<compile_context>
chip_gen: v7x
topology: tpu7x:2x2x1
jax: 0.10.0
libtpu: 0.0.40
codegen_flags: <defaults>
</compile_context>

<pallas_src>
import functools

import jax
import jax.numpy as jnp
from jax.experimental import pallas as pl
from jax.experimental.pallas import tpu as pltpu

# ----------------------------------------------------------------------------
# Module-level constants (mirroring ssd.py)
# ----------------------------------------------------------------------------
id_cat = [0, 1, 2]                       # len(id_cat) + 1 = 4 classes per box
anchor_ratios = [(1.0, 1.0), (1.0, 0.5), (0.5, 1.0)]
anchor_zooms = [0.7, 1.0, 1.3]
anchor_scales = [(z * h, z * w) for z in anchor_zooms for h, w in anchor_ratios]
NUM_BOXES = len(anchor_scales)           # 9
P_DROP = [0.2, 0.5]                      # Dropout2d probs -> identity in eval mode
BN_EPS = 1e-5
STD_STRIDES = (1, 1, 2, 2, 2)            # StandardConv strides in the module

TILE_TARGET_ROWS = 1024                  # flattened output rows per grid step
VMEM_STEP_BUDGET = 24 * 1024 * 1024      # per-grid-step working-set cap (bytes)

_VMEM_LIMIT_CACHE = []


def _vmem_limit_bytes():
    """Chip-aware scoped-VMEM cap: ~96 MiB on v5e/v6e (128 MiB), 48 MiB on v7x."""
    if not _VMEM_LIMIT_CACHE:
        try:
            cap = int(pltpu.get_tpu_info().vmem_capacity_bytes)
            _VMEM_LIMIT_CACHE.append(min(cap * 3 // 4, 96 * 1024 * 1024))
        except Exception:
            _VMEM_LIMIT_CACHE.append(48 * 1024 * 1024)
    return _VMEM_LIMIT_CACHE[0]


# ----------------------------------------------------------------------------
# Pallas kernel: fused 3x3 conv (in-kernel im2col) + BN affine (+ ReLU)
# ----------------------------------------------------------------------------
def _conv3x3_kernel(x_ref, w_ref, scale_ref, bias_ref, o_ref, slab_ref, *,
                    slabs, taps, th, wo, cin, relu, gate_slab):
    # x_ref:     (1, P, th+halo, wo+halo, cin)  bf16 activation tile (P phases)
    # w_ref:     (9*cin, tn)                    bf16 weights for this cout tile
    # scale_ref: (1, tn) f32   bias_ref: (1, tn) f32   (fused BN / conv bias)
    # o_ref:     (1, th*wo, tn)                 lane-dense output rows
    # slab_ref:  (n_slabs, th+halo, wo, cin)    VMEM scratch, dw-pre-shifted
    def _fill_slabs():
        # Pre-shift each distinct (phase, dw) once so the per-tap LHS below is
        # a contiguous leading-dim slice (no per-tap relayout copy).
        for s, (p, dw) in enumerate(slabs):
            slab_ref[s] = x_ref[0, p, :, dw:dw + wo, :]

    if gate_slab:
        pl.when(pl.program_id(2) == 0)(_fill_slabs)   # rebuilt only at cout tile 0
    else:
        _fill_slabs()

    tn = o_ref.shape[-1]
    acc = jnp.zeros((th * wo, tn), jnp.float32)
    for t, (s, dh) in enumerate(taps):                # 9 taps, uninterrupted chain
        lhs = slab_ref[s, dh:dh + th].reshape(th * wo, cin)
        rhs = w_ref[t * cin:(t + 1) * cin, :]
        acc = acc + jnp.dot(lhs, rhs, preferred_element_type=jnp.float32)

    y = acc * scale_ref[...] + bias_ref[...]          # f32 epilogue (v5e-safe)
    if relu:
        y = jnp.maximum(y, 0.0)
    o_ref[0] = y.astype(o_ref.dtype)


def _pick_tile_rows(ho, wo, vmem_fn):
    """Row-tile height: big (amortize per-step overhead) but VMEM-bounded and
    (th*wo) 16/8-aligned so output stores stay unmasked."""
    divisors = [d for d in range(1, ho + 1) if ho % d == 0]
    target = max(1, TILE_TARGET_ROWS // max(wo, 1))
    for align in (16, 8):
        good = [d for d in divisors
                if (d == ho or (d * wo) % align == 0)
                and vmem_fn(d) <= VMEM_STEP_BUDGET]
        if good:
            under = [d for d in good if d <= target]
            return max(under) if under else min(good)
    return ho


def conv3x3_fused(x_nhwc, w, scale, bias, *, stride=1, relu=True,
                  out_dtype=jnp.bfloat16):
    """3x3 conv (pad=1, stride 1|2) + per-channel affine (+ReLU) in one kernel.

    Returns (out, ho, wo) with out of shape (N, ho*wo, cout).
    """
    n, h, wd, cin = x_nhwc.shape
    cout = w.shape[-1]
    cout_p = -(-cout // 128) * 128               # lane-dense padded channels
    tn = 256 if cout_p % 256 == 0 else 128       # cout tile (256-wide MXU on v6e/v7x)
    n_ct = cout_p // tn

    xb = x_nhwc.astype(jnp.bfloat16)

    if stride == 1:
        ho, wo = h, wd
        halo = 2
        xp = jnp.pad(xb, ((0, 0), (1, 1), (1, 1), (0, 0)))
        phases = xp[:, None]                     # (N, 1, H+2, W+2, C)
        raw_taps = [(0, kh, kw) for kh in range(3) for kw in range(3)]
    elif stride == 2:
        ho = (h - 1) // 2 + 1
        wo = (wd - 1) // 2 + 1
        halo = 1
        # single fused pad to the final even extent, then one reshape/transpose
        # 4-phase space-to-depth: stride-2 conv becomes unit-stride taps.
        hp, wp = 2 * (ho + 1), 2 * (wo + 1)
        xp = jnp.pad(xb, ((0, 0), (1, hp - h - 1), (1, wp - wd - 1), (0, 0)))
        phases = xp.reshape(n, ho + 1, 2, wo + 1, 2, cin)
        phases = phases.transpose(0, 2, 4, 1, 3, 5).reshape(n, 4, ho + 1, wo + 1, cin)
        raw_taps = [(2 * (kh % 2) + (kw % 2), kh // 2, kw // 2)
                    for kh in range(3) for kw in range(3)]
    else:
        raise ValueError("stride must be 1 or 2")

    npha = phases.shape[1]
    win = wo + halo
    assert phases.shape[2] == ho + halo and phases.shape[3] == win

    # unique (phase, dw) slabs; each of the 9 taps references (slab_idx, dh)
    slabs, taps, slab_ix = [], [], {}
    for p, dh, dw in raw_taps:
        key = (p, dw)
        if key not in slab_ix:
            slab_ix[key] = len(slabs)
            slabs.append(key)
        taps.append((slab_ix[key], dh))
    n_slabs = len(slabs)

    out_bytes = jnp.dtype(out_dtype).itemsize

    def vmem_fn(th):
        return (2 * npha * (th + halo) * win * cin * 2     # input tile, 2 buffers
                + n_slabs * (th + halo) * wo * cin * 2     # dw-shift scratch
                + 2 * 9 * cin * tn * 2                     # weight tile, 2 buffers
                + 2 * th * wo * tn * out_bytes             # output tile, 2 buffers
                + th * wo * tn * 4)                        # f32 accumulator

    th = _pick_tile_rows(ho, wo, vmem_fn)
    nt = ho // th

    if nt == 1:
        xt = phases[:, None]                     # no copy
    else:
        # haloed overlapping row windows (stacked copy; duplication = halo/th)
        xt = jnp.stack([phases[:, :, t * th:t * th + th + halo]
                        for t in range(nt)], axis=1)
    xt = xt.reshape(n * nt, npha, th + halo, win, cin)

    w2 = w.reshape(9 * cin, cout)
    scale2 = scale.reshape(cout)
    bias2 = bias.reshape(cout)
    if cout_p != cout:
        w2 = jnp.pad(w2, ((0, 0), (0, cout_p - cout)))
        scale2 = jnp.pad(scale2, (0, cout_p - cout))
        bias2 = jnp.pad(bias2, (0, cout_p - cout))
    w2 = w2.astype(jnp.bfloat16)
    scale2 = scale2.reshape(1, cout_p).astype(jnp.float32)
    bias2 = bias2.reshape(1, cout_p).astype(jnp.float32)

    kernel = functools.partial(
        _conv3x3_kernel, slabs=tuple(slabs), taps=tuple(taps), th=th, wo=wo,
        cin=cin, relu=relu, gate_slab=(n_ct > 1))

    flops = 2 * n * ho * wo * 9 * cin * cout_p
    bytes_accessed = (xt.size * 2
                      + (n * nt if n_ct > 1 else 1) * w2.size * 2
                      + 2 * cout_p * 4
                      + n * ho * wo * cout_p * out_bytes)

    out = pl.pallas_call(
        kernel,
        out_shape=jax.ShapeDtypeStruct((n, ho * wo, cout_p), out_dtype),
        grid=(n, nt, n_ct),
        in_specs=[
            pl.BlockSpec((1, npha, th + halo, win, cin),
                         lambda i, t, c: (i * nt + t, 0, 0, 0, 0)),
            pl.BlockSpec((9 * cin, tn), lambda i, t, c: (0, c)),
            pl.BlockSpec((1, tn), lambda i, t, c: (0, c)),
            pl.BlockSpec((1, tn), lambda i, t, c: (0, c)),
        ],
        out_specs=pl.BlockSpec((1, th * wo, tn), lambda i, t, c: (i, t, c)),
        scratch_shapes=[pltpu.VMEM((n_slabs, th + halo, wo, cin), jnp.bfloat16)],
        compiler_params=pltpu.CompilerParams(
            dimension_semantics=("parallel", "parallel", "arbitrary"),
            vmem_limit_bytes=_vmem_limit_bytes()),
        cost_estimate=pl.CostEstimate(flops=int(flops), transcendentals=0,
                                      bytes_accessed=int(bytes_accessed)),
    )(xt, w2, scale2, bias2)

    if cout_p != cout:
        out = out[..., :cout]
    return out, ho, wo


# ----------------------------------------------------------------------------
# Deterministic parameter construction
# ----------------------------------------------------------------------------
def _make_conv_bn(key, cin, cout):
    k1, k2, k3, k4, k5 = jax.random.split(key, 5)
    w = jax.random.normal(k1, (3, 3, cin, cout), jnp.float32) * (2.0 / (9 * cin)) ** 0.5
    gamma = 1.0 + 0.1 * jax.random.normal(k2, (cout,), jnp.float32)
    beta = 0.1 * jax.random.normal(k3, (cout,), jnp.float32)
    mean = 0.1 * jax.random.normal(k4, (cout,), jnp.float32)
    var = jnp.abs(jax.random.normal(k5, (cout,), jnp.float32)) + 0.5
    scale = gamma / jnp.sqrt(var + BN_EPS)          # eval-mode BN folded to affine
    bias = beta - mean * scale
    return dict(w=w, scale=scale, bias=bias)


def _make_conv_bias(key, cin, cout):
    k1, k2 = jax.random.split(key)
    w = jax.random.normal(k1, (3, 3, cin, cout), jnp.float32) * (1.0 / (9 * cin)) ** 0.5
    b = 0.01 * jax.random.normal(k2, (cout,), jnp.float32)
    return dict(w=w, scale=jnp.ones((cout,), jnp.float32), bias=b)


def _make_output_conv(key, cin):
    # OutputConv.conv_1 (classes) + conv_2 (boxes) fused along Cout so both
    # heads share one kernel call / one set of activation DMAs.
    n_cls = (len(id_cat) + 1) * NUM_BOXES
    n_bb = 4 * NUM_BOXES
    k1, k2 = jax.random.split(key)
    cls = _make_conv_bias(k1, cin, n_cls)
    bb = _make_conv_bias(k2, cin, n_bb)
    return dict(w=jnp.concatenate([cls["w"], bb["w"]], axis=-1),
                scale=jnp.concatenate([cls["scale"], bb["scale"]]),
                bias=jnp.concatenate([cls["bias"], bb["bias"]]))


def init_params(key):
    keys = iter(jax.random.split(key, 32))
    # TODO(synk): pretrained ResNet-34 backbone replaced by a deterministic
    # stride-32 conv/BN/ReLU stack producing the same (N, 512, H/32, W/32) map
    # (loading imagenet checkpoints is not possible in this self-contained script).
    backbone_ch = [3, 64, 128, 256, 512, 512]
    backbone = [_make_conv_bn(next(keys), backbone_ch[i], backbone_ch[i + 1])
                for i in range(5)]
    std_cfg = [(512, 256), (256, 256), (256, 256), (256, 256), (256, 256)]
    std = [_make_conv_bn(next(keys), cin, cout) for cin, cout in std_cfg]
    out = [_make_output_conv(next(keys), 256) for _ in range(4)]
    return dict(backbone=backbone, std=std, out=out)


# ----------------------------------------------------------------------------
# Forward pass (eval semantics: Dropout2d = identity, BatchNorm = running stats)
# ----------------------------------------------------------------------------
def _conv_bn_relu_xla(x_nhwc, lp, stride):
    # First backbone conv (Cin=3 -> K=27) stays in plain XLA: MXU lane
    # utilisation of a Pallas matmul would be <27/128 here.
    y = jax.lax.conv_general_dilated(
        x_nhwc, lp["w"], (stride, stride), ((1, 1), (1, 1)),
        dimension_numbers=("NHWC", "HWIO", "NHWC"))
    y = y * lp["scale"].reshape(1, 1, 1, -1) + lp["bias"].reshape(1, 1, 1, -1)
    return jnp.maximum(y, 0.0)


def _output_conv(x_nhwc, head):
    n = x_nhwc.shape[0]
    out, _, _ = conv3x3_fused(x_nhwc, head["w"], head["scale"], head["bias"],
                              stride=1, relu=False, out_dtype=jnp.float32)
    n_cls = (len(id_cat) + 1) * NUM_BOXES
    cls_out = out[..., :n_cls]
    bb_out = out[..., n_cls:n_cls + 4 * NUM_BOXES]
    # flatten_conv: NHWC-contiguous (N, H*W, C) -> (N, H*W*num_boxes, C/num_boxes)
    cls_out = cls_out.reshape(n, -1, n_cls // NUM_BOXES)
    bb_out = bb_out.reshape(n, -1, 4)
    return cls_out, bb_out


def model_forward(params, x_nchw):
    n = x_nchw.shape[0]
    x = jnp.transpose(x_nchw, (0, 2, 3, 1)).astype(jnp.float32)   # NCHW -> NHWC

    # synthetic backbone stand-in (stride 32 total, 512 channels)
    x = _conv_bn_relu_xla(x, params["backbone"][0], stride=2)
    x = x.astype(jnp.bfloat16)
    for lp in params["backbone"][1:]:
        y, ho, wo = conv3x3_fused(x, lp["w"], lp["scale"], lp["bias"],
                                  stride=2, relu=True, out_dtype=jnp.bfloat16)
        x = y.reshape(n, ho, wo, -1)
    # backbone_dropout (p=0.2) and StandardConv Dropout2d (p=0.5): identity in eval.

    cls_outs, bb_outs = [], []
    for i, (lp, s) in enumerate(zip(params["std"], STD_STRIDES)):
        y, ho, wo = conv3x3_fused(x, lp["w"], lp["scale"], lp["bias"],
                                  stride=s, relu=True, out_dtype=jnp.bfloat16)
        x = y.reshape(n, ho, wo, -1)
        if i >= 1:                                   # out_conv[i-1] follows std_conv[i]
            c, b = _output_conv(x, params["out"][i - 1])
            cls_outs.append(c)
            bb_outs.append(b)

    return [jnp.concatenate(cls_outs, axis=1), jnp.concatenate(bb_outs, axis=1)]


# ----------------------------------------------------------------------------
# Self-check: Pallas conv vs. XLA reference (exercises stride 1 & 2, nt>1 row
# tiling, 128-lane Cout padding and the n_ct>1 cout-tiling path)
# ----------------------------------------------------------------------------
def _conv_reference_xla(x, w, scale, bias, stride, relu):
    xb = x.astype(jnp.bfloat16).astype(jnp.float32)     # same operand rounding
    wb = w.astype(jnp.bfloat16).astype(jnp.float32)
    y = jax.lax.conv_general_dilated(
        xb, wb, (stride, stride), ((1, 1), (1, 1)),
        dimension_numbers=("NHWC", "HWIO", "NHWC"),
        precision=jax.lax.Precision.HIGHEST)
    y = y * scale.reshape(1, 1, 1, -1) + bias.reshape(1, 1, 1, -1)
    if relu:
        y = jnp.maximum(y, 0.0)
    return y


def _check_conv(key, *, n, h, w_sp, cin, cout, stride, relu):
    k1, k2, k3, k4 = jax.random.split(key, 4)
    x = jax.random.normal(k1, (n, h, w_sp, cin), jnp.float32)
    w = jax.random.normal(k2, (3, 3, cin, cout), jnp.float32) * (1.0 / (9 * cin)) ** 0.5
    scale = 1.0 + 0.1 * jax.random.normal(k3, (cout,), jnp.float32)
    bias = 0.1 * jax.random.normal(k4, (cout,), jnp.float32)

    got, ho, wo = conv3x3_fused(x, w, scale, bias, stride=stride, relu=relu,
                                out_dtype=jnp.float32)
    got = got.reshape(n, ho, wo, cout)
    ref = _conv_reference_xla(x, w, scale, bias, stride, relu)
    err = float(jnp.max(jnp.abs(got - ref)) / (jnp.max(jnp.abs(ref)) + 1e-6))
    assert err < 2e-2, f"conv3x3_fused mismatch: stride={stride} rel_err={err:.3e}"


# ----------------------------------------------------------------------------
if __name__ == "__main__":
    key = jax.random.PRNGKey(0)
    pkey, xkey, ckey = jax.random.split(key, 3)

    # numerical checks against XLA conv:
    #   0) lane padding (cout 72 -> 128), stride 1, nt == 1
    #   1) stride 2 with multiple row tiles (nt > 1) exercising the halo windows
    #   2) cout tiling (cout_p 512 -> 2 tiles of 256) with the slab gate
    _check_conv(jax.random.fold_in(ckey, 0), n=2, h=32, w_sp=32, cin=64,
                cout=72, stride=1, relu=False)
    _check_conv(jax.random.fold_in(ckey, 1), n=1, h=128, w_sp=128, cin=64,
                cout=128, stride=2, relu=True)
    _check_conv(jax.random.fold_in(ckey, 2), n=1, h=16, w_sp=16, cin=128,
                cout=512, stride=1, relu=True)

    params = init_params(pkey)
    # small input consistent with the module: N=2, RGB, 64x64 -> backbone map 2x2
    x = jax.random.normal(xkey, (2, 3, 64, 64), jnp.float32)

    fwd = jax.jit(model_forward)
    cls_out, bb_out = fwd(params, x)
    jax.block_until_ready((cls_out, bb_out))

    # grids: 2x2, 1x1, 1x1, 1x1 -> (4+1+1+1)*9 = 63 anchors
    assert cls_out.shape == (2, 63, len(id_cat) + 1), cls_out.shape
    assert bb_out.shape == (2, 63, 4), bb_out.shape
    assert bool(jnp.all(jnp.isfinite(cls_out))) and bool(jnp.all(jnp.isfinite(bb_out)))
    print("KERNEL_OK")
</pallas_src>

<mosaic_0001>
module attributes {stable_mosaic.version = 11 : i64} {
  func.func @_conv3x3_kernel(%arg0: i32, %arg1: i32, %arg2: i32, %arg3: memref<1x1x34x34x64xbf16, #tpu.memory_space<vmem>>, %arg4: memref<576x128xbf16, #tpu.memory_space<vmem>>, %arg5: memref<1x128xf32, #tpu.memory_space<vmem>>, %arg6: memref<1x128xf32, #tpu.memory_space<vmem>>, %arg7: memref<1x1024x128xf32, #tpu.memory_space<vmem>>, %arg8: memref<3x34x32x64xbf16, #tpu.memory_space<vmem>>) attributes {dimension_semantics = [#tpu.dimension_semantics<parallel>, #tpu.dimension_semantics<parallel>, #tpu.dimension_semantics<arbitrary>], iteration_bounds = array<i64: 2, 1, 1>, scalar_prefetch = 0 : i64, scratch_operands = 1 : i64, tpu.core_type = #tpu.core_type<tc>, window_params = [{transform_indices = @transform_0, window_bounds = array<i64: 1, 1, 34, 34, 64>}, {transform_indices = @transform_1, window_bounds = array<i64: 576, 128>}, {transform_indices = @transform_2, window_bounds = array<i64: 1, 128>}, {transform_indices = @transform_3, window_bounds = array<i64: 1, 128>}, {transform_indices = @transform_4, window_bounds = array<i64: 1, 1024, 128>}]} {
    %c0 = arith.constant 0 : index
    %c0_0 = arith.constant 0 : index
    %c0_1 = arith.constant 0 : index
    %c0_2 = arith.constant 0 : index
    %c0_3 = arith.constant 0 : index
    %0 = vector.load %arg3[%c0, %c0_0, %c0_1, %c0_2, %c0_3] : memref<1x1x34x34x64xbf16, #tpu.memory_space<vmem>>, vector<1x1x34x32x64xbf16>
    %1 = vector.shape_cast %0 : vector<1x1x34x32x64xbf16> to vector<34x32x64xbf16>
    %c0_4 = arith.constant 0 : index
    %c0_5 = arith.constant 0 : index
    %c0_6 = arith.constant 0 : index
    %c0_7 = arith.constant 0 : index
    %2 = vector.load %arg8[%c0_4, %c0_5, %c0_6, %c0_7] : memref<3x34x32x64xbf16, #tpu.memory_space<vmem>>, vector<1x34x32x64xbf16>
    %3 = vector.shape_cast %2 : vector<1x34x32x64xbf16> to vector<34x32x64xbf16>
    %4 = vector.shape_cast %1 : vector<34x32x64xbf16> to vector<1x34x32x64xbf16>
    tpu.vector_store %arg8[%c0_4, %c0_5, %c0_6, %c0_7], %4 {strides = array<i32>} : memref<3x34x32x64xbf16, #tpu.memory_space<vmem>>, vector<1x34x32x64xbf16>,
    %c0_8 = arith.constant 0 : index
    %c0_9 = arith.constant 0 : index
    %c0_10 = arith.constant 0 : index
    %c1 = arith.constant 1 : index
    %c0_11 = arith.constant 0 : index
    %5 = vector.load %arg3[%c0_8, %c0_9, %c0_10, %c1, %c0_11] : memref<1x1x34x34x64xbf16, #tpu.memory_space<vmem>>, vector<1x1x34x32x64xbf16>
    %6 = vector.shape_cast %5 : vector<1x1x34x32x64xbf16> to vector<34x32x64xbf16>
    %c1_12 = arith.constant 1 : index
    %c0_13 = arith.constant 0 : index
    %c0_14 = arith.constant 0 : index
    %c0_15 = arith.constant 0 : index
    %7 = vector.load %arg8[%c1_12, %c0_13, %c0_14, %c0_15] : memref<3x34x32x64xbf16, #tpu.memory_space<vmem>>, vector<1x34x32x64xbf16>
    %8 = vector.shape_cast %7 : vector<1x34x32x64xbf16> to vector<34x32x64xbf16>
    %9 = vector.shape_cast %6 : vector<34x32x64xbf16> to vector<1x34x32x64xbf16>
    tpu.vector_store %arg8[%c1_12, %c0_13, %c0_14, %c0_15], %9 {strides = array<i32>} : memref<3x34x32x64xbf16, #tpu.memory_space<vmem>>, vector<1x34x32x64xbf16>,
    %c0_16 = arith.constant 0 : index
    %c0_17 = arith.constant 0 : index
    %c0_18 = arith.constant 0 : index
    %c2 = arith.constant 2 : index
    %c0_19 = arith.constant 0 : index
    %10 = vector.load %arg3[%c0_16, %c0_17, %c0_18, %c2, %c0_19] : memref<1x1x34x34x64xbf16, #tpu.memory_space<vmem>>, vector<1x1x34x32x64xbf16>
    %11 = vector.shape_cast %10 : vector<1x1x34x32x64xbf16> to vector<34x32x64xbf16>
    %c2_20 = arith.constant 2 : index
    %c0_21 = arith.constant 0 : index
    %c0_22 = arith.constant 0 : index
    %c0_23 = arith.constant 0 : index
    %12 = vector.load %arg8[%c2_20, %c0_21, %c0_22, %c0_23] : memref<3x34x32x64xbf16, #tpu.memory_space<vmem>>, vector<1x34x32x64xbf16>
    %13 = vector.shape_cast %12 : vector<1x34x32x64xbf16> to vector<34x32x64xbf16>
    %14 = vector.shape_cast %11 : vector<34x32x64xbf16> to vector<1x34x32x64xbf16>
    tpu.vector_store %arg8[%c2_20, %c0_21, %c0_22, %c0_23], %14 {strides = array<i32>} : memref<3x34x32x64xbf16, #tpu.memory_space<vmem>>, vector<1x34x32x64xbf16>,
    %cst = arith.constant 0.000000e+00 : f32
    %15 = vector.broadcast %cst : f32 to vector<1024x128xf32>
    %c0_24 = arith.constant 0 : index
    %c0_25 = arith.constant 0 : index
    %c0_26 = arith.constant 0 : index
    %c0_27 = arith.constant 0 : index
    %16 = vector.load %arg8[%c0_24, %c0_25, %c0_26, %c0_27] : memref<3x34x32x64xbf16, #tpu.memory_space<vmem>>, vector<1x32x32x64xbf16>
    %17 = vector.shape_cast %16 : vector<1x32x32x64xbf16> to vector<32x32x64xbf16>
    %18 = vector.shape_cast %17 : vector<32x32x64xbf16> to vector<1024x64xbf16>
    %c0_28 = arith.constant 0 : index
    %c0_29 = arith.constant 0 : index
    %19 = vector.load %arg4[%c0_28, %c0_29] : memref<576x128xbf16, #tpu.memory_space<vmem>>, vector<64x128xbf16>
    %cst_30 = arith.constant dense<0.000000e+00> : vector<1024x128xf32>
    %20 = tpu.matmul %18, %19, %cst_30 {dimension_numbers = #tpu.dot_dimension_numbers<[1], [0], [0], [1], [0, 0, 1, 1], [], []>} : vector<1024x64xbf16>, vector<64x128xbf16>, vector<1024x128xf32> -> vector<1024x128xf32>
    %21 = arith.addf %15, %20 : vector<1024x128xf32>
    %c1_31 = arith.constant 1 : index
    %c0_32 = arith.constant 0 : index
    %c0_33 = arith.constant 0 : index
    %c0_34 = arith.constant 0 : index
    %22 = vector.load %arg8[%c1_31, %c0_32, %c0_33, %c0_34] : memref<3x34x32x64xbf16, #tpu.memory_space<vmem>>, vector<1x32x32x64xbf16>
    %23 = vector.shape_cast %22 : vector<1x32x32x64xbf16> to vector<32x32x64xbf16>
    %24 = vector.shape_cast %23 : vector<32x32x64xbf16> to vector<1024x64xbf16>
    %c64 = arith.constant 64 : index
    %c0_35 = arith.constant 0 : index
    %25 = vector.load %arg4[%c64, %c0_35] : memref<576x128xbf16, #tpu.memory_space<vmem>>, vector<64x128xbf16>
    %cst_36 = arith.constant dense<0.000000e+00> : vector<1024x128xf32>
    %26 = tpu.matmul %24, %25, %cst_36 {dimension_numbers = #tpu.dot_dimension_numbers<[1], [0], [0], [1], [0, 0, 1, 1], [], []>} : vector<1024x64xbf16>, vector<64x128xbf16>, vector<1024x128xf32> -> vector<1024x128xf32>
    %27 = arith.addf %21, %26 : vector<1024x128xf32>
    %c2_37 = arith.constant 2 : index
    %c0_38 = arith.constant 0 : index
    %c0_39 = arith.constant 0 : index
    %c0_40 = arith.constant 0 : index
    %28 = vector.load %arg8[%c2_37, %c0_38, %c0_39, %c0_40] : memref<3x34x32x64xbf16, #tpu.memory_space<vmem>>, vector<1x32x32x64xbf16>
    %29 = vector.shape_cast %28 : vector<1x32x32x64xbf16> to vector<32x32x64xbf16>
    %30 = vector.shape_cast %29 : vector<32x32x64xbf16> to vector<1024x64xbf16>
    %c128 = arith.constant 128 : index
    %c0_41 = arith.constant 0 : index
    %31 = vector.load %arg4[%c128, %c0_41] : memref<576x128xbf16, #tpu.memory_space<vmem>>, vector<64x128xbf16>
    %cst_42 = arith.constant dense<0.000000e+00> : vector<1024x128xf32>
    %32 = tpu.matmul %30, %31, %cst_42 {dimension_numbers = #tpu.dot_dimension_numbers<[1], [0], [0], [1], [0, 0, 1, 1], [], []>} : vector<1024x64xbf16>, vector<64x128xbf16>, vector<1024x128xf32> -> vector<1024x128xf32>
    %33 = arith.addf %27, %32 : vector<1024x128xf32>
    %c0_43 = arith.constant 0 : index
    %c1_44 = arith.constant 1 : index
    %c0_45 = arith.constant 0 : index
    %c0_46 = arith.constant 0 : index
    %34 = vector.load %arg8[%c0_43, %c1_44, %c0_45, %c0_46] : memref<3x34x32x64xbf16, #tpu.memory_space<vmem>>, vector<1x32x32x64xbf16>
    %35 = vector.shape_cast %34 : vector<1x32x32x64xbf16> to vector<32x32x64xbf16>
    %36 = vector.shape_cast %35 : vector<32x32x64xbf16> to vector<1024x64xbf16>
    %c192 = arith.constant 192 : index
    %c0_47 = arith.constant 0 : index
    %37 = vector.load %arg4[%c192, %c0_47] : memref<576x128xbf16, #tpu.memory_space<vmem>>, vector<64x128xbf16>
    %cst_48 = arith.constant dense<0.000000e+00> : vector<1024x128xf32>
    %38 = tpu.matmul %36, %37, %cst_48 {dimension_numbers = #tpu.dot_dimension_numbers<[1], [0], [0], [1], [0, 0, 1, 1], [], []>} : vector<1024x64xbf16>, vector<64x128xbf16>, vector<1024x128xf32> -> vector<1024x128xf32>
    %39 = arith.addf %33, %38 : vector<1024x128xf32>
    %c1_49 = arith.constant 1 : index
    %c1_50 = arith.constant 1 : index
    %c0_51 = arith.constant 0 : index
    %c0_52 = arith.constant 0 : index
    %40 = vector.load %arg8[%c1_49, %c1_50, %c0_51, %c0_52] : memref<3x34x32x64xbf16, #tpu.memory_space<vmem>>, vector<1x32x32x64xbf16>
    %41 = vector.shape_cast %40 : vector<1x32x32x64xbf16> to vector<32x32x64xbf16>
    %42 = vector.shape_cast %41 : vector<32x32x64xbf16> to vector<1024x64xbf16>
    %c256 = arith.constant 256 : index
    %c0_53 = arith.constant 0 : index
    %43 = vector.load %arg4[%c256, %c0_53] : memref<576x128xbf16, #tpu.memory_space<vmem>>, vector<64x128xbf16>
    %cst_54 = arith.constant dense<0.000000e+00> : vector<1024x128xf32>
    %44 = tpu.matmul %42, %43, %cst_54 {dimension_numbers = #tpu.dot_dimension_numbers<[1], [0], [0], [1], [0, 0, 1, 1], [], []>} : vector<1024x64xbf16>, vector<64x128xbf16>, vector<1024x128xf32> -> vector<1024x128xf32>
    %45 = arith.addf %39, %44 : vector<1024x128xf32>
    %c2_55 = arith.constant 2 : index
    %c1_56 = arith.constant 1 : index
    %c0_57 = arith.constant 0 : index
    %c0_58 = arith.constant 0 : index
    %46 = vector.load %arg8[%c2_55, %c1_56, %c0_57, %c0_58] : memref<3x34x32x64xbf16, #tpu.memory_space<vmem>>, vector<1x32x32x64xbf16>
    %47 = vector.shape_cast %46 : vector<1x32x32x64xbf16> to vector<32x32x64xbf16>
    %48 = vector.shape_cast %47 : vector<32x32x64xbf16> to vector<1024x64xbf16>
    %c320 = arith.constant 320 : index
    %c0_59 = arith.constant 0 : index
    %49 = vector.load %arg4[%c320, %c0_59] : memref<576x128xbf16, #tpu.memory_space<vmem>>, vector<64x128xbf16>
    %cst_60 = arith.constant dense<0.000000e+00> : vector<1024x128xf32>
    %50 = tpu.matmul %48, %49, %cst_60 {dimension_numbers = #tpu.dot_dimension_numbers<[1], [0], [0], [1], [0, 0, 1, 1], [], []>} : vector<1024x64xbf16>, vector<64x128xbf16>, vector<1024x128xf32> -> vector<1024x128xf32>
    %51 = arith.addf %45, %50 : vector<1024x128xf32>
    %c0_61 = arith.constant 0 : index
    %c2_62 = arith.constant 2 : index
    %c0_63 = arith.constant 0 : index
    %c0_64 = arith.constant 0 : index
    %52 = vector.load %arg8[%c0_61, %c2_62, %c0_63, %c0_64] : memref<3x34x32x64xbf16, #tpu.memory_space<vmem>>, vector<1x32x32x64xbf16>
    %53 = vector.shape_cast %52 : vector<1x32x32x64xbf16> to vector<32x32x64xbf16>
    %54 = vector.shape_cast %53 : vector<32x32x64xbf16> to vector<1024x64xbf16>
    %c384 = arith.constant 384 : index
    %c0_65 = arith.constant 0 : index
    %55 = vector.load %arg4[%c384, %c0_65] : memref<576x128xbf16, #tpu.memory_space<vmem>>, vector<64x128xbf16>
    %cst_66 = arith.constant dense<0.000000e+00> : vector<1024x128xf32>
    %56 = tpu.matmul %54, %55, %cst_66 {dimension_numbers = #tpu.dot_dimension_numbers<[1], [0], [0], [1], [0, 0, 1, 1], [], []>} : vector<1024x64xbf16>, vector<64x128xbf16>, vector<1024x128xf32> -> vector<1024x128xf32>
    %57 = arith.addf %51, %56 : vector<1024x128xf32>
    %c1_67 = arith.constant 1 : index
    %c2_68 = arith.constant 2 : index
    %c0_69 = arith.constant 0 : index
    %c0_70 = arith.constant 0 : index
    %58 = vector.load %arg8[%c1_67, %c2_68, %c0_69, %c0_70] : memref<3x34x32x64xbf16, #tpu.memory_space<vmem>>, vector<1x32x32x64xbf16>
    %59 = vector.shape_cast %58 : vector<1x32x32x64xbf16> to vector<32x32x64xbf16>
    %60 = vector.shape_cast %59 : vector<32x32x64xbf16> to vector<1024x64xbf16>
    %c448 = arith.constant 448 : index
    %c0_71 = arith.constant 0 : index
    %61 = vector.load %arg4[%c448, %c0_71] : memref<576x128xbf16, #tpu.memory_space<vmem>>, vector<64x128xbf16>
    %cst_72 = arith.constant dense<0.000000e+00> : vector<1024x128xf32>
    %62 = tpu.matmul %60, %61, %cst_72 {dimension_numbers = #tpu.dot_dimension_numbers<[1], [0], [0], [1], [0, 0, 1, 1], [], []>} : vector<1024x64xbf16>, vector<64x128xbf16>, vector<1024x128xf32> -> vector<1024x128xf32>
    %63 = arith.addf %57, %62 : vector<1024x128xf32>
    %c2_73 = arith.constant 2 : index
    %c2_74 = arith.constant 2 : index
    %c0_75 = arith.constant 0 : index
    %c0_76 = arith.constant 0 : index
    %64 = vector.load %arg8[%c2_73, %c2_74, %c0_75, %c0_76] : memref<3x34x32x64xbf16, #tpu.memory_space<vmem>>, vector<1x32x32x64xbf16>
    %65 = vector.shape_cast %64 : vector<1x32x32x64xbf16> to vector<32x32x64xbf16>
    %66 = vector.shape_cast %65 : vector<32x32x64xbf16> to vector<1024x64xbf16>
    %c512 = arith.constant 512 : index
    %c0_77 = arith.constant 0 : index
    %67 = vector.load %arg4[%c512, %c0_77] : memref<576x128xbf16, #tpu.memory_space<vmem>>, vector<64x128xbf16>
    %cst_78 = arith.constant dense<0.000000e+00> : vector<1024x128xf32>
    %68 = tpu.matmul %66, %67, %cst_78 {dimension_numbers = #tpu.dot_dimension_numbers<[1], [0], [0], [1], [0, 0, 1, 1], [], []>} : vector<1024x64xbf16>, vector<64x128xbf16>, vector<1024x128xf32> -> vector<1024x128xf32>
    %69 = arith.addf %63, %68 : vector<1024x128xf32>
    %c0_79 = arith.constant 0 : index
    %c0_80 = arith.constant 0 : index
    %70 = vector.load %arg5[%c0_79, %c0_80] : memref<1x128xf32, #tpu.memory_space<vmem>>, vector<1x128xf32>
    %71 = vector.broadcast %70 : vector<1x128xf32> to vector<1024x128xf32>
    %72 = arith.mulf %69, %71 : vector<1024x128xf32>
    %c0_81 = arith.constant 0 : index
    %c0_82 = arith.constant 0 : index
    %73 = vector.load %arg6[%c0_81, %c0_82] : memref<1x128xf32, #tpu.memory_space<vmem>>, vector<1x128xf32>
    %74 = vector.broadcast %73 : vector<1x128xf32> to vector<1024x128xf32>
    %75 = arith.addf %72, %74 : vector<1024x128xf32>
    %c0_83 = arith.constant 0 : index
    %c0_84 = arith.constant 0 : index
    %c0_85 = arith.constant 0 : index
    %76 = vector.load %arg7[%c0_83, %c0_84, %c0_85] : memref<1x1024x128xf32, #tpu.memory_space<vmem>>, vector<1x1024x128xf32>
    %77 = vector.shape_cast %76 : vector<1x1024x128xf32> to vector<1024x128xf32>
    %78 = vector.shape_cast %75 : vector<1024x128xf32> to vector<1x1024x128xf32>
    tpu.vector_store %arg7[%c0_83, %c0_84, %c0_85], %78 {strides = array<i32>} : memref<1x1024x128xf32, #tpu.memory_space<vmem>>, vector<1x1024x128xf32>,
    return
  }
  func.func @transform_0(%arg0: i32, %arg1: i32, %arg2: i32) -> (i32, i32, i32, i32, i32) {
    %c1_i32 = arith.constant 1 : i32
    %0 = arith.muli %arg0, %c1_i32 : i32
    %1 = arith.addi %0, %arg1 : i32
    %c0_i32 = arith.constant 0 : i32
    %c0_i32_0 = arith.constant 0 : i32
    %c0_i32_1 = arith.constant 0 : i32
    %c0_i32_2 = arith.constant 0 : i32
    %c0_i32_3 = arith.constant 0 : i32
    return %1, %c0_i32, %c0_i32_0, %c0_i32_1, %c0_i32_2 : i32, i32, i32, i32, i32
  }
  func.func @transform_1(%arg0: i32, %arg1: i32, %arg2: i32) -> (i32, i32) {
    %c0_i32 = arith.constant 0 : i32
    %c0_i32_0 = arith.constant 0 : i32
    return %c0_i32, %arg2 : i32, i32
  }
  func.func @transform_2(%arg0: i32, %arg1: i32, %arg2: i32) -> (i32, i32) {
    %c0_i32 = arith.constant 0 : i32
    %c0_i32_0 = arith.constant 0 : i32
    return %c0_i32, %arg2 : i32, i32
  }
  func.func @transform_3(%arg0: i32, %arg1: i32, %arg2: i32) -> (i32, i32) {
    %c0_i32 = arith.constant 0 : i32
    %c0_i32_0 = arith.constant 0 : i32
    return %c0_i32, %arg2 : i32, i32
  }
  func.func @transform_4(%arg0: i32, %arg1: i32, %arg2: i32) -> (i32, i32, i32) {
    %c0_i32 = arith.constant 0 : i32
    return %arg0, %arg1, %arg2 : i32, i32, i32
  }
}

</mosaic_0001>

<llo_original>
// kernel: tpu_custom_call.1
$region0: #{tpu_custom_call.1}
  #allocation0 [shape = 'u32[]', space=smem, size = 0x4, offset = 0x4, fixed_abs, tag = 'smem constant byte address 0x4 - core index']
  #allocation1 [shape = 'u32[144,128]{1,0:T(1,128)}', space=vmem, size = 0x12000, scoped, tag = 'internal scratch']
  #allocation2 [shape = 'bf16[3,34,32,64]{3,2,1,0:T(16,128)(2,1)}', space=vmem, size = 0xcc000, scoped, tag = 'scratch operand']
  %s0 = inlined_call_operand.vmem [shape: bf16[2,1,34,34,64], index: 0, kind: input, shape index: {}]
  %s1 = inlined_call_operand.vmem [shape: bf16[576,128], index: 1, kind: input, shape index: {}]
  %s2 = inlined_call_operand.vmem [shape: f32[1,128], index: 2, kind: input, shape index: {}]
  %s3 = inlined_call_operand.vmem [shape: f32[1,128], index: 3, kind: input, shape index: {}]
  %s4 = inlined_call_operand.hbm [shape: f32[2,1024,128], index: 4, kind: output, shape index: {}]
  %s5 = sld [smem:[#allocation0]]
  $region49: #{tpu_custom_call.1} parent=0
    _
  %s7 = ssub.s32 1, %s5
  %s8 = scalar_select 0, %s7, %s5
  $region1: #{tpu_custom_call.1} parent=0
    #allocation3 [shape = 'u8[1048576]{0}', space=vmem, size = 0x100000, scoped, tag = 'output window, operand 0']
    #allocation4 [shape = 's32[2]{0}', space=sflag, size = 0x8, scoped, tag = 'scoped memory for tpu_custom_call.1']
    %9 = vsyncpa [#allocation4], 0
    %s10 = scalar_lea.sflag [#allocation4], 1
    %11 = vsyncpa %s10, 0
    loop: start=0, step=1, limit=4
    $region2: #{tpu_custom_call.1} parent=1 // loop_pre_header
      _
    $region3: #{tpu_custom_call.1} parent=1 // loop_header
      %s13 = sphi 0, %s17
      %p14 = scmp.ge.s32.totalorder %s13, 4
      %s20 = sphi 0, %s39
      %s21 = sphi 0, %s35
      %s22 = sphi 0, %s31
      %s23 = sphi 0, %s20
      %s24 = sphi 0, %s21
      %s25 = sphi 0, %s22
      %s26 = sphi 0, %s23
      %s27 = sphi 0, %s24
      %s28 = sphi 0, %s25
      %s44 = sphi 0, %s46
      %s47 = sphi 0, %s44
      %s48 = sphi 0, %s47
      %s64 = sphi 0, %s48
      %s70 = sphi 0, %s72
      %s73 = sphi 0, %s70
      %s74 = sphi 0, %s73
      %s90 = sphi 0, %s74
      %s96 = sphi 0, %s98
      %s99 = sphi 0, %s96
      %s100 = sphi 0, %s99
      %s116 = sphi 0, %s100
      %s122 = sphi 0, %s124
      %s125 = sphi 0, %s122
      %s126 = sphi 0, %s125
      %s142 = sphi 0, %s126
      %s152 = sphi 0, %s154
      %s155 = sphi 0, %s152
      %s156 = sphi 0, %s155
      %s172 = sphi 0, %s156
    $region4: #{tpu_custom_call.1} parent=1 // loop_header_branch
      %16 = sbr.rel (%p14) target = $region8
    $region5: #{tpu_custom_call.1} parent=1 // loop_body
      %s18 = ssub.s32 %s13, 1
      %s19 = ssub.s32 %s13, 2
      %s29 = sadd.s32 1, %s22
      %p30 = scmp.ge.s32.totalorder %s29, 1
      %s31 = scalar_select %p30, 0, %s29
      %s32 = sadd.s32 1, %s21
      %s33 = scalar_select %p30, %s32, %s21
      %p34 = scmp.ge.s32.totalorder %s33, 1
      %s35 = scalar_select %p34, 0, %s33
      %s36 = sadd.s32 1, %s20
      %s37 = scalar_select %p34, %s36, %s20
      %p38 = scmp.ge.s32.totalorder %s37, 2
      %s39 = scalar_select %p38, 0, %s37
      %s40 = sadd.s32 %s20, %s21
      %s41 = sadd.s32 %s39, %s35
      %s42 = ssub.s32 %s40, %s41
      %p43 = scmp.eq.s32.totalorder %s42, 0
      %s45 = sadd.s32 %s44, 1
      %s46 = scalar_select %p43, %s44, %s45
      %p49 = pneg %p43
      %p50 = scmp.eq.s32.totalorder %s13, 1
      %p51 = por %p49, %p50
      %p52 = scmp.ne.s32.totalorder %s44, %s47
      %p53 = scmp.eq.s32.totalorder %s13, 0
      %p54 = por %p52, %p53
      %p55 = scmp.ne.s32.totalorder %s44, %s47
      %p56 = scmp.eq.s32.totalorder %s18, 1
      %p57 = por %p55, %p56
      %p58 = scmp.ne.s32.totalorder %s47, %s48
      %p59 = scmp.eq.s32.totalorder %s18, 0
      %p60 = por %p58, %p59
      %p61 = scmp.ne.s32.totalorder %s47, %s48
      %p62 = scmp.eq.s32.totalorder %s19, 1
      %p63 = por %p61, %p62
      %p65 = scmp.ne.s32.totalorder %s48, %s64
      %p66 = scmp.eq.s32.totalorder %s19, 0
      %p67 = por %p65, %p66
      %s68 = ssub.s32 %s22, %s31
      %p69 = scmp.eq.s32.totalorder %s68, 0
      %s71 = sadd.s32 %s70, 1
      %s72 = scalar_select %p69, %s70, %s71
      %p75 = pneg %p69
      %p76 = scmp.eq.s32.totalorder %s13, 1
      %p77 = por %p75, %p76
      %p78 = scmp.ne.s32.totalorder %s70, %s73
      %p79 = scmp.eq.s32.totalorder %s13, 0
      %p80 = por %p78, %p79
      %p81 = scmp.ne.s32.totalorder %s70, %s73
      %p82 = scmp.eq.s32.totalorder %s18, 1
      %p83 = por %p81, %p82
      %p84 = scmp.ne.s32.totalorder %s73, %s74
      %p85 = scmp.eq.s32.totalorder %s18, 0
      %p86 = por %p84, %p85
      %p87 = scmp.ne.s32.totalorder %s73, %s74
      %p88 = scmp.eq.s32.totalorder %s19, 1
      %p89 = por %p87, %p88
      %p91 = scmp.ne.s32.totalorder %s74, %s90
      %p92 = scmp.eq.s32.totalorder %s19, 0
      %p93 = por %p91, %p92
      %s94 = ssub.s32 %s22, %s31
      %p95 = scmp.eq.s32.totalorder %s94, 0
      %s97 = sadd.s32 %s96, 1
      %s98 = scalar_select %p95, %s96, %s97
      %p101 = pneg %p95
      %p102 = scmp.eq.s32.totalorder %s13, 1
      %p103 = por %p101, %p102
      %p104 = scmp.ne.s32.totalorder %s96, %s99
      %p105 = scmp.eq.s32.totalorder %s13, 0
      %p106 = por %p104, %p105
      %p107 = scmp.ne.s32.totalorder %s96, %s99
      %p108 = scmp.eq.s32.totalorder %s18, 1
      %p109 = por %p107, %p108
      %p110 = scmp.ne.s32.totalorder %s99, %s100
      %p111 = scmp.eq.s32.totalorder %s18, 0
      %p112 = por %p110, %p111
      %p113 = scmp.ne.s32.totalorder %s99, %s100
      %p114 = scmp.eq.s32.totalorder %s19, 1
      %p115 = por %p113, %p114
      %p117 = scmp.ne.s32.totalorder %s100, %s116
      %p118 = scmp.eq.s32.totalorder %s19, 0
      %p119 = por %p117, %p118
      %s120 = ssub.s32 %s22, %s31
      %p121 = scmp.eq.s32.totalorder %s120, 0
      %s123 = sadd.s32 %s122, 1
      %s124 = scalar_select %p121, %s122, %s123
      %p127 = pneg %p121
      %p128 = scmp.eq.s32.totalorder %s13, 1
      %p129 = por %p127, %p128
      %p130 = scmp.ne.s32.totalorder %s122, %s125
      %p131 = scmp.eq.s32.totalorder %s13, 0
      %p132 = por %p130, %p131
      %p133 = scmp.ne.s32.totalorder %s122, %s125
      %p134 = scmp.eq.s32.totalorder %s18, 1
      %p135 = por %p133, %p134
      %p136 = scmp.ne.s32.totalorder %s125, %s126
      %p137 = scmp.eq.s32.totalorder %s18, 0
      %p138 = por %p136, %p137
      %p139 = scmp.ne.s32.totalorder %s125, %s126
      %p140 = scmp.eq.s32.totalorder %s19, 1
      %p141 = por %p139, %p140
      %p143 = scmp.ne.s32.totalorder %s126, %s142
      %p144 = scmp.eq.s32.totalorder %s19, 0
      %p145 = por %p143, %p144
      %s146 = ssub.s32 %s20, %s39
      %s147 = ssub.s32 %s21, %s35
      %s148 = sor.u32 %s146, %s147
      %s149 = ssub.s32 %s22, %s31
      %s150 = sor.u32 %s148, %s149
      %p151 = scmp.eq.s32.totalorder %s150, 0
      %s153 = sadd.s32 %s152, 1
      %s154 = scalar_select %p151, %s152, %s153
      %p157 = pneg %p151
      %p158 = scmp.eq.s32.totalorder %s13, 1
      %p159 = por %p157, %p158
      %p160 = scmp.ne.s32.totalorder %s152, %s155
      %p161 = scmp.eq.s32.totalorder %s13, 0
      %p162 = por %p160, %p161
      %p163 = scmp.ne.s32.totalorder %s152, %s155
      %p164 = scmp.eq.s32.totalorder %s18, 1
      %p165 = por %p163, %p164
      %p166 = scmp.ne.s32.totalorder %s155, %s156
      %p167 = scmp.eq.s32.totalorder %s18, 0
      %p168 = por %p166, %p167
      %p169 = scmp.ne.s32.totalorder %s155, %s156
      %p170 = scmp.eq.s32.totalorder %s19, 1
      %p171 = por %p169, %p170
      %p173 = scmp.ne.s32.totalorder %s156, %s172
      %p174 = scmp.eq.s32.totalorder %s19, 0
      %p175 = por %p173, %p174
      %p176 = scmp.le.s32.totalorder 1, %s13
      %p177 = scmp.lt.s32.totalorder %s13, 3
      %p178 = pnand %p176, %p177
      %p179 = pneg %p178
      // Predicated region
      $region9: #{tpu_custom_call.1} parent=5 // pred_check
        _
      $region10: #{tpu_custom_call.1} parent=5 // pred_check_branch
        %181 = sbr.rel (%p178) target = $region12
      $region11: #{tpu_custom_call.1} parent=5 // pred_region
        %s182 = ssub.s32 %s13, 1
        // Predicated region
        $region13: #{tpu_custom_call.1} parent=11 // pred_check
          %p183 = pneg %p86
        $region14: #{tpu_custom_call.1} parent=11 // pred_check_branch
          %185 = sbr.rel (%p183) target = $region16
        $region15: #{tpu_custom_call.1} parent=11 // pred_region
          %p186 = scmp.lt.s32.totalorder %s25, 0
          %s187 = scalar_select %p186, %s25, 0
          %s188 = smul.addr %s187, 4
          %s189 = scalar_lea.vmem %s1, %s188
        $region16: #{tpu_custom_call.1} parent=11 // pred_fallthru
          _
        // Predicated region
        $region17: #{tpu_custom_call.1} parent=11 // pred_check
          %p190 = pneg %p112
        $region18: #{tpu_custom_call.1} parent=11 // pred_check_branch
          %192 = sbr.rel (%p190) target = $region20
        $region19: #{tpu_custom_call.1} parent=11 // pred_region
          %p193 = scmp.lt.s32.totalorder %s25, 0
          %s194 = scalar_select %p193, %s25, 0
          %s195 = scalar_lea.vmem %s2, %s194
        $region20: #{tpu_custom_call.1} parent=11 // pred_fallthru
          _
        // Predicated region
        $region21: #{tpu_custom_call.1} parent=11 // pred_check
          %p196 = pneg %p138
        $region22: #{tpu_custom_call.1} parent=11 // pred_check_branch
          %198 = sbr.rel (%p196) target = $region24
        $region23: #{tpu_custom_call.1} parent=11 // pred_region
          %p199 = scmp.lt.s32.totalorder %s25, 0
          %s200 = scalar_select %p199, %s25, 0
          %s201 = scalar_lea.vmem %s3, %s200
        $region24: #{tpu_custom_call.1} parent=11 // pred_fallthru
          _
      $region12: #{tpu_custom_call.1} parent=5 // pred_fallthru
        _
      %p202 = scmp.lt.s32.totalorder %s13, 2
      // Predicated region
      $region25: #{tpu_custom_call.1} parent=5 // pred_check
        %p203 = pneg %p202
      $region26: #{tpu_custom_call.1} parent=5 // pred_check_branch
        %205 = sbr.rel (%p203) target = $region28
      $region27: #{tpu_custom_call.1} parent=5 // pred_region
        // Predicated region
        $region29: #{tpu_custom_call.1} parent=27 // pred_check
          %p206 = pneg %p54
        $region30: #{tpu_custom_call.1} parent=27 // pred_check_branch
          %208 = sbr.rel (%p206) target = $region32
        $region31: #{tpu_custom_call.1} parent=27 // pred_region
          %s209 = sadd.s32 %s20, %s21
          %p210 = scmp.lt.s32.totalorder %s209, 1
          %s211 = scalar_select %p210, %s209, 1
          %s212 = smul.addr %s211, 170
          %s213 = smul.addr %s212, 4
          %s214 = scalar_lea.vmem %s0, %s213
          %s215 = sadd.s32 %s20, %s21
        $region32: #{tpu_custom_call.1} parent=27 // pred_fallthru
          _
      $region28: #{tpu_custom_call.1} parent=5 // pred_fallthru
        _
      %p216 = scmp.le.s32.totalorder 1, %s13
      %p217 = scmp.lt.s32.totalorder %s13, 3
      %p218 = pnand %p216, %p217
      %p219 = pneg %p218
      // Predicated region
      $region33: #{tpu_custom_call.1} parent=5 // pred_check
        _
      $region34: #{tpu_custom_call.1} parent=5 // pred_check_branch
        %221 = sbr.rel (%p218) target = $region36
      $region35: #{tpu_custom_call.1} parent=5 // pred_region
        %s222 = ssub.s32 %s13, 1
        %s223 = sadd.s32 %s23, %s24
        %p224 = scmp.lt.s32.totalorder %s223, 1
        %s225 = scalar_select %p224, %s223, 1
        %s226 = smul.addr %s225, 170
        %s227 = smul.addr %s226, 4
        %s228 = scalar_lea.vmem %s0, %s227
        %p229 = pneg %p60
        %p230 = pneg %p57
        %p231 = scmp.lt.s32.totalorder %s25, 0
        %s232 = scalar_select %p231, %s25, 0
        %s233 = smul.addr %s232, 4
        %s234 = scalar_lea.vmem %s1, %s233
        %p235 = pneg %p86
        %p236 = pneg %p83
        %p237 = scmp.lt.s32.totalorder %s25, 0
        %s238 = scalar_select %p237, %s25, 0
        %s239 = scalar_lea.vmem %s2, %s238
        %p240 = pneg %p112
        %p241 = pneg %p109
        %p242 = scmp.lt.s32.totalorder %s25, 0
        %s243 = scalar_select %p242, %s25, 0
        %s244 = scalar_lea.vmem %s3, %s243
        %p245 = pneg %p138
        %p246 = pneg %p135
        %p247 = pneg %p168
        %p248 = pneg %p165
        %s249 = sand.u32 %s155, 1
        %s250 = scalar_lea.sflag [#allocation4], %s249
        %s251 = sand.u32 %s155, 1
        %s252 = smul.addr %s251, 1024
        %s253 = scalar_lea.vmem [#allocation3], %s252
        %s254 = sadd.s32 %s23, %s24
        %p255 = scmp.lt.s32.totalorder %s254, 1
        %s256 = scalar_select %p255, %s254, 1
        %s257 = smul.addr %s256, 170
        %s258 = smul.addr %s257, 4
        %s259 = scalar_lea.vmem %s0, %s258
        %s260 = sadd.s32 %s23, %s24
        %p261 = scmp.lt.s32.totalorder %s25, 0
        %s262 = scalar_select %p261, %s25, 0
        %s263 = smul.addr %s262, 4
        %s264 = scalar_lea.vmem %s1, %s263
        %p265 = scmp.lt.s32.totalorder %s25, 0
        %s266 = scalar_select %p265, %s25, 0
        %s267 = scalar_lea.vmem %s2, %s266
        %p268 = scmp.lt.s32.totalorder %s25, 0
        %s269 = scalar_select %p268, %s25, 0
        %s270 = scalar_lea.vmem %s3, %s269
        %s271 = smul.u32 128, %s24
        %v273 = vld [vmem:[%s259] sm:$0xf]
        %v274 = vld [vmem:[%s259 + $0x4] sm:$0xf]
        %v275 = vld [vmem:[%s259 + $0x8] sm:$0xf]
        %v276 = vld [vmem:[%s259 + $0xc] sm:$0xf]
        %v277 = vld [vmem:[%s259 + $0x14] sm:$0xf]
        %v278 = vld [vmem:[%s259 + $0x18] sm:$0xf]
        %v279 = vld [vmem:[%s259 + $0x1c] sm:$0xf]
        %v280 = vld [vmem:[%s259 + $0x20] sm:$0xf]
        %v281 = vld [vmem:[%s259 + $0x28] sm:$0xf]
        %v282 = vld [vmem:[%s259 + $0x2c] sm:$0xf]
        %v283 = vld [vmem:[%s259 + $0x30] sm:$0xf]
        %v284 = vld [vmem:[%s259 + $0x34] sm:$0xf]
        %v285 = vld [vmem:[%s259 + $0x3c] sm:$0xf]
        %v286 = vld [vmem:[%s259 + $0x40] sm:$0xf]
        %v287 = vld [vmem:[%s259 + $0x44] sm:$0xf]
        %v288 = vld [vmem:[%s259 + $0x48] sm:$0xf]
        %v289 = vld [vmem:[%s259 + $0x50] sm:$0xf]
        %v290 = vld [vmem:[%s259 + $0x54] sm:$0xf]
        %v291 = vld [vmem:[%s259 + $0x58] sm:$0xf]
        %v292 = vld [vmem:[%s259 + $0x5c] sm:$0xf]
        %v293 = vld [vmem:[%s259 + $0x64] sm:$0xf]
        %v294 = vld [vmem:[%s259 + $0x68] sm:$0xf]
        %v295 = vld [vmem:[%s259 + $0x6c] sm:$0xf]
        %v296 = vld [vmem:[%s259 + $0x70] sm:$0xf]
        %v297 = vld [vmem:[%s259 + $0x78] sm:$0xf]
        %v298 = vld [vmem:[%s259 + $0x7c] sm:$0xf]
        %v299 = vld [vmem:[%s259 + $0x80] sm:$0xf]
        %v300 = vld [vmem:[%s259 + $0x84] sm:$0xf]
        %v301 = vld [vmem:[%s259 + $0x8c] sm:$0xf]
        %v302 = vld [vmem:[%s259 + $0x90] sm:$0xf]
        %v303 = vld [vmem:[%s259 + $0x94] sm:$0xf]
        %v304 = vld [vmem:[%s259 + $0x98] sm:$0xf]
        %v305 = vld [vmem:[%s259 + $0xa0] sm:$0xf]
        %v306 = vld [vmem:[%s259 + $0xa4] sm:$0xf]
        %v307 = vld [vmem:[%s259 + $0xa8] sm:$0xf]
        %v308 = vld [vmem:[%s259 + $0xac] sm:$0xf]
        %v309 = vld [vmem:[%s259 + $0xb4] sm:$0xf]
        %v310 = vld [vmem:[%s259 + $0xb8] sm:$0xf]
        %v311 = vld [vmem:[%s259 + $0xbc] sm:$0xf]
        %v312 = vld [vmem:[%s259 + $0xc0] sm:$0xf]
        %v313 = vld [vmem:[%s259 + $0xc8] sm:$0xf]
        %v314 = vld [vmem:[%s259 + $0xcc] sm:$0xf]
        %v315 = vld [vmem:[%s259 + $0xd0] sm:$0xf]
        %v316 = vld [vmem:[%s259 + $0xd4] sm:$0xf]
        %v317 = vld [vmem:[%s259 + $0xdc] sm:$0xf]
        %v318 = vld [vmem:[%s259 + $0xe0] sm:$0xf]
        %v319 = vld [vmem:[%s259 + $0xe4] sm:$0xf]
        %v320 = vld [vmem:[%s259 + $0xe8] sm:$0xf]
        %v321 = vld [vmem:[%s259 + $0xf0] sm:$0xf]
        %v322 = vld [vmem:[%s259 + $0xf4] sm:$0xf]
        %v323 = vld [vmem:[%s259 + $0xf8] sm:$0xf]
        %v324 = vld [vmem:[%s259 + $0xfc] sm:$0xf]
        %v325 = vld [vmem:[%s259 + $0x104] sm:$0xf]
        %v326 = vld [vmem:[%s259 + $0x108] sm:$0xf]
        %v327 = vld [vmem:[%s259 + $0x10c] sm:$0xf]
        %v328 = vld [vmem:[%s259 + $0x110] sm:$0xf]
        %v329 = vld [vmem:[%s259 + $0x118] sm:$0xf]
        %v330 = vld [vmem:[%s259 + $0x11c] sm:$0xf]
        %v331 = vld [vmem:[%s259 + $0x120] sm:$0xf]
        %v332 = vld [vmem:[%s259 + $0x124] sm:$0xf]
        %v333 = vld [vmem:[%s259 + $0x12c] sm:$0xf]
        %v334 = vld [vmem:[%s259 + $0x130] sm:$0xf]
        %v335 = vld [vmem:[%s259 + $0x134] sm:$0xf]
        %v336 = vld [vmem:[%s259 + $0x138] sm:$0xf]
        %v337 = vld [vmem:[%s259 + $0x140] sm:$0xf]
        %v338 = vld [vmem:[%s259 + $0x144] sm:$0xf]
        %v339 = vld [vmem:[%s259 + $0x148] sm:$0xf]
        %v340 = vld [vmem:[%s259 + $0x14c] sm:$0xf]
        %v341 = vld [vmem:[%s259 + $0x154] sm:$0xf]
        %v342 = vld [vmem:[%s259 + $0x158] sm:$0xf]
        %v343 = vld [vmem:[%s259 + $0x15c] sm:$0xf]
        %v344 = vld [vmem:[%s259 + $0x160] sm:$0xf]
        %v345 = vld [vmem:[%s259 + $0x168] sm:$0xf]
        %v346 = vld [vmem:[%s259 + $0x16c] sm:$0xf]
        %v347 = vld [vmem:[%s259 + $0x170] sm:$0xf]
        %v348 = vld [vmem:[%s259 + $0x174] sm:$0xf]
        %v349 = vld [vmem:[%s259 + $0x17c] sm:$0xf]
        %v350 = vld [vmem:[%s259 + $0x180] sm:$0xf]
        %v351 = vld [vmem:[%s259 + $0x184] sm:$0xf]
        %v352 = vld [vmem:[%s259 + $0x188] sm:$0xf]
        %v353 = vld [vmem:[%s259 + $0x190] sm:$0xf]
        %v354 = vld [vmem:[%s259 + $0x194] sm:$0xf]
        %v355 = vld [vmem:[%s259 + $0x198] sm:$0xf]
        %v356 = vld [vmem:[%s259 + $0x19c] sm:$0xf]
        %v357 = vld [vmem:[%s259 + $0x1a4] sm:$0xf]
        %v358 = vld [vmem:[%s259 + $0x1a8] sm:$0xf]
        %v359 = vld [vmem:[%s259 + $0x1ac] sm:$0xf]
        %v360 = vld [vmem:[%s259 + $0x1b0] sm:$0xf]
        %v361 = vld [vmem:[%s259 + $0x1b8] sm:$0xf]
        %v362 = vld [vmem:[%s259 + $0x1bc] sm:$0xf]
        %v363 = vld [vmem:[%s259 + $0x1c0] sm:$0xf]
        %v364 = vld [vmem:[%s259 + $0x1c4] sm:$0xf]
        %v365 = vld [vmem:[%s259 + $0x1cc] sm:$0xf]
        %v366 = vld [vmem:[%s259 + $0x1d0] sm:$0xf]
        %v367 = vld [vmem:[%s259 + $0x1d4] sm:$0xf]
        %v368 = vld [vmem:[%s259 + $0x1d8] sm:$0xf]
        %v369 = vld [vmem:[%s259 + $0x1e0] sm:$0xf]
        %v370 = vld [vmem:[%s259 + $0x1e4] sm:$0xf]
        %v371 = vld [vmem:[%s259 + $0x1e8] sm:$0xf]
        %v372 = vld [vmem:[%s259 + $0x1ec] sm:$0xf]
        %v373 = vld [vmem:[%s259 + $0x1f4] sm:$0xf]
        %v374 = vld [vmem:[%s259 + $0x1f8] sm:$0xf]
        %v375 = vld [vmem:[%s259 + $0x1fc] sm:$0xf]
        %v376 = vld [vmem:[%s259 + $0x200] sm:$0xf]
        %v377 = vld [vmem:[%s259 + $0x208] sm:$0xf]
        %v378 = vld [vmem:[%s259 + $0x20c] sm:$0xf]
        %v379 = vld [vmem:[%s259 + $0x210] sm:$0xf]
        %v380 = vld [vmem:[%s259 + $0x214] sm:$0xf]
        %v381 = vld [vmem:[%s259 + $0x21c] sm:$0xf]
        %v382 = vld [vmem:[%s259 + $0x220] sm:$0xf]
        %v383 = vld [vmem:[%s259 + $0x224] sm:$0xf]
        %v384 = vld [vmem:[%s259 + $0x228] sm:$0xf]
        %v385 = vld [vmem:[%s259 + $0x230] sm:$0xf]
        %v386 = vld [vmem:[%s259 + $0x234] sm:$0xf]
        %v387 = vld [vmem:[%s259 + $0x238] sm:$0xf]
        %v388 = vld [vmem:[%s259 + $0x23c] sm:$0xf]
        %v389 = vld [vmem:[%s259 + $0x244] sm:$0xf]
        %v390 = vld [vmem:[%s259 + $0x248] sm:$0xf]
        %v391 = vld [vmem:[%s259 + $0x24c] sm:$0xf]
        %v392 = vld [vmem:[%s259 + $0x250] sm:$0xf]
        %v393 = vld [vmem:[%s259 + $0x258] sm:$0xf]
        %v394 = vld [vmem:[%s259 + $0x25c] sm:$0xf]
        %v395 = vld [vmem:[%s259 + $0x260] sm:$0xf]
        %v396 = vld [vmem:[%s259 + $0x264] sm:$0xf]
        %v397 = vld [vmem:[%s259 + $0x26c] sm:$0xf]
        %v398 = vld [vmem:[%s259 + $0x270] sm:$0xf]
        %v399 = vld [vmem:[%s259 + $0x274] sm:$0xf]
        %v400 = vld [vmem:[%s259 + $0x278] sm:$0xf]
        %v401 = vld [vmem:[%s259 + $0x280] sm:$0xf]
        %v402 = vld [vmem:[%s259 + $0x284] sm:$0xf]
        %v403 = vld [vmem:[%s259 + $0x288] sm:$0xf]
        %v404 = vld [vmem:[%s259 + $0x28c] sm:$0xf]
        %v405 = vld [vmem:[%s259 + $0x294] sm:$0xf]
        %v406 = vld [vmem:[%s259 + $0x298] sm:$0xf]
        %v407 = vld [vmem:[%s259 + $0x29c] sm:$0xf]
        %v408 = vld [vmem:[%s259 + $0x2a0] sm:$0xf]
        %v545 = vunpack.c.l.b16 %v273
        %v546 = vunpack.c.l.b16 %v274
        %v547 = vunpack.c.l.b16 %v275
        %v548 = vunpack.c.l.b16 %v276
        %v549 = vunpack.c.l.b16 %v277
        %v550 = vunpack.c.l.b16 %v278
        %v551 = vunpack.c.l.b16 %v279
        %v552 = vunpack.c.l.b16 %v280
        %v553 = vunpack.c.l.b16 %v281
        %v554 = vunpack.c.l.b16 %v282
        %v555 = vunpack.c.l.b16 %v283
        %v556 = vunpack.c.l.b16 %v284
        %v557 = vunpack.c.l.b16 %v285
        %v558 = vunpack.c.l.b16 %v286
        %v559 = vunpack.c.l.b16 %v287
        %v560 = vunpack.c.l.b16 %v288
        %v561 = vunpack.c.l.b16 %v289
        %v562 = vunpack.c.l.b16 %v290
        %v563 = vunpack.c.l.b16 %v291
        %v564 = vunpack.c.l.b16 %v292
        %v565 = vunpack.c.l.b16 %v293
        %v566 = vunpack.c.l.b16 %v294
        %v567 = vunpack.c.l.b16 %v295
        %v568 = vunpack.c.l.b16 %v296
        %v569 = vunpack.c.l.b16 %v297
        %v570 = vunpack.c.l.b16 %v298
        %v571 = vunpack.c.l.b16 %v299
        %v572 = vunpack.c.l.b16 %v300
        %v573 = vunpack.c.l.b16 %v301
        %v574 = vunpack.c.l.b16 %v302
        %v575 = vunpack.c.l.b16 %v303
        %v576 = vunpack.c.l.b16 %v304
        %v577 = vunpack.c.l.b16 %v305
        %v578 = vunpack.c.l.b16 %v306
        %v579 = vunpack.c.l.b16 %v307
        %v580 = vunpack.c.l.b16 %v308
        %v581 = vunpack.c.l.b16 %v309
        %v582 = vunpack.c.l.b16 %v310
        %v583 = vunpack.c.l.b16 %v311
        %v584 = vunpack.c.l.b16 %v312
        %v585 = vunpack.c.l.b16 %v313
        %v586 = vunpack.c.l.b16 %v314
        %v587 = vunpack.c.l.b16 %v315
        %v588 = vunpack.c.l.b16 %v316
        %v589 = vunpack.c.l.b16 %v317
        %v590 = vunpack.c.l.b16 %v318
        %v591 = vunpack.c.l.b16 %v319
        %v592 = vunpack.c.l.b16 %v320
        %v593 = vunpack.c.l.b16 %v321
        %v594 = vunpack.c.l.b16 %v322
        %v595 = vunpack.c.l.b16 %v323
        %v596 = vunpack.c.l.b16 %v324
        %v597 = vunpack.c.l.b16 %v325
        %v598 = vunpack.c.l.b16 %v326
        %v599 = vunpack.c.l.b16 %v327
        %v600 = vunpack.c.l.b16 %v328
        %v601 = vunpack.c.l.b16 %v329
        %v602 = vunpack.c.l.b16 %v330
        %v603 = vunpack.c.l.b16 %v331
        %v604 = vunpack.c.l.b16 %v332
        %v605 = vunpack.c.l.b16 %v333
        %v606 = vunpack.c.l.b16 %v334
        %v607 = vunpack.c.l.b16 %v335
        %v608 = vunpack.c.l.b16 %v336
        %v609 = vunpack.c.l.b16 %v337
        %v610 = vunpack.c.l.b16 %v338
        %v611 = vunpack.c.l.b16 %v339
        %v612 = vunpack.c.l.b16 %v340
        %v613 = vunpack.c.l.b16 %v341
        %v614 = vunpack.c.l.b16 %v342
        %v615 = vunpack.c.l.b16 %v343
        %v616 = vunpack.c.l.b16 %v344
        %v617 = vunpack.c.l.b16 %v345
        %v618 = vunpack.c.l.b16 %v346
        %v619 = vunpack.c.l.b16 %v347
        %v620 = vunpack.c.l.b16 %v348
        %v621 = vunpack.c.l.b16 %v349
        %v622 = vunpack.c.l.b16 %v350
        %v623 = vunpack.c.l.b16 %v351
        %v624 = vunpack.c.l.b16 %v352
        %v625 = vunpack.c.l.b16 %v353
        %v626 = vunpack.c.l.b16 %v354
        %v627 = vunpack.c.l.b16 %v355
        %v628 = vunpack.c.l.b16 %v356
        %v629 = vunpack.c.l.b16 %v357
        %v630 = vunpack.c.l.b16 %v358
        %v631 = vunpack.c.l.b16 %v359
        %v632 = vunpack.c.l.b16 %v360
        %v633 = vunpack.c.l.b16 %v361
        %v634 = vunpack.c.l.b16 %v362
        %v635 = vunpack.c.l.b16 %v363
        %v636 = vunpack.c.l.b16 %v364
        %v637 = vunpack.c.l.b16 %v365
        %v638 = vunpack.c.l.b16 %v366
        %v639 = vunpack.c.l.b16 %v367
        %v640 = vunpack.c.l.b16 %v368
        %v641 = vunpack.c.l.b16 %v369
        %v642 = vunpack.c.l.b16 %v370
        %v643 = vunpack.c.l.b16 %v371
        %v644 = vunpack.c.l.b16 %v372
        %v645 = vunpack.c.l.b16 %v373
        %v646 = vunpack.c.l.b16 %v374
        %v647 = vunpack.c.l.b16 %v375
        %v648 = vunpack.c.l.b16 %v376
        %v649 = vunpack.c.l.b16 %v377
        %v650 = vunpack.c.l.b16 %v378
        %v651 = vunpack.c.l.b16 %v379
        %v652 = vunpack.c.l.b16 %v380
        %v653 = vunpack.c.l.b16 %v381
        %v654 = vunpack.c.l.b16 %v382
        %v655 = vunpack.c.l.b16 %v383
        %v656 = vunpack.c.l.b16 %v384
        %v657 = vunpack.c.l.b16 %v385
        %v658 = vunpack.c.l.b16 %v386
        %v659 = vunpack.c.l.b16 %v387
        %v660 = vunpack.c.l.b16 %v388
        %v661 = vunpack.c.l.b16 %v389
        %v662 = vunpack.c.l.b16 %v390
        %v663 = vunpack.c.l.b16 %v391
        %v664 = vunpack.c.l.b16 %v392
        %v665 = vunpack.c.l.b16 %v393
        %v666 = vunpack.c.l.b16 %v394
        %v667 = vunpack.c.l.b16 %v395
        %v668 = vunpack.c.l.b16 %v396
        %v669 = vunpack.c.l.b16 %v397
        %v670 = vunpack.c.l.b16 %v398
        %v671 = vunpack.c.l.b16 %v399
        %v672 = vunpack.c.l.b16 %v400
        %v673 = vunpack.c.l.b16 %v401
        %v674 = vunpack.c.l.b16 %v402
        %v675 = vunpack.c.l.b16 %v403
        %v676 = vunpack.c.l.b16 %v404
        %v677 = vunpack.c.l.b16 %v405
        %v678 = vunpack.c.l.b16 %v406
        %v679 = vunpack.c.l.b16 %v407
        %v680 = vunpack.c.l.b16 %v408
        %v681 = vpack.c.b16 %v546, %v545
        %v682 = vpack.c.b16 %v548, %v547
        %v683 = vpack.c.b16 %v550, %v549
        %v684 = vpack.c.b16 %v552, %v551
        %v685 = vpack.c.b16 %v554, %v553
        %v686 = vpack.c.b16 %v556, %v555
        %v687 = vpack.c.b16 %v558, %v557
        %v688 = vpack.c.b16 %v560, %v559
        %v689 = vpack.c.b16 %v562, %v561
        %v690 = vpack.c.b16 %v564, %v563
        %v691 = vpack.c.b16 %v566, %v565
        %v692 = vpack.c.b16 %v568, %v567
        %v693 = vpack.c.b16 %v570, %v569
        %v694 = vpack.c.b16 %v572, %v571
        %v695 = vpack.c.b16 %v574, %v573
        %v696 = vpack.c.b16 %v576, %v575
        %v697 = vpack.c.b16 %v578, %v577
        %v698 = vpack.c.b16 %v580, %v579
        %v699 = vpack.c.b16 %v582, %v581
        %v700 = vpack.c.b16 %v584, %v583
        %v701 = vpack.c.b16 %v586, %v585
        %v702 = vpack.c.b16 %v588, %v587
        %v703 = vpack.c.b16 %v590, %v589
        %v704 = vpack.c.b16 %v592, %v591
        %v705 = vpack.c.b16 %v594, %v593
        %v706 = vpack.c.b16 %v596, %v595
        %v707 = vpack.c.b16 %v598, %v597
        %v708 = vpack.c.b16 %v600, %v599
        %v709 = vpack.c.b16 %v602, %v601
        %v710 = vpack.c.b16 %v604, %v603
        %v711 = vpack.c.b16 %v606, %v605
        %v712 = vpack.c.b16 %v608, %v607
        %v713 = vpack.c.b16 %v610, %v609
        %v714 = vpack.c.b16 %v612, %v611
        %v715 = vpack.c.b16 %v614, %v613
        %v716 = vpack.c.b16 %v616, %v615
        %v717 = vpack.c.b16 %v618, %v617
        %v718 = vpack.c.b16 %v620, %v619
        %v719 = vpack.c.b16 %v622, %v621
        %v720 = vpack.c.b16 %v624, %v623
        %v721 = vpack.c.b16 %v626, %v625
        %v722 = vpack.c.b16 %v628, %v627
        %v723 = vpack.c.b16 %v630, %v629
        %v724 = vpack.c.b16 %v632, %v631
        %v725 = vpack.c.b16 %v634, %v633
        %v726 = vpack.c.b16 %v636, %v635
        %v727 = vpack.c.b16 %v638, %v637
        %v728 = vpack.c.b16 %v640, %v639
        %v729 = vpack.c.b16 %v642, %v641
        %v730 = vpack.c.b16 %v644, %v643
        %v731 = vpack.c.b16 %v646, %v645
        %v732 = vpack.c.b16 %v648, %v647
        %v733 = vpack.c.b16 %v650, %v649
        %v734 = vpack.c.b16 %v652, %v651
        %v735 = vpack.c.b16 %v654, %v653
        %v736 = vpack.c.b16 %v656, %v655
        %v737 = vpack.c.b16 %v658, %v657
        %v738 = vpack.c.b16 %v660, %v659
        %v739 = vpack.c.b16 %v662, %v661
        %v740 = vpack.c.b16 %v664, %v663
        %v741 = vpack.c.b16 %v666, %v665
        %v742 = vpack.c.b16 %v668, %v667
        %v743 = vpack.c.b16 %v670, %v669
        %v744 = vpack.c.b16 %v672, %v671
        %v745 = vpack.c.b16 %v674, %v673
        %v746 = vpack.c.b16 %v676, %v675
        %v747 = vpack.c.b16 %v678, %v677
        %v748 = vpack.c.b16 %v680, %v679
        %vm817 = vcmask 523264
        %818 = vst.msk [vmem:[#allocation2] sm:$0xff] %vm817, %v681
        %819 = vst.msk [vmem:[#allocation2 + $0x8] sm:$0xff] %vm817, %v682
        %820 = vst.msk [vmem:[#allocation2 + $0x10] sm:$0xff] %vm817, %v683
        %821 = vst.msk [vmem:[#allocation2 + $0x18] sm:$0xff] %vm817, %v684
        %822 = vst.msk [vmem:[#allocation2 + $0x20] sm:$0xff] %vm817, %v685
        %823 = vst.msk [vmem:[#allocation2 + $0x28] sm:$0xff] %vm817, %v686
        %824 = vst.msk [vmem:[#allocation2 + $0x30] sm:$0xff] %vm817, %v687
        %825 = vst.msk [vmem:[#allocation2 + $0x38] sm:$0xff] %vm817, %v688
        %826 = vst.msk [vmem:[#allocation2 + $0x40] sm:$0xff] %vm817, %v689
        %827 = vst.msk [vmem:[#allocation2 + $0x48] sm:$0xff] %vm817, %v690
        %828 = vst.msk [vmem:[#allocation2 + $0x50] sm:$0xff] %vm817, %v691
        %829 = vst.msk [vmem:[#allocation2 + $0x58] sm:$0xff] %vm817, %v692
        %830 = vst.msk [vmem:[#allocation2 + $0x60] sm:$0xff] %vm817, %v693
        %831 = vst.msk [vmem:[#allocation2 + $0x68] sm:$0xff] %vm817, %v694
        %832 = vst.msk [vmem:[#allocation2 + $0x70] sm:$0xff] %vm817, %v695
        %833 = vst.msk [vmem:[#allocation2 + $0x78] sm:$0xff] %vm817, %v696
        %834 = vst.msk [vmem:[#allocation2 + $0x80] sm:$0xff] %vm817, %v697
        %835 = vst.msk [vmem:[#allocation2 + $0x88] sm:$0xff] %vm817, %v698
        %836 = vst.msk [vmem:[#allocation2 + $0x90] sm:$0xff] %vm817, %v699
        %837 = vst.msk [vmem:[#allocation2 + $0x98] sm:$0xff] %vm817, %v700
        %838 = vst.msk [vmem:[#allocation2 + $0xa0] sm:$0xff] %vm817, %v701
        %839 = vst.msk [vmem:[#allocation2 + $0xa8] sm:$0xff] %vm817, %v702
        %840 = vst.msk [vmem:[#allocation2 + $0xb0] sm:$0xff] %vm817, %v703
        %841 = vst.msk [vmem:[#allocation2 + $0xb8] sm:$0xff] %vm817, %v704
        %842 = vst.msk [vmem:[#allocation2 + $0xc0] sm:$0xff] %vm817, %v705
        %843 = vst.msk [vmem:[#allocation2 + $0xc8] sm:$0xff] %vm817, %v706
        %844 = vst.msk [vmem:[#allocation2 + $0xd0] sm:$0xff] %vm817, %v707
        %845 = vst.msk [vmem:[#allocation2 + $0xd8] sm:$0xff] %vm817, %v708
        %846 = vst.msk [vmem:[#allocation2 + $0xe0] sm:$0xff] %vm817, %v709
        %847 = vst.msk [vmem:[#allocation2 + $0xe8] sm:$0xff] %vm817, %v710
        %848 = vst.msk [vmem:[#allocation2 + $0xf0] sm:$0xff] %vm817, %v711
        %849 = vst.msk [vmem:[#allocation2 + $0xf8] sm:$0xff] %vm817, %v712
        %850 = vst.msk [vmem:[#allocation2 + $0x100] sm:$0xff] %vm817, %v713
        %851 = vst.msk [vmem:[#allocation2 + $0x108] sm:$0xff] %vm817, %v714
        %852 = vst.msk [vmem:[#allocation2 + $0x110] sm:$0xff] %vm817, %v715
        %853 = vst.msk [vmem:[#allocation2 + $0x118] sm:$0xff] %vm817, %v716
        %854 = vst.msk [vmem:[#allocation2 + $0x120] sm:$0xff] %vm817, %v717
        %855 = vst.msk [vmem:[#allocation2 + $0x128] sm:$0xff] %vm817, %v718
        %856 = vst.msk [vmem:[#allocation2 + $0x130] sm:$0xff] %vm817, %v719
        %857 = vst.msk [vmem:[#allocation2 + $0x138] sm:$0xff] %vm817, %v720
        %858 = vst.msk [vmem:[#allocation2 + $0x140] sm:$0xff] %vm817, %v721
        %859 = vst.msk [vmem:[#allocation2 + $0x148] sm:$0xff] %vm817, %v722
        %860 = vst.msk [vmem:[#allocation2 + $0x150] sm:$0xff] %vm817, %v723
        %861 = vst.msk [vmem:[#allocation2 + $0x158] sm:$0xff] %vm817, %v724
        %862 = vst.msk [vmem:[#allocation2 + $0x160] sm:$0xff] %vm817, %v725
        %863 = vst.msk [vmem:[#allocation2 + $0x168] sm:$0xff] %vm817, %v726
        %864 = vst.msk [vmem:[#allocation2 + $0x170] sm:$0xff] %vm817, %v727
        %865 = vst.msk [vmem:[#allocation2 + $0x178] sm:$0xff] %vm817, %v728
        %866 = vst.msk [vmem:[#allocation2 + $0x180] sm:$0xff] %vm817, %v729
        %867 = vst.msk [vmem:[#allocation2 + $0x188] sm:$0xff] %vm817, %v730
        %868 = vst.msk [vmem:[#allocation2 + $0x190] sm:$0xff] %vm817, %v731
        %869 = vst.msk [vmem:[#allocation2 + $0x198] sm:$0xff] %vm817, %v732
        %870 = vst.msk [vmem:[#allocation2 + $0x1a0] sm:$0xff] %vm817, %v733
        %871 = vst.msk [vmem:[#allocation2 + $0x1a8] sm:$0xff] %vm817, %v734
        %872 = vst.msk [vmem:[#allocation2 + $0x1b0] sm:$0xff] %vm817, %v735
        %873 = vst.msk [vmem:[#allocation2 + $0x1b8] sm:$0xff] %vm817, %v736
        %874 = vst.msk [vmem:[#allocation2 + $0x1c0] sm:$0xff] %vm817, %v737
        %875 = vst.msk [vmem:[#allocation2 + $0x1c8] sm:$0xff] %vm817, %v738
        %876 = vst.msk [vmem:[#allocation2 + $0x1d0] sm:$0xff] %vm817, %v739
        %877 = vst.msk [vmem:[#allocation2 + $0x1d8] sm:$0xff] %vm817, %v740
        %878 = vst.msk [vmem:[#allocation2 + $0x1e0] sm:$0xff] %vm817, %v741
        %879 = vst.msk [vmem:[#allocation2 + $0x1e8] sm:$0xff] %vm817, %v742
        %880 = vst.msk [vmem:[#allocation2 + $0x1f0] sm:$0xff] %vm817, %v743
        %881 = vst.msk [vmem:[#allocation2 + $0x1f8] sm:$0xff] %vm817, %v744
        %882 = vst.msk [vmem:[#allocation2 + $0x200] sm:$0xff] %vm817, %v745
        %883 = vst.msk [vmem:[#allocation2 + $0x208] sm:$0xff] %vm817, %v746
        %884 = vst.msk [vmem:[#allocation2 + $0x210] sm:$0xff] %vm817, %v747
        %885 = vst.msk [vmem:[#allocation2 + $0x218] sm:$0xff] %vm817, %v748
        %v886 = vld [vmem:[%s259] sm:$0xf]
        %v887 = vld [vmem:[%s259 + $0x4] sm:$0xf]
        %v888 = vld [vmem:[%s259 + $0x8] sm:$0xf]
        %v889 = vld [vmem:[%s259 + $0xc] sm:$0xf]
        %v890 = vld [vmem:[%s259 + $0x10] sm:$0x1]
        %v891 = vld [vmem:[%s259 + $0x14] sm:$0xf]
        %v892 = vld [vmem:[%s259 + $0x18] sm:$0xf]
        %v893 = vld [vmem:[%s259 + $0x1c] sm:$0xf]
        %v894 = vld [vmem:[%s259 + $0x20] sm:$0xf]
        %v895 = vld [vmem:[%s259 + $0x24] sm:$0x1]
        %v896 = vld [vmem:[%s259 + $0x28] sm:$0xf]
        %v897 = vld [vmem:[%s259 + $0x2c] sm:$0xf]
        %v898 = vld [vmem:[%s259 + $0x30] sm:$0xf]
        %v899 = vld [vmem:[%s259 + $0x34] sm:$0xf]
        %v900 = vld [vmem:[%s259 + $0x38] sm:$0x1]
        %v901 = vld [vmem:[%s259 + $0x3c] sm:$0xf]
        %v902 = vld [vmem:[%s259 + $0x40] sm:$0xf]
        %v903 = vld [vmem:[%s259 + $0x44] sm:$0xf]
        %v904 = vld [vmem:[%s259 + $0x48] sm:$0xf]
        %v905 = vld [vmem:[%s259 + $0x4c] sm:$0x1]
        %v906 = vld [vmem:[%s259 + $0x50] sm:$0xf]
        %v907 = vld [vmem:[%s259 + $0x54] sm:$0xf]
        %v908 = vld [vmem:[%s259 + $0x58] sm:$0xf]
        %v909 = vld [vmem:[%s259 + $0x5c] sm:$0xf]
        %v910 = vld [vmem:[%s259 + $0x60] sm:$0x1]
        %v911 = vld [vmem:[%s259 + $0x64] sm:$0xf]
        %v912 = vld [vmem:[%s259 + $0x68] sm:$0xf]
        %v913 = vld [vmem:[%s259 + $0x6c] sm:$0xf]
        %v914 = vld [vmem:[%s259 + $0x70] sm:$0xf]
        %v915 = vld [vmem:[%s259 + $0x74] sm:$0x1]
        %v916 = vld [vmem:[%s259 + $0x78] sm:$0xf]
        %v917 = vld [vmem:[%s259 + $0x7c] sm:$0xf]
        %v918 = vld [vmem:[%s259 + $0x80] sm:$0xf]
        %v919 = vld [vmem:[%s259 + $0x84] sm:$0xf]
        %v920 = vld [vmem:[%s259 + $0x88] sm:$0x1]
        %v921 = vld [vmem:[%s259 + $0x8c] sm:$0xf]
        %v922 = vld [vmem:[%s259 + $0x90] sm:$0xf]
        %v923 = vld [vmem:[%s259 + $0x94] sm:$0xf]
        %v924 = vld [vmem:[%s259 + $0x98] sm:$0xf]
        %v925 = vld [vmem:[%s259 + $0x9c] sm:$0x1]
        %v926 = vld [vmem:[%s259 + $0xa0] sm:$0xf]
        %v927 = vld [vmem:[%s259 + $0xa4] sm:$0xf]
        %v928 = vld [vmem:[%s259 + $0xa8] sm:$0xf]
        %v929 = vld [vmem:[%s259 + $0xac] sm:$0xf]
        %v930 = vld [vmem:[%s259 + $0xb0] sm:$0x1]
        %v931 = vld [vmem:[%s259 + $0xb4] sm:$0xf]
        %v932 = vld [vmem:[%s259 + $0xb8] sm:$0xf]
        %v933 = vld [vmem:[%s259 + $0xbc] sm:$0xf]
        %v934 = vld [vmem:[%s259 + $0xc0] sm:$0xf]
        %v935 = vld [vmem:[%s259 + $0xc4] sm:$0x1]
        %v936 = vld [vmem:[%s259 + $0xc8] sm:$0xf]
        %v937 = vld [vmem:[%s259 + $0xcc] sm:$0xf]
        %v938 = vld [vmem:[%s259 + $0xd0] sm:$0xf]
        %v939 = vld [vmem:[%s259 + $0xd4] sm:$0xf]
        %v940 = vld [vmem:[%s259 + $0xd8] sm:$0x1]
        %v941 = vld [vmem:[%s259 + $0xdc] sm:$0xf]
        %v942 = vld [vmem:[%s259 + $0xe0] sm:$0xf]
        %v943 = vld [vmem:[%s259 + $0xe4] sm:$0xf]
        %v944 = vld [vmem:[%s259 + $0xe8] sm:$0xf]
        %v945 = vld [vmem:[%s259 + $0xec] sm:$0x1]
        %v946 = vld [vmem:[%s259 + $0xf0] sm:$0xf]
        %v947 = vld [vmem:[%s259 + $0xf4] sm:$0xf]
        %v948 = vld [vmem:[%s259 + $0xf8] sm:$0xf]
        %v949 = vld [vmem:[%s259 + $0xfc] sm:$0xf]
        %v950 = vld [vmem:[%s259 + $0x100] sm:$0x1]
        %v951 = vld [vmem:[%s259 + $0x104] sm:$0xf]
        %v952 = vld [vmem:[%s259 + $0x108] sm:$0xf]
        %v953 = vld [vmem:[%s259 + $0x10c] sm:$0xf]
        %v954 = vld [vmem:[%s259 + $0x110] sm:$0xf]
        %v955 = vld [vmem:[%s259 + $0x114] sm:$0x1]
        %v956 = vld [vmem:[%s259 + $0x118] sm:$0xf]
        %v957 = vld [vmem:[%s259 + $0x11c] sm:$0xf]
        %v958 = vld [vmem:[%s259 + $0x120] sm:$0xf]
        %v959 = vld [vmem:[%s259 + $0x124] sm:$0xf]
        %v960 = vld [vmem:[%s259 + $0x128] sm:$0x1]
        %v961 = vld [vmem:[%s259 + $0x12c] sm:$0xf]
        %v962 = vld [vmem:[%s259 + $0x130] sm:$0xf]
        %v963 = vld [vmem:[%s259 + $0x134] sm:$0xf]
        %v964 = vld [vmem:[%s259 + $0x138] sm:$0xf]
        %v965 = vld [vmem:[%s259 + $0x13c] sm:$0x1]
        %v966 = vld [vmem:[%s259 + $0x140] sm:$0xf]
        %v967 = vld [vmem:[%s259 + $0x144] sm:$0xf]
        %v968 = vld [vmem:[%s259 + $0x148] sm:$0xf]
        %v969 = vld [vmem:[%s259 + $0x14c] sm:$0xf]
        %v970 = vld [vmem:[%s259 + $0x150] sm:$0x1]
        %v971 = vld [vmem:[%s259 + $0x154] sm:$0xf]
        %v972 = vld [vmem:[%s259 + $0x158] sm:$0xf]
        %v973 = vld [vmem:[%s259 + $0x15c] sm:$0xf]
        %v974 = vld [vmem:[%s259 + $0x160] sm:$0xf]
        %v975 = vld [vmem:[%s259 + $0x164] sm:$0x1]
        %v976 = vld [vmem:[%s259 + $0x168] sm:$0xf]
        %v977 = vld [vmem:[%s259 + $0x16c] sm:$0xf]
        %v978 = vld [vmem:[%s259 + $0x170] sm:$0xf]
        %v979 = vld [vmem:[%s259 + $0x174] sm:$0xf]
        %v980 = vld [vmem:[%s259 + $0x178] sm:$0x1]
        %v981 = vld [vmem:[%s259 + $0x17c] sm:$0xf]
        %v982 = vld [vmem:[%s259 + $0x180] sm:$0xf]
        %v983 = vld [vmem:[%s259 + $0x184] sm:$0xf]
        %v984 = vld [vmem:[%s259 + $0x188] sm:$0xf]
        %v985 = vld [vmem:[%s259 + $0x18c] sm:$0x1]
        %v986 = vld [vmem:[%s259 + $0x190] sm:$0xf]
        %v987 = vld [vmem:[%s259 + $0x194] sm:$0xf]
        %v988 = vld [vmem:[%s259 + $0x198] sm:$0xf]
        %v989 = vld [vmem:[%s259 + $0x19c] sm:$0xf]
        %v990 = vld [vmem:[%s259 + $0x1a0] sm:$0x1]
        %v991 = vld [vmem:[%s259 + $0x1a4] sm:$0xf]
        %v992 = vld [vmem:[%s259 + $0x1a8] sm:$0xf]
        %v993 = vld [vmem:[%s259 + $0x1ac] sm:$0xf]
        %v994 = vld [vmem:[%s259 + $0x1b0] sm:$0xf]
        %v995 = vld [vmem:[%s259 + $0x1b4] sm:$0x1]
        %v996 = vld [vmem:[%s259 + $0x1b8] sm:$0xf]
        %v997 = vld [vmem:[%s259 + $0x1bc] sm:$0xf]
        %v998 = vld [vmem:[%s259 + $0x1c0] sm:$0xf]
        %v999 = vld [vmem:[%s259 + $0x1c4] sm:$0xf]
        %v1000 = vld [vmem:[%s259 + $0x1c8] sm:$0x1]
        %v1001 = vld [vmem:[%s259 + $0x1cc] sm:$0xf]
        %v1002 = vld [vmem:[%s259 + $0x1d0] sm:$0xf]
        %v1003 = vld [vmem:[%s259 + $0x1d4] sm:$0xf]
        %v1004 = vld [vmem:[%s259 + $0x1d8] sm:$0xf]
        %v1005 = vld [vmem:[%s259 + $0x1dc] sm:$0x1]
        %v1006 = vld [vmem:[%s259 + $0x1e0] sm:$0xf]
        %v1007 = vld [vmem:[%s259 + $0x1e4] sm:$0xf]
        %v1008 = vld [vmem:[%s259 + $0x1e8] sm:$0xf]
        %v1009 = vld [vmem:[%s259 + $0x1ec] sm:$0xf]
        %v1010 = vld [vmem:[%s259 + $0x1f0] sm:$0x1]
        %v1011 = vld [vmem:[%s259 + $0x1f4] sm:$0xf]
        %v1012 = vld [vmem:[%s259 + $0x1f8] sm:$0xf]
        %v1013 = vld [vmem:[%s259 + $0x1fc] sm:$0xf]
        %v1014 = vld [vmem:[%s259 + $0x200] sm:$0xf]
        %v1015 = vld [vmem:[%s259 + $0x204] sm:$0x1]
        %v1016 = vld [vmem:[%s259 + $0x208] sm:$0xf]
        %v1017 = vld [vmem:[%s259 + $0x20c] sm:$0xf]
        %v1018 = vld [vmem:[%s259 + $0x210] sm:$0xf]
        %v1019 = vld [vmem:[%s259 + $0x214] sm:$0xf]
        %v1020 = vld [vmem:[%s259 + $0x218] sm:$0x1]
        %v1021 = vld [vmem:[%s259 + $0x21c] sm:$0xf]
        %v1022 = vld [vmem:[%s259 + $0x220] sm:$0xf]
        %v1023 = vld [vmem:[%s259 + $0x224] sm:$0xf]
        %v1024 = vld [vmem:[%s259 + $0x228] sm:$0xf]
        %v1025 = vld [vmem:[%s259 + $0x22c] sm:$0x1]
        %v1026 = vld [vmem:[%s259 + $0x230] sm:$0xf]
        %v1027 = vld [vmem:[%s259 + $0x234] sm:$0xf]
        %v1028 = vld [vmem:[%s259 + $0x238] sm:$0xf]
        %v1029 = vld [vmem:[%s259 + $0x23c] sm:$0xf]
        %v1030 = vld [vmem:[%s259 + $0x240] sm:$0x1]
        %v1031 = vld [vmem:[%s259 + $0x244] sm:$0xf]
        %v1032 = vld [vmem:[%s259 + $0x248] sm:$0xf]
        %v1033 = vld [vmem:[%s259 + $0x24c] sm:$0xf]
        %v1034 = vld [vmem:[%s259 + $0x250] sm:$0xf]
        %v1035 = vld [vmem:[%s259 + $0x254] sm:$0x1]
        %v1036 = vld [vmem:[%s259 + $0x258] sm:$0xf]
        %v1037 = vld [vmem:[%s259 + $0x25c] sm:$0xf]
        %v1038 = vld [vmem:[%s259 + $0x260] sm:$0xf]
        %v1039 = vld [vmem:[%s259 + $0x264] sm:$0xf]
        %v1040 = vld [vmem:[%s259 + $0x268] sm:$0x1]
        %v1041 = vld [vmem:[%s259 + $0x26c] sm:$0xf]
        %v1042 = vld [vmem:[%s259 + $0x270] sm:$0xf]
        %v1043 = vld [vmem:[%s259 + $0x274] sm:$0xf]
        %v1044 = vld [vmem:[%s259 + $0x278] sm:$0xf]
        %v1045 = vld [vmem:[%s259 + $0x27c] sm:$0x1]
        %v1046 = vld [vmem:[%s259 + $0x280] sm:$0xf]
        %v1047 = vld [vmem:[%s259 + $0x284] sm:$0xf]
        %v1048 = vld [vmem:[%s259 + $0x288] sm:$0xf]
        %v1049 = vld [vmem:[%s259 + $0x28c] sm:$0xf]
        %v1050 = vld [vmem:[%s259 + $0x290] sm:$0x1]
        %v1051 = vld [vmem:[%s259 + $0x294] sm:$0xf]
        %v1052 = vld [vmem:[%s259 + $0x298] sm:$0xf]
        %v1053 = vld [vmem:[%s259 + $0x29c] sm:$0xf]
        %v1054 = vld [vmem:[%s259 + $0x2a0] sm:$0xf]
        %v1055 = vld [vmem:[%s259 + $0x2a4] sm:$0x1]
        %v1226 = vunpack.c.l.b16 %v886
        %v1227 = vunpack.c.l.b16 %v887
        %v1228 = vunpack.c.l.b16 %v888
        %v1229 = vunpack.c.l.b16 %v889
        %v1230 = vunpack.c.l.b16 %v890
        %v1231 = vunpack.c.l.b16 %v891
        %v1232 = vunpack.c.l.b16 %v892
        %v1233 = vunpack.c.l.b16 %v893
        %v1234 = vunpack.c.l.b16 %v894
        %v1235 = vunpack.c.l.b16 %v895
        %v1236 = vunpack.c.l.b16 %v896
        %v1237 = vunpack.c.l.b16 %v897
        %v1238 = vunpack.c.l.b16 %v898
        %v1239 = vunpack.c.l.b16 %v899
        %v1240 = vunpack.c.l.b16 %v900
        %v1241 = vunpack.c.l.b16 %v901
        %v1242 = vunpack.c.l.b16 %v902
        %v1243 = vunpack.c.l.b16 %v903
        %v1244 = vunpack.c.l.b16 %v904
        %v1245 = vunpack.c.l.b16 %v905
        %v1246 = vunpack.c.l.b16 %v906
        %v1247 = vunpack.c.l.b16 %v907
        %v1248 = vunpack.c.l.b16 %v908
        %v1249 = vunpack.c.l.b16 %v909
        %v1250 = vunpack.c.l.b16 %v910
        %v1251 = vunpack.c.l.b16 %v911
        %v1252 = vunpack.c.l.b16 %v912
        %v1253 = vunpack.c.l.b16 %v913
        %v1254 = vunpack.c.l.b16 %v914
        %v1255 = vunpack.c.l.b16 %v915
        %v1256 = vunpack.c.l.b16 %v916
        %v1257 = vunpack.c.l.b16 %v917
        %v1258 = vunpack.c.l.b16 %v918
        %v1259 = vunpack.c.l.b16 %v919
        %v1260 = vunpack.c.l.b16 %v920
        %v1261 = vunpack.c.l.b16 %v921
        %v1262 = vunpack.c.l.b16 %v922
        %v1263 = vunpack.c.l.b16 %v923
        %v1264 = vunpack.c.l.b16 %v924
        %v1265 = vunpack.c.l.b16 %v925
        %v1266 = vunpack.c.l.b16 %v926
        %v1267 = vunpack.c.l.b16 %v927
        %v1268 = vunpack.c.l.b16 %v928
        %v1269 = vunpack.c.l.b16 %v929
        %v1270 = vunpack.c.l.b16 %v930
        %v1271 = vunpack.c.l.b16 %v931
        %v1272 = vunpack.c.l.b16 %v932
        %v1273 = vunpack.c.l.b16 %v933
        %v1274 = vunpack.c.l.b16 %v934
        %v1275 = vunpack.c.l.b16 %v935
        %v1276 = vunpack.c.l.b16 %v936
        %v1277 = vunpack.c.l.b16 %v937
        %v1278 = vunpack.c.l.b16 %v938
        %v1279 = vunpack.c.l.b16 %v939
        %v1280 = vunpack.c.l.b16 %v940
        %v1281 = vunpack.c.l.b16 %v941
        %v1282 = vunpack.c.l.b16 %v942
        %v1283 = vunpack.c.l.b16 %v943
        %v1284 = vunpack.c.l.b16 %v944
        %v1285 = vunpack.c.l.b16 %v945
        %v1286 = vunpack.c.l.b16 %v946
        %v1287 = vunpack.c.l.b16 %v947
        %v1288 = vunpack.c.l.b16 %v948
        %v1289 = vunpack.c.l.b16 %v949
        %v1290 = vunpack.c.l.b16 %v950
        %v1291 = vunpack.c.l.b16 %v951
        %v1292 = vunpack.c.l.b16 %v952
        %v1293 = vunpack.c.l.b16 %v953
        %v1294 = vunpack.c.l.b16 %v954
        %v1295 = vunpack.c.l.b16 %v955
        %v1296 = vunpack.c.l.b16 %v956
        %v1297 = vunpack.c.l.b16 %v957
        %v1298 = vunpack.c.l.b16 %v958
        %v1299 = vunpack.c.l.b16 %v959
        %v1300 = vunpack.c.l.b16 %v960
        %v1301 = vunpack.c.l.b16 %v961
        %v1302 = vunpack.c.l.b16 %v962
        %v1303 = vunpack.c.l.b16 %v963
        %v1304 = vunpack.c.l.b16 %v964
        %v1305 = vunpack.c.l.b16 %v965
        %v1306 = vunpack.c.l.b16 %v966
        %v1307 = vunpack.c.l.b16 %v967
        %v1308 = vunpack.c.l.b16 %v968
        %v1309 = vunpack.c.l.b16 %v969
        %v1310 = vunpack.c.l.b16 %v970
        %v1311 = vunpack.c.l.b16 %v971
        %v1312 = vunpack.c.l.b16 %v972
        %v1313 = vunpack.c.l.b16 %v973
        %v1314 = vunpack.c.l.b16 %v974
        %v1315 = vunpack.c.l.b16 %v975
        %v1316 = vunpack.c.l.b16 %v976
        %v1317 = vunpack.c.l.b16 %v977
        %v1318 = vunpack.c.l.b16 %v978
        %v1319 = vunpack.c.l.b16 %v979
        %v1320 = vunpack.c.l.b16 %v980
        %v1321 = vunpack.c.l.b16 %v981
        %v1322 = vunpack.c.l.b16 %v982
        %v1323 = vunpack.c.l.b16 %v983
        %v1324 = vunpack.c.l.b16 %v984
        %v1325 = vunpack.c.l.b16 %v985
        %v1326 = vunpack.c.l.b16 %v986
        %v1327 = vunpack.c.l.b16 %v987
        %v1328 = vunpack.c.l.b16 %v988
        %v1329 = vunpack.c.l.b16 %v989
        %v1330 = vunpack.c.l.b16 %v990
        %v1331 = vunpack.c.l.b16 %v991
        %v1332 = vunpack.c.l.b16 %v992
        %v1333 = vunpack.c.l.b16 %v993
        %v1334 = vunpack.c.l.b16 %v994
        %v1335 = vunpack.c.l.b16 %v995
        %v1336 = vunpack.c.l.b16 %v996
        %v1337 = vunpack.c.l.b16 %v997
        %v1338 = vunpack.c.l.b16 %v998
        %v1339 = vunpack.c.l.b16 %v999
        %v1340 = vunpack.c.l.b16 %v1000
        %v1341 = vunpack.c.l.b16 %v1001
        %v1342 = vunpack.c.l.b16 %v1002
        %v1343 = vunpack.c.l.b16 %v1003
        %v1344 = vunpack.c.l.b16 %v1004
        %v1345 = vunpack.c.l.b16 %v1005
        %v1346 = vunpack.c.l.b16 %v1006
        %v1347 = vunpack.c.l.b16 %v1007
        %v1348 = vunpack.c.l.b16 %v1008
        %v1349 = vunpack.c.l.b16 %v1009
        %v1350 = vunpack.c.l.b16 %v1010
        %v1351 = vunpack.c.l.b16 %v1011
        %v1352 = vunpack.c.l.b16 %v1012
        %v1353 = vunpack.c.l.b16 %v1013
        %v1354 = vunpack.c.l.b16 %v1014
        %v1355 = vunpack.c.l.b16 %v1015
        %v1356 = vunpack.c.l.b16 %v1016
        %v1357 = vunpack.c.l.b16 %v1017
        %v1358 = vunpack.c.l.b16 %v1018
        %v1359 = vunpack.c.l.b16 %v1019
        %v1360 = vunpack.c.l.b16 %v1020
        %v1361 = vunpack.c.l.b16 %v1021
        %v1362 = vunpack.c.l.b16 %v1022
        %v1363 = vunpack.c.l.b16 %v1023
        %v1364 = vunpack.c.l.b16 %v1024
        %v1365 = vunpack.c.l.b16 %v1025
        %v1366 = vunpack.c.l.b16 %v1026
        %v1367 = vunpack.c.l.b16 %v1027
        %v1368 = vunpack.c.l.b16 %v1028
        %v1369 = vunpack.c.l.b16 %v1029
        %v1370 = vunpack.c.l.b16 %v1030
        %v1371 = vunpack.c.l.b16 %v1031
        %v1372 = vunpack.c.l.b16 %v1032
        %v1373 = vunpack.c.l.b16 %v1033
        %v1374 = vunpack.c.l.b16 %v1034
        %v1375 = vunpack.c.l.b16 %v1035
        %v1376 = vunpack.c.l.b16 %v1036
        %v1377 = vunpack.c.l.b16 %v1037
        %v1378 = vunpack.c.l.b16 %v1038
        %v1379 = vunpack.c.l.b16 %v1039
        %v1380 = vunpack.c.l.b16 %v1040
        %v1381 = vunpack.c.l.b16 %v1041
        %v1382 = vunpack.c.l.b16 %v1042
        %v1383 = vunpack.c.l.b16 %v1043
        %v1384 = vunpack.c.l.b16 %v1044
        %v1385 = vunpack.c.l.b16 %v1045
        %v1386 = vunpack.c.l.b16 %v1046
        %v1387 = vunpack.c.l.b16 %v1047
        %v1388 = vunpack.c.l.b16 %v1048
        %v1389 = vunpack.c.l.b16 %v1049
        %v1390 = vunpack.c.l.b16 %v1050
        %v1391 = vunpack.c.l.b16 %v1051
        %v1392 = vunpack.c.l.b16 %v1052
        %v1393 = vunpack.c.l.b16 %v1053
        %v1394 = vunpack.c.l.b16 %v1054
        %v1395 = vunpack.c.l.b16 %v1055
        %v1396 = vpack.c.b16 %v1227, %v1226
        %v1397 = vpack.c.b16 %v1229, %v1228
        %v1398 = vpack.c.b16 %v1230, %v1230
        %v1399 = vpack.c.b16 %v1232, %v1231
        %v1400 = vpack.c.b16 %v1234, %v1233
        %v1401 = vpack.c.b16 %v1235, %v1235
        %v1402 = vpack.c.b16 %v1237, %v1236
        %v1403 = vpack.c.b16 %v1239, %v1238
        %v1404 = vpack.c.b16 %v1240, %v1240
        %v1405 = vpack.c.b16 %v1242, %v1241
        %v1406 = vpack.c.b16 %v1244, %v1243
        %v1407 = vpack.c.b16 %v1245, %v1245
        %v1408 = vpack.c.b16 %v1247, %v1246
        %v1409 = vpack.c.b16 %v1249, %v1248
        %v1410 = vpack.c.b16 %v1250, %v1250
        %v1411 = vpack.c.b16 %v1252, %v1251
        %v1412 = vpack.c.b16 %v1254, %v1253
        %v1413 = vpack.c.b16 %v1255, %v1255
        %v1414 = vpack.c.b16 %v1257, %v1256
        %v1415 = vpack.c.b16 %v1259, %v1258
        %v1416 = vpack.c.b16 %v1260, %v1260
        %v1417 = vpack.c.b16 %v1262, %v1261
        %v1418 = vpack.c.b16 %v1264, %v1263
        %v1419 = vpack.c.b16 %v1265, %v1265
        %v1420 = vpack.c.b16 %v1267, %v1266
        %v1421 = vpack.c.b16 %v1269, %v1268
        %v1422 = vpack.c.b16 %v1270, %v1270
        %v1423 = vpack.c.b16 %v1272, %v1271
        %v1424 = vpack.c.b16 %v1274, %v1273
        %v1425 = vpack.c.b16 %v1275, %v1275
        %v1426 = vpack.c.b16 %v1277, %v1276
        %v1427 = vpack.c.b16 %v1279, %v1278
        %v1428 = vpack.c.b16 %v1280, %v1280
        %v1429 = vpack.c.b16 %v1282, %v1281
        %v1430 = vpack.c.b16 %v1284, %v1283
        %v1431 = vpack.c.b16 %v1285, %v1285
        %v1432 = vpack.c.b16 %v1287, %v1286
        %v1433 = vpack.c.b16 %v1289, %v1288
        %v1434 = vpack.c.b16 %v1290, %v1290
        %v1435 = vpack.c.b16 %v1292, %v1291
        %v1436 = vpack.c.b16 %v1294, %v1293
        %v1437 = vpack.c.b16 %v1295, %v1295
        %v1438 = vpack.c.b16 %v1297, %v1296
        %v1439 = vpack.c.b16 %v1299, %v1298
        %v1440 = vpack.c.b16 %v1300, %v1300
        %v1441 = vpack.c.b16 %v1302, %v1301
        %v1442 = vpack.c.b16 %v1304, %v1303
        %v1443 = vpack.c.b16 %v1305, %v1305
        %v1444 = vpack.c.b16 %v1307, %v1306
        %v1445 = vpack.c.b16 %v1309, %v1308
        %v1446 = vpack.c.b16 %v1310, %v1310
        %v1447 = vpack.c.b16 %v1312, %v1311
        %v1448 = vpack.c.b16 %v1314, %v1313
        %v1449 = vpack.c.b16 %v1315, %v1315
        %v1450 = vpack.c.b16 %v1317, %v1316
        %v1451 = vpack.c.b16 %v1319, %v1318
        %v1452 = vpack.c.b16 %v1320, %v1320
        %v1453 = vpack.c.b16 %v1322, %v1321
        %v1454 = vpack.c.b16 %v1324, %v1323
        %v1455 = vpack.c.b16 %v1325, %v1325
        %v1456 = vpack.c.b16 %v1327, %v1326
        %v1457 = vpack.c.b16 %v1329, %v1328
        %v1458 = vpack.c.b16 %v1330, %v1330
        %v1459 = vpack.c.b16 %v1332, %v1331
        %v1460 = vpack.c.b16 %v1334, %v1333
        %v1461 = vpack.c.b16 %v1335, %v1335
        %v1462 = vpack.c.b16 %v1337, %v1336
        %v1463 = vpack.c.b16 %v1339, %v1338
        %v1464 = vpack.c.b16 %v1340, %v1340
        %v1465 = vpack.c.b16 %v1342, %v1341
        %v1466 = vpack.c.b16 %v1344, %v1343
        %v1467 = vpack.c.b16 %v1345, %v1345
        %v1468 = vpack.c.b16 %v1347, %v1346
        %v1469 = vpack.c.b16 %v1349, %v1348
        %v1470 = vpack.c.b16 %v1350, %v1350
        %v1471 = vpack.c.b16 %v1352, %v1351
        %v1472 = vpack.c.b16 %v1354, %v1353
        %v1473 = vpack.c.b16 %v1355, %v1355
        %v1474 = vpack.c.b16 %v1357, %v1356
        %v1475 = vpack.c.b16 %v1359, %v1358
        %v1476 = vpack.c.b16 %v1360, %v1360
        %v1477 = vpack.c.b16 %v1362, %v1361
        %v1478 = vpack.c.b16 %v1364, %v1363
        %v1479 = vpack.c.b16 %v1365, %v1365
        %v1480 = vpack.c.b16 %v1367, %v1366
        %v1481 = vpack.c.b16 %v1369, %v1368
        %v1482 = vpack.c.b16 %v1370, %v1370
        %v1483 = vpack.c.b16 %v1372, %v1371
        %v1484 = vpack.c.b16 %v1374, %v1373
        %v1485 = vpack.c.b16 %v1375, %v1375
        %v1486 = vpack.c.b16 %v1377, %v1376
        %v1487 = vpack.c.b16 %v1379, %v1378
        %v1488 = vpack.c.b16 %v1380, %v1380
        %v1489 = vpack.c.b16 %v1382, %v1381
        %v1490 = vpack.c.b16 %v1384, %v1383
        %v1491 = vpack.c.b16 %v1385, %v1385
        %v1492 = vpack.c.b16 %v1387, %v1386
        %v1493 = vpack.c.b16 %v1389, %v1388
        %v1494 = vpack.c.b16 %v1390, %v1390
        %v1495 = vpack.c.b16 %v1392, %v1391
        %v1496 = vpack.c.b16 %v1394, %v1393
        %v1497 = vpack.c.b16 %v1395, %v1395
        %vm1498 = vsmask.f32 7424
        %v1500 = vshrl.u32 %v1396, 16
        %v1502 = vshll.u32 %v1396, 16
        %v1504 = vrot.slane %v1502, 1
        %v1505 = vor.u32 %v1500, %v1504
        %v1507 = vshll.u32 %v1397, 16
        %v1509 = vrot.slane %v1507, 1
        %v1510 = vsel %vm1498, %v1505, %v1509
        %v1511 = vshrl.u32 %v1397, 16
        %v1513 = vor.u32 %v1511, %v1509
        %v1515 = vshll.u32 %v1398, 16
        %v1517 = vrot.slane %v1515, 1
        %v1518 = vsel %vm1498, %v1513, %v1517
        %v1520 = vshrl.u32 %v1399, 16
        %v1522 = vshll.u32 %v1399, 16
        %v1524 = vrot.slane %v1522, 1
        %v1525 = vor.u32 %v1520, %v1524
        %v1527 = vshll.u32 %v1400, 16
        %v1529 = vrot.slane %v1527, 1
        %v1530 = vsel %vm1498, %v1525, %v1529
        %v1531 = vshrl.u32 %v1400, 16
        %v1533 = vor.u32 %v1531, %v1529
        %v1535 = vshll.u32 %v1401, 16
        %v1537 = vrot.slane %v1535, 1
        %v1538 = vsel %vm1498, %v1533, %v1537
        %v1540 = vshrl.u32 %v1402, 16
        %v1542 = vshll.u32 %v1402, 16
        %v1544 = vrot.slane %v1542, 1
        %v1545 = vor.u32 %v1540, %v1544
        %v1547 = vshll.u32 %v1403, 16
        %v1549 = vrot.slane %v1547, 1
        %v1550 = vsel %vm1498, %v1545, %v1549
        %v1551 = vshrl.u32 %v1403, 16
        %v1553 = vor.u32 %v1551, %v1549
        %v1555 = vshll.u32 %v1404, 16
        %v1557 = vrot.slane %v1555, 1
        %v1558 = vsel %vm1498, %v1553, %v1557
        %v1560 = vshrl.u32 %v1405, 16
        %v1562 = vshll.u32 %v1405, 16
        %v1564 = vrot.slane %v1562, 1
        %v1565 = vor.u32 %v1560, %v1564
        %v1567 = vshll.u32 %v1406, 16
        %v1569 = vrot.slane %v1567, 1
        %v1570 = vsel %vm1498, %v1565, %v1569
        %v1571 = vshrl.u32 %v1406, 16
        %v1573 = vor.u32 %v1571, %v1569
        %v1575 = vshll.u32 %v1407, 16
        %v1577 = vrot.slane %v1575, 1
        %v1578 = vsel %vm1498, %v1573, %v1577
        %v1580 = vshrl.u32 %v1408, 16
        %v1582 = vshll.u32 %v1408, 16
        %v1584 = vrot.slane %v1582, 1
        %v1585 = vor.u32 %v1580, %v1584
        %v1587 = vshll.u32 %v1409, 16
        %v1589 = vrot.slane %v1587, 1
        %v1590 = vsel %vm1498, %v1585, %v1589
        %v1591 = vshrl.u32 %v1409, 16
        %v1593 = vor.u32 %v1591, %v1589
        %v1595 = vshll.u32 %v1410, 16
        %v1597 = vrot.slane %v1595, 1
        %v1598 = vsel %vm1498, %v1593, %v1597
        %v1600 = vshrl.u32 %v1411, 16
        %v1602 = vshll.u32 %v1411, 16
        %v1604 = vrot.slane %v1602, 1
        %v1605 = vor.u32 %v1600, %v1604
        %v1607 = vshll.u32 %v1412, 16
        %v1609 = vrot.slane %v1607, 1
        %v1610 = vsel %vm1498, %v1605, %v1609
        %v1611 = vshrl.u32 %v1412, 16
        %v1613 = vor.u32 %v1611, %v1609
        %v1615 = vshll.u32 %v1413, 16
        %v1617 = vrot.slane %v1615, 1
        %v1618 = vsel %vm1498, %v1613, %v1617
        %v1620 = vshrl.u32 %v1414, 16
        %v1622 = vshll.u32 %v1414, 16
        %v1624 = vrot.slane %v1622, 1
        %v1625 = vor.u32 %v1620, %v1624
        %v1627 = vshll.u32 %v1415, 16
        %v1629 = vrot.slane %v1627, 1
        %v1630 = vsel %vm1498, %v1625, %v1629
        %v1631 = vshrl.u32 %v1415, 16
        %v1633 = vor.u32 %v1631, %v1629
        %v1635 = vshll.u32 %v1416, 16
        %v1637 = vrot.slane %v1635, 1
        %v1638 = vsel %vm1498, %v1633, %v1637
        %v1640 = vshrl.u32 %v1417, 16
        %v1642 = vshll.u32 %v1417, 16
        %v1644 = vrot.slane %v1642, 1
        %v1645 = vor.u32 %v1640, %v1644
        %v1647 = vshll.u32 %v1418, 16
        %v1649 = vrot.slane %v1647, 1
        %v1650 = vsel %vm1498, %v1645, %v1649
        %v1651 = vshrl.u32 %v1418, 16
        %v1653 = vor.u32 %v1651, %v1649
        %v1655 = vshll.u32 %v1419, 16
        %v1657 = vrot.slane %v1655, 1
        %v1658 = vsel %vm1498, %v1653, %v1657
        %v1660 = vshrl.u32 %v1420, 16
        %v1662 = vshll.u32 %v1420, 16
        %v1664 = vrot.slane %v1662, 1
        %v1665 = vor.u32 %v1660, %v1664
        %v1667 = vshll.u32 %v1421, 16
        %v1669 = vrot.slane %v1667, 1
        %v1670 = vsel %vm1498, %v1665, %v1669
        %v1671 = vshrl.u32 %v1421, 16
        %v1673 = vor.u32 %v1671, %v1669
        %v1675 = vshll.u32 %v1422, 16
        %v1677 = vrot.slane %v1675, 1
        %v1678 = vsel %vm1498, %v1673, %v1677
        %v1680 = vshrl.u32 %v1423, 16
        %v1682 = vshll.u32 %v1423, 16
        %v1684 = vrot.slane %v1682, 1
        %v1685 = vor.u32 %v1680, %v1684
        %v1687 = vshll.u32 %v1424, 16
        %v1689 = vrot.slane %v1687, 1
        %v1690 = vsel %vm1498, %v1685, %v1689
        %v1691 = vshrl.u32 %v1424, 16
        %v1693 = vor.u32 %v1691, %v1689
        %v1695 = vshll.u32 %v1425, 16
        %v1697 = vrot.slane %v1695, 1
        %v1698 = vsel %vm1498, %v1693, %v1697
        %v1700 = vshrl.u32 %v1426, 16
        %v1702 = vshll.u32 %v1426, 16
        %v1704 = vrot.slane %v1702, 1
        %v1705 = vor.u32 %v1700, %v1704
        %v1707 = vshll.u32 %v1427, 16
        %v1709 = vrot.slane %v1707, 1
        %v1710 = vsel %vm1498, %v1705, %v1709
        %v1711 = vshrl.u32 %v1427, 16
        %v1713 = vor.u32 %v1711, %v1709
        %v1715 = vshll.u32 %v1428, 16
        %v1717 = vrot.slane %v1715, 1
        %v1718 = vsel %vm1498, %v1713, %v1717
        %v1720 = vshrl.u32 %v1429, 16
        %v1722 = vshll.u32 %v1429, 16
        %v1724 = vrot.slane %v1722, 1
        %v1725 = vor.u32 %v1720, %v1724
        %v1727 = vshll.u32 %v1430, 16
        %v1729 = vrot.slane %v1727, 1
        %v1730 = vsel %vm1498, %v1725, %v1729
        %v1731 = vshrl.u32 %v1430, 16
        %v1733 = vor.u32 %v1731, %v1729
        %v1735 = vshll.u32 %v1431, 16
        %v1737 = vrot.slane %v1735, 1
        %v1738 = vsel %vm1498, %v1733, %v1737
        %v1740 = vshrl.u32 %v1432, 16
        %v1742 = vshll.u32 %v1432, 16
        %v1744 = vrot.slane %v1742, 1
        %v1745 = vor.u32 %v1740, %v1744
        %v1747 = vshll.u32 %v1433, 16
        %v1749 = vrot.slane %v1747, 1
        %v1750 = vsel %vm1498, %v1745, %v1749
        %v1751 = vshrl.u32 %v1433, 16
        %v1753 = vor.u32 %v1751, %v1749
        %v1755 = vshll.u32 %v1434, 16
        %v1757 = vrot.slane %v1755, 1
        %v1758 = vsel %vm1498, %v1753, %v1757
        %v1760 = vshrl.u32 %v1435, 16
        %v1762 = vshll.u32 %v1435, 16
        %v1764 = vrot.slane %v1762, 1
        %v1765 = vor.u32 %v1760, %v1764
        %v1767 = vshll.u32 %v1436, 16
        %v1769 = vrot.slane %v1767, 1
        %v1770 = vsel %vm1498, %v1765, %v1769
        %v1771 = vshrl.u32 %v1436, 16
        %v1773 = vor.u32 %v1771, %v1769
        %v1775 = vshll.u32 %v1437, 16
        %v1777 = vrot.slane %v1775, 1
        %v1778 = vsel %vm1498, %v1773, %v1777
        %v1780 = vshrl.u32 %v1438, 16
        %v1782 = vshll.u32 %v1438, 16
        %v1784 = vrot.slane %v1782, 1
        %v1785 = vor.u32 %v1780, %v1784
        %v1787 = vshll.u32 %v1439, 16
        %v1789 = vrot.slane %v1787, 1
        %v1790 = vsel %vm1498, %v1785, %v1789
        %v1791 = vshrl.u32 %v1439, 16
        %v1793 = vor.u32 %v1791, %v1789
        %v1795 = vshll.u32 %v1440, 16
        %v1797 = vrot.slane %v1795, 1
        %v1798 = vsel %vm1498, %v1793, %v1797
        %v1800 = vshrl.u32 %v1441, 16
        %v1802 = vshll.u32 %v1441, 16
        %v1804 = vrot.slane %v1802, 1
        %v1805 = vor.u32 %v1800, %v1804
        %v1807 = vshll.u32 %v1442, 16
        %v1809 = vrot.slane %v1807, 1
        %v1810 = vsel %vm1498, %v1805, %v1809
        %v1811 = vshrl.u32 %v1442, 16
        %v1813 = vor.u32 %v1811, %v1809
        %v1815 = vshll.u32 %v1443, 16
        %v1817 = vrot.slane %v1815, 1
        %v1818 = vsel %vm1498, %v1813, %v1817
        %v1820 = vshrl.u32 %v1444, 16
        %v1822 = vshll.u32 %v1444, 16
        %v1824 = vrot.slane %v1822, 1
        %v1825 = vor.u32 %v1820, %v1824
        %v1827 = vshll.u32 %v1445, 16
        %v1829 = vrot.slane %v1827, 1
        %v1830 = vsel %vm1498, %v1825, %v1829
        %v1831 = vshrl.u32 %v1445, 16
        %v1833 = vor.u32 %v1831, %v1829
        %v1835 = vshll.u32 %v1446, 16
        %v1837 = vrot.slane %v1835, 1
        %v1838 = vsel %vm1498, %v1833, %v1837
        %v1840 = vshrl.u32 %v1447, 16
        %v1842 = vshll.u32 %v1447, 16
        %v1844 = vrot.slane %v1842, 1
        %v1845 = vor.u32 %v1840, %v1844
        %v1847 = vshll.u32 %v1448, 16
        %v1849 = vrot.slane %v1847, 1
        %v1850 = vsel %vm1498, %v1845, %v1849
        %v1851 = vshrl.u32 %v1448, 16
        %v1853 = vor.u32 %v1851, %v1849
        %v1855 = vshll.u32 %v1449, 16
        %v1857 = vrot.slane %v1855, 1
        %v1858 = vsel %vm1498, %v1853, %v1857
        %v1860 = vshrl.u32 %v1450, 16
        %v1862 = vshll.u32 %v1450, 16
        %v1864 = vrot.slane %v1862, 1
        %v1865 = vor.u32 %v1860, %v1864
        %v1867 = vshll.u32 %v1451, 16
        %v1869 = vrot.slane %v1867, 1
        %v1870 = vsel %vm1498, %v1865, %v1869
        %v1871 = vshrl.u32 %v1451, 16
        %v1873 = vor.u32 %v1871, %v1869
        %v1875 = vshll.u32 %v1452, 16
        %v1877 = vrot.slane %v1875, 1
        %v1878 = vsel %vm1498, %v1873, %v1877
        %v1880 = vshrl.u32 %v1453, 16
        %v1882 = vshll.u32 %v1453, 16
        %v1884 = vrot.slane %v1882, 1
        %v1885 = vor.u32 %v1880, %v1884
        %v1887 = vshll.u32 %v1454, 16
        %v1889 = vrot.slane %v1887, 1
        %v1890 = vsel %vm1498, %v1885, %v1889
        %v1891 = vshrl.u32 %v1454, 16
        %v1893 = vor.u32 %v1891, %v1889
        %v1895 = vshll.u32 %v1455, 16
        %v1897 = vrot.slane %v1895, 1
        %v1898 = vsel %vm1498, %v1893, %v1897
        %v1900 = vshrl.u32 %v1456, 16
        %v1902 = vshll.u32 %v1456, 16
        %v1904 = vrot.slane %v1902, 1
        %v1905 = vor.u32 %v1900, %v1904
        %v1907 = vshll.u32 %v1457, 16
        %v1909 = vrot.slane %v1907, 1
        %v1910 = vsel %vm1498, %v1905, %v1909
        %v1911 = vshrl.u32 %v1457, 16
        %v1913 = vor.u32 %v1911, %v1909
        %v1915 = vshll.u32 %v1458, 16
        %v1917 = vrot.slane %v1915, 1
        %v1918 = vsel %vm1498, %v1913, %v1917
        %v1920 = vshrl.u32 %v1459, 16
        %v1922 = vshll.u32 %v1459, 16
        %v1924 = vrot.slane %v1922, 1
        %v1925 = vor.u32 %v1920, %v1924
        %v1927 = vshll.u32 %v1460, 16
        %v1929 = vrot.slane %v1927, 1
        %v1930 = vsel %vm1498, %v1925, %v1929
        %v1931 = vshrl.u32 %v1460, 16
        %v1933 = vor.u32 %v1931, %v1929
        %v1935 = vshll.u32 %v1461, 16
        %v1937 = vrot.slane %v1935, 1
        %v1938 = vsel %vm1498, %v1933, %v1937
        %v1940 = vshrl.u32 %v1462, 16
        %v1942 = vshll.u32 %v1462, 16
        %v1944 = vrot.slane %v1942, 1
        %v1945 = vor.u32 %v1940, %v1944
        %v1947 = vshll.u32 %v1463, 16
        %v1949 = vrot.slane %v1947, 1
        %v1950 = vsel %vm1498, %v1945, %v1949
        %v1951 = vshrl.u32 %v1463, 16
        %v1953 = vor.u32 %v1951, %v1949
        %v1955 = vshll.u32 %v1464, 16
        %v1957 = vrot.slane %v1955, 1
        %v1958 = vsel %vm1498, %v1953, %v1957
        %v1960 = vshrl.u32 %v1465, 16
        %v1962 = vshll.u32 %v1465, 16
        %v1964 = vrot.slane %v1962, 1
        %v1965 = vor.u32 %v1960, %v1964
        %v1967 = vshll.u32 %v1466, 16
        %v1969 = vrot.slane %v1967, 1
        %v1970 = vsel %vm1498, %v1965, %v1969
        %v1971 = vshrl.u32 %v1466, 16
        %v1973 = vor.u32 %v1971, %v1969
        %v1975 = vshll.u32 %v1467, 16
        %v1977 = vrot.slane %v1975, 1
        %v1978 = vsel %vm1498, %v1973, %v1977
        %v1980 = vshrl.u32 %v1468, 16
        %v1982 = vshll.u32 %v1468, 16
        %v1984 = vrot.slane %v1982, 1
        %v1985 = vor.u32 %v1980, %v1984
        %v1987 = vshll.u32 %v1469, 16
        %v1989 = vrot.slane %v1987, 1
        %v1990 = vsel %vm1498, %v1985, %v1989
        %v1991 = vshrl.u32 %v1469, 16
        %v1993 = vor.u32 %v1991, %v1989
        %v1995 = vshll.u32 %v1470, 16
        %v1997 = vrot.slane %v1995, 1
        %v1998 = vsel %vm1498, %v1993, %v1997
        %v2000 = vshrl.u32 %v1471, 16
        %v2002 = vshll.u32 %v1471, 16
        %v2004 = vrot.slane %v2002, 1
        %v2005 = vor.u32 %v2000, %v2004
        %v2007 = vshll.u32 %v1472, 16
        %v2009 = vrot.slane %v2007, 1
        %v2010 = vsel %vm1498, %v2005, %v2009
        %v2011 = vshrl.u32 %v1472, 16
        %v2013 = vor.u32 %v2011, %v2009
        %v2015 = vshll.u32 %v1473, 16
        %v2017 = vrot.slane %v2015, 1
        %v2018 = vsel %vm1498, %v2013, %v2017
        %v2020 = vshrl.u32 %v1474, 16
        %v2022 = vshll.u32 %v1474, 16
        %v2024 = vrot.slane %v2022, 1
        %v2025 = vor.u32 %v2020, %v2024
        %v2027 = vshll.u32 %v1475, 16
        %v2029 = vrot.slane %v2027, 1
        %v2030 = vsel %vm1498, %v2025, %v2029
        %v2031 = vshrl.u32 %v1475, 16
        %v2033 = vor.u32 %v2031, %v2029
        %v2035 = vshll.u32 %v1476, 16
        %v2037 = vrot.slane %v2035, 1
        %v2038 = vsel %vm1498, %v2033, %v2037
        %v2040 = vshrl.u32 %v1477, 16
        %v2042 = vshll.u32 %v1477, 16
        %v2044 = vrot.slane %v2042, 1
        %v2045 = vor.u32 %v2040, %v2044
        %v2047 = vshll.u32 %v1478, 16
        %v2049 = vrot.slane %v2047, 1
        %v2050 = vsel %vm1498, %v2045, %v2049
        %v2051 = vshrl.u32 %v1478, 16
        %v2053 = vor.u32 %v2051, %v2049
        %v2055 = vshll.u32 %v1479, 16
        %v2057 = vrot.slane %v2055, 1
        %v2058 = vsel %vm1498, %v2053, %v2057
        %v2060 = vshrl.u32 %v1480, 16
        %v2062 = vshll.u32 %v1480, 16
        %v2064 = vrot.slane %v2062, 1
        %v2065 = vor.u32 %v2060, %v2064
        %v2067 = vshll.u32 %v1481, 16
        %v2069 = vrot.slane %v2067, 1
        %v2070 = vsel %vm1498, %v2065, %v2069
        %v2071 = vshrl.u32 %v1481, 16
        %v2073 = vor.u32 %v2071, %v2069
        %v2075 = vshll.u32 %v1482, 16
        %v2077 = vrot.slane %v2075, 1
        %v2078 = vsel %vm1498, %v2073, %v2077
        %v2080 = vshrl.u32 %v1483, 16
        %v2082 = vshll.u32 %v1483, 16
        %v2084 = vrot.slane %v2082, 1
        %v2085 = vor.u32 %v2080, %v2084
        %v2087 = vshll.u32 %v1484, 16
        %v2089 = vrot.slane %v2087, 1
        %v2090 = vsel %vm1498, %v2085, %v2089
        %v2091 = vshrl.u32 %v1484, 16
        %v2093 = vor.u32 %v2091, %v2089
        %v2095 = vshll.u32 %v1485, 16
        %v2097 = vrot.slane %v2095, 1
        %v2098 = vsel %vm1498, %v2093, %v2097
        %v2100 = vshrl.u32 %v1486, 16
        %v2102 = vshll.u32 %v1486, 16
        %v2104 = vrot.slane %v2102, 1
        %v2105 = vor.u32 %v2100, %v2104
        %v2107 = vshll.u32 %v1487, 16
        %v2109 = vrot.slane %v2107, 1
        %v2110 = vsel %vm1498, %v2105, %v2109
        %v2111 = vshrl.u32 %v1487, 16
        %v2113 = vor.u32 %v2111, %v2109
        %v2115 = vshll.u32 %v1488, 16
        %v2117 = vrot.slane %v2115, 1
        %v2118 = vsel %vm1498, %v2113, %v2117
        %v2120 = vshrl.u32 %v1489, 16
        %v2122 = vshll.u32 %v1489, 16
        %v2124 = vrot.slane %v2122, 1
        %v2125 = vor.u32 %v2120, %v2124
        %v2127 = vshll.u32 %v1490, 16
        %v2129 = vrot.slane %v2127, 1
        %v2130 = vsel %vm1498, %v2125, %v2129
        %v2131 = vshrl.u32 %v1490, 16
        %v2133 = vor.u32 %v2131, %v2129
        %v2135 = vshll.u32 %v1491, 16
        %v2137 = vrot.slane %v2135, 1
        %v2138 = vsel %vm1498, %v2133, %v2137
        %v2140 = vshrl.u32 %v1492, 16
        %v2142 = vshll.u32 %v1492, 16
        %v2144 = vrot.slane %v2142, 1
        %v2145 = vor.u32 %v2140, %v2144
        %v2147 = vshll.u32 %v1493, 16
        %v2149 = vrot.slane %v2147, 1
        %v2150 = vsel %vm1498, %v2145, %v2149
        %v2151 = vshrl.u32 %v1493, 16
        %v2153 = vor.u32 %v2151, %v2149
        %v2155 = vshll.u32 %v1494, 16
        %v2157 = vrot.slane %v2155, 1
        %v2158 = vsel %vm1498, %v2153, %v2157
        %v2160 = vshrl.u32 %v1495, 16
        %v2162 = vshll.u32 %v1495, 16
        %v2164 = vrot.slane %v2162, 1
        %v2165 = vor.u32 %v2160, %v2164
        %v2167 = vshll.u32 %v1496, 16
        %v2169 = vrot.slane %v2167, 1
        %v2170 = vsel %vm1498, %v2165, %v2169
        %v2171 = vshrl.u32 %v1496, 16
        %v2173 = vor.u32 %v2171, %v2169
        %v2175 = vshll.u32 %v1497, 16
        %v2177 = vrot.slane %v2175, 1
        %v2178 = vsel %vm1498, %v2173, %v2177
        %s2247 = scalar_lea.vmem [#allocation2], 544
        %2248 = vst.msk [vmem:[%s2247] sm:$0xff] %vm817, %v1510
        %2249 = vst.msk [vmem:[%s2247 + $0x8] sm:$0xff] %vm817, %v1518
        %2250 = vst.msk [vmem:[%s2247 + $0x10] sm:$0xff] %vm817, %v1530
        %2251 = vst.msk [vmem:[%s2247 + $0x18] sm:$0xff] %vm817, %v1538
        %2252 = vst.msk [vmem:[%s2247 + $0x20] sm:$0xff] %vm817, %v1550
        %2253 = vst.msk [vmem:[%s2247 + $0x28] sm:$0xff] %vm817, %v1558
        %2254 = vst.msk [vmem:[%s2247 + $0x30] sm:$0xff] %vm817, %v1570
        %2255 = vst.msk [vmem:[%s2247 + $0x38] sm:$0xff] %vm817, %v1578
        %2256 = vst.msk [vmem:[%s2247 + $0x40] sm:$0xff] %vm817, %v1590
        %2257 = vst.msk [vmem:[%s2247 + $0x48] sm:$0xff] %vm817, %v1598
        %2258 = vst.msk [vmem:[%s2247 + $0x50] sm:$0xff] %vm817, %v1610
        %2259 = vst.msk [vmem:[%s2247 + $0x58] sm:$0xff] %vm817, %v1618
        %2260 = vst.msk [vmem:[%s2247 + $0x60] sm:$0xff] %vm817, %v1630
        %2261 = vst.msk [vmem:[%s2247 + $0x68] sm:$0xff] %vm817, %v1638
        %2262 = vst.msk [vmem:[%s2247 + $0x70] sm:$0xff] %vm817, %v1650
        %2263 = vst.msk [vmem:[%s2247 + $0x78] sm:$0xff] %vm817, %v1658
        %2264 = vst.msk [vmem:[%s2247 + $0x80] sm:$0xff] %vm817, %v1670
        %2265 = vst.msk [vmem:[%s2247 + $0x88] sm:$0xff] %vm817, %v1678
        %2266 = vst.msk [vmem:[%s2247 + $0x90] sm:$0xff] %vm817, %v1690
        %2267 = vst.msk [vmem:[%s2247 + $0x98] sm:$0xff] %vm817, %v1698
        %2268 = vst.msk [vmem:[%s2247 + $0xa0] sm:$0xff] %vm817, %v1710
        %2269 = vst.msk [vmem:[%s2247 + $0xa8] sm:$0xff] %vm817, %v1718
        %2270 = vst.msk [vmem:[%s2247 + $0xb0] sm:$0xff] %vm817, %v1730
        %2271 = vst.msk [vmem:[%s2247 + $0xb8] sm:$0xff] %vm817, %v1738
        %2272 = vst.msk [vmem:[%s2247 + $0xc0] sm:$0xff] %vm817, %v1750
        %2273 = vst.msk [vmem:[%s2247 + $0xc8] sm:$0xff] %vm817, %v1758
        %2274 = vst.msk [vmem:[%s2247 + $0xd0] sm:$0xff] %vm817, %v1770
        %2275 = vst.msk [vmem:[%s2247 + $0xd8] sm:$0xff] %vm817, %v1778
        %2276 = vst.msk [vmem:[%s2247 + $0xe0] sm:$0xff] %vm817, %v1790
        %2277 = vst.msk [vmem:[%s2247 + $0xe8] sm:$0xff] %vm817, %v1798
        %2278 = vst.msk [vmem:[%s2247 + $0xf0] sm:$0xff] %vm817, %v1810
        %2279 = vst.msk [vmem:[%s2247 + $0xf8] sm:$0xff] %vm817, %v1818
        %2280 = vst.msk [vmem:[%s2247 + $0x100] sm:$0xff] %vm817, %v1830
        %2281 = vst.msk [vmem:[%s2247 + $0x108] sm:$0xff] %vm817, %v1838
        %2282 = vst.msk [vmem:[%s2247 + $0x110] sm:$0xff] %vm817, %v1850
        %2283 = vst.msk [vmem:[%s2247 + $0x118] sm:$0xff] %vm817, %v1858
        %2284 = vst.msk [vmem:[%s2247 + $0x120] sm:$0xff] %vm817, %v1870
        %2285 = vst.msk [vmem:[%s2247 + $0x128] sm:$0xff] %vm817, %v1878
        %2286 = vst.msk [vmem:[%s2247 + $0x130] sm:$0xff] %vm817, %v1890
        %2287 = vst.msk [vmem:[%s2247 + $0x138] sm:$0xff] %vm817, %v1898
        %2288 = vst.msk [vmem:[%s2247 + $0x140] sm:$0xff] %vm817, %v1910
        %2289 = vst.msk [vmem:[%s2247 + $0x148] sm:$0xff] %vm817, %v1918
        %2290 = vst.msk [vmem:[%s2247 + $0x150] sm:$0xff] %vm817, %v1930
        %2291 = vst.msk [vmem:[%s2247 + $0x158] sm:$0xff] %vm817, %v1938
        %2292 = vst.msk [vmem:[%s2247 + $0x160] sm:$0xff] %vm817, %v1950
        %2293 = vst.msk [vmem:[%s2247 + $0x168] sm:$0xff] %vm817, %v1958
        %2294 = vst.msk [vmem:[%s2247 + $0x170] sm:$0xff] %vm817, %v1970
        %2295 = vst.msk [vmem:[%s2247 + $0x178] sm:$0xff] %vm817, %v1978
        %2296 = vst.msk [vmem:[%s2247 + $0x180] sm:$0xff] %vm817, %v1990
        %2297 = vst.msk [vmem:[%s2247 + $0x188] sm:$0xff] %vm817, %v1998
        %2298 = vst.msk [vmem:[%s2247 + $0x190] sm:$0xff] %vm817, %v2010
        %2299 = vst.msk [vmem:[%s2247 + $0x198] sm:$0xff] %vm817, %v2018
        %2300 = vst.msk [vmem:[%s2247 + $0x1a0] sm:$0xff] %vm817, %v2030
        %2301 = vst.msk [vmem:[%s2247 + $0x1a8] sm:$0xff] %vm817, %v2038
        %2302 = vst.msk [vmem:[%s2247 + $0x1b0] sm:$0xff] %vm817, %v2050
        %2303 = vst.msk [vmem:[%s2247 + $0x1b8] sm:$0xff] %vm817, %v2058
        %2304 = vst.msk [vmem:[%s2247 + $0x1c0] sm:$0xff] %vm817, %v2070
        %2305 = vst.msk [vmem:[%s2247 + $0x1c8] sm:$0xff] %vm817, %v2078
        %2306 = vst.msk [vmem:[%s2247 + $0x1d0] sm:$0xff] %vm817, %v2090
        %2307 = vst.msk [vmem:[%s2247 + $0x1d8] sm:$0xff] %vm817, %v2098
        %2308 = vst.msk [vmem:[%s2247 + $0x1e0] sm:$0xff] %vm817, %v2110
        %2309 = vst.msk [vmem:[%s2247 + $0x1e8] sm:$0xff] %vm817, %v2118
        %2310 = vst.msk [vmem:[%s2247 + $0x1f0] sm:$0xff] %vm817, %v2130
        %2311 = vst.msk [vmem:[%s2247 + $0x1f8] sm:$0xff] %vm817, %v2138
        %2312 = vst.msk [vmem:[%s2247 + $0x200] sm:$0xff] %vm817, %v2150
        %2313 = vst.msk [vmem:[%s2247 + $0x208] sm:$0xff] %vm817, %v2158
        %2314 = vst.msk [vmem:[%s2247 + $0x210] sm:$0xff] %vm817, %v2170
        %2315 = vst.msk [vmem:[%s2247 + $0x218] sm:$0xff] %vm817, %v2178
        %v2316 = vld [vmem:[%s259] sm:$0xe]
        %v2317 = vld [vmem:[%s259 + $0x4] sm:$0xf]
        %v2318 = vld [vmem:[%s259 + $0x8] sm:$0xf]
        %v2319 = vld [vmem:[%s259 + $0xc] sm:$0xf]
        %v2320 = vld [vmem:[%s259 + $0x10] sm:$0x1]
        %v2321 = vld [vmem:[%s259 + $0x14] sm:$0xe]
        %v2322 = vld [vmem:[%s259 + $0x18] sm:$0xf]
        %v2323 = vld [vmem:[%s259 + $0x1c] sm:$0xf]
        %v2324 = vld [vmem:[%s259 + $0x20] sm:$0xf]
        %v2325 = vld [vmem:[%s259 + $0x24] sm:$0x1]
        %v2326 = vld [vmem:[%s259 + $0x28] sm:$0xe]
        %v2327 = vld [vmem:[%s259 + $0x2c] sm:$0xf]
        %v2328 = vld [vmem:[%s259 + $0x30] sm:$0xf]
        %v2329 = vld [vmem:[%s259 + $0x34] sm:$0xf]
        %v2330 = vld [vmem:[%s259 + $0x38] sm:$0x1]
        %v2331 = vld [vmem:[%s259 + $0x3c] sm:$0xe]
        %v2332 = vld [vmem:[%s259 + $0x40] sm:$0xf]
        %v2333 = vld [vmem:[%s259 + $0x44] sm:$0xf]
        %v2334 = vld [vmem:[%s259 + $0x48] sm:$0xf]
        %v2335 = vld [vmem:[%s259 + $0x4c] sm:$0x1]
        %v2336 = vld [vmem:[%s259 + $0x50] sm:$0xe]
        %v2337 = vld [vmem:[%s259 + $0x54] sm:$0xf]
        %v2338 = vld [vmem:[%s259 + $0x58] sm:$0xf]
        %v2339 = vld [vmem:[%s259 + $0x5c] sm:$0xf]
        %v2340 = vld [vmem:[%s259 + $0x60] sm:$0x1]
        %v2341 = vld [vmem:[%s259 + $0x64] sm:$0xe]
        %v2342 = vld [vmem:[%s259 + $0x68] sm:$0xf]
        %v2343 = vld [vmem:[%s259 + $0x6c] sm:$0xf]
        %v2344 = vld [vmem:[%s259 + $0x70] sm:$0xf]
        %v2345 = vld [vmem:[%s259 + $0x74] sm:$0x1]
        %v2346 = vld [vmem:[%s259 + $0x78] sm:$0xe]
        %v2347 = vld [vmem:[%s259 + $0x7c] sm:$0xf]
        %v2348 = vld [vmem:[%s259 + $0x80] sm:$0xf]
        %v2349 = vld [vmem:[%s259 + $0x84] sm:$0xf]
        %v2350 = vld [vmem:[%s259 + $0x88] sm:$0x1]
        %v2351 = vld [vmem:[%s259 + $0x8c] sm:$0xe]
        %v2352 = vld [vmem:[%s259 + $0x90] sm:$0xf]
        %v2353 = vld [vmem:[%s259 + $0x94] sm:$0xf]
        %v2354 = vld [vmem:[%s259 + $0x98] sm:$0xf]
        %v2355 = vld [vmem:[%s259 + $0x9c] sm:$0x1]
        %v2356 = vld [vmem:[%s259 + $0xa0] sm:$0xe]
        %v2357 = vld [vmem:[%s259 + $0xa4] sm:$0xf]
        %v2358 = vld [vmem:[%s259 + $0xa8] sm:$0xf]
        %v2359 = vld [vmem:[%s259 + $0xac] sm:$0xf]
        %v2360 = vld [vmem:[%s259 + $0xb0] sm:$0x1]
        %v2361 = vld [vmem:[%s259 + $0xb4] sm:$0xe]
        %v2362 = vld [vmem:[%s259 + $0xb8] sm:$0xf]
        %v2363 = vld [vmem:[%s259 + $0xbc] sm:$0xf]
        %v2364 = vld [vmem:[%s259 + $0xc0] sm:$0xf]
        %v2365 = vld [vmem:[%s259 + $0xc4] sm:$0x1]
        %v2366 = vld [vmem:[%s259 + $0xc8] sm:$0xe]
        %v2367 = vld [vmem:[%s259 + $0xcc] sm:$0xf]
        %v2368 = vld [vmem:[%s259 + $0xd0] sm:$0xf]
        %v2369 = vld [vmem:[%s259 + $0xd4] sm:$0xf]
        %v2370 = vld [vmem:[%s259 + $0xd8] sm:$0x1]
        %v2371 = vld [vmem:[%s259 + $0xdc] sm:$0xe]
        %v2372 = vld [vmem:[%s259 + $0xe0] sm:$0xf]
        %v2373 = vld [vmem:[%s259 + $0xe4] sm:$0xf]
        %v2374 = vld [vmem:[%s259 + $0xe8] sm:$0xf]
        %v2375 = vld [vmem:[%s259 + $0xec] sm:$0x1]
        %v2376 = vld [vmem:[%s259 + $0xf0] sm:$0xe]
        %v2377 = vld [vmem:[%s259 + $0xf4] sm:$0xf]
        %v2378 = vld [vmem:[%s259 + $0xf8] sm:$0xf]
        %v2379 = vld [vmem:[%s259 + $0xfc] sm:$0xf]
        %v2380 = vld [vmem:[%s259 + $0x100] sm:$0x1]
        %v2381 = vld [vmem:[%s259 + $0x104] sm:$0xe]
        %v2382 = vld [vmem:[%s259 + $0x108] sm:$0xf]
        %v2383 = vld [vmem:[%s259 + $0x10c] sm:$0xf]
        %v2384 = vld [vmem:[%s259 + $0x110] sm:$0xf]
        %v2385 = vld [vmem:[%s259 + $0x114] sm:$0x1]
        %v2386 = vld [vmem:[%s259 + $0x118] sm:$0xe]
        %v2387 = vld [vmem:[%s259 + $0x11c] sm:$0xf]
        %v2388 = vld [vmem:[%s259 + $0x120] sm:$0xf]
        %v2389 = vld [vmem:[%s259 + $0x124] sm:$0xf]
        %v2390 = vld [vmem:[%s259 + $0x128] sm:$0x1]
        %v2391 = vld [vmem:[%s259 + $0x12c] sm:$0xe]
        %v2392 = vld [vmem:[%s259 + $0x130] sm:$0xf]
        %v2393 = vld [vmem:[%s259 + $0x134] sm:$0xf]
        %v2394 = vld [vmem:[%s259 + $0x138] sm:$0xf]
        %v2395 = vld [vmem:[%s259 + $0x13c] sm:$0x1]
        %v2396 = vld [vmem:[%s259 + $0x140] sm:$0xe]
        %v2397 = vld [vmem:[%s259 + $0x144] sm:$0xf]
        %v2398 = vld [vmem:[%s259 + $0x148] sm:$0xf]
        %v2399 = vld [vmem:[%s259 + $0x14c] sm:$0xf]
        %v2400 = vld [vmem:[%s259 + $0x150] sm:$0x1]
        %v2401 = vld [vmem:[%s259 + $0x154] sm:$0xe]
        %v2402 = vld [vmem:[%s259 + $0x158] sm:$0xf]
        %v2403 = vld [vmem:[%s259 + $0x15c] sm:$0xf]
        %v2404 = vld [vmem:[%s259 + $0x160] sm:$0xf]
        %v2405 = vld [vmem:[%s259 + $0x164] sm:$0x1]
        %v2406 = vld [vmem:[%s259 + $0x168] sm:$0xe]
        %v2407 = vld [vmem:[%s259 + $0x16c] sm:$0xf]
        %v2408 = vld [vmem:[%s259 + $0x170] sm:$0xf]
        %v2409 = vld [vmem:[%s259 + $0x174] sm:$0xf]
        %v2410 = vld [vmem:[%s259 + $0x178] sm:$0x1]
        %v2411 = vld [vmem:[%s259 + $0x17c] sm:$0xe]
        %v2412 = vld [vmem:[%s259 + $0x180] sm:$0xf]
        %v2413 = vld [vmem:[%s259 + $0x184] sm:$0xf]
        %v2414 = vld [vmem:[%s259 + $0x188] sm:$0xf]
        %v2415 = vld [vmem:[%s259 + $0x18c] sm:$0x1]
        %v2416 = vld [vmem:[%s259 + $0x190] sm:$0xe]
        %v2417 = vld [vmem:[%s259 + $0x194] sm:$0xf]
        %v2418 = vld [vmem:[%s259 + $0x198] sm:$0xf]
        %v2419 = vld [vmem:[%s259 + $0x19c] sm:$0xf]
        %v2420 = vld [vmem:[%s259 + $0x1a0] sm:$0x1]
        %v2421 = vld [vmem:[%s259 + $0x1a4] sm:$0xe]
        %v2422 = vld [vmem:[%s259 + $0x1a8] sm:$0xf]
        %v2423 = vld [vmem:[%s259 + $0x1ac] sm:$0xf]
        %v2424 = vld [vmem:[%s259 + $0x1b0] sm:$0xf]
        %v2425 = vld [vmem:[%s259 + $0x1b4] sm:$0x1]
        %v2426 = vld [vmem:[%s259 + $0x1b8] sm:$0xe]
        %v2427 = vld [vmem:[%s259 + $0x1bc] sm:$0xf]
        %v2428 = vld [vmem:[%s259 + $0x1c0] sm:$0xf]
        %v2429 = vld [vmem:[%s259 + $0x1c4] sm:$0xf]
        %v2430 = vld [vmem:[%s259 + $0x1c8] sm:$0x1]
        %v2431 = vld [vmem:[%s259 + $0x1cc] sm:$0xe]
        %v2432 = vld [vmem:[%s259 + $0x1d0] sm:$0xf]
        %v2433 = vld [vmem:[%s259 + $0x1d4] sm:$0xf]
        %v2434 = vld [vmem:[%s259 + $0x1d8] sm:$0xf]
        %v2435 = vld [vmem:[%s259 + $0x1dc] sm:$0x1]
        %v2436 = vld [vmem:[%s259 + $0x1e0] sm:$0xe]
        %v2437 = vld [vmem:[%s259 + $0x1e4] sm:$0xf]
        %v2438 = vld [vmem:[%s259 + $0x1e8] sm:$0xf]
        %v2439 = vld [vmem:[%s259 + $0x1ec] sm:$0xf]
        %v2440 = vld [vmem:[%s259 + $0x1f0] sm:$0x1]
        %v2441 = vld [vmem:[%s259 + $0x1f4] sm:$0xe]
        %v2442 = vld [vmem:[%s259 + $0x1f8] sm:$0xf]
        %v2443 = vld [vmem:[%s259 + $0x1fc] sm:$0xf]
        %v2444 = vld [vmem:[%s259 + $0x200] sm:$0xf]
        %v2445 = vld [vmem:[%s259 + $0x204] sm:$0x1]
        %v2446 = vld [vmem:[%s259 + $0x208] sm:$0xe]
        %v2447 = vld [vmem:[%s259 + $0x20c] sm:$0xf]
        %v2448 = vld [vmem:[%s259 + $0x210] sm:$0xf]
        %v2449 = vld [vmem:[%s259 + $0x214] sm:$0xf]
        %v2450 = vld [vmem:[%s259 + $0x218] sm:$0x1]
        %v2451 = vld [vmem:[%s259 + $0x21c] sm:$0xe]
        %v2452 = vld [vmem:[%s259 + $0x220] sm:$0xf]
        %v2453 = vld [vmem:[%s259 + $0x224] sm:$0xf]
        %v2454 = vld [vmem:[%s259 + $0x228] sm:$0xf]
        %v2455 = vld [vmem:[%s259 + $0x22c] sm:$0x1]
        %v2456 = vld [vmem:[%s259 + $0x230] sm:$0xe]
        %v2457 = vld [vmem:[%s259 + $0x234] sm:$0xf]
        %v2458 = vld [vmem:[%s259 + $0x238] sm:$0xf]
        %v2459 = vld [vmem:[%s259 + $0x23c] sm:$0xf]
        %v2460 = vld [vmem:[%s259 + $0x240] sm:$0x1]
        %v2461 = vld [vmem:[%s259 + $0x244] sm:$0xe]
        %v2462 = vld [vmem:[%s259 + $0x248] sm:$0xf]
        %v2463 = vld [vmem:[%s259 + $0x24c] sm:$0xf]
        %v2464 = vld [vmem:[%s259 + $0x250] sm:$0xf]
        %v2465 = vld [vmem:[%s259 + $0x254] sm:$0x1]
        %v2466 = vld [vmem:[%s259 + $0x258] sm:$0xe]
        %v2467 = vld [vmem:[%s259 + $0x25c] sm:$0xf]
        %v2468 = vld [vmem:[%s259 + $0x260] sm:$0xf]
        %v2469 = vld [vmem:[%s259 + $0x264] sm:$0xf]
        %v2470 = vld [vmem:[%s259 + $0x268] sm:$0x1]
        %v2471 = vld [vmem:[%s259 + $0x26c] sm:$0xe]
        %v2472 = vld [vmem:[%s259 + $0x270] sm:$0xf]
        %v2473 = vld [vmem:[%s259 + $0x274] sm:$0xf]
        %v2474 = vld [vmem:[%s259 + $0x278] sm:$0xf]
        %v2475 = vld [vmem:[%s259 + $0x27c] sm:$0x1]
        %v2476 = vld [vmem:[%s259 + $0x280] sm:$0xe]
        %v2477 = vld [vmem:[%s259 + $0x284] sm:$0xf]
        %v2478 = vld [vmem:[%s259 + $0x288] sm:$0xf]
        %v2479 = vld [vmem:[%s259 + $0x28c] sm:$0xf]
        %v2480 = vld [vmem:[%s259 + $0x290] sm:$0x1]
        %v2481 = vld [vmem:[%s259 + $0x294] sm:$0xe]
        %v2482 = vld [vmem:[%s259 + $0x298] sm:$0xf]
        %v2483 = vld [vmem:[%s259 + $0x29c] sm:$0xf]
        %v2484 = vld [vmem:[%s259 + $0x2a0] sm:$0xf]
        %v2485 = vld [vmem:[%s259 + $0x2a4] sm:$0x1]
        %v2656 = vunpack.c.l.b16 %v2316
        %v2657 = vunpack.c.l.b16 %v2317
        %v2658 = vunpack.c.l.b16 %v2318
        %v2659 = vunpack.c.l.b16 %v2319
        %v2660 = vunpack.c.l.b16 %v2320
        %v2661 = vunpack.c.l.b16 %v2321
        %v2662 = vunpack.c.l.b16 %v2322
        %v2663 = vunpack.c.l.b16 %v2323
        %v2664 = vunpack.c.l.b16 %v2324
        %v2665 = vunpack.c.l.b16 %v2325
        %v2666 = vunpack.c.l.b16 %v2326
        %v2667 = vunpack.c.l.b16 %v2327
        %v2668 = vunpack.c.l.b16 %v2328
        %v2669 = vunpack.c.l.b16 %v2329
        %v2670 = vunpack.c.l.b16 %v2330
        %v2671 = vunpack.c.l.b16 %v2331
        %v2672 = vunpack.c.l.b16 %v2332
        %v2673 = vunpack.c.l.b16 %v2333
        %v2674 = vunpack.c.l.b16 %v2334
        %v2675 = vunpack.c.l.b16 %v2335
        %v2676 = vunpack.c.l.b16 %v2336
        %v2677 = vunpack.c.l.b16 %v2337
        %v2678 = vunpack.c.l.b16 %v2338
        %v2679 = vunpack.c.l.b16 %v2339
        %v2680 = vunpack.c.l.b16 %v2340
        %v2681 = vunpack.c.l.b16 %v2341
        %v2682 = vunpack.c.l.b16 %v2342
        %v2683 = vunpack.c.l.b16 %v2343
        %v2684 = vunpack.c.l.b16 %v2344
        %v2685 = vunpack.c.l.b16 %v2345
        %v2686 = vunpack.c.l.b16 %v2346
        %v2687 = vunpack.c.l.b16 %v2347
        %v2688 = vunpack.c.l.b16 %v2348
        %v2689 = vunpack.c.l.b16 %v2349
        %v2690 = vunpack.c.l.b16 %v2350
        %v2691 = vunpack.c.l.b16 %v2351
        %v2692 = vunpack.c.l.b16 %v2352
        %v2693 = vunpack.c.l.b16 %v2353
        %v2694 = vunpack.c.l.b16 %v2354
        %v2695 = vunpack.c.l.b16 %v2355
        %v2696 = vunpack.c.l.b16 %v2356
        %v2697 = vunpack.c.l.b16 %v2357
        %v2698 = vunpack.c.l.b16 %v2358
        %v2699 = vunpack.c.l.b16 %v2359
        %v2700 = vunpack.c.l.b16 %v2360
        %v2701 = vunpack.c.l.b16 %v2361
        %v2702 = vunpack.c.l.b16 %v2362
        %v2703 = vunpack.c.l.b16 %v2363
        %v2704 = vunpack.c.l.b16 %v2364
        %v2705 = vunpack.c.l.b16 %v2365
        %v2706 = vunpack.c.l.b16 %v2366
        %v2707 = vunpack.c.l.b16 %v2367
        %v2708 = vunpack.c.l.b16 %v2368
        %v2709 = vunpack.c.l.b16 %v2369
        %v2710 = vunpack.c.l.b16 %v2370
        %v2711 = vunpack.c.l.b16 %v2371
        %v2712 = vunpack.c.l.b16 %v2372
        %v2713 = vunpack.c.l.b16 %v2373
        %v2714 = vunpack.c.l.b16 %v2374
        %v2715 = vunpack.c.l.b16 %v2375
        %v2716 = vunpack.c.l.b16 %v2376
        %v2717 = vunpack.c.l.b16 %v2377
        %v2718 = vunpack.c.l.b16 %v2378
        %v2719 = vunpack.c.l.b16 %v2379
        %v2720 = vunpack.c.l.b16 %v2380
        %v2721 = vunpack.c.l.b16 %v2381
        %v2722 = vunpack.c.l.b16 %v2382
        %v2723 = vunpack.c.l.b16 %v2383
        %v2724 = vunpack.c.l.b16 %v2384
        %v2725 = vunpack.c.l.b16 %v2385
        %v2726 = vunpack.c.l.b16 %v2386
        %v2727 = vunpack.c.l.b16 %v2387
        %v2728 = vunpack.c.l.b16 %v2388
        %v2729 = vunpack.c.l.b16 %v2389
        %v2730 = vunpack.c.l.b16 %v2390
        %v2731 = vunpack.c.l.b16 %v2391
        %v2732 = vunpack.c.l.b16 %v2392
        %v2733 = vunpack.c.l.b16 %v2393
        %v2734 = vunpack.c.l.b16 %v2394
        %v2735 = vunpack.c.l.b16 %v2395
        %v2736 = vunpack.c.l.b16 %v2396
        %v2737 = vunpack.c.l.b16 %v2397
        %v2738 = vunpack.c.l.b16 %v2398
        %v2739 = vunpack.c.l.b16 %v2399
        %v2740 = vunpack.c.l.b16 %v2400
        %v2741 = vunpack.c.l.b16 %v2401
        %v2742 = vunpack.c.l.b16 %v2402
        %v2743 = vunpack.c.l.b16 %v2403
        %v2744 = vunpack.c.l.b16 %v2404
        %v2745 = vunpack.c.l.b16 %v2405
        %v2746 = vunpack.c.l.b16 %v2406
        %v2747 = vunpack.c.l.b16 %v2407
        %v2748 = vunpack.c.l.b16 %v2408
        %v2749 = vunpack.c.l.b16 %v2409
        %v2750 = vunpack.c.l.b16 %v2410
        %v2751 = vunpack.c.l.b16 %v2411
        %v2752 = vunpack.c.l.b16 %v2412
        %v2753 = vunpack.c.l.b16 %v2413
        %v2754 = vunpack.c.l.b16 %v2414
        %v2755 = vunpack.c.l.b16 %v2415
        %v2756 = vunpack.c.l.b16 %v2416
        %v2757 = vunpack.c.l.b16 %v2417
        %v2758 = vunpack.c.l.b16 %v2418
        %v2759 = vunpack.c.l.b16 %v2419
        %v2760 = vunpack.c.l.b16 %v2420
        %v2761 = vunpack.c.l.b16 %v2421
        %v2762 = vunpack.c.l.b16 %v2422
        %v2763 = vunpack.c.l.b16 %v2423
        %v2764 = vunpack.c.l.b16 %v2424
        %v2765 = vunpack.c.l.b16 %v2425
        %v2766 = vunpack.c.l.b16 %v2426
        %v2767 = vunpack.c.l.b16 %v2427
        %v2768 = vunpack.c.l.b16 %v2428
        %v2769 = vunpack.c.l.b16 %v2429
        %v2770 = vunpack.c.l.b16 %v2430
        %v2771 = vunpack.c.l.b16 %v2431
        %v2772 = vunpack.c.l.b16 %v2432
        %v2773 = vunpack.c.l.b16 %v2433
        %v2774 = vunpack.c.l.b16 %v2434
        %v2775 = vunpack.c.l.b16 %v2435
        %v2776 = vunpack.c.l.b16 %v2436
        %v2777 = vunpack.c.l.b16 %v2437
        %v2778 = vunpack.c.l.b16 %v2438
        %v2779 = vunpack.c.l.b16 %v2439
        %v2780 = vunpack.c.l.b16 %v2440
        %v2781 = vunpack.c.l.b16 %v2441
        %v2782 = vunpack.c.l.b16 %v2442
        %v2783 = vunpack.c.l.b16 %v2443
        %v2784 = vunpack.c.l.b16 %v2444
        %v2785 = vunpack.c.l.b16 %v2445
        %v2786 = vunpack.c.l.b16 %v2446
        %v2787 = vunpack.c.l.b16 %v2447
        %v2788 = vunpack.c.l.b16 %v2448
        %v2789 = vunpack.c.l.b16 %v2449
        %v2790 = vunpack.c.l.b16 %v2450
        %v2791 = vunpack.c.l.b16 %v2451
        %v2792 = vunpack.c.l.b16 %v2452
        %v2793 = vunpack.c.l.b16 %v2453
        %v2794 = vunpack.c.l.b16 %v2454
        %v2795 = vunpack.c.l.b16 %v2455
        %v2796 = vunpack.c.l.b16 %v2456
        %v2797 = vunpack.c.l.b16 %v2457
        %v2798 = vunpack.c.l.b16 %v2458
        %v2799 = vunpack.c.l.b16 %v2459
        %v2800 = vunpack.c.l.b16 %v2460
        %v2801 = vunpack.c.l.b16 %v2461
        %v2802 = vunpack.c.l.b16 %v2462
        %v2803 = vunpack.c.l.b16 %v2463
        %v2804 = vunpack.c.l.b16 %v2464
        %v2805 = vunpack.c.l.b16 %v2465
        %v2806 = vunpack.c.l.b16 %v2466
        %v2807 = vunpack.c.l.b16 %v2467
        %v2808 = vunpack.c.l.b16 %v2468
        %v2809 = vunpack.c.l.b16 %v2469
        %v2810 = vunpack.c.l.b16 %v2470
        %v2811 = vunpack.c.l.b16 %v2471
        %v2812 = vunpack.c.l.b16 %v2472
        %v2813 = vunpack.c.l.b16 %v2473
        %v2814 = vunpack.c.l.b16 %v2474
        %v2815 = vunpack.c.l.b16 %v2475
        %v2816 = vunpack.c.l.b16 %v2476
        %v2817 = vunpack.c.l.b16 %v2477
        %v2818 = vunpack.c.l.b16 %v2478
        %v2819 = vunpack.c.l.b16 %v2479
        %v2820 = vunpack.c.l.b16 %v2480
        %v2821 = vunpack.c.l.b16 %v2481
        %v2822 = vunpack.c.l.b16 %v2482
        %v2823 = vunpack.c.l.b16 %v2483
        %v2824 = vunpack.c.l.b16 %v2484
        %v2825 = vunpack.c.l.b16 %v2485
        %v2826 = vpack.c.b16 %v2657, %v2656
        %v2827 = vpack.c.b16 %v2659, %v2658
        %v2828 = vpack.c.b16 %v2660, %v2660
        %v2829 = vpack.c.b16 %v2662, %v2661
        %v2830 = vpack.c.b16 %v2664, %v2663
        %v2831 = vpack.c.b16 %v2665, %v2665
        %v2832 = vpack.c.b16 %v2667, %v2666
        %v2833 = vpack.c.b16 %v2669, %v2668
        %v2834 = vpack.c.b16 %v2670, %v2670
        %v2835 = vpack.c.b16 %v2672, %v2671
        %v2836 = vpack.c.b16 %v2674, %v2673
        %v2837 = vpack.c.b16 %v2675, %v2675
        %v2838 = vpack.c.b16 %v2677, %v2676
        %v2839 = vpack.c.b16 %v2679, %v2678
        %v2840 = vpack.c.b16 %v2680, %v2680
        %v2841 = vpack.c.b16 %v2682, %v2681
        %v2842 = vpack.c.b16 %v2684, %v2683
        %v2843 = vpack.c.b16 %v2685, %v2685
        %v2844 = vpack.c.b16 %v2687, %v2686
        %v2845 = vpack.c.b16 %v2689, %v2688
        %v2846 = vpack.c.b16 %v2690, %v2690
        %v2847 = vpack.c.b16 %v2692, %v2691
        %v2848 = vpack.c.b16 %v2694, %v2693
        %v2849 = vpack.c.b16 %v2695, %v2695
        %v2850 = vpack.c.b16 %v2697, %v2696
        %v2851 = vpack.c.b16 %v2699, %v2698
        %v2852 = vpack.c.b16 %v2700, %v2700
        %v2853 = vpack.c.b16 %v2702, %v2701
        %v2854 = vpack.c.b16 %v2704, %v2703
        %v2855 = vpack.c.b16 %v2705, %v2705
        %v2856 = vpack.c.b16 %v2707, %v2706
        %v2857 = vpack.c.b16 %v2709, %v2708
        %v2858 = vpack.c.b16 %v2710, %v2710
        %v2859 = vpack.c.b16 %v2712, %v2711
        %v2860 = vpack.c.b16 %v2714, %v2713
        %v2861 = vpack.c.b16 %v2715, %v2715
        %v2862 = vpack.c.b16 %v2717, %v2716
        %v2863 = vpack.c.b16 %v2719, %v2718
        %v2864 = vpack.c.b16 %v2720, %v2720
        %v2865 = vpack.c.b16 %v2722, %v2721
        %v2866 = vpack.c.b16 %v2724, %v2723
        %v2867 = vpack.c.b16 %v2725, %v2725
        %v2868 = vpack.c.b16 %v2727, %v2726
        %v2869 = vpack.c.b16 %v2729, %v2728
        %v2870 = vpack.c.b16 %v2730, %v2730
        %v2871 = vpack.c.b16 %v2732, %v2731
        %v2872 = vpack.c.b16 %v2734, %v2733
        %v2873 = vpack.c.b16 %v2735, %v2735
        %v2874 = vpack.c.b16 %v2737, %v2736
        %v2875 = vpack.c.b16 %v2739, %v2738
        %v2876 = vpack.c.b16 %v2740, %v2740
        %v2877 = vpack.c.b16 %v2742, %v2741
        %v2878 = vpack.c.b16 %v2744, %v2743
        %v2879 = vpack.c.b16 %v2745, %v2745
        %v2880 = vpack.c.b16 %v2747, %v2746
        %v2881 = vpack.c.b16 %v2749, %v2748
        %v2882 = vpack.c.b16 %v2750, %v2750
        %v2883 = vpack.c.b16 %v2752, %v2751
        %v2884 = vpack.c.b16 %v2754, %v2753
        %v2885 = vpack.c.b16 %v2755, %v2755
        %v2886 = vpack.c.b16 %v2757, %v2756
        %v2887 = vpack.c.b16 %v2759, %v2758
        %v2888 = vpack.c.b16 %v2760, %v2760
        %v2889 = vpack.c.b16 %v2762, %v2761
        %v2890 = vpack.c.b16 %v2764, %v2763
        %v2891 = vpack.c.b16 %v2765, %v2765
        %v2892 = vpack.c.b16 %v2767, %v2766
        %v2893 = vpack.c.b16 %v2769, %v2768
        %v2894 = vpack.c.b16 %v2770, %v2770
        %v2895 = vpack.c.b16 %v2772, %v2771
        %v2896 = vpack.c.b16 %v2774, %v2773
        %v2897 = vpack.c.b16 %v2775, %v2775
        %v2898 = vpack.c.b16 %v2777, %v2776
        %v2899 = vpack.c.b16 %v2779, %v2778
        %v2900 = vpack.c.b16 %v2780, %v2780
        %v2901 = vpack.c.b16 %v2782, %v2781
        %v2902 = vpack.c.b16 %v2784, %v2783
        %v2903 = vpack.c.b16 %v2785, %v2785
        %v2904 = vpack.c.b16 %v2787, %v2786
        %v2905 = vpack.c.b16 %v2789, %v2788
        %v2906 = vpack.c.b16 %v2790, %v2790
        %v2907 = vpack.c.b16 %v2792, %v2791
        %v2908 = vpack.c.b16 %v2794, %v2793
        %v2909 = vpack.c.b16 %v2795, %v2795
        %v2910 = vpack.c.b16 %v2797, %v2796
        %v2911 = vpack.c.b16 %v2799, %v2798
        %v2912 = vpack.c.b16 %v2800, %v2800
        %v2913 = vpack.c.b16 %v2802, %v2801
        %v2914 = vpack.c.b16 %v2804, %v2803
        %v2915 = vpack.c.b16 %v2805, %v2805
        %v2916 = vpack.c.b16 %v2807, %v2806
        %v2917 = vpack.c.b16 %v2809, %v2808
        %v2918 = vpack.c.b16 %v2810, %v2810
        %v2919 = vpack.c.b16 %v2812, %v2811
        %v2920 = vpack.c.b16 %v2814, %v2813
        %v2921 = vpack.c.b16 %v2815, %v2815
        %v2922 = vpack.c.b16 %v2817, %v2816
        %v2923 = vpack.c.b16 %v2819, %v2818
        %v2924 = vpack.c.b16 %v2820, %v2820
        %v2925 = vpack.c.b16 %v2822, %v2821
        %v2926 = vpack.c.b16 %v2824, %v2823
        %v2927 = vpack.c.b16 %v2825, %v2825
        %vm2928 = vcmask 1046528
        %v2929 = vrot.slane %v2826, 1
        %v2930 = vrot.slane %v2827, 1
        %v2931 = vsel %vm2928, %v2929, %v2930
        %v2932 = vrot.slane %v2828, 1
        %v2933 = vsel %vm2928, %v2930, %v2932
        %v2934 = vrot.slane %v2829, 1
        %v2935 = vrot.slane %v2830, 1
        %v2936 = vsel %vm2928, %v2934, %v2935
        %v2937 = vrot.slane %v2831, 1
        %v2938 = vsel %vm2928, %v2935, %v2937
        %v2939 = vrot.slane %v2832, 1
        %v2940 = vrot.slane %v2833, 1
        %v2941 = vsel %vm2928, %v2939, %v2940
        %v2942 = vrot.slane %v2834, 1
        %v2943 = vsel %vm2928, %v2940, %v2942
        %v2944 = vrot.slane %v2835, 1
        %v2945 = vrot.slane %v2836, 1
        %v2946 = vsel %vm2928, %v2944, %v2945
        %v2947 = vrot.slane %v2837, 1
        %v2948 = vsel %vm2928, %v2945, %v2947
        %v2949 = vrot.slane %v2838, 1
        %v2950 = vrot.slane %v2839, 1
        %v2951 = vsel %vm2928, %v2949, %v2950
        %v2952 = vrot.slane %v2840, 1
        %v2953 = vsel %vm2928, %v2950, %v2952
        %v2954 = vrot.slane %v2841, 1
        %v2955 = vrot.slane %v2842, 1
        %v2956 = vsel %vm2928, %v2954, %v2955
        %v2957 = vrot.slane %v2843, 1
        %v2958 = vsel %vm2928, %v2955, %v2957
        %v2959 = vrot.slane %v2844, 1
        %v2960 = vrot.slane %v2845, 1
        %v2961 = vsel %vm2928, %v2959, %v2960
        %v2962 = vrot.slane %v2846, 1
        %v2963 = vsel %vm2928, %v2960, %v2962
        %v2964 = vrot.slane %v2847, 1
        %v2965 = vrot.slane %v2848, 1
        %v2966 = vsel %vm2928, %v2964, %v2965
        %v2967 = vrot.slane %v2849, 1
        %v2968 = vsel %vm2928, %v2965, %v2967
        %v2969 = vrot.slane %v2850, 1
        %v2970 = vrot.slane %v2851, 1
        %v2971 = vsel %vm2928, %v2969, %v2970
        %v2972 = vrot.slane %v2852, 1
        %v2973 = vsel %vm2928, %v2970, %v2972
        %v2974 = vrot.slane %v2853, 1
        %v2975 = vrot.slane %v2854, 1
        %v2976 = vsel %vm2928, %v2974, %v2975
        %v2977 = vrot.slane %v2855, 1
        %v2978 = vsel %vm2928, %v2975, %v2977
        %v2979 = vrot.slane %v2856, 1
        %v2980 = vrot.slane %v2857, 1
        %v2981 = vsel %vm2928, %v2979, %v2980
        %v2982 = vrot.slane %v2858, 1
        %v2983 = vsel %vm2928, %v2980, %v2982
        %v2984 = vrot.slane %v2859, 1
        %v2985 = vrot.slane %v2860, 1
        %v2986 = vsel %vm2928, %v2984, %v2985
        %v2987 = vrot.slane %v2861, 1
        %v2988 = vsel %vm2928, %v2985, %v2987
        %v2989 = vrot.slane %v2862, 1
        %v2990 = vrot.slane %v2863, 1
        %v2991 = vsel %vm2928, %v2989, %v2990
        %v2992 = vrot.slane %v2864, 1
        %v2993 = vsel %vm2928, %v2990, %v2992
        %v2994 = vrot.slane %v2865, 1
        %v2995 = vrot.slane %v2866, 1
        %v2996 = vsel %vm2928, %v2994, %v2995
        %v2997 = vrot.slane %v2867, 1
        %v2998 = vsel %vm2928, %v2995, %v2997
        %v2999 = vrot.slane %v2868, 1
        %v3000 = vrot.slane %v2869, 1
        %v3001 = vsel %vm2928, %v2999, %v3000
        %v3002 = vrot.slane %v2870, 1
        %v3003 = vsel %vm2928, %v3000, %v3002
        %v3004 = vrot.slane %v2871, 1
        %v3005 = vrot.slane %v2872, 1
        %v3006 = vsel %vm2928, %v3004, %v3005
        %v3007 = vrot.slane %v2873, 1
        %v3008 = vsel %vm2928, %v3005, %v3007
        %v3009 = vrot.slane %v2874, 1
        %v3010 = vrot.slane %v2875, 1
        %v3011 = vsel %vm2928, %v3009, %v3010
        %v3012 = vrot.slane %v2876, 1
        %v3013 = vsel %vm2928, %v3010, %v3012
        %v3014 = vrot.slane %v2877, 1
        %v3015 = vrot.slane %v2878, 1
        %v3016 = vsel %vm2928, %v3014, %v3015
        %v3017 = vrot.slane %v2879, 1
        %v3018 = vsel %vm2928, %v3015, %v3017
        %v3019 = vrot.slane %v2880, 1
        %v3020 = vrot.slane %v2881, 1
        %v3021 = vsel %vm2928, %v3019, %v3020
        %v3022 = vrot.slane %v2882, 1
        %v3023 = vsel %vm2928, %v3020, %v3022
        %v3024 = vrot.slane %v2883, 1
        %v3025 = vrot.slane %v2884, 1
        %v3026 = vsel %vm2928, %v3024, %v3025
        %v3027 = vrot.slane %v2885, 1
        %v3028 = vsel %vm2928, %v3025, %v3027
        %v3029 = vrot.slane %v2886, 1
        %v3030 = vrot.slane %v2887, 1
        %v3031 = vsel %vm2928, %v3029, %v3030
        %v3032 = vrot.slane %v2888, 1
        %v3033 = vsel %vm2928, %v3030, %v3032
        %v3034 = vrot.slane %v2889, 1
        %v3035 = vrot.slane %v2890, 1
        %v3036 = vsel %vm2928, %v3034, %v3035
        %v3037 = vrot.slane %v2891, 1
        %v3038 = vsel %vm2928, %v3035, %v3037
        %v3039 = vrot.slane %v2892, 1
        %v3040 = vrot.slane %v2893, 1
        %v3041 = vsel %vm2928, %v3039, %v3040
        %v3042 = vrot.slane %v2894, 1
        %v3043 = vsel %vm2928, %v3040, %v3042
        %v3044 = vrot.slane %v2895, 1
        %v3045 = vrot.slane %v2896, 1
        %v3046 = vsel %vm2928, %v3044, %v3045
        %v3047 = vrot.slane %v2897, 1
        %v3048 = vsel %vm2928, %v3045, %v3047
        %v3049 = vrot.slane %v2898, 1
        %v3050 = vrot.slane %v2899, 1
        %v3051 = vsel %vm2928, %v3049, %v3050
        %v3052 = vrot.slane %v2900, 1
        %v3053 = vsel %vm2928, %v3050, %v3052
        %v3054 = vrot.slane %v2901, 1
        %v3055 = vrot.slane %v2902, 1
        %v3056 = vsel %vm2928, %v3054, %v3055
        %v3057 = vrot.slane %v2903, 1
        %v3058 = vsel %vm2928, %v3055, %v3057
        %v3059 = vrot.slane %v2904, 1
        %v3060 = vrot.slane %v2905, 1
        %v3061 = vsel %vm2928, %v3059, %v3060
        %v3062 = vrot.slane %v2906, 1
        %v3063 = vsel %vm2928, %v3060, %v3062
        %v3064 = vrot.slane %v2907, 1
        %v3065 = vrot.slane %v2908, 1
        %v3066 = vsel %vm2928, %v3064, %v3065
        %v3067 = vrot.slane %v2909, 1
        %v3068 = vsel %vm2928, %v3065, %v3067
        %v3069 = vrot.slane %v2910, 1
        %v3070 = vrot.slane %v2911, 1
        %v3071 = vsel %vm2928, %v3069, %v3070
        %v3072 = vrot.slane %v2912, 1
        %v3073 = vsel %vm2928, %v3070, %v3072
        %v3074 = vrot.slane %v2913, 1
        %v3075 = vrot.slane %v2914, 1
        %v3076 = vsel %vm2928, %v3074, %v3075
        %v3077 = vrot.slane %v2915, 1
        %v3078 = vsel %vm2928, %v3075, %v3077
        %v3079 = vrot.slane %v2916, 1
        %v3080 = vrot.slane %v2917, 1
        %v3081 = vsel %vm2928, %v3079, %v3080
        %v3082 = vrot.slane %v2918, 1
        %v3083 = vsel %vm2928, %v3080, %v3082
        %v3084 = vrot.slane %v2919, 1
        %v3085 = vrot.slane %v2920, 1
        %v3086 = vsel %vm2928, %v3084, %v3085
        %v3087 = vrot.slane %v2921, 1
        %v3088 = vsel %vm2928, %v3085, %v3087
        %v3089 = vrot.slane %v2922, 1
        %v3090 = vrot.slane %v2923, 1
        %v3091 = vsel %vm2928, %v3089, %v3090
        %v3092 = vrot.slane %v2924, 1
        %v3093 = vsel %vm2928, %v3090, %v3092
        %v3094 = vrot.slane %v2925, 1
        %v3095 = vrot.slane %v2926, 1
        %v3096 = vsel %vm2928, %v3094, %v3095
        %v3097 = vrot.slane %v2927, 1
        %v3098 = vsel %vm2928, %v3095, %v3097
        %s3167 = scalar_lea.vmem [#allocation2], 1088
        %3168 = vst.msk [vmem:[%s3167] sm:$0xff] %vm817, %v2931
        %3169 = vst.msk [vmem:[%s3167 + $0x8] sm:$0xff] %vm817, %v2933
        %3170 = vst.msk [vmem:[%s3167 + $0x10] sm:$0xff] %vm817, %v2936
        %3171 = vst.msk [vmem:[%s3167 + $0x18] sm:$0xff] %vm817, %v2938
        %3172 = vst.msk [vmem:[%s3167 + $0x20] sm:$0xff] %vm817, %v2941
        %3173 = vst.msk [vmem:[%s3167 + $0x28] sm:$0xff] %vm817, %v2943
        %3174 = vst.msk [vmem:[%s3167 + $0x30] sm:$0xff] %vm817, %v2946
        %3175 = vst.msk [vmem:[%s3167 + $0x38] sm:$0xff] %vm817, %v2948
        %3176 = vst.msk [vmem:[%s3167 + $0x40] sm:$0xff] %vm817, %v2951
        %3177 = vst.msk [vmem:[%s3167 + $0x48] sm:$0xff] %vm817, %v2953
        %3178 = vst.msk [vmem:[%s3167 + $0x50] sm:$0xff] %vm817, %v2956
        %3179 = vst.msk [vmem:[%s3167 + $0x58] sm:$0xff] %vm817, %v2958
        %3180 = vst.msk [vmem:[%s3167 + $0x60] sm:$0xff] %vm817, %v2961
        %3181 = vst.msk [vmem:[%s3167 + $0x68] sm:$0xff] %vm817, %v2963
        %3182 = vst.msk [vmem:[%s3167 + $0x70] sm:$0xff] %vm817, %v2966
        %3183 = vst.msk [vmem:[%s3167 + $0x78] sm:$0xff] %vm817, %v2968
        %3184 = vst.msk [vmem:[%s3167 + $0x80] sm:$0xff] %vm817, %v2971
        %3185 = vst.msk [vmem:[%s3167 + $0x88] sm:$0xff] %vm817, %v2973
        %3186 = vst.msk [vmem:[%s3167 + $0x90] sm:$0xff] %vm817, %v2976
        %3187 = vst.msk [vmem:[%s3167 + $0x98] sm:$0xff] %vm817, %v2978
        %3188 = vst.msk [vmem:[%s3167 + $0xa0] sm:$0xff] %vm817, %v2981
        %3189 = vst.msk [vmem:[%s3167 + $0xa8] sm:$0xff] %vm817, %v2983
        %3190 = vst.msk [vmem:[%s3167 + $0xb0] sm:$0xff] %vm817, %v2986
        %3191 = vst.msk [vmem:[%s3167 + $0xb8] sm:$0xff] %vm817, %v2988
        %3192 = vst.msk [vmem:[%s3167 + $0xc0] sm:$0xff] %vm817, %v2991
        %3193 = vst.msk [vmem:[%s3167 + $0xc8] sm:$0xff] %vm817, %v2993
        %3194 = vst.msk [vmem:[%s3167 + $0xd0] sm:$0xff] %vm817, %v2996
        %3195 = vst.msk [vmem:[%s3167 + $0xd8] sm:$0xff] %vm817, %v2998
        %3196 = vst.msk [vmem:[%s3167 + $0xe0] sm:$0xff] %vm817, %v3001
        %3197 = vst.msk [vmem:[%s3167 + $0xe8] sm:$0xff] %vm817, %v3003
        %3198 = vst.msk [vmem:[%s3167 + $0xf0] sm:$0xff] %vm817, %v3006
        %3199 = vst.msk [vmem:[%s3167 + $0xf8] sm:$0xff] %vm817, %v3008
        %3200 = vst.msk [vmem:[%s3167 + $0x100] sm:$0xff] %vm817, %v3011
        %3201 = vst.msk [vmem:[%s3167 + $0x108] sm:$0xff] %vm817, %v3013
        %3202 = vst.msk [vmem:[%s3167 + $0x110] sm:$0xff] %vm817, %v3016
        %3203 = vst.msk [vmem:[%s3167 + $0x118] sm:$0xff] %vm817, %v3018
        %3204 = vst.msk [vmem:[%s3167 + $0x120] sm:$0xff] %vm817, %v3021
        %3205 = vst.msk [vmem:[%s3167 + $0x128] sm:$0xff] %vm817, %v3023
        %3206 = vst.msk [vmem:[%s3167 + $0x130] sm:$0xff] %vm817, %v3026
        %3207 = vst.msk [vmem:[%s3167 + $0x138] sm:$0xff] %vm817, %v3028
        %3208 = vst.msk [vmem:[%s3167 + $0x140] sm:$0xff] %vm817, %v3031
        %3209 = vst.msk [vmem:[%s3167 + $0x148] sm:$0xff] %vm817, %v3033
        %3210 = vst.msk [vmem:[%s3167 + $0x150] sm:$0xff] %vm817, %v3036
        %3211 = vst.msk [vmem:[%s3167 + $0x158] sm:$0xff] %vm817, %v3038
        %3212 = vst.msk [vmem:[%s3167 + $0x160] sm:$0xff] %vm817, %v3041
        %3213 = vst.msk [vmem:[%s3167 + $0x168] sm:$0xff] %vm817, %v3043
        %3214 = vst.msk [vmem:[%s3167 + $0x170] sm:$0xff] %vm817, %v3046
        %3215 = vst.msk [vmem:[%s3167 + $0x178] sm:$0xff] %vm817, %v3048
        %3216 = vst.msk [vmem:[%s3167 + $0x180] sm:$0xff] %vm817, %v3051
        %3217 = vst.msk [vmem:[%s3167 + $0x188] sm:$0xff] %vm817, %v3053
        %3218 = vst.msk [vmem:[%s3167 + $0x190] sm:$0xff] %vm817, %v3056
        %3219 = vst.msk [vmem:[%s3167 + $0x198] sm:$0xff] %vm817, %v3058
        %3220 = vst.msk [vmem:[%s3167 + $0x1a0] sm:$0xff] %vm817, %v3061
        %3221 = vst.msk [vmem:[%s3167 + $0x1a8] sm:$0xff] %vm817, %v3063
        %3222 = vst.msk [vmem:[%s3167 + $0x1b0] sm:$0xff] %vm817, %v3066
        %3223 = vst.msk [vmem:[%s3167 + $0x1b8] sm:$0xff] %vm817, %v3068
        %3224 = vst.msk [vmem:[%s3167 + $0x1c0] sm:$0xff] %vm817, %v3071
        %3225 = vst.msk [vmem:[%s3167 + $0x1c8] sm:$0xff] %vm817, %v3073
        %3226 = vst.msk [vmem:[%s3167 + $0x1d0] sm:$0xff] %vm817, %v3076
        %3227 = vst.msk [vmem:[%s3167 + $0x1d8] sm:$0xff] %vm817, %v3078
        %3228 = vst.msk [vmem:[%s3167 + $0x1e0] sm:$0xff] %vm817, %v3081
        %3229 = vst.msk [vmem:[%s3167 + $0x1e8] sm:$0xff] %vm817, %v3083
        %3230 = vst.msk [vmem:[%s3167 + $0x1f0] sm:$0xff] %vm817, %v3086
        %3231 = vst.msk [vmem:[%s3167 + $0x1f8] sm:$0xff] %vm817, %v3088
        %3232 = vst.msk [vmem:[%s3167 + $0x200] sm:$0xff] %vm817, %v3091
        %3233 = vst.msk [vmem:[%s3167 + $0x208] sm:$0xff] %vm817, %v3093
        %3234 = vst.msk [vmem:[%s3167 + $0x210] sm:$0xff] %vm817, %v3096
        %3235 = vst.msk [vmem:[%s3167 + $0x218] sm:$0xff] %vm817, %v3098
        %v3236 = vld [vmem:[#allocation2] sm:$0xff]
        %v3237 = vld [vmem:[#allocation2 + $0x8] sm:$0xff]
        %v3238 = vld [vmem:[#allocation2 + $0x10] sm:$0xff]
        %v3239 = vld [vmem:[#allocation2 + $0x18] sm:$0xff]
        %v3240 = vld [vmem:[#allocation2 + $0x20] sm:$0xff]
        %v3241 = vld [vmem:[#allocation2 + $0x28] sm:$0xff]
        %v3242 = vld [vmem:[#allocation2 + $0x30] sm:$0xff]
        %v3243 = vld [vmem:[#allocation2 + $0x38] sm:$0xff]
        %v3244 = vld [vmem:[#allocation2 + $0x40] sm:$0xff]
        %v3245 = vld [vmem:[#allocation2 + $0x48] sm:$0xff]
        %v3246 = vld [vmem:[#allocation2 + $0x50] sm:$0xff]
        %v3247 = vld [vmem:[#allocation2 + $0x58] sm:$0xff]
        %v3248 = vld [vmem:[#allocation2 + $0x60] sm:$0xff]
        %v3249 = vld [vmem:[#allocation2 + $0x68] sm:$0xff]
        %v3250 = vld [vmem:[#allocation2 + $0x70] sm:$0xff]
        %v3251 = vld [vmem:[#allocation2 + $0x78] sm:$0xff]
        %v3252 = vld [vmem:[#allocation2 + $0x80] sm:$0xff]
        %v3253 = vld [vmem:[#allocation2 + $0x88] sm:$0xff]
        %v3254 = vld [vmem:[#allocation2 + $0x90] sm:$0xff]
        %v3255 = vld [vmem:[#allocation2 + $0x98] sm:$0xff]
        %v3256 = vld [vmem:[#allocation2 + $0xa0] sm:$0xff]
        %v3257 = vld [vmem:[#allocation2 + $0xa8] sm:$0xff]
        %v3258 = vld [vmem:[#allocation2 + $0xb0] sm:$0xff]
        %v3259 = vld [vmem:[#allocation2 + $0xb8] sm:$0xff]
        %v3260 = vld [vmem:[#allocation2 + $0xc0] sm:$0xff]
        %v3261 = vld [vmem:[#allocation2 + $0xc8] sm:$0xff]
        %v3262 = vld [vmem:[#allocation2 + $0xd0] sm:$0xff]
        %v3263 = vld [vmem:[#allocation2 + $0xd8] sm:$0xff]
        %v3264 = vld [vmem:[#allocation2 + $0xe0] sm:$0xff]
        %v3265 = vld [vmem:[#allocation2 + $0xe8] sm:$0xff]
        %v3266 = vld [vmem:[#allocation2 + $0xf0] sm:$0xff]
        %v3267 = vld [vmem:[#allocation2 + $0xf8] sm:$0xff]
        %v3268 = vld [vmem:[#allocation2 + $0x100] sm:$0xff]
        %v3269 = vld [vmem:[#allocation2 + $0x108] sm:$0xff]
        %v3270 = vld [vmem:[#allocation2 + $0x110] sm:$0xff]
        %v3271 = vld [vmem:[#allocation2 + $0x118] sm:$0xff]
        %v3272 = vld [vmem:[#allocation2 + $0x120] sm:$0xff]
        %v3273 = vld [vmem:[#allocation2 + $0x128] sm:$0xff]
        %v3274 = vld [vmem:[#allocation2 + $0x130] sm:$0xff]
        %v3275 = vld [vmem:[#allocation2 + $0x138] sm:$0xff]
        %v3276 = vld [vmem:[#allocation2 + $0x140] sm:$0xff]
        %v3277 = vld [vmem:[#allocation2 + $0x148] sm:$0xff]
        %v3278 = vld [vmem:[#allocation2 + $0x150] sm:$0xff]
        %v3279 = vld [vmem:[#allocation2 + $0x158] sm:$0xff]
        %v3280 = vld [vmem:[#allocation2 + $0x160] sm:$0xff]
        %v3281 = vld [vmem:[#allocation2 + $0x168] sm:$0xff]
        %v3282 = vld [vmem:[#allocation2 + $0x170] sm:$0xff]
        %v3283 = vld [vmem:[#allocation2 + $0x178] sm:$0xff]
        %v3284 = vld [vmem:[#allocation2 + $0x180] sm:$0xff]
        %v3285 = vld [vmem:[#allocation2 + $0x188] sm:$0xff]
        %v3286 = vld [vmem:[#allocation2 + $0x190] sm:$0xff]
        %v3287 = vld [vmem:[#allocation2 + $0x198] sm:$0xff]
        %v3288 = vld [vmem:[#allocation2 + $0x1a0] sm:$0xff]
        %v3289 = vld [vmem:[#allocation2 + $0x1a8] sm:$0xff]
        %v3290 = vld [vmem:[#allocation2 + $0x1b0] sm:$0xff]
        %v3291 = vld [vmem:[#allocation2 + $0x1b8] sm:$0xff]
        %v3292 = vld [vmem:[#allocation2 + $0x1c0] sm:$0xff]
        %v3293 = vld [vmem:[#allocation2 + $0x1c8] sm:$0xff]
        %v3294 = vld [vmem:[#allocation2 + $0x1d0] sm:$0xff]
        %v3295 = vld [vmem:[#allocation2 + $0x1d8] sm:$0xff]
        %v3296 = vld [vmem:[#allocation2 + $0x1e0] sm:$0xff]
        %v3297 = vld [vmem:[#allocation2 + $0x1e8] sm:$0xff]
        %v3298 = vld [vmem:[#allocation2 + $0x1f0] sm:$0xff]
        %v3299 = vld [vmem:[#allocation2 + $0x1f8] sm:$0xff]
        %v3300 = vld [vmem:[%s264] sm:$0xf]
        %v3301 = vld [vmem:[%s264 + $0x4] sm:$0xf]
        %v3302 = vld [vmem:[%s264 + $0x8] sm:$0xf]
        %v3303 = vld [vmem:[%s264 + $0xc] sm:$0xf]
        %v3304 = vld [vmem:[%s264 + $0x10] sm:$0xf]
        %v3305 = vld [vmem:[%s264 + $0x14] sm:$0xf]
        %v3306 = vld [vmem:[%s264 + $0x18] sm:$0xf]
        %v3307 = vld [vmem:[%s264 + $0x1c] sm:$0xf]
        %v3308 = vld [vmem:[%s2247] sm:$0xff]
        %v3309 = vld [vmem:[%s2247 + $0x8] sm:$0xff]
        %v3310 = vld [vmem:[%s2247 + $0x10] sm:$0xff]
        %v3311 = vld [vmem:[%s2247 + $0x18] sm:$0xff]
        %v3312 = vld [vmem:[%s2247 + $0x20] sm:$0xff]
        %v3313 = vld [vmem:[%s2247 + $0x28] sm:$0xff]
        %v3314 = vld [vmem:[%s2247 + $0x30] sm:$0xff]
        %v3315 = vld [vmem:[%s2247 + $0x38] sm:$0xff]
        %v3316 = vld [vmem:[%s2247 + $0x40] sm:$0xff]
        %v3317 = vld [vmem:[%s2247 + $0x48] sm:$0xff]
        %v3318 = vld [vmem:[%s2247 + $0x50] sm:$0xff]
        %v3319 = vld [vmem:[%s2247 + $0x58] sm:$0xff]
        %v3320 = vld [vmem:[%s2247 + $0x60] sm:$0xff]
        %v3321 = vld [vmem:[%s2247 + $0x68] sm:$0xff]
        %v3322 = vld [vmem:[%s2247 + $0x70] sm:$0xff]
        %v3323 = vld [vmem:[%s2247 + $0x78] sm:$0xff]
        %v3324 = vld [vmem:[%s2247 + $0x80] sm:$0xff]
        %v3325 = vld [vmem:[%s2247 + $0x88] sm:$0xff]
        %v3326 = vld [vmem:[%s2247 + $0x90] sm:$0xff]
        %v3327 = vld [vmem:[%s2247 + $0x98] sm:$0xff]
        %v3328 = vld [vmem:[%s2247 + $0xa0] sm:$0xff]
        %v3329 = vld [vmem:[%s2247 + $0xa8] sm:$0xff]
        %v3330 = vld [vmem:[%s2247 + $0xb0] sm:$0xff]
        %v3331 = vld [vmem:[%s2247 + $0xb8] sm:$0xff]
        %v3332 = vld [vmem:[%s2247 + $0xc0] sm:$0xff]
        %v3333 = vld [vmem:[%s2247 + $0xc8] sm:$0xff]
        %v3334 = vld [vmem:[%s2247 + $0xd0] sm:$0xff]
        %v3335 = vld [vmem:[%s2247 + $0xd8] sm:$0xff]
        %v3336 = vld [vmem:[%s2247 + $0xe0] sm:$0xff]
        %v3337 = vld [vmem:[%s2247 + $0xe8] sm:$0xff]
        %v3338 = vld [vmem:[%s2247 + $0xf0] sm:$0xff]
        %v3339 = vld [vmem:[%s2247 + $0xf8] sm:$0xff]
        %v3340 = vld [vmem:[%s2247 + $0x100] sm:$0xff]
        %v3341 = vld [vmem:[%s2247 + $0x108] sm:$0xff]
        %v3342 = vld [vmem:[%s2247 + $0x110] sm:$0xff]
        %v3343 = vld [vmem:[%s2247 + $0x118] sm:$0xff]
        %v3344 = vld [vmem:[%s2247 + $0x120] sm:$0xff]
        %v3345 = vld [vmem:[%s2247 + $0x128] sm:$0xff]
        %v3346 = vld [vmem:[%s2247 + $0x130] sm:$0xff]
        %v3347 = vld [vmem:[%s2247 + $0x138] sm:$0xff]
        %v3348 = vld [vmem:[%s2247 + $0x140] sm:$0xff]
        %v3349 = vld [vmem:[%s2247 + $0x148] sm:$0xff]
        %v3350 = vld [vmem:[%s2247 + $0x150] sm:$0xff]
        %v3351 = vld [vmem:[%s2247 + $0x158] sm:$0xff]
        %v3352 = vld [vmem:[%s2247 + $0x160] sm:$0xff]
        %v3353 = vld [vmem:[%s2247 + $0x168] sm:$0xff]
        %v3354 = vld [vmem:[%s2247 + $0x170] sm:$0xff]
        %v3355 = vld [vmem:[%s2247 + $0x178] sm:$0xff]
        %v3356 = vld [vmem:[%s2247 + $0x180] sm:$0xff]
        %v3357 = vld [vmem:[%s2247 + $0x188] sm:$0xff]
        %v3358 = vld [vmem:[%s2247 + $0x190] sm:$0xff]
        %v3359 = vld [vmem:[%s2247 + $0x198] sm:$0xff]
        %v3360 = vld [vmem:[%s2247 + $0x1a0] sm:$0xff]
        %v3361 = vld [vmem:[%s2247 + $0x1a8] sm:$0xff]
        %v3362 = vld [vmem:[%s2247 + $0x1b0] sm:$0xff]
        %v3363 = vld [vmem:[%s2247 + $0x1b8] sm:$0xff]
        %v3364 = vld [vmem:[%s2247 + $0x1c0] sm:$0xff]
        %v3365 = vld [vmem:[%s2247 + $0x1c8] sm:$0xff]
        %v3366 = vld [vmem:[%s2247 + $0x1d0] sm:$0xff]
        %v3367 = vld [vmem:[%s2247 + $0x1d8] sm:$0xff]
        %v3368 = vld [vmem:[%s2247 + $0x1e0] sm:$0xff]
        %v3369 = vld [vmem:[%s2247 + $0x1e8] sm:$0xff]
        %v3370 = vld [vmem:[%s2247 + $0x1f0] sm:$0xff]
        %v3371 = vld [vmem:[%s2247 + $0x1f8] sm:$0xff]
        %v3372 = vld [vmem:[%s264 + $0x20] sm:$0xf]
        %v3373 = vld [vmem:[%s264 + $0x24] sm:$0xf]
        %v3374 = vld [vmem:[%s264 + $0x28] sm:$0xf]
        %v3375 = vld [vmem:[%s264 + $0x2c] sm:$0xf]
        %v3376 = vld [vmem:[%s264 + $0x30] sm:$0xf]
        %v3377 = vld [vmem:[%s264 + $0x34] sm:$0xf]
        %v3378 = vld [vmem:[%s264 + $0x38] sm:$0xf]
        %v3379 = vld [vmem:[%s264 + $0x3c] sm:$0xf]
        %v3388 = vunpack.c.l.b16 %v3372
        %v3389 = vunpack.c.l.b16 %v3373
        %v3390 = vunpack.c.l.b16 %v3374
        %v3391 = vunpack.c.l.b16 %v3375
        %v3392 = vunpack.c.l.b16 %v3376
        %v3393 = vunpack.c.l.b16 %v3377
        %v3394 = vunpack.c.l.b16 %v3378
        %v3395 = vunpack.c.l.b16 %v3379
        %v3396 = vpack.c.b16 %v3389, %v3388
        %v3397 = vpack.c.b16 %v3391, %v3390
        %v3398 = vpack.c.b16 %v3393, %v3392
        %v3399 = vpack.c.b16 %v3395, %v3394
        %v3405 = vsel %vm817, %v3308, 0
        %v3408 = vsel %vm817, %v3309, 0
        %v3411 = vsel %vm817, %v3310, 0
        %v3414 = vsel %vm817, %v3311, 0
        %v3417 = vsel %vm817, %v3312, 0
        %v3420 = vsel %vm817, %v3313, 0
        %v3423 = vsel %vm817, %v3314, 0
        %v3426 = vsel %vm817, %v3315, 0
        %v3429 = vsel %vm817, %v3316, 0
        %v3432 = vsel %vm817, %v3317, 0
        %v3435 = vsel %vm817, %v3318, 0
        %v3438 = vsel %vm817, %v3319, 0
        %v3441 = vsel %vm817, %v3320, 0
        %v3444 = vsel %vm817, %v3321, 0
        %v3447 = vsel %vm817, %v3322, 0
        %v3450 = vsel %vm817, %v3323, 0
        %v3453 = vsel %vm817, %v3324, 0
        %v3456 = vsel %vm817, %v3325, 0
        %v3459 = vsel %vm817, %v3326, 0
        %v3462 = vsel %vm817, %v3327, 0
        %v3465 = vsel %vm817, %v3328, 0
        %v3468 = vsel %vm817, %v3329, 0
        %v3471 = vsel %vm817, %v3330, 0
        %v3474 = vsel %vm817, %v3331, 0
        %v3477 = vsel %vm817, %v3332, 0
        %v3480 = vsel %vm817, %v3333, 0
        %v3483 = vsel %vm817, %v3334, 0
        %v3486 = vsel %vm817, %v3335, 0
        %v3489 = vsel %vm817, %v3336, 0
        %v3492 = vsel %vm817, %v3337, 0
        %v3495 = vsel %vm817, %v3338, 0
        %v3498 = vsel %vm817, %v3339, 0
        %v3501 = vsel %vm817, %v3340, 0
        %v3504 = vsel %vm817, %v3341, 0
        %v3507 = vsel %vm817, %v3342, 0
        %v3510 = vsel %vm817, %v3343, 0
        %v3513 = vsel %vm817, %v3344, 0
        %v3516 = vsel %vm817, %v3345, 0
        %v3519 = vsel %vm817, %v3346, 0
        %v3522 = vsel %vm817, %v3347, 0
        %v3525 = vsel %vm817, %v3348, 0
        %v3528 = vsel %vm817, %v3349, 0
        %v3531 = vsel %vm817, %v3350, 0
        %v3534 = vsel %vm817, %v3351, 0
        %v3537 = vsel %vm817, %v3352, 0
        %v3540 = vsel %vm817, %v3353, 0
        %v3543 = vsel %vm817, %v3354, 0
        %v3546 = vsel %vm817, %v3355, 0
        %v3549 = vsel %vm817, %v3356, 0
        %v3552 = vsel %vm817, %v3357, 0
        %v3555 = vsel %vm817, %v3358, 0
        %v3558 = vsel %vm817, %v3359, 0
        %v3561 = vsel %vm817, %v3360, 0
        %v3564 = vsel %vm817, %v3361, 0
        %v3567 = vsel %vm817, %v3362, 0
        %v3570 = vsel %vm817, %v3363, 0
        %v3573 = vsel %vm817, %v3364, 0
        %v3576 = vsel %vm817, %v3365, 0
        %v3579 = vsel %vm817, %v3366, 0
        %v3582 = vsel %vm817, %v3367, 0
        %v3585 = vsel %vm817, %v3368, 0
        %v3588 = vsel %vm817, %v3369, 0
        %v3591 = vsel %vm817, %v3370, 0
        %v3594 = vsel %vm817, %v3371, 0
        %3596 = vmatprep.subr.bf16.mxu0 0
        %3597 = vmatpush1.bf16.msra.mxu0 %v3396
        %3598 = vmatprep.subr.bf16.mxu0 0
        %3599 = vmatpush1.bf16.msra.mxu0 %v3397
        %3600 = vmatprep.subr.bf16.mxu0 0
        %3601 = vmatpush1.bf16.msra.mxu0 %v3398
        %3602 = vmatprep.subr.bf16.mxu0 0
        %3603 = vmatpush1.bf16.msra.mxu0 %v3399
        %3604 = vmatprep.subr.bf16.mxu0 0
        %3605 = vmatpush1.bf16.msra.mxu0 0
        %3606 = vmatprep.subr.bf16.mxu0 0
        %3607 = vmatpush1.bf16.msra.mxu0 0
        %3608 = vmatprep.subr.bf16.mxu0 0
        %3609 = vmatpush1.bf16.msra.mxu0 0
        %3610 = vmatprep.subr.bf16.mxu0 0
        %3611 = vmatpush1.bf16.msra.mxu0 0
        %3612 = vmatprep.subr.bf16.mxu0 0
        %3613 = vmatpush1.bf16.msra.mxu0 0
        %3614 = vmatprep.subr.bf16.mxu0 0
        %3615 = vmatpush1.bf16.msra.mxu0 0
        %3616 = vmatprep.subr.bf16.mxu0 0
        %3617 = vmatpush1.bf16.msra.mxu0 0
        %3618 = vmatprep.subr.bf16.mxu0 0
        %3619 = vmatpush1.bf16.msra.mxu0 0
        %3620 = vmatprep.subr.bf16.mxu0 0
        %3621 = vmatpush1.bf16.msra.mxu0 0
        %3622 = vmatprep.subr.bf16.mxu0 0
        %3623 = vmatpush1.bf16.msra.mxu0 0
        %3624 = vmatprep.subr.bf16.mxu0 0
        %3625 = vmatpush1.bf16.msra.mxu0 0
        %3626 = vmatprep.subr.bf16.mxu0 0
        %3627 = vmatpush1.bf16.msra.mxu0 0
        %3628 = vmatprep.mubr.bf16.mxu0 0
        %3629 = vmatmul.mubr.bf16.gmra.mrb[0].mxu0 %v3405
        %v3630 = vpop.f32.mrb[0].mxu0
        %v3631 = vadd.f32 0.0, %v3630
        %v3632 = vpop.f32.mrb[0].mxu0
        %v3633 = vpop.f32.mrb[0].mxu0
        %v3634 = vadd.f32 0.0, %v3633
        %v3635 = vpop.f32.mrb[0].mxu0
        %3636 = vmatprep.mubr.bf16.mxu0 0
        %3637 = vmatmul.mubr.bf16.gmra.mrb[0].mxu0 %v3408
        %v3638 = vpop.f32.mrb[0].mxu0
        %v3639 = vadd.f32 0.0, %v3638
        %v3640 = vpop.f32.mrb[0].mxu0
        %v3641 = vpop.f32.mrb[0].mxu0
        %v3642 = vadd.f32 0.0, %v3641
        %v3643 = vpop.f32.mrb[0].mxu0
        %3644 = vmatprep.mubr.bf16.mxu0 0
        %3645 = vmatmul.mubr.bf16.gmra.mrb[0].mxu0 %v3411
        %v3646 = vpop.f32.mrb[0].mxu0
        %v3647 = vadd.f32 0.0, %v3646
        %v3648 = vpop.f32.mrb[0].mxu0
        %v3649 = vpop.f32.mrb[0].mxu0
        %v3650 = vadd.f32 0.0, %v3649
        %v3651 = vpop.f32.mrb[0].mxu0
        %3652 = vmatprep.mubr.bf16.mxu0 0
        %3653 = vmatmul.mubr.bf16.gmra.mrb[0].mxu0 %v3414
        %v3654 = vpop.f32.mrb[0].mxu0
        %v3655 = vadd.f32 0.0, %v3654
        %v3656 = vpop.f32.mrb[0].mxu0
        %v3657 = vpop.f32.mrb[0].mxu0
        %v3658 = vadd.f32 0.0, %v3657
        %v3659 = vpop.f32.mrb[0].mxu0
        %3660 = vmatprep.mubr.bf16.mxu0 0
        %3661 = vmatmul.mubr.bf16.gmra.mrb[0].mxu0 %v3417
        %v3662 = vpop.f32.mrb[0].mxu0
        %v3663 = vadd.f32 0.0, %v3662
        %v3664 = vpop.f32.mrb[0].mxu0
        %v3665 = vpop.f32.mrb[0].mxu0
        %v3666 = vadd.f32 0.0, %v3665
        %v3667 = vpop.f32.mrb[0].mxu0
        %3668 = vmatprep.mubr.bf16.mxu0 0
        %3669 = vmatmul.mubr.bf16.gmra.mrb[0].mxu0 %v3420
        %v3670 = vpop.f32.mrb[0].mxu0
        %v3671 = vadd.f32 0.0, %v3670
        %v3672 = vpop.f32.mrb[0].mxu0
        %v3673 = vpop.f32.mrb[0].mxu0
        %v3674 = vadd.f32 0.0, %v3673
        %v3675 = vpop.f32.mrb[0].mxu0
        %3676 = vmatprep.mubr.bf16.mxu0 0
        %3677 = vmatmul.mubr.bf16.gmra.mrb[0].mxu0 %v3423
        %v3678 = vpop.f32.mrb[0].mxu0
        %v3679 = vadd.f32 0.0, %v3678
        %v3680 = vpop.f32.mrb[0].mxu0
        %v3681 = vpop.f32.mrb[0].mxu0
        %v3682 = vadd.f32 0.0, %v3681
        %v3683 = vpop.f32.mrb[0].mxu0
        %3684 = vmatprep.mubr.bf16.mxu0 0
        %3685 = vmatmul.mubr.bf16.gmra.mrb[0].mxu0 %v3426
        %v3686 = vpop.f32.mrb[0].mxu0
        %v3687 = vadd.f32 0.0, %v3686
        %v3688 = vpop.f32.mrb[0].mxu0
        %v3689 = vpop.f32.mrb[0].mxu0
        %v3690 = vadd.f32 0.0, %v3689
        %v3691 = vpop.f32.mrb[0].mxu0
        %3692 = vmatprep.mubr.bf16.mxu0 0
        %3693 = vmatmul.mubr.bf16.gmra.mrb[0].mxu0 %v3429
        %v3694 = vpop.f32.mrb[0].mxu0
        %v3695 = vadd.f32 0.0, %v3694
        %v3696 = vpop.f32.mrb[0].mxu0
        %v3697 = vpop.f32.mrb[0].mxu0
        %v3698 = vadd.f32 0.0, %v3697
        %v3699 = vpop.f32.mrb[0].mxu0
        %3700 = vmatprep.mubr.bf16.mxu0 0
        %3701 = vmatmul.mubr.bf16.gmra.mrb[0].mxu0 %v3432
        %v3702 = vpop.f32.mrb[0].mxu0
        %v3703 = vadd.f32 0.0, %v3702
        %v3704 = vpop.f32.mrb[0].mxu0
        %v3705 = vpop.f32.mrb[0].mxu0
        %v3706 = vadd.f32 0.0, %v3705
        %v3707 = vpop.f32.mrb[0].mxu0
        %3708 = vmatprep.mubr.bf16.mxu0 0
        %3709 = vmatmul.mubr.bf16.gmra.mrb[0].mxu0 %v3435
        %v3710 = vpop.f32.mrb[0].mxu0
        %v3711 = vadd.f32 0.0, %v3710
        %v3712 = vpop.f32.mrb[0].mxu0
        %v3713 = vpop.f32.mrb[0].mxu0
        %v3714 = vadd.f32 0.0, %v3713
        %v3715 = vpop.f32.mrb[0].mxu0
        %3716 = vmatprep.mubr.bf16.mxu0 0
        %3717 = vmatmul.mubr.bf16.gmra.mrb[0].mxu0 %v3438
        %v3718 = vpop.f32.mrb[0].mxu0
        %v3719 = vadd.f32 0.0, %v3718
        %v3720 = vpop.f32.mrb[0].mxu0
        %v3721 = vpop.f32.mrb[0].mxu0
        %v3722 = vadd.f32 0.0, %v3721
        %v3723 = vpop.f32.mrb[0].mxu0
        %3724 = vmatprep.mubr.bf16.mxu0 0
        %3725 = vmatmul.mubr.bf16.gmra.mrb[0].mxu0 %v3441
        %v3726 = vpop.f32.mrb[0].mxu0
        %v3727 = vadd.f32 0.0, %v3726
        %v3728 = vpop.f32.mrb[0].mxu0
        %v3729 = vpop.f32.mrb[0].mxu0
        %v3730 = vadd.f32 0.0, %v3729
        %v3731 = vpop.f32.mrb[0].mxu0
        %3732 = vmatprep.mubr.bf16.mxu0 0
        %3733 = vmatmul.mubr.bf16.gmra.mrb[0].mxu0 %v3444
        %v3734 = vpop.f32.mrb[0].mxu0
        %v3735 = vadd.f32 0.0, %v3734
        %v3736 = vpop.f32.mrb[0].mxu0
        %v3737 = vpop.f32.mrb[0].mxu0
        %v3738 = vadd.f32 0.0, %v3737
        %v3739 = vpop.f32.mrb[0].mxu0
        %3740 = vmatprep.mubr.bf16.mxu0 0
        %3741 = vmatmul.mubr.bf16.gmra.mrb[0].mxu0 %v3447
        %v3742 = vpop.f32.mrb[0].mxu0
        %v3743 = vadd.f32 0.0, %v3742
        %v3744 = vpop.f32.mrb[0].mxu0
        %v3745 = vpop.f32.mrb[0].mxu0
        %v3746 = vadd.f32 0.0, %v3745
        %v3747 = vpop.f32.mrb[0].mxu0
        %3748 = vmatprep.mubr.bf16.mxu0 0
        %3749 = vmatmul.mubr.bf16.gmra.mrb[0].mxu0 %v3450
        %v3750 = vpop.f32.mrb[0].mxu0
        %v3751 = vadd.f32 0.0, %v3750
        %v3752 = vpop.f32.mrb[0].mxu0
        %v3753 = vpop.f32.mrb[0].mxu0
        %v3754 = vadd.f32 0.0, %v3753
        %v3755 = vpop.f32.mrb[0].mxu0
        %3756 = vmatprep.mubr.bf16.mxu0 0
        %3757 = vmatmul.mubr.bf16.gmra.mrb[0].mxu0 %v3453
        %v3758 = vpop.f32.mrb[0].mxu0
        %v3759 = vadd.f32 0.0, %v3758
        %v3760 = vpop.f32.mrb[0].mxu0
        %v3761 = vpop.f32.mrb[0].mxu0
        %v3762 = vadd.f32 0.0, %v3761
        %v3763 = vpop.f32.mrb[0].mxu0
        %3764 = vmatprep.mubr.bf16.mxu0 0
        %3765 = vmatmul.mubr.bf16.gmra.mrb[0].mxu0 %v3456
        %v3766 = vpop.f32.mrb[0].mxu0
        %v3767 = vadd.f32 0.0, %v3766
        %v3768 = vpop.f32.mrb[0].mxu0
        %v3769 = vpop.f32.mrb[0].mxu0
        %v3770 = vadd.f32 0.0, %v3769
        %v3771 = vpop.f32.mrb[0].mxu0
        %3772 = vmatprep.mubr.bf16.mxu0 0
        %3773 = vmatmul.mubr.bf16.gmra.mrb[0].mxu0 %v3459
        %v3774 = vpop.f32.mrb[0].mxu0
        %v3775 = vadd.f32 0.0, %v3774
        %v3776 = vpop.f32.mrb[0].mxu0
        %v3777 = vpop.f32.mrb[0].mxu0
        %v3778 = vadd.f32 0.0, %v3777
        %v3779 = vpop.f32.mrb[0].mxu0
        %3780 = vmatprep.mubr.bf16.mxu0 0
        %3781 = vmatmul.mubr.bf16.gmra.mrb[0].mxu0 %v3462
        %v3782 = vpop.f32.mrb[0].mxu0
        %v3783 = vadd.f32 0.0, %v3782
        %v3784 = vpop.f32.mrb[0].mxu0
        %v3785 = vpop.f32.mrb[0].mxu0
        %v3786 = vadd.f32 0.0, %v3785
        %v3787 = vpop.f32.mrb[0].mxu0
        %3788 = vmatprep.mubr.bf16.mxu0 0
        %3789 = vmatmul.mubr.bf16.gmra.mrb[0].mxu0 %v3465
        %v3790 = vpop.f32.mrb[0].mxu0
        %v3791 = vadd.f32 0.0, %v3790
        %v3792 = vpop.f32.mrb[0].mxu0
        %v3793 = vpop.f32.mrb[0].mxu0
        %v3794 = vadd.f32 0.0, %v3793
        %v3795 = vpop.f32.mrb[0].mxu0
        %3796 = vmatprep.mubr.bf16.mxu0 0
        %3797 = vmatmul.mubr.bf16.gmra.mrb[0].mxu0 %v3468
        %v3798 = vpop.f32.mrb[0].mxu0
        %v3799 = vadd.f32 0.0, %v3798
        %v3800 = vpop.f32.mrb[0].mxu0
        %v3801 = vpop.f32.mrb[0].mxu0
        %v3802 = vadd.f32 0.0, %v3801
        %v3803 = vpop.f32.mrb[0].mxu0
        %3804 = vmatprep.mubr.bf16.mxu0 0
        %3805 = vmatmul.mubr.bf16.gmra.mrb[0].mxu0 %v3471
        %v3806 = vpop.f32.mrb[0].mxu0
        %v3807 = vadd.f32 0.0, %v3806
        %v3808 = vpop.f32.mrb[0].mxu0
        %v3809 = vpop.f32.mrb[0].mxu0
        %v3810 = vadd.f32 0.0, %v3809
        %v3811 = vpop.f32.mrb[0].mxu0
        %3812 = vmatprep.mubr.bf16.mxu0 0
        %3813 = vmatmul.mubr.bf16.gmra.mrb[0].mxu0 %v3474
        %v3814 = vpop.f32.mrb[0].mxu0
        %v3815 = vadd.f32 0.0, %v3814
        %v3816 = vpop.f32.mrb[0].mxu0
        %v3817 = vpop.f32.mrb[0].mxu0
        %v3818 = vadd.f32 0.0, %v3817
        %v3819 = vpop.f32.mrb[0].mxu0
        %3820 = vmatprep.mubr.bf16.mxu0 0
        %3821 = vmatmul.mubr.bf16.gmra.mrb[0].mxu0 %v3477
        %v3822 = vpop.f32.mrb[0].mxu0
        %v3823 = vadd.f32 0.0, %v3822
        %v3824 = vpop.f32.mrb[0].mxu0
        %v3825 = vpop.f32.mrb[0].mxu0
        %v3826 = vadd.f32 0.0, %v3825
        %v3827 = vpop.f32.mrb[0].mxu0
        %3828 = vmatprep.mubr.bf16.mxu0 0
        %3829 = vmatmul.mubr.bf16.gmra.mrb[0].mxu0 %v3480
        %v3830 = vpop.f32.mrb[0].mxu0
        %v3831 = vadd.f32 0.0, %v3830
        %v3832 = vpop.f32.mrb[0].mxu0
        %v3833 = vpop.f32.mrb[0].mxu0
        %v3834 = vadd.f32 0.0, %v3833
        %v3835 = vpop.f32.mrb[0].mxu0
        %3836 = vmatprep.mubr.bf16.mxu0 0
        %3837 = vmatmul.mubr.bf16.gmra.mrb[0].mxu0 %v3483
        %v3838 = vpop.f32.mrb[0].mxu0
        %v3839 = vadd.f32 0.0, %v3838
        %v3840 = vpop.f32.mrb[0].mxu0
        %v3841 = vpop.f32.mrb[0].mxu0
        %v3842 = vadd.f32 0.0, %v3841
        %v3843 = vpop.f32.mrb[0].mxu0
        %3844 = vmatprep.mubr.bf16.mxu0 0
        %3845 = vmatmul.mubr.bf16.gmra.mrb[0].mxu0 %v3486
        %v3846 = vpop.f32.mrb[0].mxu0
        %v3847 = vadd.f32 0.0, %v3846
        %v3848 = vpop.f32.mrb[0].mxu0
        %v3849 = vpop.f32.mrb[0].mxu0
        %v3850 = vadd.f32 0.0, %v3849
        %v3851 = vpop.f32.mrb[0].mxu0
        %3852 = vmatprep.mubr.bf16.mxu0 0
        %3853 = vmatmul.mubr.bf16.gmra.mrb[0].mxu0 %v3489
        %v3854 = vpop.f32.mrb[0].mxu0
        %v3855 = vadd.f32 0.0, %v3854
        %v3856 = vpop.f32.mrb[0].mxu0
        %v3857 = vpop.f32.mrb[0].mxu0
        %v3858 = vadd.f32 0.0, %v3857
        %v3859 = vpop.f32.mrb[0].mxu0
        %3860 = vmatprep.mubr.bf16.mxu0 0
        %3861 = vmatmul.mubr.bf16.gmra.mrb[0].mxu0 %v3492
        %v3862 = vpop.f32.mrb[0].mxu0
        %v3863 = vadd.f32 0.0, %v3862
        %v3864 = vpop.f32.mrb[0].mxu0
        %v3865 = vpop.f32.mrb[0].mxu0
        %v3866 = vadd.f32 0.0, %v3865
        %v3867 = vpop.f32.mrb[0].mxu0
        %3868 = vmatprep.mubr.bf16.mxu0 0
        %3869 = vmatmul.mubr.bf16.gmra.mrb[0].mxu0 %v3495
        %v3870 = vpop.f32.mrb[0].mxu0
        %v3871 = vadd.f32 0.0, %v3870
        %v3872 = vpop.f32.mrb[0].mxu0
        %v3873 = vpop.f32.mrb[0].mxu0
        %v3874 = vadd.f32 0.0, %v3873
        %v3875 = vpop.f32.mrb[0].mxu0
        %3876 = vmatprep.mubr.bf16.mxu0 0
        %3877 = vmatmul.mubr.bf16.gmra.mrb[0].mxu0 %v3498
        %v3878 = vpop.f32.mrb[0].mxu0
        %v3879 = vadd.f32 0.0, %v3878
        %v3880 = vpop.f32.mrb[0].mxu0
        %v3881 = vpop.f32.mrb[0].mxu0
        %v3882 = vadd.f32 0.0, %v3881
        %v3883 = vpop.f32.mrb[0].mxu0
        %3884 = vmatprep.mubr.bf16.mxu0 0
        %3885 = vmatmul.mubr.bf16.gmra.mrb[0].mxu0 %v3501
        %v3886 = vpop.f32.mrb[0].mxu0
        %v3887 = vadd.f32 0.0, %v3886
        %v3888 = vpop.f32.mrb[0].mxu0
        %v3889 = vpop.f32.mrb[0].mxu0
        %v3890 = vadd.f32 0.0, %v3889
        %v3891 = vpop.f32.mrb[0].mxu0
        %3892 = vmatprep.mubr.bf16.mxu0 0
        %3893 = vmatmul.mubr.bf16.gmra.mrb[0].mxu0 %v3504
        %v3894 = vpop.f32.mrb[0].mxu0
        %v3895 = vadd.f32 0.0, %v3894
        %v3896 = vpop.f32.mrb[0].mxu0
        %v3897 = vpop.f32.mrb[0].mxu0
        %v3898 = vadd.f32 0.0, %v3897
        %v3899 = vpop.f32.mrb[0].mxu0
        %3900 = vmatprep.mubr.bf16.mxu0 0
        %3901 = vmatmul.mubr.bf16.gmra.mrb[0].mxu0 %v3507
        %v3902 = vpop.f32.mrb[0].mxu0
        %v3903 = vadd.f32 0.0, %v3902
        %v3904 = vpop.f32.mrb[0].mxu0
        %v3905 = vpop.f32.mrb[0].mxu0
        %v3906 = vadd.f32 0.0, %v3905
        %v3907 = vpop.f32.mrb[0].mxu0
        %3908 = vmatprep.mubr.bf16.mxu0 0
        %3909 = vmatmul.mubr.bf16.gmra.mrb[0].mxu0 %v3510
        %v3910 = vpop.f32.mrb[0].mxu0
        %v3911 = vadd.f32 0.0, %v3910
        %v3912 = vpop.f32.mrb[0].mxu0
        %v3913 = vpop.f32.mrb[0].mxu0
        %v3914 = vadd.f32 0.0, %v3913
        %v3915 = vpop.f32.mrb[0].mxu0
        %3916 = vmatprep.mubr.bf16.mxu0 0
        %3917 = vmatmul.mubr.bf16.gmra.mrb[0].mxu0 %v3513
        %v3918 = vpop.f32.mrb[0].mxu0
        %v3919 = vadd.f32 0.0, %v3918
        %v3920 = vpop.f32.mrb[0].mxu0
        %v3921 = vpop.f32.mrb[0].mxu0
        %v3922 = vadd.f32 0.0, %v3921
        %v3923 = vpop.f32.mrb[0].mxu0
        %3924 = vmatprep.mubr.bf16.mxu0 0
        %3925 = vmatmul.mubr.bf16.gmra.mrb[0].mxu0 %v3516
        %v3926 = vpop.f32.mrb[0].mxu0
        %v3927 = vadd.f32 0.0, %v3926
        %v3928 = vpop.f32.mrb[0].mxu0
        %v3929 = vpop.f32.mrb[0].mxu0
        %v3930 = vadd.f32 0.0, %v3929
        %v3931 = vpop.f32.mrb[0].mxu0
        %3932 = vmatprep.mubr.bf16.mxu0 0
        %3933 = vmatmul.mubr.bf16.gmra.mrb[0].mxu0 %v3519
        %v3934 = vpop.f32.mrb[0].mxu0
        %v3935 = vadd.f32 0.0, %v3934
        %v3936 = vpop.f32.mrb[0].mxu0
        %v3937 = vpop.f32.mrb[0].mxu0
        %v3938 = vadd.f32 0.0, %v3937
        %v3939 = vpop.f32.mrb[0].mxu0
        %3940 = vmatprep.mubr.bf16.mxu0 0
        %3941 = vmatmul.mubr.bf16.gmra.mrb[0].mxu0 %v3522
        %v3942 = vpop.f32.mrb[0].mxu0
        %v3943 = vadd.f32 0.0, %v3942
        %v3944 = vpop.f32.mrb[0].mxu0
        %v3945 = vpop.f32.mrb[0].mxu0
        %v3946 = vadd.f32 0.0, %v3945
        %v3947 = vpop.f32.mrb[0].mxu0
        %3948 = vmatprep.mubr.bf16.mxu0 0
        %3949 = vmatmul.mubr.bf16.gmra.mrb[0].mxu0 %v3525
        %v3950 = vpop.f32.mrb[0].mxu0
        %v3951 = vadd.f32 0.0, %v3950
        %v3952 = vpop.f32.mrb[0].mxu0
        %v3953 = vpop.f32.mrb[0].mxu0
        %v3954 = vadd.f32 0.0, %v3953
        %v3955 = vpop.f32.mrb[0].mxu0
        %3956 = vmatprep.mubr.bf16.mxu0 0
        %3957 = vmatmul.mubr.bf16.gmra.mrb[0].mxu0 %v3528
        %v3958 = vpop.f32.mrb[0].mxu0
        %v3959 = vadd.f32 0.0, %v3958
        %v3960 = vpop.f32.mrb[0].mxu0
        %v3961 = vpop.f32.mrb[0].mxu0
        %v3962 = vadd.f32 0.0, %v3961
        %v3963 = vpop.f32.mrb[0].mxu0
        %3964 = vmatprep.mubr.bf16.mxu0 0
        %3965 = vmatmul.mubr.bf16.gmra.mrb[0].mxu0 %v3531
        %v3966 = vpop.f32.mrb[0].mxu0
        %v3967 = vadd.f32 0.0, %v3966
        %v3968 = vpop.f32.mrb[0].mxu0
        %v3969 = vpop.f32.mrb[0].mxu0
        %v3970 = vadd.f32 0.0, %v3969
        %v3971 = vpop.f32.mrb[0].mxu0
        %3972 = vmatprep.mubr.bf16.mxu0 0
        %3973 = vmatmul.mubr.bf16.gmra.mrb[0].mxu0 %v3534
        %v3974 = vpop.f32.mrb[0].mxu0
        %v3975 = vadd.f32 0.0, %v3974
        %v3976 = vpop.f32.mrb[0].mxu0
        %v3977 = vpop.f32.mrb[0].mxu0
        %v3978 = vadd.f32 0.0, %v3977
        %v3979 = vpop.f32.mrb[0].mxu0
        %3980 = vmatprep.mubr.bf16.mxu0 0
        %3981 = vmatmul.mubr.bf16.gmra.mrb[0].mxu0 %v3537
        %v3982 = vpop.f32.mrb[0].mxu0
        %v3983 = vadd.f32 0.0, %v3982
        %v3984 = vpop.f32.mrb[0].mxu0
        %v3985 = vpop.f32.mrb[0].mxu0
        %v3986 = vadd.f32 0.0, %v3985
        %v3987 = vpop.f32.mrb[0].mxu0
        %3988 = vmatprep.mubr.bf16.mxu0 0
        %3989 = vmatmul.mubr.bf16.gmra.mrb[0].mxu0 %v3540
        %v3990 = vpop.f32.mrb[0].mxu0
        %v3991 = vadd.f32 0.0, %v3990
        %v3992 = vpop.f32.mrb[0].mxu0
        %v3993 = vpop.f32.mrb[0].mxu0
        %v3994 = vadd.f32 0.0, %v3993
        %v3995 = vpop.f32.mrb[0].mxu0
        %3996 = vmatprep.mubr.bf16.mxu0 0
        %3997 = vmatmul.mubr.bf16.gmra.mrb[0].mxu0 %v3543
        %v3998 = vpop.f32.mrb[0].mxu0
        %v3999 = vadd.f32 0.0, %v3998
        %v4000 = vpop.f32.mrb[0].mxu0
        %v4001 = vpop.f32.mrb[0].mxu0
        %v4002 = vadd.f32 0.0, %v4001
        %v4003 = vpop.f32.mrb[0].mxu0
        %4004 = vmatprep.mubr.bf16.mxu0 0
        %4005 = vmatmul.mubr.bf16.gmra.mrb[0].mxu0 %v3546
        %v4006 = vpop.f32.mrb[0].mxu0
        %v4007 = vadd.f32 0.0, %v4006
        %v4008 = vpop.f32.mrb[0].mxu0
        %v4009 = vpop.f32.mrb[0].mxu0
        %v4010 = vadd.f32 0.0, %v4009
        %v4011 = vpop.f32.mrb[0].mxu0
        %4012 = vmatprep.mubr.bf16.mxu0 0
        %4013 = vmatmul.mubr.bf16.gmra.mrb[0].mxu0 %v3549
        %v4014 = vpop.f32.mrb[0].mxu0
        %v4015 = vadd.f32 0.0, %v4014
        %v4016 = vpop.f32.mrb[0].mxu0
        %v4017 = vpop.f32.mrb[0].mxu0
        %v4018 = vadd.f32 0.0, %v4017
        %v4019 = vpop.f32.mrb[0].mxu0
        %4020 = vmatprep.mubr.bf16.mxu0 0
        %4021 = vmatmul.mubr.bf16.gmra.mrb[0].mxu0 %v3552
        %v4022 = vpop.f32.mrb[0].mxu0
        %v4023 = vadd.f32 0.0, %v4022
        %v4024 = vpop.f32.mrb[0].mxu0
        %v4025 = vpop.f32.mrb[0].mxu0
        %v4026 = vadd.f32 0.0, %v4025
        %v4027 = vpop.f32.mrb[0].mxu0
        %4028 = vmatprep.mubr.bf16.mxu0 0
        %4029 = vmatmul.mubr.bf16.gmra.mrb[0].mxu0 %v3555
        %v4030 = vpop.f32.mrb[0].mxu0
        %v4031 = vadd.f32 0.0, %v4030
        %v4032 = vpop.f32.mrb[0].mxu0
        %v4033 = vpop.f32.mrb[0].mxu0
        %v4034 = vadd.f32 0.0, %v4033
        %v4035 = vpop.f32.mrb[0].mxu0
        %4036 = vmatprep.mubr.bf16.mxu0 0
        %4037 = vmatmul.mubr.bf16.gmra.mrb[0].mxu0 %v3558
        %v4038 = vpop.f32.mrb[0].mxu0
        %v4039 = vadd.f32 0.0, %v4038
        %v4040 = vpop.f32.mrb[0].mxu0
        %v4041 = vpop.f32.mrb[0].mxu0
        %v4042 = vadd.f32 0.0, %v4041
        %v4043 = vpop.f32.mrb[0].mxu0
        %4044 = vmatprep.mubr.bf16.mxu0 0
        %4045 = vmatmul.mubr.bf16.gmra.mrb[0].mxu0 %v3561
        %v4046 = vpop.f32.mrb[0].mxu0
        %v4047 = vadd.f32 0.0, %v4046
        %v4048 = vpop.f32.mrb[0].mxu0
        %v4049 = vpop.f32.mrb[0].mxu0
        %v4050 = vadd.f32 0.0, %v4049
        %v4051 = vpop.f32.mrb[0].mxu0
        %4052 = vmatprep.mubr.bf16.mxu0 0
        %4053 = vmatmul.mubr.bf16.gmra.mrb[0].mxu0 %v3564
        %v4054 = vpop.f32.mrb[0].mxu0
        %v4055 = vadd.f32 0.0, %v4054
        %v4056 = vpop.f32.mrb[0].mxu0
        %v4057 = vpop.f32.mrb[0].mxu0
        %v4058 = vadd.f32 0.0, %v4057
        %v4059 = vpop.f32.mrb[0].mxu0
        %4060 = vmatprep.mubr.bf16.mxu0 0
        %4061 = vmatmul.mubr.bf16.gmra.mrb[0].mxu0 %v3567
        %v4062 = vpop.f32.mrb[0].mxu0
        %v4063 = vadd.f32 0.0, %v4062
        %v4064 = vpop.f32.mrb[0].mxu0
        %v4065 = vpop.f32.mrb[0].mxu0
        %v4066 = vadd.f32 0.0, %v4065
        %v4067 = vpop.f32.mrb[0].mxu0
        %4068 = vmatprep.mubr.bf16.mxu0 0
        %4069 = vmatmul.mubr.bf16.gmra.mrb[0].mxu0 %v3570
        %v4070 = vpop.f32.mrb[0].mxu0
        %v4071 = vadd.f32 0.0, %v4070
        %v4072 = vpop.f32.mrb[0].mxu0
        %v4073 = vpop.f32.mrb[0].mxu0
        %v4074 = vadd.f32 0.0, %v4073
        %v4075 = vpop.f32.mrb[0].mxu0
        %4076 = vmatprep.mubr.bf16.mxu0 0
        %4077 = vmatmul.mubr.bf16.gmra.mrb[0].mxu0 %v3573
        %v4078 = vpop.f32.mrb[0].mxu0
        %v4079 = vadd.f32 0.0, %v4078
        %v4080 = vpop.f32.mrb[0].mxu0
        %v4081 = vpop.f32.mrb[0].mxu0
        %v4082 = vadd.f32 0.0, %v4081
        %v4083 = vpop.f32.mrb[0].mxu0
        %4084 = vmatprep.mubr.bf16.mxu0 0
        %4085 = vmatmul.mubr.bf16.gmra.mrb[0].mxu0 %v3576
        %v4086 = vpop.f32.mrb[0].mxu0
        %v4087 = vadd.f32 0.0, %v4086
        %v4088 = vpop.f32.mrb[0].mxu0
        %v4089 = vpop.f32.mrb[0].mxu0
        %v4090 = vadd.f32 0.0, %v4089
        %v4091 = vpop.f32.mrb[0].mxu0
        %4092 = vmatprep.mubr.bf16.mxu0 0
        %4093 = vmatmul.mubr.bf16.gmra.mrb[0].mxu0 %v3579
        %v4094 = vpop.f32.mrb[0].mxu0
        %v4095 = vadd.f32 0.0, %v4094
        %v4096 = vpop.f32.mrb[0].mxu0
        %v4097 = vpop.f32.mrb[0].mxu0
        %v4098 = vadd.f32 0.0, %v4097
        %v4099 = vpop.f32.mrb[0].mxu0
        %4100 = vmatprep.mubr.bf16.mxu0 0
        %4101 = vmatmul.mubr.bf16.gmra.mrb[0].mxu0 %v3582
        %v4102 = vpop.f32.mrb[0].mxu0
        %v4103 = vadd.f32 0.0, %v4102
        %v4104 = vpop.f32.mrb[0].mxu0
        %v4105 = vpop.f32.mrb[0].mxu0
        %v4106 = vadd.f32 0.0, %v4105
        %v4107 = vpop.f32.mrb[0].mxu0
        %4108 = vmatprep.mubr.bf16.mxu0 0
        %4109 = vmatmul.mubr.bf16.gmra.mrb[0].mxu0 %v3585
        %v4110 = vpop.f32.mrb[0].mxu0
        %v4111 = vadd.f32 0.0, %v4110
        %v4112 = vpop.f32.mrb[0].mxu0
        %v4113 = vpop.f32.mrb[0].mxu0
        %v4114 = vadd.f32 0.0, %v4113
        %v4115 = vpop.f32.mrb[0].mxu0
        %4116 = vmatprep.mubr.bf16.mxu0 0
        %4117 = vmatmul.mubr.bf16.gmra.mrb[0].mxu0 %v3588
        %v4118 = vpop.f32.mrb[0].mxu0
        %v4119 = vadd.f32 0.0, %v4118
        %v4120 = vpop.f32.mrb[0].mxu0
        %v4121 = vpop.f32.mrb[0].mxu0
        %v4122 = vadd.f32 0.0, %v4121
        %v4123 = vpop.f32.mrb[0].mxu0
        %4124 = vmatprep.mubr.bf16.mxu0 0
        %4125 = vmatmul.mubr.bf16.gmra.mrb[0].mxu0 %v3591
        %v4126 = vpop.f32.mrb[0].mxu0
        %v4127 = vadd.f32 0.0, %v4126
        %v4128 = vpop.f32.mrb[0].mxu0
        %v4129 = vpop.f32.mrb[0].mxu0
        %v4130 = vadd.f32 0.0, %v4129
        %v4131 = vpop.f32.mrb[0].mxu0
        %4132 = vmatprep.mubr.bf16.mxu0 0
        %4133 = vmatmul.mubr.bf16.gmra.mrb[0].mxu0 %v3594
        %v4134 = vpop.f32.mrb[0].mxu0
        %v4135 = vadd.f32 0.0, %v4134
        %v4136 = vpop.f32.mrb[0].mxu0
        %v4137 = vpop.f32.mrb[0].mxu0
        %v4138 = vadd.f32 0.0, %v4137
        %v4139 = vpop.f32.mrb[0].mxu0
        %4140 = vdwg.mxu0
        %v4149 = vunpack.c.l.b16 %v3300
        %v4150 = vunpack.c.l.b16 %v3301
        %v4151 = vunpack.c.l.b16 %v3302
        %v4152 = vunpack.c.l.b16 %v3303
        %v4153 = vunpack.c.l.b16 %v3304
        %v4154 = vunpack.c.l.b16 %v3305
        %v4155 = vunpack.c.l.b16 %v3306
        %v4156 = vunpack.c.l.b16 %v3307
        %v4157 = vpack.c.b16 %v4150, %v4149
        %v4158 = vpack.c.b16 %v4152, %v4151
        %v4159 = vpack.c.b16 %v4154, %v4153
        %v4160 = vpack.c.b16 %v4156, %v4155
        %v4166 = vsel %vm817, %v3236, 0
        %v4169 = vsel %vm817, %v3237, 0
        %v4172 = vsel %vm817, %v3238, 0
        %v4175 = vsel %vm817, %v3239, 0
        %v4178 = vsel %vm817, %v3240, 0
        %v4181 = vsel %vm817, %v3241, 0
        %v4184 = vsel %vm817, %v3242, 0
        %v4187 = vsel %vm817, %v3243, 0
        %v4190 = vsel %vm817, %v3244, 0
        %v4193 = vsel %vm817, %v3245, 0
        %v4196 = vsel %vm817, %v3246, 0
        %v4199 = vsel %vm817, %v3247, 0
        %v4202 = vsel %vm817, %v3248, 0
        %v4205 = vsel %vm817, %v3249, 0
        %v4208 = vsel %vm817, %v3250, 0
        %v4211 = vsel %vm817, %v3251, 0
        %v4214 = vsel %vm817, %v3252, 0
        %v4217 = vsel %vm817, %v3253, 0
        %v4220 = vsel %vm817, %v3254, 0
        %v4223 = vsel %vm817, %v3255, 0
        %v4226 = vsel %vm817, %v3256, 0
        %v4229 = vsel %vm817, %v3257, 0
        %v4232 = vsel %vm817, %v3258, 0
        %v4235 = vsel %vm817, %v3259, 0
        %v4238 = vsel %vm817, %v3260, 0
        %v4241 = vsel %vm817, %v3261, 0
        %v4244 = vsel %vm817, %v3262, 0
        %v4247 = vsel %vm817, %v3263, 0
        %v4250 = vsel %vm817, %v3264, 0
        %v4253 = vsel %vm817, %v3265, 0
        %v4256 = vsel %vm817, %v3266, 0
        %v4259 = vsel %vm817, %v3267, 0
        %v4262 = vsel %vm817, %v3268, 0
        %v4265 = vsel %vm817, %v3269, 0
        %v4268 = vsel %vm817, %v3270, 0
        %v4271 = vsel %vm817, %v3271, 0
        %v4274 = vsel %vm817, %v3272, 0
        %v4277 = vsel %vm817, %v3273, 0
        %v4280 = vsel %vm817, %v3274, 0
        %v4283 = vsel %vm817, %v3275, 0
        %v4286 = vsel %vm817, %v3276, 0
        %v4289 = vsel %vm817, %v3277, 0
        %v4292 = vsel %vm817, %v3278, 0
        %v4295 = vsel %vm817, %v3279, 0
        %v4298 = vsel %vm817, %v3280, 0
        %v4301 = vsel %vm817, %v3281, 0
        %v4304 = vsel %vm817, %v3282, 0
        %v4307 = vsel %vm817, %v3283, 0
        %v4310 = vsel %vm817, %v3284, 0
        %v4313 = vsel %vm817, %v3285, 0
        %v4316 = vsel %vm817, %v3286, 0
        %v4319 = vsel %vm817, %v3287, 0
        %v4322 = vsel %vm817, %v3288, 0
        %v4325 = vsel %vm817, %v3289, 0
        %v4328 = vsel %vm817, %v3290, 0
        %v4331 = vsel %vm817, %v3291, 0
        %v4334 = vsel %vm817, %v3292, 0
        %v4337 = vsel %vm817, %v3293, 0
        %v4340 = vsel %vm817, %v3294, 0
        %v4343 = vsel %vm817, %v3295, 0
        %v4346 = vsel %vm817, %v3296, 0
        %v4349 = vsel %vm817, %v3297, 0
        %v4352 = vsel %vm817, %v3298, 0
        %v4355 = vsel %vm817, %v3299, 0
        %4357 = vmatprep.subr.bf16.mxu0 0
        %4358 = vmatpush1.bf16.msra.mxu0 %v4157
        %4359 = vmatprep.subr.bf16.mxu0 0
        %4360 = vmatpush1.bf16.msra.mxu0 %v4158
        %4361 = vmatprep.subr.bf16.mxu0 0
        %4362 = vmatpush1.bf16.msra.mxu0 %v4159
        %4363 = vmatprep.subr.bf16.mxu0 0
        %4364 = vmatpush1.bf16.msra.mxu0 %v4160
        %4365 = vmatprep.subr.bf16.mxu0 0
        %4366 = vmatpush1.bf16.msra.mxu0 0
        %4367 = vmatprep.subr.bf16.mxu0 0
        %4368 = vmatpush1.bf16.msra.mxu0 0
        %4369 = vmatprep.subr.bf16.mxu0 0
        %4370 = vmatpush1.bf16.msra.mxu0 0
        %4371 = vmatprep.subr.bf16.mxu0 0
        %4372 = vmatpush1.bf16.msra.mxu0 0
        %4373 = vmatprep.subr.bf16.mxu0 0
        %4374 = vmatpush1.bf16.msra.mxu0 0
        %4375 = vmatprep.subr.bf16.mxu0 0
        %4376 = vmatpush1.bf16.msra.mxu0 0
        %4377 = vmatprep.subr.bf16.mxu0 0
        %4378 = vmatpush1.bf16.msra.mxu0 0
        %4379 = vmatprep.subr.bf16.mxu0 0
        %4380 = vmatpush1.bf16.msra.mxu0 0
        %4381 = vmatprep.subr.bf16.mxu0 0
        %4382 = vmatpush1.bf16.msra.mxu0 0
        %4383 = vmatprep.subr.bf16.mxu0 0
        %4384 = vmatpush1.bf16.msra.mxu0 0
        %4385 = vmatprep.subr.bf16.mxu0 0
        %4386 = vmatpush1.bf16.msra.mxu0 0
        %4387 = vmatprep.subr.bf16.mxu0 0
        %4388 = vmatpush1.bf16.msra.mxu0 0
        %4389 = vmatprep.mubr.bf16.mxu0 0
        %4390 = vmatmul.mubr.bf16.gmra.mrb[0].mxu0 %v4166
        %v4391 = vpop.f32.mrb[0].mxu0
        %v4392 = vadd.f32 %v3631, %v4391
        %v4393 = vpop.f32.mrb[0].mxu0
        %v4394 = vpop.f32.mrb[0].mxu0
        %v4395 = vadd.f32 %v3634, %v4394
        %v4396 = vpop.f32.mrb[0].mxu0
        %4397 = vmatprep.mubr.bf16.mxu0 0
        %4398 = vmatmul.mubr.bf16.gmra.mrb[0].mxu0 %v4169
        %v4399 = vpop.f32.mrb[0].mxu0
        %v4400 = vadd.f32 %v3639, %v4399
        %v4401 = vpop.f32.mrb[0].mxu0
        %v4402 = vpop.f32.mrb[0].mxu0
        %v4403 = vadd.f32 %v3642, %v4402
        %v4404 = vpop.f32.mrb[0].mxu0
        %4405 = vmatprep.mubr.bf16.mxu0 0
        %4406 = vmatmul.mubr.bf16.gmra.mrb[0].mxu0 %v4172
        %v4407 = vpop.f32.mrb[0].mxu0
        %v4408 = vadd.f32 %v3647, %v4407
        %v4409 = vpop.f32.mrb[0].mxu0
        %v4410 = vpop.f32.mrb[0].mxu0
        %v4411 = vadd.f32 %v3650, %v4410
        %v4412 = vpop.f32.mrb[0].mxu0
        %4413 = vmatprep.mubr.bf16.mxu0 0
        %4414 = vmatmul.mubr.bf16.gmra.mrb[0].mxu0 %v4175
        %v4415 = vpop.f32.mrb[0].mxu0
        %v4416 = vadd.f32 %v3655, %v4415
        %v4417 = vpop.f32.mrb[0].mxu0
        %v4418 = vpop.f32.mrb[0].mxu0
        %v4419 = vadd.f32 %v3658, %v4418
        %v4420 = vpop.f32.mrb[0].mxu0
        %4421 = vmatprep.mubr.bf16.mxu0 0
        %4422 = vmatmul.mubr.bf16.gmra.mrb[0].mxu0 %v4178
        %v4423 = vpop.f32.mrb[0].mxu0
        %v4424 = vadd.f32 %v3663, %v4423
        %v4425 = vpop.f32.mrb[0].mxu0
        %v4426 = vpop.f32.mrb[0].mxu0
        %v4427 = vadd.f32 %v3666, %v4426
        %v4428 = vpop.f32.mrb[0].mxu0
        %4429 = vmatprep.mubr.bf16.mxu0 0
        %4430 = vmatmul.mubr.bf16.gmra.mrb[0].mxu0 %v4181
        %v4431 = vpop.f32.mrb[0].mxu0
        %v4432 = vadd.f32 %v3671, %v4431
        %v4433 = vpop.f32.mrb[0].mxu0
        %v4434 = vpop.f32.mrb[0].mxu0
        %v4435 = vadd.f32 %v3674, %v4434
        %v4436 = vpop.f32.mrb[0].mxu0
        %4437 = vmatprep.mubr.bf16.mxu0 0
        %4438 = vmatmul.mubr.bf16.gmra.mrb[0].mxu0 %v4184
        %v4439 = vpop.f32.mrb[0].mxu0
        %v4440 = vadd.f32 %v3679, %v4439
        %v4441 = vpop.f32.mrb[0].mxu0
        %v4442 = vpop.f32.mrb[0].mxu0
        %v4443 = vadd.f32 %v3682, %v4442
        %v4444 = vpop.f32.mrb[0].mxu0
        %4445 = vmatprep.mubr.bf16.mxu0 0
        %4446 = vmatmul.mubr.bf16.gmra.mrb[0].mxu0 %v4187
        %v4447 = vpop.f32.mrb[0].mxu0
        %v4448 = vadd.f32 %v3687, %v4447
        %v4449 = vpop.f32.mrb[0].mxu0
        %v4450 = vpop.f32.mrb[0].mxu0
        %v4451 = vadd.f32 %v3690, %v4450
        %v4452 = vpop.f32.mrb[0].mxu0
        %4453 = vmatprep.mubr.bf16.mxu0 0
        %4454 = vmatmul.mubr.bf16.gmra.mrb[0].mxu0 %v4190
        %v4455 = vpop.f32.mrb[0].mxu0
        %v4456 = vadd.f32 %v3695, %v4455
        %v4457 = vpop.f32.mrb[0].mxu0
        %v4458 = vpop.f32.mrb[0].mxu0
        %v4459 = vadd.f32 %v3698, %v4458
        %v4460 = vpop.f32.mrb[0].mxu0
        %4461 = vmatprep.mubr.bf16.mxu0 0
        %4462 = vmatmul.mubr.bf16.gmra.mrb[0].mxu0 %v4193
        %v4463 = vpop.f32.mrb[0].mxu0
        %v4464 = vadd.f32 %v3703, %v4463
        %v4465 = vpop.f32.mrb[0].mxu0
        %v4466 = vpop.f32.mrb[0].mxu0
        %v4467 = vadd.f32 %v3706, %v4466
        %v4468 = vpop.f32.mrb[0].mxu0
        %4469 = vmatprep.mubr.bf16.mxu0 0
        %4470 = vmatmul.mubr.bf16.gmra.mrb[0].mxu0 %v4196
        %v4471 = vpop.f32.mrb[0].mxu0
        %v4472 = vadd.f32 %v3711, %v4471
        %v4473 = vpop.f32.mrb[0].mxu0
        %v4474 = vpop.f32.mrb[0].mxu0
        %v4475 = vadd.f32 %v3714, %v4474
        %v4476 = vpop.f32.mrb[0].mxu0
        %4477 = vmatprep.mubr.bf16.mxu0 0
        %4478 = vmatmul.mubr.bf16.gmra.mrb[0].mxu0 %v4199
        %v4479 = vpop.f32.mrb[0].mxu0
        %v4480 = vadd.f32 %v3719, %v4479
        %v4481 = vpop.f32.mrb[0].mxu0
        %v4482 = vpop.f32.mrb[0].mxu0
        %v4483 = vadd.f32 %v3722, %v4482
        %v4484 = vpop.f32.mrb[0].mxu0
        %4485 = vmatprep.mubr.bf16.mxu0 0
        %4486 = vmatmul.mubr.bf16.gmra.mrb[0].mxu0 %v4202
        %v4487 = vpop.f32.mrb[0].mxu0
        %v4488 = vadd.f32 %v3727, %v4487
        %v4489 = vpop.f32.mrb[0].mxu0
        %v4490 = vpop.f32.mrb[0].mxu0
        %v4491 = vadd.f32 %v3730, %v4490
        %v4492 = vpop.f32.mrb[0].mxu0
        %4493 = vmatprep.mubr.bf16.mxu0 0
        %4494 = vmatmul.mubr.bf16.gmra.mrb[0].mxu0 %v4205
        %v4495 = vpop.f32.mrb[0].mxu0
        %v4496 = vadd.f32 %v3735, %v4495
        %v4497 = vpop.f32.mrb[0].mxu0
        %v4498 = vpop.f32.mrb[0].mxu0
        %v4499 = vadd.f32 %v3738, %v4498
        %v4500 = vpop.f32.mrb[0].mxu0
        %4501 = vmatprep.mubr.bf16.mxu0 0
        %4502 = vmatmul.mubr.bf16.gmra.mrb[0].mxu0 %v4208
        %v4503 = vpop.f32.mrb[0].mxu0
        %v4504 = vadd.f32 %v3743, %v4503
        %v4505 = vpop.f32.mrb[0].mxu0
        %v4506 = vpop.f32.mrb[0].mxu0
        %v4507 = vadd.f32 %v3746, %v4506
        %v4508 = vpop.f32.mrb[0].mxu0
        %4509 = vmatprep.mubr.bf16.mxu0 0
        %4510 = vmatmul.mubr.bf16.gmra.mrb[0].mxu0 %v4211
        %v4511 = vpop.f32.mrb[0].mxu0
        %v4512 = vadd.f32 %v3751, %v4511
        %v4513 = vpop.f32.mrb[0].mxu0
        %v4514 = vpop.f32.mrb[0].mxu0
        %v4515 = vadd.f32 %v3754, %v4514
        %v4516 = vpop.f32.mrb[0].mxu0
        %4517 = vmatprep.mubr.bf16.mxu0 0
        %4518 = vmatmul.mubr.bf16.gmra.mrb[0].mxu0 %v4214
        %v4519 = vpop.f32.mrb[0].mxu0
        %v4520 = vadd.f32 %v3759, %v4519
        %v4521 = vpop.f32.mrb[0].mxu0
        %v4522 = vpop.f32.mrb[0].mxu0
        %v4523 = vadd.f32 %v3762, %v4522
        %v4524 = vpop.f32.mrb[0].mxu0
        %4525 = vmatprep.mubr.bf16.mxu0 0
        %4526 = vmatmul.mubr.bf16.gmra.mrb[0].mxu0 %v4217
        %v4527 = vpop.f32.mrb[0].mxu0
        %v4528 = vadd.f32 %v3767, %v4527
        %v4529 = vpop.f32.mrb[0].mxu0
        %v4530 = vpop.f32.mrb[0].mxu0
        %v4531 = vadd.f32 %v3770, %v4530
        %v4532 = vpop.f32.mrb[0].mxu0
        %4533 = vmatprep.mubr.bf16.mxu0 0
        %4534 = vmatmul.mubr.bf16.gmra.mrb[0].mxu0 %v4220
        %v4535 = vpop.f32.mrb[0].mxu0
        %v4536 = vadd.f32 %v3775, %v4535
        %v4537 = vpop.f32.mrb[0].mxu0
        %v4538 = vpop.f32.mrb[0].mxu0
        %v4539 = vadd.f32 %v3778, %v4538
        %v4540 = vpop.f32.mrb[0].mxu0
        %4541 = vmatprep.mubr.bf16.mxu0 0
        %4542 = vmatmul.mubr.bf16.gmra.mrb[0].mxu0 %v4223
        %v4543 = vpop.f32.mrb[0].mxu0
        %v4544 = vadd.f32 %v3783, %v4543
        %v4545 = vpop.f32.mrb[0].mxu0
        %v4546 = vpop.f32.mrb[0].mxu0
        %v4547 = vadd.f32 %v3786, %v4546
        %v4548 = vpop.f32.mrb[0].mxu0
        %4549 = vmatprep.mubr.bf16.mxu0 0
        %4550 = vmatmul.mubr.bf16.gmra.mrb[0].mxu0 %v4226
        %v4551 = vpop.f32.mrb[0].mxu0
        %v4552 = vadd.f32 %v3791, %v4551
        %v4553 = vpop.f32.mrb[0].mxu0
        %v4554 = vpop.f32.mrb[0].mxu0
        %v4555 = vadd.f32 %v3794, %v4554
        %v4556 = vpop.f32.mrb[0].mxu0
        %4557 = vmatprep.mubr.bf16.mxu0 0
        %4558 = vmatmul.mubr.bf16.gmra.mrb[0].mxu0 %v4229
        %v4559 = vpop.f32.mrb[0].mxu0
        %v4560 = vadd.f32 %v3799, %v4559
        %v4561 = vpop.f32.mrb[0].mxu0
        %v4562 = vpop.f32.mrb[0].mxu0
        %v4563 = vadd.f32 %v3802, %v4562
        %v4564 = vpop.f32.mrb[0].mxu0
        %4565 = vmatprep.mubr.bf16.mxu0 0
        %4566 = vmatmul.mubr.bf16.gmra.mrb[0].mxu0 %v4232
        %v4567 = vpop.f32.mrb[0].mxu0
        %v4568 = vadd.f32 %v3807, %v4567
        %v4569 = vpop.f32.mrb[0].mxu0
        %v4570 = vpop.f32.mrb[0].mxu0
        %v4571 = vadd.f32 %v3810, %v4570
        %v4572 = vpop.f32.mrb[0].mxu0
        %4573 = vmatprep.mubr.bf16.mxu0 0
        %4574 = vmatmul.mubr.bf16.gmra.mrb[0].mxu0 %v4235
        %v4575 = vpop.f32.mrb[0].mxu0
        %v4576 = vadd.f32 %v3815, %v4575
        %v4577 = vpop.f32.mrb[0].mxu0
        %v4578 = vpop.f32.mrb[0].mxu0
        %v4579 = vadd.f32 %v3818, %v4578
        %v4580 = vpop.f32.mrb[0].mxu0
        %4581 = vmatprep.mubr.bf16.mxu0 0
        %4582 = vmatmul.mubr.bf16.gmra.mrb[0].mxu0 %v4238
        %v4583 = vpop.f32.mrb[0].mxu0
        %v4584 = vadd.f32 %v3823, %v4583
        %v4585 = vpop.f32.mrb[0].mxu0
        %v4586 = vpop.f32.mrb[0].mxu0
        %v4587 = vadd.f32 %v3826, %v4586
        %v4588 = vpop.f32.mrb[0].mxu0
        %4589 = vmatprep.mubr.bf16.mxu0 0
        %4590 = vmatmul.mubr.bf16.gmra.mrb[0].mxu0 %v4241
        %v4591 = vpop.f32.mrb[0].mxu0
        %v4592 = vadd.f32 %v3831, %v4591
        %v4593 = vpop.f32.mrb[0].mxu0
        %v4594 = vpop.f32.mrb[0].mxu0
        %v4595 = vadd.f32 %v3834, %v4594
        %v4596 = vpop.f32.mrb[0].mxu0
        %4597 = vmatprep.mubr.bf16.mxu0 0
        %4598 = vmatmul.mubr.bf16.gmra.mrb[0].mxu0 %v4244
        %v4599 = vpop.f32.mrb[0].mxu0
        %v4600 = vadd.f32 %v3839, %v4599
        %v4601 = vpop.f32.mrb[0].mxu0
        %v4602 = vpop.f32.mrb[0].mxu0
        %v4603 = vadd.f32 %v3842, %v4602
        %v4604 = vpop.f32.mrb[0].mxu0
        %4605 = vmatprep.mubr.bf16.mxu0 0
        %4606 = vmatmul.mubr.bf16.gmra.mrb[0].mxu0 %v4247
        %v4607 = vpop.f32.mrb[0].mxu0
        %v4608 = vadd.f32 %v3847, %v4607
        %v4609 = vpop.f32.mrb[0].mxu0
        %v4610 = vpop.f32.mrb[0].mxu0
        %v4611 = vadd.f32 %v3850, %v4610
        %v4612 = vpop.f32.mrb[0].mxu0
        %4613 = vmatprep.mubr.bf16.mxu0 0
        %4614 = vmatmul.mubr.bf16.gmra.mrb[0].mxu0 %v4250
        %v4615 = vpop.f32.mrb[0].mxu0
        %v4616 = vadd.f32 %v3855, %v4615
        %v4617 = vpop.f32.mrb[0].mxu0
        %v4618 = vpop.f32.mrb[0].mxu0
        %v4619 = vadd.f32 %v3858, %v4618
        %v4620 = vpop.f32.mrb[0].mxu0
        %4621 = vmatprep.mubr.bf16.mxu0 0
        %4622 = vmatmul.mubr.bf16.gmra.mrb[0].mxu0 %v4253
        %v4623 = vpop.f32.mrb[0].mxu0
        %v4624 = vadd.f32 %v3863, %v4623
        %v4625 = vpop.f32.mrb[0].mxu0
        %v4626 = vpop.f32.mrb[0].mxu0
        %v4627 = vadd.f32 %v3866, %v4626
        %v4628 = vpop.f32.mrb[0].mxu0
        %4629 = vmatprep.mubr.bf16.mxu0 0
        %4630 = vmatmul.mubr.bf16.gmra.mrb[0].mxu0 %v4256
        %v4631 = vpop.f32.mrb[0].mxu0
        %v4632 = vadd.f32 %v3871, %v4631
        %v4633 = vpop.f32.mrb[0].mxu0
        %v4634 = vpop.f32.mrb[0].mxu0
        %v4635 = vadd.f32 %v3874, %v4634
        %v4636 = vpop.f32.mrb[0].mxu0
        %4637 = vmatprep.mubr.bf16.mxu0 0
        %4638 = vmatmul.mubr.bf16.gmra.mrb[0].mxu0 %v4259
        %v4639 = vpop.f32.mrb[0].mxu0
        %v4640 = vadd.f32 %v3879, %v4639
        %v4641 = vpop.f32.mrb[0].mxu0
        %v4642 = vpop.f32.mrb[0].mxu0
        %v4643 = vadd.f32 %v3882, %v4642
        %v4644 = vpop.f32.mrb[0].mxu0
        %4645 = vmatprep.mubr.bf16.mxu0 0
        %4646 = vmatmul.mubr.bf16.gmra.mrb[0].mxu0 %v4262
        %v4647 = vpop.f32.mrb[0].mxu0
        %v4648 = vadd.f32 %v3887, %v4647
        %v4649 = vpop.f32.mrb[0].mxu0
        %v4650 = vpop.f32.mrb[0].mxu0
        %v4651 = vadd.f32 %v3890, %v4650
        %v4652 = vpop.f32.mrb[0].mxu0
        %4653 = vmatprep.mubr.bf16.mxu0 0
        %4654 = vmatmul.mubr.bf16.gmra.mrb[0].mxu0 %v4265
        %v4655 = vpop.f32.mrb[0].mxu0
        %v4656 = vadd.f32 %v3895, %v4655
        %v4657 = vpop.f32.mrb[0].mxu0
        %v4658 = vpop.f32.mrb[0].mxu0
        %v4659 = vadd.f32 %v3898, %v4658
        %v4660 = vpop.f32.mrb[0].mxu0
        %4661 = vmatprep.mubr.bf16.mxu0 0
        %4662 = vmatmul.mubr.bf16.gmra.mrb[0].mxu0 %v4268
        %v4663 = vpop.f32.mrb[0].mxu0
        %v4664 = vadd.f32 %v3903, %v4663
        %v4665 = vpop.f32.mrb[0].mxu0
        %v4666 = vpop.f32.mrb[0].mxu0
        %v4667 = vadd.f32 %v3906, %v4666
        %v4668 = vpop.f32.mrb[0].mxu0
        %4669 = vmatprep.mubr.bf16.mxu0 0
        %4670 = vmatmul.mubr.bf16.gmra.mrb[0].mxu0 %v4271
        %v4671 = vpop.f32.mrb[0].mxu0
        %v4672 = vadd.f32 %v3911, %v4671
        %v4673 = vpop.f32.mrb[0].mxu0
        %v4674 = vpop.f32.mrb[0].mxu0
        %v4675 = vadd.f32 %v3914, %v4674
        %v4676 = vpop.f32.mrb[0].mxu0
        %4677 = vmatprep.mubr.bf16.mxu0 0
        %4678 = vmatmul.mubr.bf16.gmra.mrb[0].mxu0 %v4274
        %v4679 = vpop.f32.mrb[0].mxu0
        %v4680 = vadd.f32 %v3919, %v4679
        %v4681 = vpop.f32.mrb[0].mxu0
        %v4682 = vpop.f32.mrb[0].mxu0
        %v4683 = vadd.f32 %v3922, %v4682
        %v4684 = vpop.f32.mrb[0].mxu0
        %4685 = vmatprep.mubr.bf16.mxu0 0
        %4686 = vmatmul.mubr.bf16.gmra.mrb[0].mxu0 %v4277
        %v4687 = vpop.f32.mrb[0].mxu0
        %v4688 = vadd.f32 %v3927, %v4687
        %v4689 = vpop.f32.mrb[0].mxu0
        %v4690 = vpop.f32.mrb[0].mxu0
        %v4691 = vadd.f32 %v3930, %v4690
        %v4692 = vpop.f32.mrb[0].mxu0
        %4693 = vmatprep.mubr.bf16.mxu0 0
        %4694 = vmatmul.mubr.bf16.gmra.mrb[0].mxu0 %v4280
        %v4695 = vpop.f32.mrb[0].mxu0
        %v4696 = vadd.f32 %v3935, %v4695
        %v4697 = vpop.f32.mrb[0].mxu0
        %v4698 = vpop.f32.mrb[0].mxu0
        %v4699 = vadd.f32 %v3938, %v4698
        %v4700 = vpop.f32.mrb[0].mxu0
        %4701 = vmatprep.mubr.bf16.mxu0 0
        %4702 = vmatmul.mubr.bf16.gmra.mrb[0].mxu0 %v4283
        %v4703 = vpop.f32.mrb[0].mxu0
        %v4704 = vadd.f32 %v3943, %v4703
        %v4705 = vpop.f32.mrb[0].mxu0
        %v4706 = vpop.f32.mrb[0].mxu0
        %v4707 = vadd.f32 %v3946, %v4706
        %v4708 = vpop.f32.mrb[0].mxu0
        %4709 = vmatprep.mubr.bf16.mxu0 0
        %4710 = vmatmul.mubr.bf16.gmra.mrb[0].mxu0 %v4286
        %v4711 = vpop.f32.mrb[0].mxu0
        %v4712 = vadd.f32 %v3951, %v4711
        %v4713 = vpop.f32.mrb[0].mxu0
        %v4714 = vpop.f32.mrb[0].mxu0
        %v4715 = vadd.f32 %v3954, %v4714
        %v4716 = vpop.f32.mrb[0].mxu0
        %4717 = vmatprep.mubr.bf16.mxu0 0
        %4718 = vmatmul.mubr.bf16.gmra.mrb[0].mxu0 %v4289
        %v4719 = vpop.f32.mrb[0].mxu0
        %v4720 = vadd.f32 %v3959, %v4719
        %v4721 = vpop.f32.mrb[0].mxu0
        %v4722 = vpop.f32.mrb[0].mxu0
        %v4723 = vadd.f32 %v3962, %v4722
        %v4724 = vpop.f32.mrb[0].mxu0
        %4725 = vmatprep.mubr.bf16.mxu0 0
        %4726 = vmatmul.mubr.bf16.gmra.mrb[0].mxu0 %v4292
        %v4727 = vpop.f32.mrb[0].mxu0
        %v4728 = vadd.f32 %v3967, %v4727
        %v4729 = vpop.f32.mrb[0].mxu0
        %v4730 = vpop.f32.mrb[0].mxu0
        %v4731 = vadd.f32 %v3970, %v4730
        %v4732 = vpop.f32.mrb[0].mxu0
        %4733 = vmatprep.mubr.bf16.mxu0 0
        %4734 = vmatmul.mubr.bf16.gmra.mrb[0].mxu0 %v4295
        %v4735 = vpop.f32.mrb[0].mxu0
        %v4736 = vadd.f32 %v3975, %v4735
        %v4737 = vpop.f32.mrb[0].mxu0
        %v4738 = vpop.f32.mrb[0].mxu0
        %v4739 = vadd.f32 %v3978, %v4738
        %v4740 = vpop.f32.mrb[0].mxu0
        %4741 = vmatprep.mubr.bf16.mxu0 0
        %4742 = vmatmul.mubr.bf16.gmra.mrb[0].mxu0 %v4298
        %v4743 = vpop.f32.mrb[0].mxu0
        %v4744 = vadd.f32 %v3983, %v4743
        %v4745 = vpop.f32.mrb[0].mxu0
        %v4746 = vpop.f32.mrb[0].mxu0
        %v4747 = vadd.f32 %v3986, %v4746
        %v4748 = vpop.f32.mrb[0].mxu0
        %4749 = vmatprep.mubr.bf16.mxu0 0
        %4750 = vmatmul.mubr.bf16.gmra.mrb[0].mxu0 %v4301
        %v4751 = vpop.f32.mrb[0].mxu0
        %v4752 = vadd.f32 %v3991, %v4751
        %v4753 = vpop.f32.mrb[0].mxu0
        %v4754 = vpop.f32.mrb[0].mxu0
        %v4755 = vadd.f32 %v3994, %v4754
        %v4756 = vpop.f32.mrb[0].mxu0
        %4757 = vmatprep.mubr.bf16.mxu0 0
        %4758 = vmatmul.mubr.bf16.gmra.mrb[0].mxu0 %v4304
        %v4759 = vpop.f32.mrb[0].mxu0
        %v4760 = vadd.f32 %v3999, %v4759
        %v4761 = vpop.f32.mrb[0].mxu0
        %v4762 = vpop.f32.mrb[0].mxu0
        %v4763 = vadd.f32 %v4002, %v4762
        %v4764 = vpop.f32.mrb[0].mxu0
        %4765 = vmatprep.mubr.bf16.mxu0 0
        %4766 = vmatmul.mubr.bf16.gmra.mrb[0].mxu0 %v4307
        %v4767 = vpop.f32.mrb[0].mxu0
        %v4768 = vadd.f32 %v4007, %v4767
        %v4769 = vpop.f32.mrb[0].mxu0
        %v4770 = vpop.f32.mrb[0].mxu0
        %v4771 = vadd.f32 %v4010, %v4770
        %v4772 = vpop.f32.mrb[0].mxu0
        %4773 = vmatprep.mubr.bf16.mxu0 0
        %4774 = vmatmul.mubr.bf16.gmra.mrb[0].mxu0 %v4310
        %v4775 = vpop.f32.mrb[0].mxu0
        %v4776 = vadd.f32 %v4015, %v4775
        %v4777 = vpop.f32.mrb[0].mxu0
        %v4778 = vpop.f32.mrb[0].mxu0
        %v4779 = vadd.f32 %v4018, %v4778
        %v4780 = vpop.f32.mrb[0].mxu0
        %4781 = vmatprep.mubr.bf16.mxu0 0
        %4782 = vmatmul.mubr.bf16.gmra.mrb[0].mxu0 %v4313
        %v4783 = vpop.f32.mrb[0].mxu0
        %v4784 = vadd.f32 %v4023, %v4783
        %v4785 = vpop.f32.mrb[0].mxu0
        %v4786 = vpop.f32.mrb[0].mxu0
        %v4787 = vadd.f32 %v4026, %v4786
        %v4788 = vpop.f32.mrb[0].mxu0
        %4789 = vmatprep.mubr.bf16.mxu0 0
        %4790 = vmatmul.mubr.bf16.gmra.mrb[0].mxu0 %v4316
        %v4791 = vpop.f32.mrb[0].mxu0
        %v4792 = vadd.f32 %v4031, %v4791
        %v4793 = vpop.f32.mrb[0].mxu0
        %v4794 = vpop.f32.mrb[0].mxu0
        %v4795 = vadd.f32 %v4034, %v4794
        %v4796 = vpop.f32.mrb[0].mxu0
        %4797 = vmatprep.mubr.bf16.mxu0 0
        %4798 = vmatmul.mubr.bf16.gmra.mrb[0].mxu0 %v4319
        %v4799 = vpop.f32.mrb[0].mxu0
        %v4800 = vadd.f32 %v4039, %v4799
        %v4801 = vpop.f32.mrb[0].mxu0
        %v4802 = vpop.f32.mrb[0].mxu0
        %v4803 = vadd.f32 %v4042, %v4802
        %v4804 = vpop.f32.mrb[0].mxu0
        %4805 = vmatprep.mubr.bf16.mxu0 0
        %4806 = vmatmul.mubr.bf16.gmra.mrb[0].mxu0 %v4322
        %v4807 = vpop.f32.mrb[0].mxu0
        %v4808 = vadd.f32 %v4047, %v4807
        %v4809 = vpop.f32.mrb[0].mxu0
        %v4810 = vpop.f32.mrb[0].mxu0
        %v4811 = vadd.f32 %v4050, %v4810
        %v4812 = vpop.f32.mrb[0].mxu0
        %4813 = vmatprep.mubr.bf16.mxu0 0
        %4814 = vmatmul.mubr.bf16.gmra.mrb[0].mxu0 %v4325
        %v4815 = vpop.f32.mrb[0].mxu0
        %v4816 = vadd.f32 %v4055, %v4815
        %v4817 = vpop.f32.mrb[0].mxu0
        %v4818 = vpop.f32.mrb[0].mxu0
        %v4819 = vadd.f32 %v4058, %v4818
        %v4820 = vpop.f32.mrb[0].mxu0
        %4821 = vmatprep.mubr.bf16.mxu0 0
        %4822 = vmatmul.mubr.bf16.gmra.mrb[0].mxu0 %v4328
        %v4823 = vpop.f32.mrb[0].mxu0
        %v4824 = vadd.f32 %v4063, %v4823
        %v4825 = vpop.f32.mrb[0].mxu0
        %v4826 = vpop.f32.mrb[0].mxu0
        %v4827 = vadd.f32 %v4066, %v4826
        %v4828 = vpop.f32.mrb[0].mxu0
        %4829 = vmatprep.mubr.bf16.mxu0 0
        %4830 = vmatmul.mubr.bf16.gmra.mrb[0].mxu0 %v4331
        %v4831 = vpop.f32.mrb[0].mxu0
        %v4832 = vadd.f32 %v4071, %v4831
        %v4833 = vpop.f32.mrb[0].mxu0
        %v4834 = vpop.f32.mrb[0].mxu0
        %v4835 = vadd.f32 %v4074, %v4834
        %v4836 = vpop.f32.mrb[0].mxu0
        %4837 = vmatprep.mubr.bf16.mxu0 0
        %4838 = vmatmul.mubr.bf16.gmra.mrb[0].mxu0 %v4334
        %v4839 = vpop.f32.mrb[0].mxu0
        %v4840 = vadd.f32 %v4079, %v4839
        %v4841 = vpop.f32.mrb[0].mxu0
        %v4842 = vpop.f32.mrb[0].mxu0
        %v4843 = vadd.f32 %v4082, %v4842
        %v4844 = vpop.f32.mrb[0].mxu0
        %4845 = vmatprep.mubr.bf16.mxu0 0
        %4846 = vmatmul.mubr.bf16.gmra.mrb[0].mxu0 %v4337
        %v4847 = vpop.f32.mrb[0].mxu0
        %v4848 = vadd.f32 %v4087, %v4847
        %v4849 = vpop.f32.mrb[0].mxu0
        %v4850 = vpop.f32.mrb[0].mxu0
        %v4851 = vadd.f32 %v4090, %v4850
        %v4852 = vpop.f32.mrb[0].mxu0
        %4853 = vmatprep.mubr.bf16.mxu0 0
        %4854 = vmatmul.mubr.bf16.gmra.mrb[0].mxu0 %v4340
        %v4855 = vpop.f32.mrb[0].mxu0
        %v4856 = vadd.f32 %v4095, %v4855
        %v4857 = vpop.f32.mrb[0].mxu0
        %v4858 = vpop.f32.mrb[0].mxu0
        %v4859 = vadd.f32 %v4098, %v4858
        %v4860 = vpop.f32.mrb[0].mxu0
        %4861 = vmatprep.mubr.bf16.mxu0 0
        %4862 = vmatmul.mubr.bf16.gmra.mrb[0].mxu0 %v4343
        %v4863 = vpop.f32.mrb[0].mxu0
        %v4864 = vadd.f32 %v4103, %v4863
        %v4865 = vpop.f32.mrb[0].mxu0
        %v4866 = vpop.f32.mrb[0].mxu0
        %v4867 = vadd.f32 %v4106, %v4866
        %v4868 = vpop.f32.mrb[0].mxu0
        %4869 = vmatprep.mubr.bf16.mxu0 0
        %4870 = vmatmul.mubr.bf16.gmra.mrb[0].mxu0 %v4346
        %v4871 = vpop.f32.mrb[0].mxu0
        %v4872 = vadd.f32 %v4111, %v4871
        %v4873 = vpop.f32.mrb[0].mxu0
        %v4874 = vpop.f32.mrb[0].mxu0
        %v4875 = vadd.f32 %v4114, %v4874
        %v4876 = vpop.f32.mrb[0].mxu0
        %4877 = vmatprep.mubr.bf16.mxu0 0
        %4878 = vmatmul.mubr.bf16.gmra.mrb[0].mxu0 %v4349
        %v4879 = vpop.f32.mrb[0].mxu0
        %v4880 = vadd.f32 %v4119, %v4879
        %v4881 = vpop.f32.mrb[0].mxu0
        %v4882 = vpop.f32.mrb[0].mxu0
        %v4883 = vadd.f32 %v4122, %v4882
        %v4884 = vpop.f32.mrb[0].mxu0
        %4885 = vmatprep.mubr.bf16.mxu0 0
        %4886 = vmatmul.mubr.bf16.gmra.mrb[0].mxu0 %v4352
        %v4887 = vpop.f32.mrb[0].mxu0
        %v4888 = vadd.f32 %v4127, %v4887
        %v4889 = vpop.f32.mrb[0].mxu0
        %v4890 = vpop.f32.mrb[0].mxu0
        %v4891 = vadd.f32 %v4130, %v4890
        %v4892 = vpop.f32.mrb[0].mxu0
        %4893 = vmatprep.mubr.bf16.mxu0 0
        %4894 = vmatmul.mubr.bf16.gmra.mrb[0].mxu0 %v4355
        %v4895 = vpop.f32.mrb[0].mxu0
        %v4896 = vadd.f32 %v4135, %v4895
        %v4897 = vpop.f32.mrb[0].mxu0
        %v4898 = vpop.f32.mrb[0].mxu0
        %v4899 = vadd.f32 %v4138, %v4898
        %v4900 = vpop.f32.mrb[0].mxu0
        %4901 = vdwg.mxu0
        %v4902 = vld [vmem:[%s3167] sm:$0xff]
        %v4903 = vld [vmem:[%s3167 + $0x8] sm:$0xff]
        %v4904 = vld [vmem:[%s3167 + $0x10] sm:$0xff]
        %v4905 = vld [vmem:[%s3167 + $0x18] sm:$0xff]
        %v4906 = vld [vmem:[%s3167 + $0x20] sm:$0xff]
        %v4907 = vld [vmem:[%s3167 + $0x28] sm:$0xff]
        %v4908 = vld [vmem:[%s3167 + $0x30] sm:$0xff]
        %v4909 = vld [vmem:[%s3167 + $0x38] sm:$0xff]
        %v4910 = vld [vmem:[%s3167 + $0x40] sm:$0xff]
        %v4911 = vld [vmem:[%s3167 + $0x48] sm:$0xff]
        %v4912 = vld [vmem:[%s3167 + $0x50] sm:$0xff]
        %v4913 = vld [vmem:[%s3167 + $0x58] sm:$0xff]
        %v4914 = vld [vmem:[%s3167 + $0x60] sm:$0xff]
        %v4915 = vld [vmem:[%s3167 + $0x68] sm:$0xff]
        %v4916 = vld [vmem:[%s3167 + $0x70] sm:$0xff]
        %v4917 = vld [vmem:[%s3167 + $0x78] sm:$0xff]
        %v4918 = vld [vmem:[%s3167 + $0x80] sm:$0xff]
        %v4919 = vld [vmem:[%s3167 + $0x88] sm:$0xff]
        %v4920 = vld [vmem:[%s3167 + $0x90] sm:$0xff]
        %v4921 = vld [vmem:[%s3167 + $0x98] sm:$0xff]
        %v4922 = vld [vmem:[%s3167 + $0xa0] sm:$0xff]
        %v4923 = vld [vmem:[%s3167 + $0xa8] sm:$0xff]
        %v4924 = vld [vmem:[%s3167 + $0xb0] sm:$0xff]
        %v4925 = vld [vmem:[%s3167 + $0xb8] sm:$0xff]
        %v4926 = vld [vmem:[%s3167 + $0xc0] sm:$0xff]
        %v4927 = vld [vmem:[%s3167 + $0xc8] sm:$0xff]
        %v4928 = vld [vmem:[%s3167 + $0xd0] sm:$0xff]
        %v4929 = vld [vmem:[%s3167 + $0xd8] sm:$0xff]
        %v4930 = vld [vmem:[%s3167 + $0xe0] sm:$0xff]
        %v4931 = vld [vmem:[%s3167 + $0xe8] sm:$0xff]
        %v4932 = vld [vmem:[%s3167 + $0xf0] sm:$0xff]
        %v4933 = vld [vmem:[%s3167 + $0xf8] sm:$0xff]
        %v4934 = vld [vmem:[%s3167 + $0x100] sm:$0xff]
        %v4935 = vld [vmem:[%s3167 + $0x108] sm:$0xff]
        %v4936 = vld [vmem:[%s3167 + $0x110] sm:$0xff]
        %v4937 = vld [vmem:[%s3167 + $0x118] sm:$0xff]
        %v4938 = vld [vmem:[%s3167 + $0x120] sm:$0xff]
        %v4939 = vld [vmem:[%s3167 + $0x128] sm:$0xff]
        %v4940 = vld [vmem:[%s3167 + $0x130] sm:$0xff]
        %v4941 = vld [vmem:[%s3167 + $0x138] sm:$0xff]
        %v4942 = vld [vmem:[%s3167 + $0x140] sm:$0xff]
        %v4943 = vld [vmem:[%s3167 + $0x148] sm:$0xff]
        %v4944 = vld [vmem:[%s3167 + $0x150] sm:$0xff]
        %v4945 = vld [vmem:[%s3167 + $0x158] sm:$0xff]
        %v4946 = vld [vmem:[%s3167 + $0x160] sm:$0xff]
        %v4947 = vld [vmem:[%s3167 + $0x168] sm:$0xff]
        %v4948 = vld [vmem:[%s3167 + $0x170] sm:$0xff]
        %v4949 = vld [vmem:[%s3167 + $0x178] sm:$0xff]
        %v4950 = vld [vmem:[%s3167 + $0x180] sm:$0xff]
        %v4951 = vld [vmem:[%s3167 + $0x188] sm:$0xff]
        %v4952 = vld [vmem:[%s3167 + $0x190] sm:$0xff]
        %v4953 = vld [vmem:[%s3167 + $0x198] sm:$0xff]
        %v4954 = vld [vmem:[%s3167 + $0x1a0] sm:$0xff]
        %v4955 = vld [vmem:[%s3167 + $0x1a8] sm:$0xff]
        %v4956 = vld [vmem:[%s3167 + $0x1b0] sm:$0xff]
        %v4957 = vld [vmem:[%s3167 + $0x1b8] sm:$0xff]
        %v4958 = vld [vmem:[%s3167 + $0x1c0] sm:$0xff]
        %v4959 = vld [vmem:[%s3167 + $0x1c8] sm:$0xff]
        %v4960 = vld [vmem:[%s3167 + $0x1d0] sm:$0xff]
        %v4961 = vld [vmem:[%s3167 + $0x1d8] sm:$0xff]
        %v4962 = vld [vmem:[%s3167 + $0x1e0] sm:$0xff]
        %v4963 = vld [vmem:[%s3167 + $0x1e8] sm:$0xff]
        %v4964 = vld [vmem:[%s3167 + $0x1f0] sm:$0xff]
        %v4965 = vld [vmem:[%s3167 + $0x1f8] sm:$0xff]
        %v4966 = vld [vmem:[%s264 + $0x40] sm:$0xf]
        %v4967 = vld [vmem:[%s264 + $0x44] sm:$0xf]
        %v4968 = vld [vmem:[%s264 + $0x48] sm:$0xf]
        %v4969 = vld [vmem:[%s264 + $0x4c] sm:$0xf]
        %v4970 = vld [vmem:[%s264 + $0x50] sm:$0xf]
        %v4971 = vld [vmem:[%s264 + $0x54] sm:$0xf]
        %v4972 = vld [vmem:[%s264 + $0x58] sm:$0xf]
        %v4973 = vld [vmem:[%s264 + $0x5c] sm:$0xf]
        %v4982 = vunpack.c.l.b16 %v4966
        %v4983 = vunpack.c.l.b16 %v4967
        %v4984 = vunpack.c.l.b16 %v4968
        %v4985 = vunpack.c.l.b16 %v4969
        %v4986 = vunpack.c.l.b16 %v4970
        %v4987 = vunpack.c.l.b16 %v4971
        %v4988 = vunpack.c.l.b16 %v4972
        %v4989 = vunpack.c.l.b16 %v4973
        %v4990 = vpack.c.b16 %v4983, %v4982
        %v4991 = vpack.c.b16 %v4985, %v4984
        %v4992 = vpack.c.b16 %v4987, %v4986
        %v4993 = vpack.c.b16 %v4989, %v4988
        %v4999 = vsel %vm817, %v4902, 0
        %v5002 = vsel %vm817, %v4903, 0
        %v5005 = vsel %vm817, %v4904, 0
        %v5008 = vsel %vm817, %v4905, 0
        %v5011 = vsel %vm817, %v4906, 0
        %v5014 = vsel %vm817, %v4907, 0
        %v5017 = vsel %vm817, %v4908, 0
        %v5020 = vsel %vm817, %v4909, 0
        %v5023 = vsel %vm817, %v4910, 0
        %v5026 = vsel %vm817, %v4911, 0
        %v5029 = vsel %vm817, %v4912, 0
        %v5032 = vsel %vm817, %v4913, 0
        %v5035 = vsel %vm817, %v4914, 0
        %v5038 = vsel %vm817, %v4915, 0
        %v5041 = vsel %vm817, %v4916, 0
        %v5044 = vsel %vm817, %v4917, 0
        %v5047 = vsel %vm817, %v4918, 0
        %v5050 = vsel %vm817, %v4919, 0
        %v5053 = vsel %vm817, %v4920, 0
        %v5056 = vsel %vm817, %v4921, 0
        %v5059 = vsel %vm817, %v4922, 0
        %v5062 = vsel %vm817, %v4923, 0
        %v5065 = vsel %vm817, %v4924, 0
        %v5068 = vsel %vm817, %v4925, 0
        %v5071 = vsel %vm817, %v4926, 0
        %v5074 = vsel %vm817, %v4927, 0
        %v5077 = vsel %vm817, %v4928, 0
        %v5080 = vsel %vm817, %v4929, 0
        %v5083 = vsel %vm817, %v4930, 0
        %v5086 = vsel %vm817, %v4931, 0
        %v5089 = vsel %vm817, %v4932, 0
        %v5092 = vsel %vm817, %v4933, 0
        %v5095 = vsel %vm817, %v4934, 0
        %v5098 = vsel %vm817, %v4935, 0
        %v5101 = vsel %vm817, %v4936, 0
        %v5104 = vsel %vm817, %v4937, 0
        %v5107 = vsel %vm817, %v4938, 0
        %v5110 = vsel %vm817, %v4939, 0
        %v5113 = vsel %vm817, %v4940, 0
        %v5116 = vsel %vm817, %v4941, 0
        %v5119 = vsel %vm817, %v4942, 0
        %v5122 = vsel %vm817, %v4943, 0
        %v5125 = vsel %vm817, %v4944, 0
        %v5128 = vsel %vm817, %v4945, 0
        %v5131 = vsel %vm817, %v4946, 0
        %v5134 = vsel %vm817, %v4947, 0
        %v5137 = vsel %vm817, %v4948, 0
        %v5140 = vsel %vm817, %v4949, 0
        %v5143 = vsel %vm817, %v4950, 0
        %v5146 = vsel %vm817, %v4951, 0
        %v5149 = vsel %vm817, %v4952, 0
        %v5152 = vsel %vm817, %v4953, 0
        %v5155 = vsel %vm817, %v4954, 0
        %v5158 = vsel %vm817, %v4955, 0
        %v5161 = vsel %vm817, %v4956, 0
        %v5164 = vsel %vm817, %v4957, 0
        %v5167 = vsel %vm817, %v4958, 0
        %v5170 = vsel %vm817, %v4959, 0
        %v5173 = vsel %vm817, %v4960, 0
        %v5176 = vsel %vm817, %v4961, 0
        %v5179 = vsel %vm817, %v4962, 0
        %v5182 = vsel %vm817, %v4963, 0
        %v5185 = vsel %vm817, %v4964, 0
        %v5188 = vsel %vm817, %v4965, 0
        %5190 = vmatprep.subr.bf16.mxu0 0
        %5191 = vmatpush1.bf16.msra.mxu0 %v4990
        %5192 = vmatprep.subr.bf16.mxu0 0
        %5193 = vmatpush1.bf16.msra.mxu0 %v4991
        %5194 = vmatprep.subr.bf16.mxu0 0
        %5195 = vmatpush1.bf16.msra.mxu0 %v4992
        %5196 = vmatprep.subr.bf16.mxu0 0
        %5197 = vmatpush1.bf16.msra.mxu0 %v4993
        %5198 = vmatprep.subr.bf16.mxu0 0
        %5199 = vmatpush1.bf16.msra.mxu0 0
        %5200 = vmatprep.subr.bf16.mxu0 0
        %5201 = vmatpush1.bf16.msra.mxu0 0
        %5202 = vmatprep.subr.bf16.mxu0 0
        %5203 = vmatpush1.bf16.msra.mxu0 0
        %5204 = vmatprep.subr.bf16.mxu0 0
        %5205 = vmatpush1.bf16.msra.mxu0 0
        %5206 = vmatprep.subr.bf16.mxu0 0
        %5207 = vmatpush1.bf16.msra.mxu0 0
        %5208 = vmatprep.subr.bf16.mxu0 0
        %5209 = vmatpush1.bf16.msra.mxu0 0
        %5210 = vmatprep.subr.bf16.mxu0 0
        %5211 = vmatpush1.bf16.msra.mxu0 0
        %5212 = vmatprep.subr.bf16.mxu0 0
        %5213 = vmatpush1.bf16.msra.mxu0 0
        %5214 = vmatprep.subr.bf16.mxu0 0
        %5215 = vmatpush1.bf16.msra.mxu0 0
        %5216 = vmatprep.subr.bf16.mxu0 0
        %5217 = vmatpush1.bf16.msra.mxu0 0
        %5218 = vmatprep.subr.bf16.mxu0 0
        %5219 = vmatpush1.bf16.msra.mxu0 0
        %5220 = vmatprep.subr.bf16.mxu0 0
        %5221 = vmatpush1.bf16.msra.mxu0 0
        %5222 = vmatprep.mubr.bf16.mxu0 0
        %5223 = vmatmul.mubr.bf16.gmra.mrb[0].mxu0 %v4999
        %v5224 = vpop.f32.mrb[0].mxu0
        %v5225 = vadd.f32 0.0, %v5224
        %v5226 = vpop.f32.mrb[0].mxu0
        %v5227 = vpop.f32.mrb[0].mxu0
        %v5228 = vadd.f32 0.0, %v5227
        %v5229 = vpop.f32.mrb[0].mxu0
        %5230 = vmatprep.mubr.bf16.mxu0 0
        %5231 = vmatmul.mubr.bf16.gmra.mrb[0].mxu0 %v5002
        %v5232 = vpop.f32.mrb[0].mxu0
        %v5233 = vadd.f32 0.0, %v5232
        %v5234 = vpop.f32.mrb[0].mxu0
        %v5235 = vpop.f32.mrb[0].mxu0
        %v5236 = vadd.f32 0.0, %v5235
        %v5237 = vpop.f32.mrb[0].mxu0
        %5238 = vmatprep.mubr.bf16.mxu0 0
        %5239 = vmatmul.mubr.bf16.gmra.mrb[0].mxu0 %v5005
        %v5240 = vpop.f32.mrb[0].mxu0
        %v5241 = vadd.f32 0.0, %v5240
        %v5242 = vpop.f32.mrb[0].mxu0
        %v5243 = vpop.f32.mrb[0].mxu0
        %v5244 = vadd.f32 0.0, %v5243
        %v5245 = vpop.f32.mrb[0].mxu0
        %5246 = vmatprep.mubr.bf16.mxu0 0
        %5247 = vmatmul.mubr.bf16.gmra.mrb[0].mxu0 %v5008
        %v5248 = vpop.f32.mrb[0].mxu0
        %v5249 = vadd.f32 0.0, %v5248
        %v5250 = vpop.f32.mrb[0].mxu0
        %v5251 = vpop.f32.mrb[0].mxu0
        %v5252 = vadd.f32 0.0, %v5251
        %v5253 = vpop.f32.mrb[0].mxu0
        %5254 = vmatprep.mubr.bf16.mxu0 0
        %5255 = vmatmul.mubr.bf16.gmra.mrb[0].mxu0 %v5011
        %v5256 = vpop.f32.mrb[0].mxu0
        %v5257 = vadd.f32 0.0, %v5256
        %v5258 = vpop.f32.mrb[0].mxu0
        %v5259 = vpop.f32.mrb[0].mxu0
        %v5260 = vadd.f32 0.0, %v5259
        %v5261 = vpop.f32.mrb[0].mxu0
        %5262 = vmatprep.mubr.bf16.mxu0 0
        %5263 = vmatmul.mubr.bf16.gmra.mrb[0].mxu0 %v5014
        %v5264 = vpop.f32.mrb[0].mxu0
        %v5265 = vadd.f32 0.0, %v5264
        %v5266 = vpop.f32.mrb[0].mxu0
        %v5267 = vpop.f32.mrb[0].mxu0
        %v5268 = vadd.f32 0.0, %v5267
        %v5269 = vpop.f32.mrb[0].mxu0
        %5270 = vmatprep.mubr.bf16.mxu0 0
        %5271 = vmatmul.mubr.bf16.gmra.mrb[0].mxu0 %v5017
        %v5272 = vpop.f32.mrb[0].mxu0
        %v5273 = vadd.f32 0.0, %v5272
        %v5274 = vpop.f32.mrb[0].mxu0
        %v5275 = vpop.f32.mrb[0].mxu0
        %v5276 = vadd.f32 0.0, %v5275
        %v5277 = vpop.f32.mrb[0].mxu0
        %5278 = vmatprep.mubr.bf16.mxu0 0
        %5279 = vmatmul.mubr.bf16.gmra.mrb[0].mxu0 %v5020
        %v5280 = vpop.f32.mrb[0].mxu0
        %v5281 = vadd.f32 0.0, %v5280
        %v5282 = vpop.f32.mrb[0].mxu0
        %v5283 = vpop.f32.mrb[0].mxu0
        %v5284 = vadd.f32 0.0, %v5283
        %v5285 = vpop.f32.mrb[0].mxu0
        %5286 = vmatprep.mubr.bf16.mxu0 0
        %5287 = vmatmul.mubr.bf16.gmra.mrb[0].mxu0 %v5023
        %v5288 = vpop.f32.mrb[0].mxu0
        %v5289 = vadd.f32 0.0, %v5288
        %v5290 = vpop.f32.mrb[0].mxu0
        %v5291 = vpop.f32.mrb[0].mxu0
        %v5292 = vadd.f32 0.0, %v5291
        %v5293 = vpop.f32.mrb[0].mxu0
        %5294 = vmatprep.mubr.bf16.mxu0 0
        %5295 = vmatmul.mubr.bf16.gmra.mrb[0].mxu0 %v5026
        %v5296 = vpop.f32.mrb[0].mxu0
        %v5297 = vadd.f32 0.0, %v5296
        %v5298 = vpop.f32.mrb[0].mxu0
        %v5299 = vpop.f32.mrb[0].mxu0
        %v5300 = vadd.f32 0.0, %v5299
        %v5301 = vpop.f32.mrb[0].mxu0
        %5302 = vmatprep.mubr.bf16.mxu0 0
        %5303 = vmatmul.mubr.bf16.gmra.mrb[0].mxu0 %v5029
        %v5304 = vpop.f32.mrb[0].mxu0
        %v5305 = vadd.f32 0.0, %v5304
        %v5306 = vpop.f32.mrb[0].mxu0
        %v5307 = vpop.f32.mrb[0].mxu0
        %v5308 = vadd.f32 0.0, %v5307
        %v5309 = vpop.f32.mrb[0].mxu0
        %5310 = vmatprep.mubr.bf16.mxu0 0
        %5311 = vmatmul.mubr.bf16.gmra.mrb[0].mxu0 %v5032
        %v5312 = vpop.f32.mrb[0].mxu0
        %v5313 = vadd.f32 0.0, %v5312
        %v5314 = vpop.f32.mrb[0].mxu0
        %v5315 = vpop.f32.mrb[0].mxu0
        %v5316 = vadd.f32 0.0, %v5315
        %v5317 = vpop.f32.mrb[0].mxu0
        %5318 = vmatprep.mubr.bf16.mxu0 0
        %5319 = vmatmul.mubr.bf16.gmra.mrb[0].mxu0 %v5035
        %v5320 = vpop.f32.mrb[0].mxu0
        %v5321 = vadd.f32 0.0, %v5320
        %v5322 = vpop.f32.mrb[0].mxu0
        %v5323 = vpop.f32.mrb[0].mxu0
        %v5324 = vadd.f32 0.0, %v5323
        %v5325 = vpop.f32.mrb[0].mxu0
        %5326 = vmatprep.mubr.bf16.mxu0 0
        %5327 = vmatmul.mubr.bf16.gmra.mrb[0].mxu0 %v5038
        %v5328 = vpop.f32.mrb[0].mxu0
        %v5329 = vadd.f32 0.0, %v5328
        %v5330 = vpop.f32.mrb[0].mxu0
        %v5331 = vpop.f32.mrb[0].mxu0
        %v5332 = vadd.f32 0.0, %v5331
        %v5333 = vpop.f32.mrb[0].mxu0
        %5334 = vmatprep.mubr.bf16.mxu0 0
        %5335 = vmatmul.mubr.bf16.gmra.mrb[0].mxu0 %v5041
        %v5336 = vpop.f32.mrb[0].mxu0
        %v5337 = vadd.f32 0.0, %v5336
        %v5338 = vpop.f32.mrb[0].mxu0
        %v5339 = vpop.f32.mrb[0].mxu0
        %v5340 = vadd.f32 0.0, %v5339
        %v5341 = vpop.f32.mrb[0].mxu0
        %5342 = vmatprep.mubr.bf16.mxu0 0
        %5343 = vmatmul.mubr.bf16.gmra.mrb[0].mxu0 %v5044
        %v5344 = vpop.f32.mrb[0].mxu0
        %v5345 = vadd.f32 0.0, %v5344
        %v5346 = vpop.f32.mrb[0].mxu0
        %v5347 = vpop.f32.mrb[0].mxu0
        %v5348 = vadd.f32 0.0, %v5347
        %v5349 = vpop.f32.mrb[0].mxu0
        %5350 = vmatprep.mubr.bf16.mxu0 0
        %5351 = vmatmul.mubr.bf16.gmra.mrb[0].mxu0 %v5047
        %v5352 = vpop.f32.mrb[0].mxu0
        %v5353 = vadd.f32 0.0, %v5352
        %v5354 = vpop.f32.mrb[0].mxu0
        %v5355 = vpop.f32.mrb[0].mxu0
        %v5356 = vadd.f32 0.0, %v5355
        %v5357 = vpop.f32.mrb[0].mxu0
        %5358 = vmatprep.mubr.bf16.mxu0 0
        %5359 = vmatmul.mubr.bf16.gmra.mrb[0].mxu0 %v5050
        %v5360 = vpop.f32.mrb[0].mxu0
        %v5361 = vadd.f32 0.0, %v5360
        %v5362 = vpop.f32.mrb[0].mxu0
        %v5363 = vpop.f32.mrb[0].mxu0
        %v5364 = vadd.f32 0.0, %v5363
        %v5365 = vpop.f32.mrb[0].mxu0
        %5366 = vmatprep.mubr.bf16.mxu0 0
        %5367 = vmatmul.mubr.bf16.gmra.mrb[0].mxu0 %v5053
        %v5368 = vpop.f32.mrb[0].mxu0
        %v5369 = vadd.f32 0.0, %v5368
        %v5370 = vpop.f32.mrb[0].mxu0
        %v5371 = vpop.f32.mrb[0].mxu0
        %v5372 = vadd.f32 0.0, %v5371
        %v5373 = vpop.f32.mrb[0].mxu0
        %5374 = vmatprep.mubr.bf16.mxu0 0
        %5375 = vmatmul.mubr.bf16.gmra.mrb[0].mxu0 %v5056
        %v5376 = vpop.f32.mrb[0].mxu0
        %v5377 = vadd.f32 0.0, %v5376
        %v5378 = vpop.f32.mrb[0].mxu0
        %v5379 = vpop.f32.mrb[0].mxu0
        %v5380 = vadd.f32 0.0, %v5379
        %v5381 = vpop.f32.mrb[0].mxu0
        %5382 = vmatprep.mubr.bf16.mxu0 0
        %5383 = vmatmul.mubr.bf16.gmra.mrb[0].mxu0 %v5059
        %v5384 = vpop.f32.mrb[0].mxu0
        %v5385 = vadd.f32 0.0, %v5384
        %v5386 = vpop.f32.mrb[0].mxu0
        %v5387 = vpop.f32.mrb[0].mxu0
        %v5388 = vadd.f32 0.0, %v5387
        %v5389 = vpop.f32.mrb[0].mxu0
        %5390 = vmatprep.mubr.bf16.mxu0 0
        %5391 = vmatmul.mubr.bf16.gmra.mrb[0].mxu0 %v5062
        %v5392 = vpop.f32.mrb[0].mxu0
        %v5393 = vadd.f32 0.0, %v5392
        %v5394 = vpop.f32.mrb[0].mxu0
        %v5395 = vpop.f32.mrb[0].mxu0
        %v5396 = vadd.f32 0.0, %v5395
        %v5397 = vpop.f32.mrb[0].mxu0
        %5398 = vmatprep.mubr.bf16.mxu0 0
        %5399 = vmatmul.mubr.bf16.gmra.mrb[0].mxu0 %v5065
        %v5400 = vpop.f32.mrb[0].mxu0
        %v5401 = vadd.f32 0.0, %v5400
        %v5402 = vpop.f32.mrb[0].mxu0
        %v5403 = vpop.f32.mrb[0].mxu0
        %v5404 = vadd.f32 0.0, %v5403
        %v5405 = vpop.f32.mrb[0].mxu0
        %5406 = vmatprep.mubr.bf16.mxu0 0
        %5407 = vmatmul.mubr.bf16.gmra.mrb[0].mxu0 %v5068
        %v5408 = vpop.f32.mrb[0].mxu0
        %v5409 = vadd.f32 0.0, %v5408
        %v5410 = vpop.f32.mrb[0].mxu0
        %v5411 = vpop.f32.mrb[0].mxu0
        %v5412 = vadd.f32 0.0, %v5411
        %v5413 = vpop.f32.mrb[0].mxu0
        %5414 = vmatprep.mubr.bf16.mxu0 0
        %5415 = vmatmul.mubr.bf16.gmra.mrb[0].mxu0 %v5071
        %v5416 = vpop.f32.mrb[0].mxu0
        %v5417 = vadd.f32 0.0, %v5416
        %v5418 = vpop.f32.mrb[0].mxu0
        %v5419 = vpop.f32.mrb[0].mxu0
        %v5420 = vadd.f32 0.0, %v5419
        %v5421 = vpop.f32.mrb[0].mxu0
        %5422 = vmatprep.mubr.bf16.mxu0 0
        %5423 = vmatmul.mubr.bf16.gmra.mrb[0].mxu0 %v5074
        %v5424 = vpop.f32.mrb[0].mxu0
        %v5425 = vadd.f32 0.0, %v5424
        %v5426 = vpop.f32.mrb[0].mxu0
        %v5427 = vpop.f32.mrb[0].mxu0
        %v5428 = vadd.f32 0.0, %v5427
        %v5429 = vpop.f32.mrb[0].mxu0
        %5430 = vmatprep.mubr.bf16.mxu0 0
        %5431 = vmatmul.mubr.bf16.gmra.mrb[0].mxu0 %v5077
        %v5432 = vpop.f32.mrb[0].mxu0
        %v5433 = vadd.f32 0.0, %v5432
        %v5434 = vpop.f32.mrb[0].mxu0
        %v5435 = vpop.f32.mrb[0].mxu0
        %v5436 = vadd.f32 0.0, %v5435
        %v5437 = vpop.f32.mrb[0].mxu0
        %5438 = vmatprep.mubr.bf16.mxu0 0
        %5439 = vmatmul.mubr.bf16.gmra.mrb[0].mxu0 %v5080
        %v5440 = vpop.f32.mrb[0].mxu0
        %v5441 = vadd.f32 0.0, %v5440
        %v5442 = vpop.f32.mrb[0].mxu0
        %v5443 = vpop.f32.mrb[0].mxu0
        %v5444 = vadd.f32 0.0, %v5443
        %v5445 = vpop.f32.mrb[0].mxu0
        %5446 = vmatprep.mubr.bf16.mxu0 0
        %5447 = vmatmul.mubr.bf16.gmra.mrb[0].mxu0 %v5083
        %v5448 = vpop.f32.mrb[0].mxu0
        %v5449 = vadd.f32 0.0, %v5448
        %v5450 = vpop.f32.mrb[0].mxu0
        %v5451 = vpop.f32.mrb[0].mxu0
        %v5452 = vadd.f32 0.0, %v5451
        %v5453 = vpop.f32.mrb[0].mxu0
        %5454 = vmatprep.mubr.bf16.mxu0 0
        %5455 = vmatmul.mubr.bf16.gmra.mrb[0].mxu0 %v5086
        %v5456 = vpop.f32.mrb[0].mxu0
        %v5457 = vadd.f32 0.0, %v5456
        %v5458 = vpop.f32.mrb[0].mxu0
        %v5459 = vpop.f32.mrb[0].mxu0
        %v5460 = vadd.f32 0.0, %v5459
        %v5461 = vpop.f32.mrb[0].mxu0
        %5462 = vmatprep.mubr.bf16.mxu0 0
        %5463 = vmatmul.mubr.bf16.gmra.mrb[0].mxu0 %v5089
        %v5464 = vpop.f32.mrb[0].mxu0
        %v5465 = vadd.f32 0.0, %v5464
        %v5466 = vpop.f32.mrb[0].mxu0
        %v5467 = vpop.f32.mrb[0].mxu0
        %v5468 = vadd.f32 0.0, %v5467
        %v5469 = vpop.f32.mrb[0].mxu0
        %5470 = vmatprep.mubr.bf16.mxu0 0
        %5471 = vmatmul.mubr.bf16.gmra.mrb[0].mxu0 %v5092
        %v5472 = vpop.f32.mrb[0].mxu0
        %v5473 = vadd.f32 0.0, %v5472
        %v5474 = vpop.f32.mrb[0].mxu0
        %v5475 = vpop.f32.mrb[0].mxu0
        %v5476 = vadd.f32 0.0, %v5475
        %v5477 = vpop.f32.mrb[0].mxu0
        %5478 = vmatprep.mubr.bf16.mxu0 0
        %5479 = vmatmul.mubr.bf16.gmra.mrb[0].mxu0 %v5095
        %v5480 = vpop.f32.mrb[0].mxu0
        %v5481 = vadd.f32 0.0, %v5480
        %v5482 = vpop.f32.mrb[0].mxu0
        %v5483 = vpop.f32.mrb[0].mxu0
        %v5484 = vadd.f32 0.0, %v5483
        %v5485 = vpop.f32.mrb[0].mxu0
        %5486 = vmatprep.mubr.bf16.mxu0 0
        %5487 = vmatmul.mubr.bf16.gmra.mrb[0].mxu0 %v5098
        %v5488 = vpop.f32.mrb[0].mxu0
        %v5489 = vadd.f32 0.0, %v5488
        %v5490 = vpop.f32.mrb[0].mxu0
        %v5491 = vpop.f32.mrb[0].mxu0
        %v5492 = vadd.f32 0.0, %v5491
        %v5493 = vpop.f32.mrb[0].mxu0
        %5494 = vmatprep.mubr.bf16.mxu0 0
        %5495 = vmatmul.mubr.bf16.gmra.mrb[0].mxu0 %v5101
        %v5496 = vpop.f32.mrb[0].mxu0
        %v5497 = vadd.f32 0.0, %v5496
        %v5498 = vpop.f32.mrb[0].mxu0
        %v5499 = vpop.f32.mrb[0].mxu0
        %v5500 = vadd.f32 0.0, %v5499
        %v5501 = vpop.f32.mrb[0].mxu0
        %5502 = vmatprep.mubr.bf16.mxu0 0
        %5503 = vmatmul.mubr.bf16.gmra.mrb[0].mxu0 %v5104
        %v5504 = vpop.f32.mrb[0].mxu0
        %v5505 = vadd.f32 0.0, %v5504
        %v5506 = vpop.f32.mrb[0].mxu0
        %v5507 = vpop.f32.mrb[0].mxu0
        %v5508 = vadd.f32 0.0, %v5507
        %v5509 = vpop.f32.mrb[0].mxu0
        %5510 = vmatprep.mubr.bf16.mxu0 0
        %5511 = vmatmul.mubr.bf16.gmra.mrb[0].mxu0 %v5107
        %v5512 = vpop.f32.mrb[0].mxu0
        %v5513 = vadd.f32 0.0, %v5512
        %v5514 = vpop.f32.mrb[0].mxu0
        %v5515 = vpop.f32.mrb[0].mxu0
        %v5516 = vadd.f32 0.0, %v5515
        %v5517 = vpop.f32.mrb[0].mxu0
        %5518 = vmatprep.mubr.bf16.mxu0 0
        %5519 = vmatmul.mubr.bf16.gmra.mrb[0].mxu0 %v5110
        %v5520 = vpop.f32.mrb[0].mxu0
        %v5521 = vadd.f32 0.0, %v5520
        %v5522 = vpop.f32.mrb[0].mxu0
        %v5523 = vpop.f32.mrb[0].mxu0
        %v5524 = vadd.f32 0.0, %v5523
        %v5525 = vpop.f32.mrb[0].mxu0
        %5526 = vmatprep.mubr.bf16.mxu0 0
        %5527 = vmatmul.mubr.bf16.gmra.mrb[0].mxu0 %v5113
        %v5528 = vpop.f32.mrb[0].mxu0
        %v5529 = vadd.f32 0.0, %v5528
        %v5530 = vpop.f32.mrb[0].mxu0
        %v5531 = vpop.f32.mrb[0].mxu0
        %v5532 = vadd.f32 0.0, %v5531
        %v5533 = vpop.f32.mrb[0].mxu0
        %5534 = vmatprep.mubr.bf16.mxu0 0
        %5535 = vmatmul.mubr.bf16.gmra.mrb[0].mxu0 %v5116
        %v5536 = vpop.f32.mrb[0].mxu0
        %v5537 = vadd.f32 0.0, %v5536
        %v5538 = vpop.f32.mrb[0].mxu0
        %v5539 = vpop.f32.mrb[0].mxu0
        %v5540 = vadd.f32 0.0, %v5539
        %v5541 = vpop.f32.mrb[0].mxu0
        %5542 = vmatprep.mubr.bf16.mxu0 0
        %5543 = vmatmul.mubr.bf16.gmra.mrb[0].mxu0 %v5119
        %v5544 = vpop.f32.mrb[0].mxu0
        %v5545 = vadd.f32 0.0, %v5544
        %v5546 = vpop.f32.mrb[0].mxu0
        %v5547 = vpop.f32.mrb[0].mxu0
        %v5548 = vadd.f32 0.0, %v5547
        %v5549 = vpop.f32.mrb[0].mxu0
        %5550 = vmatprep.mubr.bf16.mxu0 0
        %5551 = vmatmul.mubr.bf16.gmra.mrb[0].mxu0 %v5122
        %v5552 = vpop.f32.mrb[0].mxu0
        %v5553 = vadd.f32 0.0, %v5552
        %v5554 = vpop.f32.mrb[0].mxu0
        %v5555 = vpop.f32.mrb[0].mxu0
        %v5556 = vadd.f32 0.0, %v5555
        %v5557 = vpop.f32.mrb[0].mxu0
        %5558 = vmatprep.mubr.bf16.mxu0 0
        %5559 = vmatmul.mubr.bf16.gmra.mrb[0].mxu0 %v5125
        %v5560 = vpop.f32.mrb[0].mxu0
        %v5561 = vadd.f32 0.0, %v5560
        %v5562 = vpop.f32.mrb[0].mxu0
        %v5563 = vpop.f32.mrb[0].mxu0
        %v5564 = vadd.f32 0.0, %v5563
        %v5565 = vpop.f32.mrb[0].mxu0
        %5566 = vmatprep.mubr.bf16.mxu0 0
        %5567 = vmatmul.mubr.bf16.gmra.mrb[0].mxu0 %v5128
        %v5568 = vpop.f32.mrb[0].mxu0
        %v5569 = vadd.f32 0.0, %v5568
        %v5570 = vpop.f32.mrb[0].mxu0
        %v5571 = vpop.f32.mrb[0].mxu0
        %v5572 = vadd.f32 0.0, %v5571
        %v5573 = vpop.f32.mrb[0].mxu0
        %5574 = vmatprep.mubr.bf16.mxu0 0
        %5575 = vmatmul.mubr.bf16.gmra.mrb[0].mxu0 %v5131
        %v5576 = vpop.f32.mrb[0].mxu0
        %v5577 = vadd.f32 0.0, %v5576
        %v5578 = vpop.f32.mrb[0].mxu0
        %v5579 = vpop.f32.mrb[0].mxu0
        %v5580 = vadd.f32 0.0, %v5579
        %v5581 = vpop.f32.mrb[0].mxu0
        %5582 = vmatprep.mubr.bf16.mxu0 0
        %5583 = vmatmul.mubr.bf16.gmra.mrb[0].mxu0 %v5134
        %v5584 = vpop.f32.mrb[0].mxu0
        %v5585 = vadd.f32 0.0, %v5584
        %v5586 = vpop.f32.mrb[0].mxu0
        %v5587 = vpop.f32.mrb[0].mxu0
        %v5588 = vadd.f32 0.0, %v5587
        %v5589 = vpop.f32.mrb[0].mxu0
        %5590 = vmatprep.mubr.bf16.mxu0 0
        %5591 = vmatmul.mubr.bf16.gmra.mrb[0].mxu0 %v5137
        %v5592 = vpop.f32.mrb[0].mxu0
        %v5593 = vadd.f32 0.0, %v5592
        %v5594 = vpop.f32.mrb[0].mxu0
        %v5595 = vpop.f32.mrb[0].mxu0
        %v5596 = vadd.f32 0.0, %v5595
        %v5597 = vpop.f32.mrb[0].mxu0
        %5598 = vmatprep.mubr.bf16.mxu0 0
        %5599 = vmatmul.mubr.bf16.gmra.mrb[0].mxu0 %v5140
        %v5600 = vpop.f32.mrb[0].mxu0
        %v5601 = vadd.f32 0.0, %v5600
        %v5602 = vpop.f32.mrb[0].mxu0
        %v5603 = vpop.f32.mrb[0].mxu0
        %v5604 = vadd.f32 0.0, %v5603
        %v5605 = vpop.f32.mrb[0].mxu0
        %5606 = vmatprep.mubr.bf16.mxu0 0
        %5607 = vmatmul.mubr.bf16.gmra.mrb[0].mxu0 %v5143
        %v5608 = vpop.f32.mrb[0].mxu0
        %v5609 = vadd.f32 0.0, %v5608
        %v5610 = vpop.f32.mrb[0].mxu0
        %v5611 = vpop.f32.mrb[0].mxu0
        %v5612 = vadd.f32 0.0, %v5611
        %v5613 = vpop.f32.mrb[0].mxu0
        %5614 = vmatprep.mubr.bf16.mxu0 0
        %5615 = vmatmul.mubr.bf16.gmra.mrb[0].mxu0 %v5146
        %v5616 = vpop.f32.mrb[0].mxu0
        %v5617 = vadd.f32 0.0, %v5616
        %v5618 = vpop.f32.mrb[0].mxu0
        %v5619 = vpop.f32.mrb[0].mxu0
        %v5620 = vadd.f32 0.0, %v5619
        %v5621 = vpop.f32.mrb[0].mxu0
        %5622 = vmatprep.mubr.bf16.mxu0 0
        %5623 = vmatmul.mubr.bf16.gmra.mrb[0].mxu0 %v5149
        %v5624 = vpop.f32.mrb[0].mxu0
        %v5625 = vadd.f32 0.0, %v5624
        %v5626 = vpop.f32.mrb[0].mxu0
        %v5627 = vpop.f32.mrb[0].mxu0
        %v5628 = vadd.f32 0.0, %v5627
        %v5629 = vpop.f32.mrb[0].mxu0
        %5630 = vmatprep.mubr.bf16.mxu0 0
        %5631 = vmatmul.mubr.bf16.gmra.mrb[0].mxu0 %v5152
        %v5632 = vpop.f32.mrb[0].mxu0
        %v5633 = vadd.f32 0.0, %v5632
        %v5634 = vpop.f32.mrb[0].mxu0
        %v5635 = vpop.f32.mrb[0].mxu0
        %v5636 = vadd.f32 0.0, %v5635
        %v5637 = vpop.f32.mrb[0].mxu0
        %5638 = vmatprep.mubr.bf16.mxu0 0
        %5639 = vmatmul.mubr.bf16.gmra.mrb[0].mxu0 %v5155
        %v5640 = vpop.f32.mrb[0].mxu0
        %v5641 = vadd.f32 0.0, %v5640
        %v5642 = vpop.f32.mrb[0].mxu0
        %v5643 = vpop.f32.mrb[0].mxu0
        %v5644 = vadd.f32 0.0, %v5643
        %v5645 = vpop.f32.mrb[0].mxu0
        %5646 = vmatprep.mubr.bf16.mxu0 0
        %5647 = vmatmul.mubr.bf16.gmra.mrb[0].mxu0 %v5158
        %v5648 = vpop.f32.mrb[0].mxu0
        %v5649 = vadd.f32 0.0, %v5648
        %v5650 = vpop.f32.mrb[0].mxu0
        %v5651 = vpop.f32.mrb[0].mxu0
        %v5652 = vadd.f32 0.0, %v5651
        %v5653 = vpop.f32.mrb[0].mxu0
        %5654 = vmatprep.mubr.bf16.mxu0 0
        %5655 = vmatmul.mubr.bf16.gmra.mrb[0].mxu0 %v5161
        %v5656 = vpop.f32.mrb[0].mxu0
        %v5657 = vadd.f32 0.0, %v5656
        %v5658 = vpop.f32.mrb[0].mxu0
        %v5659 = vpop.f32.mrb[0].mxu0
        %v5660 = vadd.f32 0.0, %v5659
        %v5661 = vpop.f32.mrb[0].mxu0
        %5662 = vmatprep.mubr.bf16.mxu0 0
        %5663 = vmatmul.mubr.bf16.gmra.mrb[0].mxu0 %v5164
        %v5664 = vpop.f32.mrb[0].mxu0
        %v5665 = vadd.f32 0.0, %v5664
        %v5666 = vpop.f32.mrb[0].mxu0
        %v5667 = vpop.f32.mrb[0].mxu0
        %v5668 = vadd.f32 0.0, %v5667
        %v5669 = vpop.f32.mrb[0].mxu0
        %5670 = vmatprep.mubr.bf16.mxu0 0
        %5671 = vmatmul.mubr.bf16.gmra.mrb[0].mxu0 %v5167
        %v5672 = vpop.f32.mrb[0].mxu0
        %v5673 = vadd.f32 0.0, %v5672
        %v5674 = vpop.f32.mrb[0].mxu0
        %v5675 = vpop.f32.mrb[0].mxu0
        %v5676 = vadd.f32 0.0, %v5675
        %v5677 = vpop.f32.mrb[0].mxu0
        %5678 = vmatprep.mubr.bf16.mxu0 0
        %5679 = vmatmul.mubr.bf16.gmra.mrb[0].mxu0 %v5170
        %v5680 = vpop.f32.mrb[0].mxu0
        %v5681 = vadd.f32 0.0, %v5680
        %v5682 = vpop.f32.mrb[0].mxu0
        %v5683 = vpop.f32.mrb[0].mxu0
        %v5684 = vadd.f32 0.0, %v5683
        %v5685 = vpop.f32.mrb[0].mxu0
        %5686 = vmatprep.mubr.bf16.mxu0 0
        %5687 = vmatmul.mubr.bf16.gmra.mrb[0].mxu0 %v5173
        %v5688 = vpop.f32.mrb[0].mxu0
        %v5689 = vadd.f32 0.0, %v5688
        %v5690 = vpop.f32.mrb[0].mxu0
        %v5691 = vpop.f32.mrb[0].mxu0
        %v5692 = vadd.f32 0.0, %v5691
        %v5693 = vpop.f32.mrb[0].mxu0
        %5694 = vmatprep.mubr.bf16.mxu0 0
        %5695 = vmatmul.mubr.bf16.gmra.mrb[0].mxu0 %v5176
        %v5696 = vpop.f32.mrb[0].mxu0
        %v5697 = vadd.f32 0.0, %v5696
        %v5698 = vpop.f32.mrb[0].mxu0
        %v5699 = vpop.f32.mrb[0].mxu0
        %v5700 = vadd.f32 0.0, %v5699
        %v5701 = vpop.f32.mrb[0].mxu0
        %5702 = vmatprep.mubr.bf16.mxu0 0
        %5703 = vmatmul.mubr.bf16.gmra.mrb[0].mxu0 %v5179
        %v5704 = vpop.f32.mrb[0].mxu0
        %v5705 = vadd.f32 0.0, %v5704
        %v5706 = vpop.f32.mrb[0].mxu0
        %v5707 = vpop.f32.mrb[0].mxu0
        %v5708 = vadd.f32 0.0, %v5707
        %v5709 = vpop.f32.mrb[0].mxu0
        %5710 = vmatprep.mubr.bf16.mxu0 0
        %5711 = vmatmul.mubr.bf16.gmra.mrb[0].mxu0 %v5182
        %v5712 = vpop.f32.mrb[0].mxu0
        %v5713 = vadd.f32 0.0, %v5712
        %v5714 = vpop.f32.mrb[0].mxu0
        %v5715 = vpop.f32.mrb[0].mxu0
        %v5716 = vadd.f32 0.0, %v5715
        %v5717 = vpop.f32.mrb[0].mxu0
        %5718 = vmatprep.mubr.bf16.mxu0 0
        %5719 = vmatmul.mubr.bf16.gmra.mrb[0].mxu0 %v5185
        %v5720 = vpop.f32.mrb[0].mxu0
        %v5721 = vadd.f32 0.0, %v5720
        %v5722 = vpop.f32.mrb[0].mxu0
        %v5723 = vpop.f32.mrb[0].mxu0
        %v5724 = vadd.f32 0.0, %v5723
        %v5725 = vpop.f32.mrb[0].mxu0
        %5726 = vmatprep.mubr.bf16.mxu0 0
        %5727 = vmatmul.mubr.bf16.gmra.mrb[0].mxu0 %v5188
        %v5728 = vpop.f32.mrb[0].mxu0
        %v5729 = vadd.f32 0.0, %v5728
        %v5730 = vpop.f32.mrb[0].mxu0
        %v5731 = vpop.f32.mrb[0].mxu0
        %v5732 = vadd.f32 0.0, %v5731
        %v5733 = vpop.f32.mrb[0].mxu0
        %5734 = vdwg.mxu0
        %v5735 = vadd.f32 %v4392, %v5225
        %v5736 = vadd.f32 %v4395, %v5228
        %v5737 = vadd.f32 %v4400, %v5233
        %v5738 = vadd.f32 %v4403, %v5236
        %v5739 = vadd.f32 %v4408, %v5241
        %v5740 = vadd.f32 %v4411, %v5244
        %v5741 = vadd.f32 %v4416, %v5249
        %v5742 = vadd.f32 %v4419, %v5252
        %v5743 = vadd.f32 %v4424, %v5257
        %v5744 = vadd.f32 %v4427, %v5260
        %v5745 = vadd.f32 %v4432, %v5265
        %v5746 = vadd.f32 %v4435, %v5268
        %v5747 = vadd.f32 %v4440, %v5273
        %v5748 = vadd.f32 %v4443, %v5276
        %v5749 = vadd.f32 %v4448, %v5281
        %v5750 = vadd.f32 %v4451, %v5284
        %v5751 = vadd.f32 %v4456, %v5289
        %v5752 = vadd.f32 %v4459, %v5292
        %v5753 = vadd.f32 %v4464, %v5297
        %v5754 = vadd.f32 %v4467, %v5300
        %v5755 = vadd.f32 %v4472, %v5305
        %v5756 = vadd.f32 %v4475, %v5308
        %v5757 = vadd.f32 %v4480, %v5313
        %v5758 = vadd.f32 %v4483, %v5316
        %v5759 = vadd.f32 %v4488, %v5321
        %v5760 = vadd.f32 %v4491, %v5324
        %v5761 = vadd.f32 %v4496, %v5329
        %v5762 = vadd.f32 %v4499, %v5332
        %v5763 = vadd.f32 %v4504, %v5337
        %v5764 = vadd.f32 %v4507, %v5340
        %v5765 = vadd.f32 %v4512, %v5345
        %v5766 = vadd.f32 %v4515, %v5348
        %v5767 = vadd.f32 %v4520, %v5353
        %v5768 = vadd.f32 %v4523, %v5356
        %v5769 = vadd.f32 %v4528, %v5361
        %v5770 = vadd.f32 %v4531, %v5364
        %v5771 = vadd.f32 %v4536, %v5369
        %v5772 = vadd.f32 %v4539, %v5372
        %v5773 = vadd.f32 %v4544, %v5377
        %v5774 = vadd.f32 %v4547, %v5380
        %v5775 = vadd.f32 %v4552, %v5385
        %v5776 = vadd.f32 %v4555, %v5388
        %v5777 = vadd.f32 %v4560, %v5393
        %v5778 = vadd.f32 %v4563, %v5396
        %v5779 = vadd.f32 %v4568, %v5401
        %v5780 = vadd.f32 %v4571, %v5404
        %v5781 = vadd.f32 %v4576, %v5409
        %v5782 = vadd.f32 %v4579, %v5412
        %v5783 = vadd.f32 %v4584, %v5417
        %v5784 = vadd.f32 %v4587, %v5420
        %v5785 = vadd.f32 %v4592, %v5425
        %v5786 = vadd.f32 %v4595, %v5428
        %v5787 = vadd.f32 %v4600, %v5433
        %v5788 = vadd.f32 %v4603, %v5436
        %v5789 = vadd.f32 %v4608, %v5441
        %v5790 = vadd.f32 %v4611, %v5444
        %v5791 = vadd.f32 %v4616, %v5449
        %v5792 = vadd.f32 %v4619, %v5452
        %v5793 = vadd.f32 %v4624, %v5457
        %v5794 = vadd.f32 %v4627, %v5460
        %v5795 = vadd.f32 %v4632, %v5465
        %v5796 = vadd.f32 %v4635, %v5468
        %v5797 = vadd.f32 %v4640, %v5473
        %v5798 = vadd.f32 %v4643, %v5476
        %v5799 = vadd.f32 %v4648, %v5481
        %v5800 = vadd.f32 %v4651, %v5484
        %v5801 = vadd.f32 %v4656, %v5489
        %v5802 = vadd.f32 %v4659, %v5492
        %v5803 = vadd.f32 %v4664, %v5497
        %v5804 = vadd.f32 %v4667, %v5500
        %v5805 = vadd.f32 %v4672, %v5505
        %v5806 = vadd.f32 %v4675, %v5508
        %v5807 = vadd.f32 %v4680, %v5513
        %v5808 = vadd.f32 %v4683, %v5516
        %v5809 = vadd.f32 %v4688, %v5521
        %v5810 = vadd.f32 %v4691, %v5524
        %v5811 = vadd.f32 %v4696, %v5529
        %v5812 = vadd.f32 %v4699, %v5532
        %v5813 = vadd.f32 %v4704, %v5537
        %v5814 = vadd.f32 %v4707, %v5540
        %v5815 = vadd.f32 %v4712, %v5545
        %v5816 = vadd.f32 %v4715, %v5548
        %v5817 = vadd.f32 %v4720, %v5553
        %v5818 = vadd.f32 %v4723, %v5556
        %v5819 = vadd.f32 %v4728, %v5561
        %v5820 = vadd.f32 %v4731, %v5564
        %v5821 = vadd.f32 %v4736, %v5569
        %v5822 = vadd.f32 %v4739, %v5572
        %v5823 = vadd.f32 %v4744, %v5577
        %v5824 = vadd.f32 %v4747, %v5580
        %v5825 = vadd.f32 %v4752, %v5585
        %v5826 = vadd.f32 %v4755, %v5588
        %v5827 = vadd.f32 %v4760, %v5593
        %v5828 = vadd.f32 %v4763, %v5596
        %v5829 = vadd.f32 %v4768, %v5601
        %v5830 = vadd.f32 %v4771, %v5604
        %v5831 = vadd.f32 %v4776, %v5609
        %v5832 = vadd.f32 %v4779, %v5612
        %v5833 = vadd.f32 %v4784, %v5617
        %v5834 = vadd.f32 %v4787, %v5620
        %v5835 = vadd.f32 %v4792, %v5625
        %v5836 = vadd.f32 %v4795, %v5628
        %v5837 = vadd.f32 %v4800, %v5633
        %v5838 = vadd.f32 %v4803, %v5636
        %v5839 = vadd.f32 %v4808, %v5641
        %v5840 = vadd.f32 %v4811, %v5644
        %v5841 = vadd.f32 %v4816, %v5649
        %v5842 = vadd.f32 %v4819, %v5652
        %v5843 = vadd.f32 %v4824, %v5657
        %v5844 = vadd.f32 %v4827, %v5660
        %v5845 = vadd.f32 %v4832, %v5665
        %v5846 = vadd.f32 %v4835, %v5668
        %v5847 = vadd.f32 %v4840, %v5673
        %v5848 = vadd.f32 %v4843, %v5676
        %v5849 = vadd.f32 %v4848, %v5681
        %v5850 = vadd.f32 %v4851, %v5684
        %v5851 = vadd.f32 %v4856, %v5689
        %v5852 = vadd.f32 %v4859, %v5692
        %v5853 = vadd.f32 %v4864, %v5697
        %v5854 = vadd.f32 %v4867, %v5700
        %v5855 = vadd.f32 %v4872, %v5705
        %v5856 = vadd.f32 %v4875, %v5708
        %v5857 = vadd.f32 %v4880, %v5713
        %v5858 = vadd.f32 %v4883, %v5716
        %v5859 = vadd.f32 %v4888, %v5721
        %v5860 = vadd.f32 %v4891, %v5724
        %v5861 = vadd.f32 %v4896, %v5729
        %v5862 = vadd.f32 %v4899, %v5732
        %s5863 = scalar_lea.vmem [#allocation2], 16
        %v5864 = vld [vmem:[%s5863] sm:$0xff]
        %v5865 = vld [vmem:[%s5863 + $0x8] sm:$0xff]
        %v5866 = vld [vmem:[%s5863 + $0x10] sm:$0xff]
        %v5867 = vld [vmem:[%s5863 + $0x18] sm:$0xff]
        %v5868 = vld [vmem:[%s5863 + $0x20] sm:$0xff]
        %v5869 = vld [vmem:[%s5863 + $0x28] sm:$0xff]
        %v5870 = vld [vmem:[%s5863 + $0x30] sm:$0xff]
        %v5871 = vld [vmem:[%s5863 + $0x38] sm:$0xff]
        %v5872 = vld [vmem:[%s5863 + $0x40] sm:$0xff]
        %v5873 = vld [vmem:[%s5863 + $0x48] sm:$0xff]
        %v5874 = vld [vmem:[%s5863 + $0x50] sm:$0xff]
        %v5875 = vld [vmem:[%s5863 + $0x58] sm:$0xff]
        %v5876 = vld [vmem:[%s5863 + $0x60] sm:$0xff]
        %v5877 = vld [vmem:[%s5863 + $0x68] sm:$0xff]
        %v5878 = vld [vmem:[%s5863 + $0x70] sm:$0xff]
        %v5879 = vld [vmem:[%s5863 + $0x78] sm:$0xff]
        %v5880 = vld [vmem:[%s5863 + $0x80] sm:$0xff]
        %v5881 = vld [vmem:[%s5863 + $0x88] sm:$0xff]
        %v5882 = vld [vmem:[%s5863 + $0x90] sm:$0xff]
        %v5883 = vld [vmem:[%s5863 + $0x98] sm:$0xff]
        %v5884 = vld [vmem:[%s5863 + $0xa0] sm:$0xff]
        %v5885 = vld [vmem:[%s5863 + $0xa8] sm:$0xff]
        %v5886 = vld [vmem:[%s5863 + $0xb0] sm:$0xff]
        %v5887 = vld [vmem:[%s5863 + $0xb8] sm:$0xff]
        %v5888 = vld [vmem:[%s5863 + $0xc0] sm:$0xff]
        %v5889 = vld [vmem:[%s5863 + $0xc8] sm:$0xff]
        %v5890 = vld [vmem:[%s5863 + $0xd0] sm:$0xff]
        %v5891 = vld [vmem:[%s5863 + $0xd8] sm:$0xff]
        %v5892 = vld [vmem:[%s5863 + $0xe0] sm:$0xff]
        %v5893 = vld [vmem:[%s5863 + $0xe8] sm:$0xff]
        %v5894 = vld [vmem:[%s5863 + $0xf0] sm:$0xff]
        %v5895 = vld [vmem:[%s5863 + $0xf8] sm:$0xff]
        %v5896 = vld [vmem:[%s5863 + $0x100] sm:$0xff]
        %v5897 = vld [vmem:[%s5863 + $0x108] sm:$0xff]
        %v5898 = vld [vmem:[%s5863 + $0x110] sm:$0xff]
        %v5899 = vld [vmem:[%s5863 + $0x118] sm:$0xff]
        %v5900 = vld [vmem:[%s5863 + $0x120] sm:$0xff]
        %v5901 = vld [vmem:[%s5863 + $0x128] sm:$0xff]
        %v5902 = vld [vmem:[%s5863 + $0x130] sm:$0xff]
        %v5903 = vld [vmem:[%s5863 + $0x138] sm:$0xff]
        %v5904 = vld [vmem:[%s5863 + $0x140] sm:$0xff]
        %v5905 = vld [vmem:[%s5863 + $0x148] sm:$0xff]
        %v5906 = vld [vmem:[%s5863 + $0x150] sm:$0xff]
        %v5907 = vld [vmem:[%s5863 + $0x158] sm:$0xff]
        %v5908 = vld [vmem:[%s5863 + $0x160] sm:$0xff]
        %v5909 = vld [vmem:[%s5863 + $0x168] sm:$0xff]
        %v5910 = vld [vmem:[%s5863 + $0x170] sm:$0xff]
        %v5911 = vld [vmem:[%s5863 + $0x178] sm:$0xff]
        %v5912 = vld [vmem:[%s5863 + $0x180] sm:$0xff]
        %v5913 = vld [vmem:[%s5863 + $0x188] sm:$0xff]
        %v5914 = vld [vmem:[%s5863 + $0x190] sm:$0xff]
        %v5915 = vld [vmem:[%s5863 + $0x198] sm:$0xff]
        %v5916 = vld [vmem:[%s5863 + $0x1a0] sm:$0xff]
        %v5917 = vld [vmem:[%s5863 + $0x1a8] sm:$0xff]
        %v5918 = vld [vmem:[%s5863 + $0x1b0] sm:$0xff]
        %v5919 = vld [vmem:[%s5863 + $0x1b8] sm:$0xff]
        %v5920 = vld [vmem:[%s5863 + $0x1c0] sm:$0xff]
        %v5921 = vld [vmem:[%s5863 + $0x1c8] sm:$0xff]
        %v5922 = vld [vmem:[%s5863 + $0x1d0] sm:$0xff]
        %v5923 = vld [vmem:[%s5863 + $0x1d8] sm:$0xff]
        %v5924 = vld [vmem:[%s5863 + $0x1e0] sm:$0xff]
        %v5925 = vld [vmem:[%s5863 + $0x1e8] sm:$0xff]
        %v5926 = vld [vmem:[%s5863 + $0x1f0] sm:$0xff]
        %v5927 = vld [vmem:[%s5863 + $0x1f8] sm:$0xff]
        %v5928 = vld [vmem:[%s264 + $0x60] sm:$0xf]
        %v5929 = vld [vmem:[%s264 + $0x64] sm:$0xf]
        %v5930 = vld [vmem:[%s264 + $0x68] sm:$0xf]
        %v5931 = vld [vmem:[%s264 + $0x6c] sm:$0xf]
        %v5932 = vld [vmem:[%s264 + $0x70] sm:$0xf]
        %v5933 = vld [vmem:[%s264 + $0x74] sm:$0xf]
        %v5934 = vld [vmem:[%s264 + $0x78] sm:$0xf]
        %v5935 = vld [vmem:[%s264 + $0x7c] sm:$0xf]
        %v5944 = vunpack.c.l.b16 %v5928
        %v5945 = vunpack.c.l.b16 %v5929
        %v5946 = vunpack.c.l.b16 %v5930
        %v5947 = vunpack.c.l.b16 %v5931
        %v5948 = vunpack.c.l.b16 %v5932
        %v5949 = vunpack.c.l.b16 %v5933
        %v5950 = vunpack.c.l.b16 %v5934
        %v5951 = vunpack.c.l.b16 %v5935
        %v5952 = vpack.c.b16 %v5945, %v5944
        %v5953 = vpack.c.b16 %v5947, %v5946
        %v5954 = vpack.c.b16 %v5949, %v5948
        %v5955 = vpack.c.b16 %v5951, %v5950
        %v5961 = vsel %vm817, %v5864, 0
        %v5964 = vsel %vm817, %v5865, 0
        %v5967 = vsel %vm817, %v5866, 0
        %v5970 = vsel %vm817, %v5867, 0
        %v5973 = vsel %vm817, %v5868, 0
        %v5976 = vsel %vm817, %v5869, 0
        %v5979 = vsel %vm817, %v5870, 0
        %v5982 = vsel %vm817, %v5871, 0
        %v5985 = vsel %vm817, %v5872, 0
        %v5988 = vsel %vm817, %v5873, 0
        %v5991 = vsel %vm817, %v5874, 0
        %v5994 = vsel %vm817, %v5875, 0
        %v5997 = vsel %vm817, %v5876, 0
        %v6000 = vsel %vm817, %v5877, 0
        %v6003 = vsel %vm817, %v5878, 0
        %v6006 = vsel %vm817, %v5879, 0
        %v6009 = vsel %vm817, %v5880, 0
        %v6012 = vsel %vm817, %v5881, 0
        %v6015 = vsel %vm817, %v5882, 0
        %v6018 = vsel %vm817, %v5883, 0
        %v6021 = vsel %vm817, %v5884, 0
        %v6024 = vsel %vm817, %v5885, 0
        %v6027 = vsel %vm817, %v5886, 0
        %v6030 = vsel %vm817, %v5887, 0
        %v6033 = vsel %vm817, %v5888, 0
        %v6036 = vsel %vm817, %v5889, 0
        %v6039 = vsel %vm817, %v5890, 0
        %v6042 = vsel %vm817, %v5891, 0
        %v6045 = vsel %vm817, %v5892, 0
        %v6048 = vsel %vm817, %v5893, 0
        %v6051 = vsel %vm817, %v5894, 0
        %v6054 = vsel %vm817, %v5895, 0
        %v6057 = vsel %vm817, %v5896, 0
        %v6060 = vsel %vm817, %v5897, 0
        %v6063 = vsel %vm817, %v5898, 0
        %v6066 = vsel %vm817, %v5899, 0
        %v6069 = vsel %vm817, %v5900, 0
        %v6072 = vsel %vm817, %v5901, 0
        %v6075 = vsel %vm817, %v5902, 0
        %v6078 = vsel %vm817, %v5903, 0
        %v6081 = vsel %vm817, %v5904, 0
        %v6084 = vsel %vm817, %v5905, 0
        %v6087 = vsel %vm817, %v5906, 0
        %v6090 = vsel %vm817, %v5907, 0
        %v6093 = vsel %vm817, %v5908, 0
        %v6096 = vsel %vm817, %v5909, 0
        %v6099 = vsel %vm817, %v5910, 0
        %v6102 = vsel %vm817, %v5911, 0
        %v6105 = vsel %vm817, %v5912, 0
        %v6108 = vsel %vm817, %v5913, 0
        %v6111 = vsel %vm817, %v5914, 0
        %v6114 = vsel %vm817, %v5915, 0
        %v6117 = vsel %vm817, %v5916, 0
        %v6120 = vsel %vm817, %v5917, 0
        %v6123 = vsel %vm817, %v5918, 0
        %v6126 = vsel %vm817, %v5919, 0
        %v6129 = vsel %vm817, %v5920, 0
        %v6132 = vsel %vm817, %v5921, 0
        %v6135 = vsel %vm817, %v5922, 0
        %v6138 = vsel %vm817, %v5923, 0
        %v6141 = vsel %vm817, %v5924, 0
        %v6144 = vsel %vm817, %v5925, 0
        %v6147 = vsel %vm817, %v5926, 0
        %v6150 = vsel %vm817, %v5927, 0
        %6152 = vmatprep.subr.bf16.mxu0 0
        %6153 = vmatpush1.bf16.msra.mxu0 %v5952
        %6154 = vmatprep.subr.bf16.mxu0 0
        %6155 = vmatpush1.bf16.msra.mxu0 %v5953
        %6156 = vmatprep.subr.bf16.mxu0 0
        %6157 = vmatpush1.bf16.msra.mxu0 %v5954
        %6158 = vmatprep.subr.bf16.mxu0 0
        %6159 = vmatpush1.bf16.msra.mxu0 %v5955
        %6160 = vmatprep.subr.bf16.mxu0 0
        %6161 = vmatpush1.bf16.msra.mxu0 0
        %6162 = vmatprep.subr.bf16.mxu0 0
        %6163 = vmatpush1.bf16.msra.mxu0 0
        %6164 = vmatprep.subr.bf16.mxu0 0
        %6165 = vmatpush1.bf16.msra.mxu0 0
        %6166 = vmatprep.subr.bf16.mxu0 0
        %6167 = vmatpush1.bf16.msra.mxu0 0
        %6168 = vmatprep.subr.bf16.mxu0 0
        %6169 = vmatpush1.bf16.msra.mxu0 0
        %6170 = vmatprep.subr.bf16.mxu0 0
        %6171 = vmatpush1.bf16.msra.mxu0 0
        %6172 = vmatprep.subr.bf16.mxu0 0
        %6173 = vmatpush1.bf16.msra.mxu0 0
        %6174 = vmatprep.subr.bf16.mxu0 0
        %6175 = vmatpush1.bf16.msra.mxu0 0
        %6176 = vmatprep.subr.bf16.mxu0 0
        %6177 = vmatpush1.bf16.msra.mxu0 0
        %6178 = vmatprep.subr.bf16.mxu0 0
        %6179 = vmatpush1.bf16.msra.mxu0 0
        %6180 = vmatprep.subr.bf16.mxu0 0
        %6181 = vmatpush1.bf16.msra.mxu0 0
        %6182 = vmatprep.subr.bf16.mxu0 0
        %6183 = vmatpush1.bf16.msra.mxu0 0
        %6184 = vmatprep.mubr.bf16.mxu0 0
        %6185 = vmatmul.mubr.bf16.gmra.mrb[0].mxu0 %v5961
        %v6186 = vpop.f32.mrb[0].mxu0
        %v6187 = vadd.f32 0.0, %v6186
        %v6188 = vpop.f32.mrb[0].mxu0
        %v6189 = vpop.f32.mrb[0].mxu0
        %v6190 = vadd.f32 0.0, %v6189
        %v6191 = vpop.f32.mrb[0].mxu0
        %6192 = vmatprep.mubr.bf16.mxu0 0
        %6193 = vmatmul.mubr.bf16.gmra.mrb[0].mxu0 %v5964
        %v6194 = vpop.f32.mrb[0].mxu0
        %v6195 = vadd.f32 0.0, %v6194
        %v6196 = vpop.f32.mrb[0].mxu0
        %v6197 = vpop.f32.mrb[0].mxu0
        %v6198 = vadd.f32 0.0, %v6197
        %v6199 = vpop.f32.mrb[0].mxu0
        %6200 = vmatprep.mubr.bf16.mxu0 0
        %6201 = vmatmul.mubr.bf16.gmra.mrb[0].mxu0 %v5967
        %v6202 = vpop.f32.mrb[0].mxu0
        %v6203 = vadd.f32 0.0, %v6202
        %v6204 = vpop.f32.mrb[0].mxu0
        %v6205 = vpop.f32.mrb[0].mxu0
        %v6206 = vadd.f32 0.0, %v6205
        %v6207 = vpop.f32.mrb[0].mxu0
        %6208 = vmatprep.mubr.bf16.mxu0 0
        %6209 = vmatmul.mubr.bf16.gmra.mrb[0].mxu0 %v5970
        %v6210 = vpop.f32.mrb[0].mxu0
        %v6211 = vadd.f32 0.0, %v6210
        %v6212 = vpop.f32.mrb[0].mxu0
        %v6213 = vpop.f32.mrb[0].mxu0
        %v6214 = vadd.f32 0.0, %v6213
        %v6215 = vpop.f32.mrb[0].mxu0
        %6216 = vmatprep.mubr.bf16.mxu0 0
        %6217 = vmatmul.mubr.bf16.gmra.mrb[0].mxu0 %v5973
        %v6218 = vpop.f32.mrb[0].mxu0
        %v6219 = vadd.f32 0.0, %v6218
        %v6220 = vpop.f32.mrb[0].mxu0
        %v6221 = vpop.f32.mrb[0].mxu0
        %v6222 = vadd.f32 0.0, %v6221
        %v6223 = vpop.f32.mrb[0].mxu0
        %6224 = vmatprep.mubr.bf16.mxu0 0
        %6225 = vmatmul.mubr.bf16.gmra.mrb[0].mxu0 %v5976
        %v6226 = vpop.f32.mrb[0].mxu0
        %v6227 = vadd.f32 0.0, %v6226
        %v6228 = vpop.f32.mrb[0].mxu0
        %v6229 = vpop.f32.mrb[0].mxu0
        %v6230 = vadd.f32 0.0, %v6229
        %v6231 = vpop.f32.mrb[0].mxu0
        %6232 = vmatprep.mubr.bf16.mxu0 0
        %6233 = vmatmul.mubr.bf16.gmra.mrb[0].mxu0 %v5979
        %v6234 = vpop.f32.mrb[0].mxu0
        %v6235 = vadd.f32 0.0, %v6234
        %v6236 = vpop.f32.mrb[0].mxu0
        %v6237 = vpop.f32.mrb[0].mxu0
        %v6238 = vadd.f32 0.0, %v6237
        %v6239 = vpop.f32.mrb[0].mxu0
        %6240 = vmatprep.mubr.bf16.mxu0 0
        %6241 = vmatmul.mubr.bf16.gmra.mrb[0].mxu0 %v5982
        %v6242 = vpop.f32.mrb[0].mxu0
        %v6243 = vadd.f32 0.0, %v6242
        %v6244 = vpop.f32.mrb[0].mxu0
        %v6245 = vpop.f32.mrb[0].mxu0
        %v6246 = vadd.f32 0.0, %v6245
        %v6247 = vpop.f32.mrb[0].mxu0
        %6248 = vmatprep.mubr.bf16.mxu0 0
        %6249 = vmatmul.mubr.bf16.gmra.mrb[0].mxu0 %v5985
        %v6250 = vpop.f32.mrb[0].mxu0
        %v6251 = vadd.f32 0.0, %v6250
        %v6252 = vpop.f32.mrb[0].mxu0
        %v6253 = vpop.f32.mrb[0].mxu0
        %v6254 = vadd.f32 0.0, %v6253
        %v6255 = vpop.f32.mrb[0].mxu0
        %6256 = vmatprep.mubr.bf16.mxu0 0
        %6257 = vmatmul.mubr.bf16.gmra.mrb[0].mxu0 %v5988
        %v6258 = vpop.f32.mrb[0].mxu0
        %v6259 = vadd.f32 0.0, %v6258
        %v6260 = vpop.f32.mrb[0].mxu0
        %v6261 = vpop.f32.mrb[0].mxu0
        %v6262 = vadd.f32 0.0, %v6261
        %v6263 = vpop.f32.mrb[0].mxu0
        %6264 = vmatprep.mubr.bf16.mxu0 0
        %6265 = vmatmul.mubr.bf16.gmra.mrb[0].mxu0 %v5991
        %v6266 = vpop.f32.mrb[0].mxu0
        %v6267 = vadd.f32 0.0, %v6266
        %v6268 = vpop.f32.mrb[0].mxu0
        %v6269 = vpop.f32.mrb[0].mxu0
        %v6270 = vadd.f32 0.0, %v6269
        %v6271 = vpop.f32.mrb[0].mxu0
        %6272 = vmatprep.mubr.bf16.mxu0 0
        %6273 = vmatmul.mubr.bf16.gmra.mrb[0].mxu0 %v5994
        %v6274 = vpop.f32.mrb[0].mxu0
        %v6275 = vadd.f32 0.0, %v6274
        %v6276 = vpop.f32.mrb[0].mxu0
        %v6277 = vpop.f32.mrb[0].mxu0
        %v6278 = vadd.f32 0.0, %v6277
        %v6279 = vpop.f32.mrb[0].mxu0
        %6280 = vmatprep.mubr.bf16.mxu0 0
        %6281 = vmatmul.mubr.bf16.gmra.mrb[0].mxu0 %v5997
        %v6282 = vpop.f32.mrb[0].mxu0
        %v6283 = vadd.f32 0.0, %v6282
        %v6284 = vpop.f32.mrb[0].mxu0
        %v6285 = vpop.f32.mrb[0].mxu0
        %v6286 = vadd.f32 0.0, %v6285
        %v6287 = vpop.f32.mrb[0].mxu0
        %6288 = vmatprep.mubr.bf16.mxu0 0
        %6289 = vmatmul.mubr.bf16.gmra.mrb[0].mxu0 %v6000
        %v6290 = vpop.f32.mrb[0].mxu0
        %v6291 = vadd.f32 0.0, %v6290
        %v6292 = vpop.f32.mrb[0].mxu0
        %v6293 = vpop.f32.mrb[0].mxu0
        %v6294 = vadd.f32 0.0, %v6293
        %v6295 = vpop.f32.mrb[0].mxu0
        %6296 = vmatprep.mubr.bf16.mxu0 0
        %6297 = vmatmul.mubr.bf16.gmra.mrb[0].mxu0 %v6003
        %v6298 = vpop.f32.mrb[0].mxu0
        %v6299 = vadd.f32 0.0, %v6298
        %v6300 = vpop.f32.mrb[0].mxu0
        %v6301 = vpop.f32.mrb[0].mxu0
        %v6302 = vadd.f32 0.0, %v6301
        %v6303 = vpop.f32.mrb[0].mxu0
        %6304 = vmatprep.mubr.bf16.mxu0 0
        %6305 = vmatmul.mubr.bf16.gmra.mrb[0].mxu0 %v6006
        %v6306 = vpop.f32.mrb[0].mxu0
        %v6307 = vadd.f32 0.0, %v6306
        %v6308 = vpop.f32.mrb[0].mxu0
        %v6309 = vpop.f32.mrb[0].mxu0
        %v6310 = vadd.f32 0.0, %v6309
        %v6311 = vpop.f32.mrb[0].mxu0
        %6312 = vmatprep.mubr.bf16.mxu0 0
        %6313 = vmatmul.mubr.bf16.gmra.mrb[0].mxu0 %v6009
        %v6314 = vpop.f32.mrb[0].mxu0
        %v6315 = vadd.f32 0.0, %v6314
        %v6316 = vpop.f32.mrb[0].mxu0
        %v6317 = vpop.f32.mrb[0].mxu0
        %v6318 = vadd.f32 0.0, %v6317
        %v6319 = vpop.f32.mrb[0].mxu0
        %6320 = vmatprep.mubr.bf16.mxu0 0
        %6321 = vmatmul.mubr.bf16.gmra.mrb[0].mxu0 %v6012
        %v6322 = vpop.f32.mrb[0].mxu0
        %v6323 = vadd.f32 0.0, %v6322
        %v6324 = vpop.f32.mrb[0].mxu0
        %v6325 = vpop.f32.mrb[0].mxu0
        %v6326 = vadd.f32 0.0, %v6325
        %v6327 = vpop.f32.mrb[0].mxu0
        %6328 = vmatprep.mubr.bf16.mxu0 0
        %6329 = vmatmul.mubr.bf16.gmra.mrb[0].mxu0 %v6015
        %v6330 = vpop.f32.mrb[0].mxu0
        %v6331 = vadd.f32 0.0, %v6330
        %v6332 = vpop.f32.mrb[0].mxu0
        %v6333 = vpop.f32.mrb[0].mxu0
        %v6334 = vadd.f32 0.0, %v6333
        %v6335 = vpop.f32.mrb[0].mxu0
        %6336 = vmatprep.mubr.bf16.mxu0 0
        %6337 = vmatmul.mubr.bf16.gmra.mrb[0].mxu0 %v6018
        %v6338 = vpop.f32.mrb[0].mxu0
        %v6339 = vadd.f32 0.0, %v6338
        %v6340 = vpop.f32.mrb[0].mxu0
        %v6341 = vpop.f32.mrb[0].mxu0
        %v6342 = vadd.f32 0.0, %v6341
        %v6343 = vpop.f32.mrb[0].mxu0
        %6344 = vmatprep.mubr.bf16.mxu0 0
        %6345 = vmatmul.mubr.bf16.gmra.mrb[0].mxu0 %v6021
        %v6346 = vpop.f32.mrb[0].mxu0
        %v6347 = vadd.f32 0.0, %v6346
        %v6348 = vpop.f32.mrb[0].mxu0
        %v6349 = vpop.f32.mrb[0].mxu0
        %v6350 = vadd.f32 0.0, %v6349
        %v6351 = vpop.f32.mrb[0].mxu0
        %6352 = vmatprep.mubr.bf16.mxu0 0
        %6353 = vmatmul.mubr.bf16.gmra.mrb[0].mxu0 %v6024
        %v6354 = vpop.f32.mrb[0].mxu0
        %v6355 = vadd.f32 0.0, %v6354
        %v6356 = vpop.f32.mrb[0].mxu0
        %v6357 = vpop.f32.mrb[0].mxu0
        %v6358 = vadd.f32 0.0, %v6357
        %v6359 = vpop.f32.mrb[0].mxu0
        %6360 = vmatprep.mubr.bf16.mxu0 0
        %6361 = vmatmul.mubr.bf16.gmra.mrb[0].mxu0 %v6027
        %v6362 = vpop.f32.mrb[0].mxu0
        %v6363 = vadd.f32 0.0, %v6362
        %v6364 = vpop.f32.mrb[0].mxu0
        %v6365 = vpop.f32.mrb[0].mxu0
        %v6366 = vadd.f32 0.0, %v6365
        %v6367 = vpop.f32.mrb[0].mxu0
        %6368 = vmatprep.mubr.bf16.mxu0 0
        %6369 = vmatmul.mubr.bf16.gmra.mrb[0].mxu0 %v6030
        %v6370 = vpop.f32.mrb[0].mxu0
        %v6371 = vadd.f32 0.0, %v6370
        %v6372 = vpop.f32.mrb[0].mxu0
        %v6373 = vpop.f32.mrb[0].mxu0
        %v6374 = vadd.f32 0.0, %v6373
        %v6375 = vpop.f32.mrb[0].mxu0
        %6376 = vmatprep.mubr.bf16.mxu0 0
        %6377 = vmatmul.mubr.bf16.gmra.mrb[0].mxu0 %v6033
        %v6378 = vpop.f32.mrb[0].mxu0
        %v6379 = vadd.f32 0.0, %v6378
        %v6380 = vpop.f32.mrb[0].mxu0
        %v6381 = vpop.f32.mrb[0].mxu0
        %v6382 = vadd.f32 0.0, %v6381
        %v6383 = vpop.f32.mrb[0].mxu0
        %6384 = vmatprep.mubr.bf16.mxu0 0
        %6385 = vmatmul.mubr.bf16.gmra.mrb[0].mxu0 %v6036
        %v6386 = vpop.f32.mrb[0].mxu0
        %v6387 = vadd.f32 0.0, %v6386
        %v6388 = vpop.f32.mrb[0].mxu0
        %v6389 = vpop.f32.mrb[0].mxu0
        %v6390 = vadd.f32 0.0, %v6389
        %v6391 = vpop.f32.mrb[0].mxu0
        %6392 = vmatprep.mubr.bf16.mxu0 0
        %6393 = vmatmul.mubr.bf16.gmra.mrb[0].mxu0 %v6039
        %v6394 = vpop.f32.mrb[0].mxu0
        %v6395 = vadd.f32 0.0, %v6394
        %v6396 = vpop.f32.mrb[0].mxu0
        %v6397 = vpop.f32.mrb[0].mxu0
        %v6398 = vadd.f32 0.0, %v6397
        %v6399 = vpop.f32.mrb[0].mxu0
        %6400 = vmatprep.mubr.bf16.mxu0 0
        %6401 = vmatmul.mubr.bf16.gmra.mrb[0].mxu0 %v6042
        %v6402 = vpop.f32.mrb[0].mxu0
        %v6403 = vadd.f32 0.0, %v6402
        %v6404 = vpop.f32.mrb[0].mxu0
        %v6405 = vpop.f32.mrb[0].mxu0
        %v6406 = vadd.f32 0.0, %v6405
        %v6407 = vpop.f32.mrb[0].mxu0
        %6408 = vmatprep.mubr.bf16.mxu0 0
        %6409 = vmatmul.mubr.bf16.gmra.mrb[0].mxu0 %v6045
        %v6410 = vpop.f32.mrb[0].mxu0
        %v6411 = vadd.f32 0.0, %v6410
        %v6412 = vpop.f32.mrb[0].mxu0
        %v6413 = vpop.f32.mrb[0].mxu0
        %v6414 = vadd.f32 0.0, %v6413
        %v6415 = vpop.f32.mrb[0].mxu0
        %6416 = vmatprep.mubr.bf16.mxu0 0
        %6417 = vmatmul.mubr.bf16.gmra.mrb[0].mxu0 %v6048
        %v6418 = vpop.f32.mrb[0].mxu0
        %v6419 = vadd.f32 0.0, %v6418
        %v6420 = vpop.f32.mrb[0].mxu0
        %v6421 = vpop.f32.mrb[0].mxu0
        %v6422 = vadd.f32 0.0, %v6421
        %v6423 = vpop.f32.mrb[0].mxu0
        %6424 = vmatprep.mubr.bf16.mxu0 0
        %6425 = vmatmul.mubr.bf16.gmra.mrb[0].mxu0 %v6051
        %v6426 = vpop.f32.mrb[0].mxu0
        %v6427 = vadd.f32 0.0, %v6426
        %v6428 = vpop.f32.mrb[0].mxu0
        %v6429 = vpop.f32.mrb[0].mxu0
        %v6430 = vadd.f32 0.0, %v6429
        %v6431 = vpop.f32.mrb[0].mxu0
        %6432 = vmatprep.mubr.bf16.mxu0 0
        %6433 = vmatmul.mubr.bf16.gmra.mrb[0].mxu0 %v6054
        %v6434 = vpop.f32.mrb[0].mxu0
        %v6435 = vadd.f32 0.0, %v6434
        %v6436 = vpop.f32.mrb[0].mxu0
        %v6437 = vpop.f32.mrb[0].mxu0
        %v6438 = vadd.f32 0.0, %v6437
        %v6439 = vpop.f32.mrb[0].mxu0
        %6440 = vmatprep.mubr.bf16.mxu0 0
        %6441 = vmatmul.mubr.bf16.gmra.mrb[0].mxu0 %v6057
        %v6442 = vpop.f32.mrb[0].mxu0
        %v6443 = vadd.f32 0.0, %v6442
        %v6444 = vpop.f32.mrb[0].mxu0
        %v6445 = vpop.f32.mrb[0].mxu0
        %v6446 = vadd.f32 0.0, %v6445
        %v6447 = vpop.f32.mrb[0].mxu0
        %6448 = vmatprep.mubr.bf16.mxu0 0
        %6449 = vmatmul.mubr.bf16.gmra.mrb[0].mxu0 %v6060
        %v6450 = vpop.f32.mrb[0].mxu0
        %v6451 = vadd.f32 0.0, %v6450
        %v6452 = vpop.f32.mrb[0].mxu0
        %v6453 = vpop.f32.mrb[0].mxu0
        %v6454 = vadd.f32 0.0, %v6453
        %v6455 = vpop.f32.mrb[0].mxu0
        %6456 = vmatprep.mubr.bf16.mxu0 0
        %6457 = vmatmul.mubr.bf16.gmra.mrb[0].mxu0 %v6063
        %v6458 = vpop.f32.mrb[0].mxu0
        %v6459 = vadd.f32 0.0, %v6458
        %v6460 = vpop.f32.mrb[0].mxu0
        %v6461 = vpop.f32.mrb[0].mxu0
        %v6462 = vadd.f32 0.0, %v6461
        %v6463 = vpop.f32.mrb[0].mxu0
        %6464 = vmatprep.mubr.bf16.mxu0 0
        %6465 = vmatmul.mubr.bf16.gmra.mrb[0].mxu0 %v6066
        %v6466 = vpop.f32.mrb[0].mxu0
        %v6467 = vadd.f32 0.0, %v6466
        %v6468 = vpop.f32.mrb[0].mxu0
        %v6469 = vpop.f32.mrb[0].mxu0
        %v6470 = vadd.f32 0.0, %v6469
        %v6471 = vpop.f32.mrb[0].mxu0
        %6472 = vmatprep.mubr.bf16.mxu0 0
        %6473 = vmatmul.mubr.bf16.gmra.mrb[0].mxu0 %v6069
        %v6474 = vpop.f32.mrb[0].mxu0
        %v6475 = vadd.f32 0.0, %v6474
        %v6476 = vpop.f32.mrb[0].mxu0
        %v6477 = vpop.f32.mrb[0].mxu0
        %v6478 = vadd.f32 0.0, %v6477
        %v6479 = vpop.f32.mrb[0].mxu0
        %6480 = vmatprep.mubr.bf16.mxu0 0
        %6481 = vmatmul.mubr.bf16.gmra.mrb[0].mxu0 %v6072
        %v6482 = vpop.f32.mrb[0].mxu0
        %v6483 = vadd.f32 0.0, %v6482
        %v6484 = vpop.f32.mrb[0].mxu0
        %v6485 = vpop.f32.mrb[0].mxu0
        %v6486 = vadd.f32 0.0, %v6485
        %v6487 = vpop.f32.mrb[0].mxu0
        %6488 = vmatprep.mubr.bf16.mxu0 0
        %6489 = vmatmul.mubr.bf16.gmra.mrb[0].mxu0 %v6075
        %v6490 = vpop.f32.mrb[0].mxu0
        %v6491 = vadd.f32 0.0, %v6490
        %v6492 = vpop.f32.mrb[0].mxu0
        %v6493 = vpop.f32.mrb[0].mxu0
        %v6494 = vadd.f32 0.0, %v6493
        %v6495 = vpop.f32.mrb[0].mxu0
        %6496 = vmatprep.mubr.bf16.mxu0 0
        %6497 = vmatmul.mubr.bf16.gmra.mrb[0].mxu0 %v6078
        %v6498 = vpop.f32.mrb[0].mxu0
        %v6499 = vadd.f32 0.0, %v6498
        %v6500 = vpop.f32.mrb[0].mxu0
        %v6501 = vpop.f32.mrb[0].mxu0
        %v6502 = vadd.f32 0.0, %v6501
        %v6503 = vpop.f32.mrb[0].mxu0
        %6504 = vmatprep.mubr.bf16.mxu0 0
        %6505 = vmatmul.mubr.bf16.gmra.mrb[0].mxu0 %v6081
        %v6506 = vpop.f32.mrb[0].mxu0
        %v6507 = vadd.f32 0.0, %v6506
        %v6508 = vpop.f32.mrb[0].mxu0
        %v6509 = vpop.f32.mrb[0].mxu0
        %v6510 = vadd.f32 0.0, %v6509
        %v6511 = vpop.f32.mrb[0].mxu0
        %6512 = vmatprep.mubr.bf16.mxu0 0
        %6513 = vmatmul.mubr.bf16.gmra.mrb[0].mxu0 %v6084
        %v6514 = vpop.f32.mrb[0].mxu0
        %v6515 = vadd.f32 0.0, %v6514
        %v6516 = vpop.f32.mrb[0].mxu0
        %v6517 = vpop.f32.mrb[0].mxu0
        %v6518 = vadd.f32 0.0, %v6517
        %v6519 = vpop.f32.mrb[0].mxu0
        %6520 = vmatprep.mubr.bf16.mxu0 0
        %6521 = vmatmul.mubr.bf16.gmra.mrb[0].mxu0 %v6087
        %v6522 = vpop.f32.mrb[0].mxu0
        %v6523 = vadd.f32 0.0, %v6522
        %v6524 = vpop.f32.mrb[0].mxu0
        %v6525 = vpop.f32.mrb[0].mxu0
        %v6526 = vadd.f32 0.0, %v6525
        %v6527 = vpop.f32.mrb[0].mxu0
        %6528 = vmatprep.mubr.bf16.mxu0 0
        %6529 = vmatmul.mubr.bf16.gmra.mrb[0].mxu0 %v6090
        %v6530 = vpop.f32.mrb[0].mxu0
        %v6531 = vadd.f32 0.0, %v6530
        %v6532 = vpop.f32.mrb[0].mxu0
        %v6533 = vpop.f32.mrb[0].mxu0
        %v6534 = vadd.f32 0.0, %v6533
        %v6535 = vpop.f32.mrb[0].mxu0
        %6536 = vmatprep.mubr.bf16.mxu0 0
        %6537 = vmatmul.mubr.bf16.gmra.mrb[0].mxu0 %v6093
        %v6538 = vpop.f32.mrb[0].mxu0
        %v6539 = vadd.f32 0.0, %v6538
        %v6540 = vpop.f32.mrb[0].mxu0
        %v6541 = vpop.f32.mrb[0].mxu0
        %v6542 = vadd.f32 0.0, %v6541
        %v6543 = vpop.f32.mrb[0].mxu0
        %6544 = vmatprep.mubr.bf16.mxu0 0
        %6545 = vmatmul.mubr.bf16.gmra.mrb[0].mxu0 %v6096
        %v6546 = vpop.f32.mrb[0].mxu0
        %v6547 = vadd.f32 0.0, %v6546
        %v6548 = vpop.f32.mrb[0].mxu0
        %v6549 = vpop.f32.mrb[0].mxu0
        %v6550 = vadd.f32 0.0, %v6549
        %v6551 = vpop.f32.mrb[0].mxu0
        %6552 = vmatprep.mubr.bf16.mxu0 0
        %6553 = vmatmul.mubr.bf16.gmra.mrb[0].mxu0 %v6099
        %v6554 = vpop.f32.mrb[0].mxu0
        %v6555 = vadd.f32 0.0, %v6554
        %v6556 = vpop.f32.mrb[0].mxu0
        %v6557 = vpop.f32.mrb[0].mxu0
        %v6558 = vadd.f32 0.0, %v6557
        %v6559 = vpop.f32.mrb[0].mxu0
        %6560 = vmatprep.mubr.bf16.mxu0 0
        %6561 = vmatmul.mubr.bf16.gmra.mrb[0].mxu0 %v6102
        %v6562 = vpop.f32.mrb[0].mxu0
        %v6563 = vadd.f32 0.0, %v6562
        %v6564 = vpop.f32.mrb[0].mxu0
        %v6565 = vpop.f32.mrb[0].mxu0
        %v6566 = vadd.f32 0.0, %v6565
        %v6567 = vpop.f32.mrb[0].mxu0
        %6568 = vmatprep.mubr.bf16.mxu0 0
        %6569 = vmatmul.mubr.bf16.gmra.mrb[0].mxu0 %v6105
        %v6570 = vpop.f32.mrb[0].mxu0
        %v6571 = vadd.f32 0.0, %v6570
        %v6572 = vpop.f32.mrb[0].mxu0
        %v6573 = vpop.f32.mrb[0].mxu0
        %v6574 = vadd.f32 0.0, %v6573
        %v6575 = vpop.f32.mrb[0].mxu0
        %6576 = vmatprep.mubr.bf16.mxu0 0
        %6577 = vmatmul.mubr.bf16.gmra.mrb[0].mxu0 %v6108
        %v6578 = vpop.f32.mrb[0].mxu0
        %v6579 = vadd.f32 0.0, %v6578
        %v6580 = vpop.f32.mrb[0].mxu0
        %v6581 = vpop.f32.mrb[0].mxu0
        %v6582 = vadd.f32 0.0, %v6581
        %v6583 = vpop.f32.mrb[0].mxu0
        %6584 = vmatprep.mubr.bf16.mxu0 0
        %6585 = vmatmul.mubr.bf16.gmra.mrb[0].mxu0 %v6111
        %v6586 = vpop.f32.mrb[0].mxu0
        %v6587 = vadd.f32 0.0, %v6586
        %v6588 = vpop.f32.mrb[0].mxu0
        %v6589 = vpop.f32.mrb[0].mxu0
        %v6590 = vadd.f32 0.0, %v6589
        %v6591 = vpop.f32.mrb[0].mxu0
        %6592 = vmatprep.mubr.bf16.mxu0 0
        %6593 = vmatmul.mubr.bf16.gmra.mrb[0].mxu0 %v6114
        %v6594 = vpop.f32.mrb[0].mxu0
        %v6595 = vadd.f32 0.0, %v6594
        %v6596 = vpop.f32.mrb[0].mxu0
        %v6597 = vpop.f32.mrb[0].mxu0
        %v6598 = vadd.f32 0.0, %v6597
        %v6599 = vpop.f32.mrb[0].mxu0
        %6600 = vmatprep.mubr.bf16.mxu0 0
        %6601 = vmatmul.mubr.bf16.gmra.mrb[0].mxu0 %v6117
        %v6602 = vpop.f32.mrb[0].mxu0
        %v6603 = vadd.f32 0.0, %v6602
        %v6604 = vpop.f32.mrb[0].mxu0
        %v6605 = vpop.f32.mrb[0].mxu0
        %v6606 = vadd.f32 0.0, %v6605
        %v6607 = vpop.f32.mrb[0].mxu0
        %6608 = vmatprep.mubr.bf16.mxu0 0
        %6609 = vmatmul.mubr.bf16.gmra.mrb[0].mxu0 %v6120
        %v6610 = vpop.f32.mrb[0].mxu0
        %v6611 = vadd.f32 0.0, %v6610
        %v6612 = vpop.f32.mrb[0].mxu0
        %v6613 = vpop.f32.mrb[0].mxu0
        %v6614 = vadd.f32 0.0, %v6613
        %v6615 = vpop.f32.mrb[0].mxu0
        %6616 = vmatprep.mubr.bf16.mxu0 0
        %6617 = vmatmul.mubr.bf16.gmra.mrb[0].mxu0 %v6123
        %v6618 = vpop.f32.mrb[0].mxu0
        %v6619 = vadd.f32 0.0, %v6618
        %v6620 = vpop.f32.mrb[0].mxu0
        %v6621 = vpop.f32.mrb[0].mxu0
        %v6622 = vadd.f32 0.0, %v6621
        %v6623 = vpop.f32.mrb[0].mxu0
        %6624 = vmatprep.mubr.bf16.mxu0 0
        %6625 = vmatmul.mubr.bf16.gmra.mrb[0].mxu0 %v6126
        %v6626 = vpop.f32.mrb[0].mxu0
        %v6627 = vadd.f32 0.0, %v6626
        %v6628 = vpop.f32.mrb[0].mxu0
        %v6629 = vpop.f32.mrb[0].mxu0
        %v6630 = vadd.f32 0.0, %v6629
        %v6631 = vpop.f32.mrb[0].mxu0
        %6632 = vmatprep.mubr.bf16.mxu0 0
        %6633 = vmatmul.mubr.bf16.gmra.mrb[0].mxu0 %v6129
        %v6634 = vpop.f32.mrb[0].mxu0
        %v6635 = vadd.f32 0.0, %v6634
        %v6636 = vpop.f32.mrb[0].mxu0
        %v6637 = vpop.f32.mrb[0].mxu0
        %v6638 = vadd.f32 0.0, %v6637
        %v6639 = vpop.f32.mrb[0].mxu0
        %6640 = vmatprep.mubr.bf16.mxu0 0
        %6641 = vmatmul.mubr.bf16.gmra.mrb[0].mxu0 %v6132
        %v6642 = vpop.f32.mrb[0].mxu0
        %v6643 = vadd.f32 0.0, %v6642
        %v6644 = vpop.f32.mrb[0].mxu0
        %v6645 = vpop.f32.mrb[0].mxu0
        %v6646 = vadd.f32 0.0, %v6645
        %v6647 = vpop.f32.mrb[0].mxu0
        %6648 = vmatprep.mubr.bf16.mxu0 0
        %6649 = vmatmul.mubr.bf16.gmra.mrb[0].mxu0 %v6135
        %v6650 = vpop.f32.mrb[0].mxu0
        %v6651 = vadd.f32 0.0, %v6650
        %v6652 = vpop.f32.mrb[0].mxu0
        %v6653 = vpop.f32.mrb[0].mxu0
        %v6654 = vadd.f32 0.0, %v6653
        %v6655 = vpop.f32.mrb[0].mxu0
        %6656 = vmatprep.mubr.bf16.mxu0 0
        %6657 = vmatmul.mubr.bf16.gmra.mrb[0].mxu0 %v6138
        %v6658 = vpop.f32.mrb[0].mxu0
        %v6659 = vadd.f32 0.0, %v6658
        %v6660 = vpop.f32.mrb[0].mxu0
        %v6661 = vpop.f32.mrb[0].mxu0
        %v6662 = vadd.f32 0.0, %v6661
        %v6663 = vpop.f32.mrb[0].mxu0
        %6664 = vmatprep.mubr.bf16.mxu0 0
        %6665 = vmatmul.mubr.bf16.gmra.mrb[0].mxu0 %v6141
        %v6666 = vpop.f32.mrb[0].mxu0
        %v6667 = vadd.f32 0.0, %v6666
        %v6668 = vpop.f32.mrb[0].mxu0
        %v6669 = vpop.f32.mrb[0].mxu0
        %v6670 = vadd.f32 0.0, %v6669
        %v6671 = vpop.f32.mrb[0].mxu0
        %6672 = vmatprep.mubr.bf16.mxu0 0
        %6673 = vmatmul.mubr.bf16.gmra.mrb[0].mxu0 %v6144
        %v6674 = vpop.f32.mrb[0].mxu0
        %v6675 = vadd.f32 0.0, %v6674
        %v6676 = vpop.f32.mrb[0].mxu0
        %v6677 = vpop.f32.mrb[0].mxu0
        %v6678 = vadd.f32 0.0, %v6677
        %v6679 = vpop.f32.mrb[0].mxu0
        %6680 = vmatprep.mubr.bf16.mxu0 0
        %6681 = vmatmul.mubr.bf16.gmra.mrb[0].mxu0 %v6147
        %v6682 = vpop.f32.mrb[0].mxu0
        %v6683 = vadd.f32 0.0, %v6682
        %v6684 = vpop.f32.mrb[0].mxu0
        %v6685 = vpop.f32.mrb[0].mxu0
        %v6686 = vadd.f32 0.0, %v6685
        %v6687 = vpop.f32.mrb[0].mxu0
        %6688 = vmatprep.mubr.bf16.mxu0 0
        %6689 = vmatmul.mubr.bf16.gmra.mrb[0].mxu0 %v6150
        %v6690 = vpop.f32.mrb[0].mxu0
        %v6691 = vadd.f32 0.0, %v6690
        %v6692 = vpop.f32.mrb[0].mxu0
        %v6693 = vpop.f32.mrb[0].mxu0
        %v6694 = vadd.f32 0.0, %v6693
        %v6695 = vpop.f32.mrb[0].mxu0
        %6696 = vdwg.mxu0
        %v6697 = vadd.f32 %v5735, %v6187
        %v6698 = vadd.f32 %v5736, %v6190
        %v6699 = vadd.f32 %v5737, %v6195
        %v6700 = vadd.f32 %v5738, %v6198
        %v6701 = vadd.f32 %v5739, %v6203
        %v6702 = vadd.f32 %v5740, %v6206
        %v6703 = vadd.f32 %v5741, %v6211
        %v6704 = vadd.f32 %v5742, %v6214
        %v6705 = vadd.f32 %v5743, %v6219
        %v6706 = vadd.f32 %v5744, %v6222
        %v6707 = vadd.f32 %v5745, %v6227
        %v6708 = vadd.f32 %v5746, %v6230
        %v6709 = vadd.f32 %v5747, %v6235
        %v6710 = vadd.f32 %v5748, %v6238
        %v6711 = vadd.f32 %v5749, %v6243
        %v6712 = vadd.f32 %v5750, %v6246
        %v6713 = vadd.f32 %v5751, %v6251
        %v6714 = vadd.f32 %v5752, %v6254
        %v6715 = vadd.f32 %v5753, %v6259
        %v6716 = vadd.f32 %v5754, %v6262
        %v6717 = vadd.f32 %v5755, %v6267
        %v6718 = vadd.f32 %v5756, %v6270
        %v6719 = vadd.f32 %v5757, %v6275
        %v6720 = vadd.f32 %v5758, %v6278
        %v6721 = vadd.f32 %v5759, %v6283
        %v6722 = vadd.f32 %v5760, %v6286
        %v6723 = vadd.f32 %v5761, %v6291
        %v6724 = vadd.f32 %v5762, %v6294
        %v6725 = vadd.f32 %v5763, %v6299
        %v6726 = vadd.f32 %v5764, %v6302
        %v6727 = vadd.f32 %v5765, %v6307
        %v6728 = vadd.f32 %v5766, %v6310
        %v6729 = vadd.f32 %v5767, %v6315
        %v6730 = vadd.f32 %v5768, %v6318
        %v6731 = vadd.f32 %v5769, %v6323
        %v6732 = vadd.f32 %v5770, %v6326
        %v6733 = vadd.f32 %v5771, %v6331
        %v6734 = vadd.f32 %v5772, %v6334
        %v6735 = vadd.f32 %v5773, %v6339
        %v6736 = vadd.f32 %v5774, %v6342
        %v6737 = vadd.f32 %v5775, %v6347
        %v6738 = vadd.f32 %v5776, %v6350
        %v6739 = vadd.f32 %v5777, %v6355
        %v6740 = vadd.f32 %v5778, %v6358
        %v6741 = vadd.f32 %v5779, %v6363
        %v6742 = vadd.f32 %v5780, %v6366
        %v6743 = vadd.f32 %v5781, %v6371
        %v6744 = vadd.f32 %v5782, %v6374
        %v6745 = vadd.f32 %v5783, %v6379
        %v6746 = vadd.f32 %v5784, %v6382
        %v6747 = vadd.f32 %v5785, %v6387
        %v6748 = vadd.f32 %v5786, %v6390
        %v6749 = vadd.f32 %v5787, %v6395
        %v6750 = vadd.f32 %v5788, %v6398
        %v6751 = vadd.f32 %v5789, %v6403
        %v6752 = vadd.f32 %v5790, %v6406
        %v6753 = vadd.f32 %v5791, %v6411
        %v6754 = vadd.f32 %v5792, %v6414
        %v6755 = vadd.f32 %v5793, %v6419
        %v6756 = vadd.f32 %v5794, %v6422
        %v6757 = vadd.f32 %v5795, %v6427
        %v6758 = vadd.f32 %v5796, %v6430
        %v6759 = vadd.f32 %v5797, %v6435
        %v6760 = vadd.f32 %v5798, %v6438
        %v6761 = vadd.f32 %v5799, %v6443
        %v6762 = vadd.f32 %v5800, %v6446
        %v6763 = vadd.f32 %v5801, %v6451
        %v6764 = vadd.f32 %v5802, %v6454
        %v6765 = vadd.f32 %v5803, %v6459
        %v6766 = vadd.f32 %v5804, %v6462
        %v6767 = vadd.f32 %v5805, %v6467
        %v6768 = vadd.f32 %v5806, %v6470
        %v6769 = vadd.f32 %v5807, %v6475
        %v6770 = vadd.f32 %v5808, %v6478
        %v6771 = vadd.f32 %v5809, %v6483
        %v6772 = vadd.f32 %v5810, %v6486
        %v6773 = vadd.f32 %v5811, %v6491
        %v6774 = vadd.f32 %v5812, %v6494
        %v6775 = vadd.f32 %v5813, %v6499
        %v6776 = vadd.f32 %v5814, %v6502
        %v6777 = vadd.f32 %v5815, %v6507
        %v6778 = vadd.f32 %v5816, %v6510
        %v6779 = vadd.f32 %v5817, %v6515
        %v6780 = vadd.f32 %v5818, %v6518
        %v6781 = vadd.f32 %v5819, %v6523
        %v6782 = vadd.f32 %v5820, %v6526
        %v6783 = vadd.f32 %v5821, %v6531
        %v6784 = vadd.f32 %v5822, %v6534
        %v6785 = vadd.f32 %v5823, %v6539
        %v6786 = vadd.f32 %v5824, %v6542
        %v6787 = vadd.f32 %v5825, %v6547
        %v6788 = vadd.f32 %v5826, %v6550
        %v6789 = vadd.f32 %v5827, %v6555
        %v6790 = vadd.f32 %v5828, %v6558
        %v6791 = vadd.f32 %v5829, %v6563
        %v6792 = vadd.f32 %v5830, %v6566
        %v6793 = vadd.f32 %v5831, %v6571
        %v6794 = vadd.f32 %v5832, %v6574
        %v6795 = vadd.f32 %v5833, %v6579
        %v6796 = vadd.f32 %v5834, %v6582
        %v6797 = vadd.f32 %v5835, %v6587
        %v6798 = vadd.f32 %v5836, %v6590
        %v6799 = vadd.f32 %v5837, %v6595
        %v6800 = vadd.f32 %v5838, %v6598
        %v6801 = vadd.f32 %v5839, %v6603
        %v6802 = vadd.f32 %v5840, %v6606
        %v6803 = vadd.f32 %v5841, %v6611
        %v6804 = vadd.f32 %v5842, %v6614
        %v6805 = vadd.f32 %v5843, %v6619
        %v6806 = vadd.f32 %v5844, %v6622
        %v6807 = vadd.f32 %v5845, %v6627
        %v6808 = vadd.f32 %v5846, %v6630
        %v6809 = vadd.f32 %v5847, %v6635
        %v6810 = vadd.f32 %v5848, %v6638
        %v6811 = vadd.f32 %v5849, %v6643
        %v6812 = vadd.f32 %v5850, %v6646
        %v6813 = vadd.f32 %v5851, %v6651
        %v6814 = vadd.f32 %v5852, %v6654
        %v6815 = vadd.f32 %v5853, %v6659
        %v6816 = vadd.f32 %v5854, %v6662
        %v6817 = vadd.f32 %v5855, %v6667
        %v6818 = vadd.f32 %v5856, %v6670
        %v6819 = vadd.f32 %v5857, %v6675
        %v6820 = vadd.f32 %v5858, %v6678
        %v6821 = vadd.f32 %v5859, %v6683
        %v6822 = vadd.f32 %v5860, %v6686
        %v6823 = vadd.f32 %v5861, %v6691
        %v6824 = vadd.f32 %v5862, %v6694
        %s6825 = scalar_lea.vmem [#allocation2], 560
        %v6826 = vld [vmem:[%s6825] sm:$0xff]
        %v6827 = vld [vmem:[%s6825 + $0x8] sm:$0xff]
        %v6828 = vld [vmem:[%s6825 + $0x10] sm:$0xff]
        %v6829 = vld [vmem:[%s6825 + $0x18] sm:$0xff]
        %v6830 = vld [vmem:[%s6825 + $0x20] sm:$0xff]
        %v6831 = vld [vmem:[%s6825 + $0x28] sm:$0xff]
        %v6832 = vld [vmem:[%s6825 + $0x30] sm:$0xff]
        %v6833 = vld [vmem:[%s6825 + $0x38] sm:$0xff]
        %v6834 = vld [vmem:[%s6825 + $0x40] sm:$0xff]
        %v6835 = vld [vmem:[%s6825 + $0x48] sm:$0xff]
        %v6836 = vld [vmem:[%s6825 + $0x50] sm:$0xff]
        %v6837 = vld [vmem:[%s6825 + $0x58] sm:$0xff]
        %v6838 = vld [vmem:[%s6825 + $0x60] sm:$0xff]
        %v6839 = vld [vmem:[%s6825 + $0x68] sm:$0xff]
        %v6840 = vld [vmem:[%s6825 + $0x70] sm:$0xff]
        %v6841 = vld [vmem:[%s6825 + $0x78] sm:$0xff]
        %v6842 = vld [vmem:[%s6825 + $0x80] sm:$0xff]
        %v6843 = vld [vmem:[%s6825 + $0x88] sm:$0xff]
        %v6844 = vld [vmem:[%s6825 + $0x90] sm:$0xff]
        %v6845 = vld [vmem:[%s6825 + $0x98] sm:$0xff]
        %v6846 = vld [vmem:[%s6825 + $0xa0] sm:$0xff]
        %v6847 = vld [vmem:[%s6825 + $0xa8] sm:$0xff]
        %v6848 = vld [vmem:[%s6825 + $0xb0] sm:$0xff]
        %v6849 = vld [vmem:[%s6825 + $0xb8] sm:$0xff]
        %v6850 = vld [vmem:[%s6825 + $0xc0] sm:$0xff]
        %v6851 = vld [vmem:[%s6825 + $0xc8] sm:$0xff]
        %v6852 = vld [vmem:[%s6825 + $0xd0] sm:$0xff]
        %v6853 = vld [vmem:[%s6825 + $0xd8] sm:$0xff]
        %v6854 = vld [vmem:[%s6825 + $0xe0] sm:$0xff]
        %v6855 = vld [vmem:[%s6825 + $0xe8] sm:$0xff]
        %v6856 = vld [vmem:[%s6825 + $0xf0] sm:$0xff]
        %v6857 = vld [vmem:[%s6825 + $0xf8] sm:$0xff]
        %v6858 = vld [vmem:[%s6825 + $0x100] sm:$0xff]
        %v6859 = vld [vmem:[%s6825 + $0x108] sm:$0xff]
        %v6860 = vld [vmem:[%s6825 + $0x110] sm:$0xff]
        %v6861 = vld [vmem:[%s6825 + $0x118] sm:$0xff]
        %v6862 = vld [vmem:[%s6825 + $0x120] sm:$0xff]
        %v6863 = vld [vmem:[%s6825 + $0x128] sm:$0xff]
        %v6864 = vld [vmem:[%s6825 + $0x130] sm:$0xff]
        %v6865 = vld [vmem:[%s6825 + $0x138] sm:$0xff]
        %v6866 = vld [vmem:[%s6825 + $0x140] sm:$0xff]
        %v6867 = vld [vmem:[%s6825 + $0x148] sm:$0xff]
        %v6868 = vld [vmem:[%s6825 + $0x150] sm:$0xff]
        %v6869 = vld [vmem:[%s6825 + $0x158] sm:$0xff]
        %v6870 = vld [vmem:[%s6825 + $0x160] sm:$0xff]
        %v6871 = vld [vmem:[%s6825 + $0x168] sm:$0xff]
        %v6872 = vld [vmem:[%s6825 + $0x170] sm:$0xff]
        %v6873 = vld [vmem:[%s6825 + $0x178] sm:$0xff]
        %v6874 = vld [vmem:[%s6825 + $0x180] sm:$0xff]
        %v6875 = vld [vmem:[%s6825 + $0x188] sm:$0xff]
        %v6876 = vld [vmem:[%s6825 + $0x190] sm:$0xff]
        %v6877 = vld [vmem:[%s6825 + $0x198] sm:$0xff]
        %v6878 = vld [vmem:[%s6825 + $0x1a0] sm:$0xff]
        %v6879 = vld [vmem:[%s6825 + $0x1a8] sm:$0xff]
        %v6880 = vld [vmem:[%s6825 + $0x1b0] sm:$0xff]
        %v6881 = vld [vmem:[%s6825 + $0x1b8] sm:$0xff]
        %v6882 = vld [vmem:[%s6825 + $0x1c0] sm:$0xff]
        %v6883 = vld [vmem:[%s6825 + $0x1c8] sm:$0xff]
        %v6884 = vld [vmem:[%s6825 + $0x1d0] sm:$0xff]
        %v6885 = vld [vmem:[%s6825 + $0x1d8] sm:$0xff]
        %v6886 = vld [vmem:[%s6825 + $0x1e0] sm:$0xff]
        %v6887 = vld [vmem:[%s6825 + $0x1e8] sm:$0xff]
        %v6888 = vld [vmem:[%s6825 + $0x1f0] sm:$0xff]
        %v6889 = vld [vmem:[%s6825 + $0x1f8] sm:$0xff]
        %v6890 = vld [vmem:[%s264 + $0x80] sm:$0xf]
        %v6891 = vld [vmem:[%s264 + $0x84] sm:$0xf]
        %v6892 = vld [vmem:[%s264 + $0x88] sm:$0xf]
        %v6893 = vld [vmem:[%s264 + $0x8c] sm:$0xf]
        %v6894 = vld [vmem:[%s264 + $0x90] sm:$0xf]
        %v6895 = vld [vmem:[%s264 + $0x94] sm:$0xf]
        %v6896 = vld [vmem:[%s264 + $0x98] sm:$0xf]
        %v6897 = vld [vmem:[%s264 + $0x9c] sm:$0xf]
        %v6906 = vunpack.c.l.b16 %v6890
        %v6907 = vunpack.c.l.b16 %v6891
        %v6908 = vunpack.c.l.b16 %v6892
        %v6909 = vunpack.c.l.b16 %v6893
        %v6910 = vunpack.c.l.b16 %v6894
        %v6911 = vunpack.c.l.b16 %v6895
        %v6912 = vunpack.c.l.b16 %v6896
        %v6913 = vunpack.c.l.b16 %v6897
        %v6914 = vpack.c.b16 %v6907, %v6906
        %v6915 = vpack.c.b16 %v6909, %v6908
        %v6916 = vpack.c.b16 %v6911, %v6910
        %v6917 = vpack.c.b16 %v6913, %v6912
        %v6923 = vsel %vm817, %v6826, 0
        %v6926 = vsel %vm817, %v6827, 0
        %v6929 = vsel %vm817, %v6828, 0
        %v6932 = vsel %vm817, %v6829, 0
        %v6935 = vsel %vm817, %v6830, 0
        %v6938 = vsel %vm817, %v6831, 0
        %v6941 = vsel %vm817, %v6832, 0
        %v6944 = vsel %vm817, %v6833, 0
        %v6947 = vsel %vm817, %v6834, 0
        %v6950 = vsel %vm817, %v6835, 0
        %v6953 = vsel %vm817, %v6836, 0
        %v6956 = vsel %vm817, %v6837, 0
        %v6959 = vsel %vm817, %v6838, 0
        %v6962 = vsel %vm817, %v6839, 0
        %v6965 = vsel %vm817, %v6840, 0
        %v6968 = vsel %vm817, %v6841, 0
        %v6971 = vsel %vm817, %v6842, 0
        %v6974 = vsel %vm817, %v6843, 0
        %v6977 = vsel %vm817, %v6844, 0
        %v6980 = vsel %vm817, %v6845, 0
        %v6983 = vsel %vm817, %v6846, 0
        %v6986 = vsel %vm817, %v6847, 0
        %v6989 = vsel %vm817, %v6848, 0
        %v6992 = vsel %vm817, %v6849, 0
        %v6995 = vsel %vm817, %v6850, 0
        %v6998 = vsel %vm817, %v6851, 0
        %v7001 = vsel %vm817, %v6852, 0
        %v7004 = vsel %vm817, %v6853, 0
        %v7007 = vsel %vm817, %v6854, 0
        %v7010 = vsel %vm817, %v6855, 0
        %v7013 = vsel %vm817, %v6856, 0
        %v7016 = vsel %vm817, %v6857, 0
        %v7019 = vsel %vm817, %v6858, 0
        %v7022 = vsel %vm817, %v6859, 0
        %v7025 = vsel %vm817, %v6860, 0
        %v7028 = vsel %vm817, %v6861, 0
        %v7031 = vsel %vm817, %v6862, 0
        %v7034 = vsel %vm817, %v6863, 0
        %v7037 = vsel %vm817, %v6864, 0
        %v7040 = vsel %vm817, %v6865, 0
        %v7043 = vsel %vm817, %v6866, 0
        %v7046 = vsel %vm817, %v6867, 0
        %v7049 = vsel %vm817, %v6868, 0
        %v7052 = vsel %vm817, %v6869, 0
        %v7055 = vsel %vm817, %v6870, 0
        %v7058 = vsel %vm817, %v6871, 0
        %v7061 = vsel %vm817, %v6872, 0
        %v7064 = vsel %vm817, %v6873, 0
        %v7067 = vsel %vm817, %v6874, 0
        %v7070 = vsel %vm817, %v6875, 0
        %v7073 = vsel %vm817, %v6876, 0
        %v7076 = vsel %vm817, %v6877, 0
        %v7079 = vsel %vm817, %v6878, 0
        %v7082 = vsel %vm817, %v6879, 0
        %v7085 = vsel %vm817, %v6880, 0
        %v7088 = vsel %vm817, %v6881, 0
        %v7091 = vsel %vm817, %v6882, 0
        %v7094 = vsel %vm817, %v6883, 0
        %v7097 = vsel %vm817, %v6884, 0
        %v7100 = vsel %vm817, %v6885, 0
        %v7103 = vsel %vm817, %v6886, 0
        %v7106 = vsel %vm817, %v6887, 0
        %v7109 = vsel %vm817, %v6888, 0
        %v7112 = vsel %vm817, %v6889, 0
        %7114 = vmatprep.subr.bf16.mxu0 0
        %7115 = vmatpush1.bf16.msra.mxu0 %v6914
        %7116 = vmatprep.subr.bf16.mxu0 0
        %7117 = vmatpush1.bf16.msra.mxu0 %v6915
        %7118 = vmatprep.subr.bf16.mxu0 0
        %7119 = vmatpush1.bf16.msra.mxu0 %v6916
        %7120 = vmatprep.subr.bf16.mxu0 0
        %7121 = vmatpush1.bf16.msra.mxu0 %v6917
        %7122 = vmatprep.subr.bf16.mxu0 0
        %7123 = vmatpush1.bf16.msra.mxu0 0
        %7124 = vmatprep.subr.bf16.mxu0 0
        %7125 = vmatpush1.bf16.msra.mxu0 0
        %7126 = vmatprep.subr.bf16.mxu0 0
        %7127 = vmatpush1.bf16.msra.mxu0 0
        %7128 = vmatprep.subr.bf16.mxu0 0
        %7129 = vmatpush1.bf16.msra.mxu0 0
        %7130 = vmatprep.subr.bf16.mxu0 0
        %7131 = vmatpush1.bf16.msra.mxu0 0
        %7132 = vmatprep.subr.bf16.mxu0 0
        %7133 = vmatpush1.bf16.msra.mxu0 0
        %7134 = vmatprep.subr.bf16.mxu0 0
        %7135 = vmatpush1.bf16.msra.mxu0 0
        %7136 = vmatprep.subr.bf16.mxu0 0
        %7137 = vmatpush1.bf16.msra.mxu0 0
        %7138 = vmatprep.subr.bf16.mxu0 0
        %7139 = vmatpush1.bf16.msra.mxu0 0
        %7140 = vmatprep.subr.bf16.mxu0 0
        %7141 = vmatpush1.bf16.msra.mxu0 0
        %7142 = vmatprep.subr.bf16.mxu0 0
        %7143 = vmatpush1.bf16.msra.mxu0 0
        %7144 = vmatprep.subr.bf16.mxu0 0
        %7145 = vmatpush1.bf16.msra.mxu0 0
        %7146 = vmatprep.mubr.bf16.mxu0 0
        %7147 = vmatmul.mubr.bf16.gmra.mrb[0].mxu0 %v6923
        %v7148 = vpop.f32.mrb[0].mxu0
        %v7149 = vadd.f32 0.0, %v7148
        %v7150 = vpop.f32.mrb[0].mxu0
        %v7151 = vpop.f32.mrb[0].mxu0
        %v7152 = vadd.f32 0.0, %v7151
        %v7153 = vpop.f32.mrb[0].mxu0
        %7154 = vmatprep.mubr.bf16.mxu0 0
        %7155 = vmatmul.mubr.bf16.gmra.mrb[0].mxu0 %v6926
        %v7156 = vpop.f32.mrb[0].mxu0
        %v7157 = vadd.f32 0.0, %v7156
        %v7158 = vpop.f32.mrb[0].mxu0
        %v7159 = vpop.f32.mrb[0].mxu0
        %v7160 = vadd.f32 0.0, %v7159
        %v7161 = vpop.f32.mrb[0].mxu0
        %7162 = vmatprep.mubr.bf16.mxu0 0
        %7163 = vmatmul.mubr.bf16.gmra.mrb[0].mxu0 %v6929
        %v7164 = vpop.f32.mrb[0].mxu0
        %v7165 = vadd.f32 0.0, %v7164
        %v7166 = vpop.f32.mrb[0].mxu0
        %v7167 = vpop.f32.mrb[0].mxu0
        %v7168 = vadd.f32 0.0, %v7167
        %v7169 = vpop.f32.mrb[0].mxu0
        %7170 = vmatprep.mubr.bf16.mxu0 0
        %7171 = vmatmul.mubr.bf16.gmra.mrb[0].mxu0 %v6932
        %v7172 = vpop.f32.mrb[0].mxu0
        %v7173 = vadd.f32 0.0, %v7172
        %v7174 = vpop.f32.mrb[0].mxu0
        %v7175 = vpop.f32.mrb[0].mxu0
        %v7176 = vadd.f32 0.0, %v7175
        %v7177 = vpop.f32.mrb[0].mxu0
        %7178 = vmatprep.mubr.bf16.mxu0 0
        %7179 = vmatmul.mubr.bf16.gmra.mrb[0].mxu0 %v6935
        %v7180 = vpop.f32.mrb[0].mxu0
        %v7181 = vadd.f32 0.0, %v7180
        %v7182 = vpop.f32.mrb[0].mxu0
        %v7183 = vpop.f32.mrb[0].mxu0
        %v7184 = vadd.f32 0.0, %v7183
        %v7185 = vpop.f32.mrb[0].mxu0
        %7186 = vmatprep.mubr.bf16.mxu0 0
        %7187 = vmatmul.mubr.bf16.gmra.mrb[0].mxu0 %v6938
        %v7188 = vpop.f32.mrb[0].mxu0
        %v7189 = vadd.f32 0.0, %v7188
        %v7190 = vpop.f32.mrb[0].mxu0
        %v7191 = vpop.f32.mrb[0].mxu0
        %v7192 = vadd.f32 0.0, %v7191
        %v7193 = vpop.f32.mrb[0].mxu0
        %7194 = vmatprep.mubr.bf16.mxu0 0
        %7195 = vmatmul.mubr.bf16.gmra.mrb[0].mxu0 %v6941
        %v7196 = vpop.f32.mrb[0].mxu0
        %v7197 = vadd.f32 0.0, %v7196
        %v7198 = vpop.f32.mrb[0].mxu0
        %v7199 = vpop.f32.mrb[0].mxu0
        %v7200 = vadd.f32 0.0, %v7199
        %v7201 = vpop.f32.mrb[0].mxu0
        %7202 = vmatprep.mubr.bf16.mxu0 0
        %7203 = vmatmul.mubr.bf16.gmra.mrb[0].mxu0 %v6944
        %v7204 = vpop.f32.mrb[0].mxu0
        %v7205 = vadd.f32 0.0, %v7204
        %v7206 = vpop.f32.mrb[0].mxu0
        %v7207 = vpop.f32.mrb[0].mxu0
        %v7208 = vadd.f32 0.0, %v7207
        %v7209 = vpop.f32.mrb[0].mxu0
        %7210 = vmatprep.mubr.bf16.mxu0 0
        %7211 = vmatmul.mubr.bf16.gmra.mrb[0].mxu0 %v6947
        %v7212 = vpop.f32.mrb[0].mxu0
        %v7213 = vadd.f32 0.0, %v7212
        %v7214 = vpop.f32.mrb[0].mxu0
        %v7215 = vpop.f32.mrb[0].mxu0
        %v7216 = vadd.f32 0.0, %v7215
        %v7217 = vpop.f32.mrb[0].mxu0
        %7218 = vmatprep.mubr.bf16.mxu0 0
        %7219 = vmatmul.mubr.bf16.gmra.mrb[0].mxu0 %v6950
        %v7220 = vpop.f32.mrb[0].mxu0
        %v7221 = vadd.f32 0.0, %v7220
        %v7222 = vpop.f32.mrb[0].mxu0
        %v7223 = vpop.f32.mrb[0].mxu0
        %v7224 = vadd.f32 0.0, %v7223
        %v7225 = vpop.f32.mrb[0].mxu0
        %7226 = vmatprep.mubr.bf16.mxu0 0
        %7227 = vmatmul.mubr.bf16.gmra.mrb[0].mxu0 %v6953
        %v7228 = vpop.f32.mrb[0].mxu0
        %v7229 = vadd.f32 0.0, %v7228
        %v7230 = vpop.f32.mrb[0].mxu0
        %v7231 = vpop.f32.mrb[0].mxu0
        %v7232 = vadd.f32 0.0, %v7231
        %v7233 = vpop.f32.mrb[0].mxu0
        %7234 = vmatprep.mubr.bf16.mxu0 0
        %7235 = vmatmul.mubr.bf16.gmra.mrb[0].mxu0 %v6956
        %v7236 = vpop.f32.mrb[0].mxu0
        %v7237 = vadd.f32 0.0, %v7236
        %v7238 = vpop.f32.mrb[0].mxu0
        %v7239 = vpop.f32.mrb[0].mxu0
        %v7240 = vadd.f32 0.0, %v7239
        %v7241 = vpop.f32.mrb[0].mxu0
        %7242 = vmatprep.mubr.bf16.mxu0 0
        %7243 = vmatmul.mubr.bf16.gmra.mrb[0].mxu0 %v6959
        %v7244 = vpop.f32.mrb[0].mxu0
        %v7245 = vadd.f32 0.0, %v7244
        %v7246 = vpop.f32.mrb[0].mxu0
        %v7247 = vpop.f32.mrb[0].mxu0
        %v7248 = vadd.f32 0.0, %v7247
        %v7249 = vpop.f32.mrb[0].mxu0
        %7250 = vmatprep.mubr.bf16.mxu0 0
        %7251 = vmatmul.mubr.bf16.gmra.mrb[0].mxu0 %v6962
        %v7252 = vpop.f32.mrb[0].mxu0
        %v7253 = vadd.f32 0.0, %v7252
        %v7254 = vpop.f32.mrb[0].mxu0
        %v7255 = vpop.f32.mrb[0].mxu0
        %v7256 = vadd.f32 0.0, %v7255
        %v7257 = vpop.f32.mrb[0].mxu0
        %7258 = vmatprep.mubr.bf16.mxu0 0
        %7259 = vmatmul.mubr.bf16.gmra.mrb[0].mxu0 %v6965
        %v7260 = vpop.f32.mrb[0].mxu0
        %v7261 = vadd.f32 0.0, %v7260
        %v7262 = vpop.f32.mrb[0].mxu0
        %v7263 = vpop.f32.mrb[0].mxu0
        %v7264 = vadd.f32 0.0, %v7263
        %v7265 = vpop.f32.mrb[0].mxu0
        %7266 = vmatprep.mubr.bf16.mxu0 0
        %7267 = vmatmul.mubr.bf16.gmra.mrb[0].mxu0 %v6968
        %v7268 = vpop.f32.mrb[0].mxu0
        %v7269 = vadd.f32 0.0, %v7268
        %v7270 = vpop.f32.mrb[0].mxu0
        %v7271 = vpop.f32.mrb[0].mxu0
        %v7272 = vadd.f32 0.0, %v7271
        %v7273 = vpop.f32.mrb[0].mxu0
        %7274 = vmatprep.mubr.bf16.mxu0 0
        %7275 = vmatmul.mubr.bf16.gmra.mrb[0].mxu0 %v6971
        %v7276 = vpop.f32.mrb[0].mxu0
        %v7277 = vadd.f32 0.0, %v7276
        %v7278 = vpop.f32.mrb[0].mxu0
        %v7279 = vpop.f32.mrb[0].mxu0
        %v7280 = vadd.f32 0.0, %v7279
        %v7281 = vpop.f32.mrb[0].mxu0
        %7282 = vmatprep.mubr.bf16.mxu0 0
        %7283 = vmatmul.mubr.bf16.gmra.mrb[0].mxu0 %v6974
        %v7284 = vpop.f32.mrb[0].mxu0
        %v7285 = vadd.f32 0.0, %v7284
        %v7286 = vpop.f32.mrb[0].mxu0
        %v7287 = vpop.f32.mrb[0].mxu0
        %v7288 = vadd.f32 0.0, %v7287
        %v7289 = vpop.f32.mrb[0].mxu0
        %7290 = vmatprep.mubr.bf16.mxu0 0
        %7291 = vmatmul.mubr.bf16.gmra.mrb[0].mxu0 %v6977
        %v7292 = vpop.f32.mrb[0].mxu0
        %v7293 = vadd.f32 0.0, %v7292
        %v7294 = vpop.f32.mrb[0].mxu0
        %v7295 = vpop.f32.mrb[0].mxu0
        %v7296 = vadd.f32 0.0, %v7295
        %v7297 = vpop.f32.mrb[0].mxu0
        %7298 = vmatprep.mubr.bf16.mxu0 0
        %7299 = vmatmul.mubr.bf16.gmra.mrb[0].mxu0 %v6980
        %v7300 = vpop.f32.mrb[0].mxu0
        %v7301 = vadd.f32 0.0, %v7300
        %v7302 = vpop.f32.mrb[0].mxu0
        %v7303 = vpop.f32.mrb[0].mxu0
        %v7304 = vadd.f32 0.0, %v7303
        %v7305 = vpop.f32.mrb[0].mxu0
        %7306 = vmatprep.mubr.bf16.mxu0 0
        %7307 = vmatmul.mubr.bf16.gmra.mrb[0].mxu0 %v6983
        %v7308 = vpop.f32.mrb[0].mxu0
        %v7309 = vadd.f32 0.0, %v7308
        %v7310 = vpop.f32.mrb[0].mxu0
        %v7311 = vpop.f32.mrb[0].mxu0
        %v7312 = vadd.f32 0.0, %v7311
        %v7313 = vpop.f32.mrb[0].mxu0
        %7314 = vmatprep.mubr.bf16.mxu0 0
        %7315 = vmatmul.mubr.bf16.gmra.mrb[0].mxu0 %v6986
        %v7316 = vpop.f32.mrb[0].mxu0
        %v7317 = vadd.f32 0.0, %v7316
        %v7318 = vpop.f32.mrb[0].mxu0
        %v7319 = vpop.f32.mrb[0].mxu0
        %v7320 = vadd.f32 0.0, %v7319
        %v7321 = vpop.f32.mrb[0].mxu0
        %7322 = vmatprep.mubr.bf16.mxu0 0
        %7323 = vmatmul.mubr.bf16.gmra.mrb[0].mxu0 %v6989
        %v7324 = vpop.f32.mrb[0].mxu0
        %v7325 = vadd.f32 0.0, %v7324
        %v7326 = vpop.f32.mrb[0].mxu0
        %v7327 = vpop.f32.mrb[0].mxu0
        %v7328 = vadd.f32 0.0, %v7327
        %v7329 = vpop.f32.mrb[0].mxu0
        %7330 = vmatprep.mubr.bf16.mxu0 0
        %7331 = vmatmul.mubr.bf16.gmra.mrb[0].mxu0 %v6992
        %v7332 = vpop.f32.mrb[0].mxu0
        %v7333 = vadd.f32 0.0, %v7332
        %v7334 = vpop.f32.mrb[0].mxu0
        %v7335 = vpop.f32.mrb[0].mxu0
        %v7336 = vadd.f32 0.0, %v7335
        %v7337 = vpop.f32.mrb[0].mxu0
        %7338 = vmatprep.mubr.bf16.mxu0 0
        %7339 = vmatmul.mubr.bf16.gmra.mrb[0].mxu0 %v6995
        %v7340 = vpop.f32.mrb[0].mxu0
        %v7341 = vadd.f32 0.0, %v7340
        %v7342 = vpop.f32.mrb[0].mxu0
        %v7343 = vpop.f32.mrb[0].mxu0
        %v7344 = vadd.f32 0.0, %v7343
        %v7345 = vpop.f32.mrb[0].mxu0
        %7346 = vmatprep.mubr.bf16.mxu0 0
        %7347 = vmatmul.mubr.bf16.gmra.mrb[0].mxu0 %v6998
        %v7348 = vpop.f32.mrb[0].mxu0
        %v7349 = vadd.f32 0.0, %v7348
        %v7350 = vpop.f32.mrb[0].mxu0
        %v7351 = vpop.f32.mrb[0].mxu0
        %v7352 = vadd.f32 0.0, %v7351
        %v7353 = vpop.f32.mrb[0].mxu0
        %7354 = vmatprep.mubr.bf16.mxu0 0
        %7355 = vmatmul.mubr.bf16.gmra.mrb[0].mxu0 %v7001
        %v7356 = vpop.f32.mrb[0].mxu0
        %v7357 = vadd.f32 0.0, %v7356
        %v7358 = vpop.f32.mrb[0].mxu0
        %v7359 = vpop.f32.mrb[0].mxu0
        %v7360 = vadd.f32 0.0, %v7359
        %v7361 = vpop.f32.mrb[0].mxu0
        %7362 = vmatprep.mubr.bf16.mxu0 0
        %7363 = vmatmul.mubr.bf16.gmra.mrb[0].mxu0 %v7004
        %v7364 = vpop.f32.mrb[0].mxu0
        %v7365 = vadd.f32 0.0, %v7364
        %v7366 = vpop.f32.mrb[0].mxu0
        %v7367 = vpop.f32.mrb[0].mxu0
        %v7368 = vadd.f32 0.0, %v7367
        %v7369 = vpop.f32.mrb[0].mxu0
        %7370 = vmatprep.mubr.bf16.mxu0 0
        %7371 = vmatmul.mubr.bf16.gmra.mrb[0].mxu0 %v7007
        %v7372 = vpop.f32.mrb[0].mxu0
        %v7373 = vadd.f32 0.0, %v7372
        %v7374 = vpop.f32.mrb[0].mxu0
        %v7375 = vpop.f32.mrb[0].mxu0
        %v7376 = vadd.f32 0.0, %v7375
        %v7377 = vpop.f32.mrb[0].mxu0
        %7378 = vmatprep.mubr.bf16.mxu0 0
        %7379 = vmatmul.mubr.bf16.gmra.mrb[0].mxu0 %v7010
        %v7380 = vpop.f32.mrb[0].mxu0
        %v7381 = vadd.f32 0.0, %v7380
        %v7382 = vpop.f32.mrb[0].mxu0
        %v7383 = vpop.f32.mrb[0].mxu0
        %v7384 = vadd.f32 0.0, %v7383
        %v7385 = vpop.f32.mrb[0].mxu0
        %7386 = vmatprep.mubr.bf16.mxu0 0
        %7387 = vmatmul.mubr.bf16.gmra.mrb[0].mxu0 %v7013
        %v7388 = vpop.f32.mrb[0].mxu0
        %v7389 = vadd.f32 0.0, %v7388
        %v7390 = vpop.f32.mrb[0].mxu0
        %v7391 = vpop.f32.mrb[0].mxu0
        %v7392 = vadd.f32 0.0, %v7391
        %v7393 = vpop.f32.mrb[0].mxu0
        %7394 = vmatprep.mubr.bf16.mxu0 0
        %7395 = vmatmul.mubr.bf16.gmra.mrb[0].mxu0 %v7016
        %v7396 = vpop.f32.mrb[0].mxu0
        %v7397 = vadd.f32 0.0, %v7396
        %v7398 = vpop.f32.mrb[0].mxu0
        %v7399 = vpop.f32.mrb[0].mxu0
        %v7400 = vadd.f32 0.0, %v7399
        %v7401 = vpop.f32.mrb[0].mxu0
        %7402 = vmatprep.mubr.bf16.mxu0 0
        %7403 = vmatmul.mubr.bf16.gmra.mrb[0].mxu0 %v7019
        %v7404 = vpop.f32.mrb[0].mxu0
        %v7405 = vadd.f32 0.0, %v7404
        %v7406 = vpop.f32.mrb[0].mxu0
        %v7407 = vpop.f32.mrb[0].mxu0
        %v7408 = vadd.f32 0.0, %v7407
        %v7409 = vpop.f32.mrb[0].mxu0
        %7410 = vmatprep.mubr.bf16.mxu0 0
        %7411 = vmatmul.mubr.bf16.gmra.mrb[0].mxu0 %v7022
        %v7412 = vpop.f32.mrb[0].mxu0
        %v7413 = vadd.f32 0.0, %v7412
        %v7414 = vpop.f32.mrb[0].mxu0
        %v7415 = vpop.f32.mrb[0].mxu0
        %v7416 = vadd.f32 0.0, %v7415
        %v7417 = vpop.f32.mrb[0].mxu0
        %7418 = vmatprep.mubr.bf16.mxu0 0
        %7419 = vmatmul.mubr.bf16.gmra.mrb[0].mxu0 %v7025
        %v7420 = vpop.f32.mrb[0].mxu0
        %v7421 = vadd.f32 0.0, %v7420
        %v7422 = vpop.f32.mrb[0].mxu0
        %v7423 = vpop.f32.mrb[0].mxu0
        %v7424 = vadd.f32 0.0, %v7423
        %v7425 = vpop.f32.mrb[0].mxu0
        %7426 = vmatprep.mubr.bf16.mxu0 0
        %7427 = vmatmul.mubr.bf16.gmra.mrb[0].mxu0 %v7028
        %v7428 = vpop.f32.mrb[0].mxu0
        %v7429 = vadd.f32 0.0, %v7428
        %v7430 = vpop.f32.mrb[0].mxu0
        %v7431 = vpop.f32.mrb[0].mxu0
        %v7432 = vadd.f32 0.0, %v7431
        %v7433 = vpop.f32.mrb[0].mxu0
        %7434 = vmatprep.mubr.bf16.mxu0 0
        %7435 = vmatmul.mubr.bf16.gmra.mrb[0].mxu0 %v7031
        %v7436 = vpop.f32.mrb[0].mxu0
        %v7437 = vadd.f32 0.0, %v7436
        %v7438 = vpop.f32.mrb[0].mxu0
        %v7439 = vpop.f32.mrb[0].mxu0
        %v7440 = vadd.f32 0.0, %v7439
        %v7441 = vpop.f32.mrb[0].mxu0
        %7442 = vmatprep.mubr.bf16.mxu0 0
        %7443 = vmatmul.mubr.bf16.gmra.mrb[0].mxu0 %v7034
        %v7444 = vpop.f32.mrb[0].mxu0
        %v7445 = vadd.f32 0.0, %v7444
        %v7446 = vpop.f32.mrb[0].mxu0
        %v7447 = vpop.f32.mrb[0].mxu0
        %v7448 = vadd.f32 0.0, %v7447
        %v7449 = vpop.f32.mrb[0].mxu0
        %7450 = vmatprep.mubr.bf16.mxu0 0
        %7451 = vmatmul.mubr.bf16.gmra.mrb[0].mxu0 %v7037
        %v7452 = vpop.f32.mrb[0].mxu0
        %v7453 = vadd.f32 0.0, %v7452
        %v7454 = vpop.f32.mrb[0].mxu0
        %v7455 = vpop.f32.mrb[0].mxu0
        %v7456 = vadd.f32 0.0, %v7455
        %v7457 = vpop.f32.mrb[0].mxu0
        %7458 = vmatprep.mubr.bf16.mxu0 0
        %7459 = vmatmul.mubr.bf16.gmra.mrb[0].mxu0 %v7040
        %v7460 = vpop.f32.mrb[0].mxu0
        %v7461 = vadd.f32 0.0, %v7460
        %v7462 = vpop.f32.mrb[0].mxu0
        %v7463 = vpop.f32.mrb[0].mxu0
        %v7464 = vadd.f32 0.0, %v7463
        %v7465 = vpop.f32.mrb[0].mxu0
        %7466 = vmatprep.mubr.bf16.mxu0 0
        %7467 = vmatmul.mubr.bf16.gmra.mrb[0].mxu0 %v7043
        %v7468 = vpop.f32.mrb[0].mxu0
        %v7469 = vadd.f32 0.0, %v7468
        %v7470 = vpop.f32.mrb[0].mxu0
        %v7471 = vpop.f32.mrb[0].mxu0
        %v7472 = vadd.f32 0.0, %v7471
        %v7473 = vpop.f32.mrb[0].mxu0
        %7474 = vmatprep.mubr.bf16.mxu0 0
        %7475 = vmatmul.mubr.bf16.gmra.mrb[0].mxu0 %v7046
        %v7476 = vpop.f32.mrb[0].mxu0
        %v7477 = vadd.f32 0.0, %v7476
        %v7478 = vpop.f32.mrb[0].mxu0
        %v7479 = vpop.f32.mrb[0].mxu0
        %v7480 = vadd.f32 0.0, %v7479
        %v7481 = vpop.f32.mrb[0].mxu0
        %7482 = vmatprep.mubr.bf16.mxu0 0
        %7483 = vmatmul.mubr.bf16.gmra.mrb[0].mxu0 %v7049
        %v7484 = vpop.f32.mrb[0].mxu0
        %v7485 = vadd.f32 0.0, %v7484
        %v7486 = vpop.f32.mrb[0].mxu0
        %v7487 = vpop.f32.mrb[0].mxu0
        %v7488 = vadd.f32 0.0, %v7487
        %v7489 = vpop.f32.mrb[0].mxu0
        %7490 = vmatprep.mubr.bf16.mxu0 0
        %7491 = vmatmul.mubr.bf16.gmra.mrb[0].mxu0 %v7052
        %v7492 = vpop.f32.mrb[0].mxu0
        %v7493 = vadd.f32 0.0, %v7492
        %v7494 = vpop.f32.mrb[0].mxu0
        %v7495 = vpop.f32.mrb[0].mxu0
        %v7496 = vadd.f32 0.0, %v7495
        %v7497 = vpop.f32.mrb[0].mxu0
        %7498 = vmatprep.mubr.bf16.mxu0 0
        %7499 = vmatmul.mubr.bf16.gmra.mrb[0].mxu0 %v7055
        %v7500 = vpop.f32.mrb[0].mxu0
        %v7501 = vadd.f32 0.0, %v7500
        %v7502 = vpop.f32.mrb[0].mxu0
        %v7503 = vpop.f32.mrb[0].mxu0
        %v7504 = vadd.f32 0.0, %v7503
        %v7505 = vpop.f32.mrb[0].mxu0
        %7506 = vmatprep.mubr.bf16.mxu0 0
        %7507 = vmatmul.mubr.bf16.gmra.mrb[0].mxu0 %v7058
        %v7508 = vpop.f32.mrb[0].mxu0
        %v7509 = vadd.f32 0.0, %v7508
        %v7510 = vpop.f32.mrb[0].mxu0
        %v7511 = vpop.f32.mrb[0].mxu0
        %v7512 = vadd.f32 0.0, %v7511
        %v7513 = vpop.f32.mrb[0].mxu0
        %7514 = vmatprep.mubr.bf16.mxu0 0
        %7515 = vmatmul.mubr.bf16.gmra.mrb[0].mxu0 %v7061
        %v7516 = vpop.f32.mrb[0].mxu0
        %v7517 = vadd.f32 0.0, %v7516
        %v7518 = vpop.f32.mrb[0].mxu0
        %v7519 = vpop.f32.mrb[0].mxu0
        %v7520 = vadd.f32 0.0, %v7519
        %v7521 = vpop.f32.mrb[0].mxu0
        %7522 = vmatprep.mubr.bf16.mxu0 0
        %7523 = vmatmul.mubr.bf16.gmra.mrb[0].mxu0 %v7064
        %v7524 = vpop.f32.mrb[0].mxu0
        %v7525 = vadd.f32 0.0, %v7524
        %v7526 = vpop.f32.mrb[0].mxu0
        %v7527 = vpop.f32.mrb[0].mxu0
        %v7528 = vadd.f32 0.0, %v7527
        %v7529 = vpop.f32.mrb[0].mxu0
        %7530 = vmatprep.mubr.bf16.mxu0 0
        %7531 = vmatmul.mubr.bf16.gmra.mrb[0].mxu0 %v7067
        %v7532 = vpop.f32.mrb[0].mxu0
        %v7533 = vadd.f32 0.0, %v7532
        %v7534 = vpop.f32.mrb[0].mxu0
        %v7535 = vpop.f32.mrb[0].mxu0
        %v7536 = vadd.f32 0.0, %v7535
        %v7537 = vpop.f32.mrb[0].mxu0
        %7538 = vmatprep.mubr.bf16.mxu0 0
        %7539 = vmatmul.mubr.bf16.gmra.mrb[0].mxu0 %v7070
        %v7540 = vpop.f32.mrb[0].mxu0
        %v7541 = vadd.f32 0.0, %v7540
        %v7542 = vpop.f32.mrb[0].mxu0
        %v7543 = vpop.f32.mrb[0].mxu0
        %v7544 = vadd.f32 0.0, %v7543
        %v7545 = vpop.f32.mrb[0].mxu0
        %7546 = vmatprep.mubr.bf16.mxu0 0
        %7547 = vmatmul.mubr.bf16.gmra.mrb[0].mxu0 %v7073
        %v7548 = vpop.f32.mrb[0].mxu0
        %v7549 = vadd.f32 0.0, %v7548
        %v7550 = vpop.f32.mrb[0].mxu0
        %v7551 = vpop.f32.mrb[0].mxu0
        %v7552 = vadd.f32 0.0, %v7551
        %v7553 = vpop.f32.mrb[0].mxu0
        %7554 = vmatprep.mubr.bf16.mxu0 0
        %7555 = vmatmul.mubr.bf16.gmra.mrb[0].mxu0 %v7076
        %v7556 = vpop.f32.mrb[0].mxu0
        %v7557 = vadd.f32 0.0, %v7556
        %v7558 = vpop.f32.mrb[0].mxu0
        %v7559 = vpop.f32.mrb[0].mxu0
        %v7560 = vadd.f32 0.0, %v7559
        %v7561 = vpop.f32.mrb[0].mxu0
        %7562 = vmatprep.mubr.bf16.mxu0 0
        %7563 = vmatmul.mubr.bf16.gmra.mrb[0].mxu0 %v7079
        %v7564 = vpop.f32.mrb[0].mxu0
        %v7565 = vadd.f32 0.0, %v7564
        %v7566 = vpop.f32.mrb[0].mxu0
        %v7567 = vpop.f32.mrb[0].mxu0
        %v7568 = vadd.f32 0.0, %v7567
        %v7569 = vpop.f32.mrb[0].mxu0
        %7570 = vmatprep.mubr.bf16.mxu0 0
        %7571 = vmatmul.mubr.bf16.gmra.mrb[0].mxu0 %v7082
        %v7572 = vpop.f32.mrb[0].mxu0
        %v7573 = vadd.f32 0.0, %v7572
        %v7574 = vpop.f32.mrb[0].mxu0
        %v7575 = vpop.f32.mrb[0].mxu0
        %v7576 = vadd.f32 0.0, %v7575
        %v7577 = vpop.f32.mrb[0].mxu0
        %7578 = vmatprep.mubr.bf16.mxu0 0
        %7579 = vmatmul.mubr.bf16.gmra.mrb[0].mxu0 %v7085
        %v7580 = vpop.f32.mrb[0].mxu0
        %v7581 = vadd.f32 0.0, %v7580
        %v7582 = vpop.f32.mrb[0].mxu0
        %v7583 = vpop.f32.mrb[0].mxu0
        %v7584 = vadd.f32 0.0, %v7583
        %v7585 = vpop.f32.mrb[0].mxu0
        %7586 = vmatprep.mubr.bf16.mxu0 0
        %7587 = vmatmul.mubr.bf16.gmra.mrb[0].mxu0 %v7088
        %v7588 = vpop.f32.mrb[0].mxu0
        %v7589 = vadd.f32 0.0, %v7588
        %v7590 = vpop.f32.mrb[0].mxu0
        %v7591 = vpop.f32.mrb[0].mxu0
        %v7592 = vadd.f32 0.0, %v7591
        %v7593 = vpop.f32.mrb[0].mxu0
        %7594 = vmatprep.mubr.bf16.mxu0 0
        %7595 = vmatmul.mubr.bf16.gmra.mrb[0].mxu0 %v7091
        %v7596 = vpop.f32.mrb[0].mxu0
        %v7597 = vadd.f32 0.0, %v7596
        %v7598 = vpop.f32.mrb[0].mxu0
        %v7599 = vpop.f32.mrb[0].mxu0
        %v7600 = vadd.f32 0.0, %v7599
        %v7601 = vpop.f32.mrb[0].mxu0
        %7602 = vmatprep.mubr.bf16.mxu0 0
        %7603 = vmatmul.mubr.bf16.gmra.mrb[0].mxu0 %v7094
        %v7604 = vpop.f32.mrb[0].mxu0
        %v7605 = vadd.f32 0.0, %v7604
        %v7606 = vpop.f32.mrb[0].mxu0
        %v7607 = vpop.f32.mrb[0].mxu0
        %v7608 = vadd.f32 0.0, %v7607
        %v7609 = vpop.f32.mrb[0].mxu0
        %7610 = vmatprep.mubr.bf16.mxu0 0
        %7611 = vmatmul.mubr.bf16.gmra.mrb[0].mxu0 %v7097
        %v7612 = vpop.f32.mrb[0].mxu0
        %v7613 = vadd.f32 0.0, %v7612
        %v7614 = vpop.f32.mrb[0].mxu0
        %v7615 = vpop.f32.mrb[0].mxu0
        %v7616 = vadd.f32 0.0, %v7615
        %v7617 = vpop.f32.mrb[0].mxu0
        %7618 = vmatprep.mubr.bf16.mxu0 0
        %7619 = vmatmul.mubr.bf16.gmra.mrb[0].mxu0 %v7100
        %v7620 = vpop.f32.mrb[0].mxu0
        %v7621 = vadd.f32 0.0, %v7620
        %v7622 = vpop.f32.mrb[0].mxu0
        %v7623 = vpop.f32.mrb[0].mxu0
        %v7624 = vadd.f32 0.0, %v7623
        %v7625 = vpop.f32.mrb[0].mxu0
        %7626 = vmatprep.mubr.bf16.mxu0 0
        %7627 = vmatmul.mubr.bf16.gmra.mrb[0].mxu0 %v7103
        %v7628 = vpop.f32.mrb[0].mxu0
        %v7629 = vadd.f32 0.0, %v7628
        %v7630 = vpop.f32.mrb[0].mxu0
        %v7631 = vpop.f32.mrb[0].mxu0
        %v7632 = vadd.f32 0.0, %v7631
        %v7633 = vpop.f32.mrb[0].mxu0
        %7634 = vmatprep.mubr.bf16.mxu0 0
        %7635 = vmatmul.mubr.bf16.gmra.mrb[0].mxu0 %v7106
        %v7636 = vpop.f32.mrb[0].mxu0
        %v7637 = vadd.f32 0.0, %v7636
        %v7638 = vpop.f32.mrb[0].mxu0
        %v7639 = vpop.f32.mrb[0].mxu0
        %v7640 = vadd.f32 0.0, %v7639
        %v7641 = vpop.f32.mrb[0].mxu0
        %7642 = vmatprep.mubr.bf16.mxu0 0
        %7643 = vmatmul.mubr.bf16.gmra.mrb[0].mxu0 %v7109
        %v7644 = vpop.f32.mrb[0].mxu0
        %v7645 = vadd.f32 0.0, %v7644
        %v7646 = vpop.f32.mrb[0].mxu0
        %v7647 = vpop.f32.mrb[0].mxu0
        %v7648 = vadd.f32 0.0, %v7647
        %v7649 = vpop.f32.mrb[0].mxu0
        %7650 = vmatprep.mubr.bf16.mxu0 0
        %7651 = vmatmul.mubr.bf16.gmra.mrb[0].mxu0 %v7112
        %v7652 = vpop.f32.mrb[0].mxu0
        %v7653 = vadd.f32 0.0, %v7652
        %v7654 = vpop.f32.mrb[0].mxu0
        %v7655 = vpop.f32.mrb[0].mxu0
        %v7656 = vadd.f32 0.0, %v7655
        %v7657 = vpop.f32.mrb[0].mxu0
        %7658 = vdwg.mxu0
        %v7659 = vadd.f32 %v6697, %v7149
        %v7660 = vadd.f32 %v6698, %v7152
        %v7661 = vadd.f32 %v6699, %v7157
        %v7662 = vadd.f32 %v6700, %v7160
        %v7663 = vadd.f32 %v6701, %v7165
        %v7664 = vadd.f32 %v6702, %v7168
        %v7665 = vadd.f32 %v6703, %v7173
        %v7666 = vadd.f32 %v6704, %v7176
        %v7667 = vadd.f32 %v6705, %v7181
        %v7668 = vadd.f32 %v6706, %v7184
        %v7669 = vadd.f32 %v6707, %v7189
        %v7670 = vadd.f32 %v6708, %v7192
        %v7671 = vadd.f32 %v6709, %v7197
        %v7672 = vadd.f32 %v6710, %v7200
        %v7673 = vadd.f32 %v6711, %v7205
        %v7674 = vadd.f32 %v6712, %v7208
        %v7675 = vadd.f32 %v6713, %v7213
        %v7676 = vadd.f32 %v6714, %v7216
        %v7677 = vadd.f32 %v6715, %v7221
        %v7678 = vadd.f32 %v6716, %v7224
        %v7679 = vadd.f32 %v6717, %v7229
        %v7680 = vadd.f32 %v6718, %v7232
        %v7681 = vadd.f32 %v6719, %v7237
        %v7682 = vadd.f32 %v6720, %v7240
        %v7683 = vadd.f32 %v6721, %v7245
        %v7684 = vadd.f32 %v6722, %v7248
        %v7685 = vadd.f32 %v6723, %v7253
        %v7686 = vadd.f32 %v6724, %v7256
        %v7687 = vadd.f32 %v6725, %v7261
        %v7688 = vadd.f32 %v6726, %v7264
        %v7689 = vadd.f32 %v6727, %v7269
        %v7690 = vadd.f32 %v6728, %v7272
        %v7691 = vadd.f32 %v6729, %v7277
        %v7692 = vadd.f32 %v6730, %v7280
        %v7693 = vadd.f32 %v6731, %v7285
        %v7694 = vadd.f32 %v6732, %v7288
        %v7695 = vadd.f32 %v6733, %v7293
        %v7696 = vadd.f32 %v6734, %v7296
        %v7697 = vadd.f32 %v6735, %v7301
        %v7698 = vadd.f32 %v6736, %v7304
        %v7699 = vadd.f32 %v6737, %v7309
        %v7700 = vadd.f32 %v6738, %v7312
        %v7701 = vadd.f32 %v6739, %v7317
        %v7702 = vadd.f32 %v6740, %v7320
        %v7703 = vadd.f32 %v6741, %v7325
        %v7704 = vadd.f32 %v6742, %v7328
        %v7705 = vadd.f32 %v6743, %v7333
        %v7706 = vadd.f32 %v6744, %v7336
        %v7707 = vadd.f32 %v6745, %v7341
        %v7708 = vadd.f32 %v6746, %v7344
        %v7709 = vadd.f32 %v6747, %v7349
        %v7710 = vadd.f32 %v6748, %v7352
        %v7711 = vadd.f32 %v6749, %v7357
        %v7712 = vadd.f32 %v6750, %v7360
        %v7713 = vadd.f32 %v6751, %v7365
        %v7714 = vadd.f32 %v6752, %v7368
        %v7715 = vadd.f32 %v6753, %v7373
        %v7716 = vadd.f32 %v6754, %v7376
        %v7717 = vadd.f32 %v6755, %v7381
        %v7718 = vadd.f32 %v6756, %v7384
        %v7719 = vadd.f32 %v6757, %v7389
        %v7720 = vadd.f32 %v6758, %v7392
        %v7721 = vadd.f32 %v6759, %v7397
        %v7722 = vadd.f32 %v6760, %v7400
        %v7723 = vadd.f32 %v6761, %v7405
        %v7724 = vadd.f32 %v6762, %v7408
        %v7725 = vadd.f32 %v6763, %v7413
        %v7726 = vadd.f32 %v6764, %v7416
        %v7727 = vadd.f32 %v6765, %v7421
        %v7728 = vadd.f32 %v6766, %v7424
        %v7729 = vadd.f32 %v6767, %v7429
        %v7730 = vadd.f32 %v6768, %v7432
        %v7731 = vadd.f32 %v6769, %v7437
        %v7732 = vadd.f32 %v6770, %v7440
        %v7733 = vadd.f32 %v6771, %v7445
        %v7734 = vadd.f32 %v6772, %v7448
        %v7735 = vadd.f32 %v6773, %v7453
        %v7736 = vadd.f32 %v6774, %v7456
        %v7737 = vadd.f32 %v6775, %v7461
        %v7738 = vadd.f32 %v6776, %v7464
        %v7739 = vadd.f32 %v6777, %v7469
        %v7740 = vadd.f32 %v6778, %v7472
        %v7741 = vadd.f32 %v6779, %v7477
        %v7742 = vadd.f32 %v6780, %v7480
        %v7743 = vadd.f32 %v6781, %v7485
        %v7744 = vadd.f32 %v6782, %v7488
        %v7745 = vadd.f32 %v6783, %v7493
        %v7746 = vadd.f32 %v6784, %v7496
        %v7747 = vadd.f32 %v6785, %v7501
        %v7748 = vadd.f32 %v6786, %v7504
        %v7749 = vadd.f32 %v6787, %v7509
        %v7750 = vadd.f32 %v6788, %v7512
        %v7751 = vadd.f32 %v6789, %v7517
        %v7752 = vadd.f32 %v6790, %v7520
        %v7753 = vadd.f32 %v6791, %v7525
        %v7754 = vadd.f32 %v6792, %v7528
        %v7755 = vadd.f32 %v6793, %v7533
        %v7756 = vadd.f32 %v6794, %v7536
        %v7757 = vadd.f32 %v6795, %v7541
        %v7758 = vadd.f32 %v6796, %v7544
        %v7759 = vadd.f32 %v6797, %v7549
        %v7760 = vadd.f32 %v6798, %v7552
        %v7761 = vadd.f32 %v6799, %v7557
        %v7762 = vadd.f32 %v6800, %v7560
        %v7763 = vadd.f32 %v6801, %v7565
        %v7764 = vadd.f32 %v6802, %v7568
        %v7765 = vadd.f32 %v6803, %v7573
        %v7766 = vadd.f32 %v6804, %v7576
        %v7767 = vadd.f32 %v6805, %v7581
        %v7768 = vadd.f32 %v6806, %v7584
        %v7769 = vadd.f32 %v6807, %v7589
        %v7770 = vadd.f32 %v6808, %v7592
        %v7771 = vadd.f32 %v6809, %v7597
        %v7772 = vadd.f32 %v6810, %v7600
        %v7773 = vadd.f32 %v6811, %v7605
        %v7774 = vadd.f32 %v6812, %v7608
        %v7775 = vadd.f32 %v6813, %v7613
        %v7776 = vadd.f32 %v6814, %v7616
        %v7777 = vadd.f32 %v6815, %v7621
        %v7778 = vadd.f32 %v6816, %v7624
        %v7779 = vadd.f32 %v6817, %v7629
        %v7780 = vadd.f32 %v6818, %v7632
        %v7781 = vadd.f32 %v6819, %v7637
        %v7782 = vadd.f32 %v6820, %v7640
        %v7783 = vadd.f32 %v6821, %v7645
        %v7784 = vadd.f32 %v6822, %v7648
        %v7785 = vadd.f32 %v6823, %v7653
        %v7786 = vadd.f32 %v6824, %v7656
        %s7787 = scalar_lea.vmem [#allocation2], 1104
        %v7788 = vld [vmem:[%s7787] sm:$0xff]
        %v7789 = vld [vmem:[%s7787 + $0x8] sm:$0xff]
        %v7790 = vld [vmem:[%s7787 + $0x10] sm:$0xff]
        %v7791 = vld [vmem:[%s7787 + $0x18] sm:$0xff]
        %v7792 = vld [vmem:[%s7787 + $0x20] sm:$0xff]
        %v7793 = vld [vmem:[%s7787 + $0x28] sm:$0xff]
        %v7794 = vld [vmem:[%s7787 + $0x30] sm:$0xff]
        %v7795 = vld [vmem:[%s7787 + $0x38] sm:$0xff]
        %v7796 = vld [vmem:[%s7787 + $0x40] sm:$0xff]
        %v7797 = vld [vmem:[%s7787 + $0x48] sm:$0xff]
        %v7798 = vld [vmem:[%s7787 + $0x50] sm:$0xff]
        %v7799 = vld [vmem:[%s7787 + $0x58] sm:$0xff]
        %v7800 = vld [vmem:[%s7787 + $0x60] sm:$0xff]
        %v7801 = vld [vmem:[%s7787 + $0x68] sm:$0xff]
        %v7802 = vld [vmem:[%s7787 + $0x70] sm:$0xff]
        %v7803 = vld [vmem:[%s7787 + $0x78] sm:$0xff]
        %v7804 = vld [vmem:[%s7787 + $0x80] sm:$0xff]
        %v7805 = vld [vmem:[%s7787 + $0x88] sm:$0xff]
        %v7806 = vld [vmem:[%s7787 + $0x90] sm:$0xff]
        %v7807 = vld [vmem:[%s7787 + $0x98] sm:$0xff]
        %v7808 = vld [vmem:[%s7787 + $0xa0] sm:$0xff]
        %v7809 = vld [vmem:[%s7787 + $0xa8] sm:$0xff]
        %v7810 = vld [vmem:[%s7787 + $0xb0] sm:$0xff]
        %v7811 = vld [vmem:[%s7787 + $0xb8] sm:$0xff]
        %v7812 = vld [vmem:[%s7787 + $0xc0] sm:$0xff]
        %v7813 = vld [vmem:[%s7787 + $0xc8] sm:$0xff]
        %v7814 = vld [vmem:[%s7787 + $0xd0] sm:$0xff]
        %v7815 = vld [vmem:[%s7787 + $0xd8] sm:$0xff]
        %v7816 = vld [vmem:[%s7787 + $0xe0] sm:$0xff]
        %v7817 = vld [vmem:[%s7787 + $0xe8] sm:$0xff]
        %v7818 = vld [vmem:[%s7787 + $0xf0] sm:$0xff]
        %v7819 = vld [vmem:[%s7787 + $0xf8] sm:$0xff]
        %v7820 = vld [vmem:[%s7787 + $0x100] sm:$0xff]
        %v7821 = vld [vmem:[%s7787 + $0x108] sm:$0xff]
        %v7822 = vld [vmem:[%s7787 + $0x110] sm:$0xff]
        %v7823 = vld [vmem:[%s7787 + $0x118] sm:$0xff]
        %v7824 = vld [vmem:[%s7787 + $0x120] sm:$0xff]
        %v7825 = vld [vmem:[%s7787 + $0x128] sm:$0xff]
        %v7826 = vld [vmem:[%s7787 + $0x130] sm:$0xff]
        %v7827 = vld [vmem:[%s7787 + $0x138] sm:$0xff]
        %v7828 = vld [vmem:[%s7787 + $0x140] sm:$0xff]
        %v7829 = vld [vmem:[%s7787 + $0x148] sm:$0xff]
        %v7830 = vld [vmem:[%s7787 + $0x150] sm:$0xff]
        %v7831 = vld [vmem:[%s7787 + $0x158] sm:$0xff]
        %v7832 = vld [vmem:[%s7787 + $0x160] sm:$0xff]
        %v7833 = vld [vmem:[%s7787 + $0x168] sm:$0xff]
        %v7834 = vld [vmem:[%s7787 + $0x170] sm:$0xff]
        %v7835 = vld [vmem:[%s7787 + $0x178] sm:$0xff]
        %v7836 = vld [vmem:[%s7787 + $0x180] sm:$0xff]
        %v7837 = vld [vmem:[%s7787 + $0x188] sm:$0xff]
        %v7838 = vld [vmem:[%s7787 + $0x190] sm:$0xff]
        %v7839 = vld [vmem:[%s7787 + $0x198] sm:$0xff]
        %v7840 = vld [vmem:[%s7787 + $0x1a0] sm:$0xff]
        %v7841 = vld [vmem:[%s7787 + $0x1a8] sm:$0xff]
        %v7842 = vld [vmem:[%s7787 + $0x1b0] sm:$0xff]
        %v7843 = vld [vmem:[%s7787 + $0x1b8] sm:$0xff]
        %v7844 = vld [vmem:[%s7787 + $0x1c0] sm:$0xff]
        %v7845 = vld [vmem:[%s7787 + $0x1c8] sm:$0xff]
        %v7846 = vld [vmem:[%s7787 + $0x1d0] sm:$0xff]
        %v7847 = vld [vmem:[%s7787 + $0x1d8] sm:$0xff]
        %v7848 = vld [vmem:[%s7787 + $0x1e0] sm:$0xff]
        %v7849 = vld [vmem:[%s7787 + $0x1e8] sm:$0xff]
        %v7850 = vld [vmem:[%s7787 + $0x1f0] sm:$0xff]
        %v7851 = vld [vmem:[%s7787 + $0x1f8] sm:$0xff]
        %v7852 = vld [vmem:[%s264 + $0xa0] sm:$0xf]
        %v7853 = vld [vmem:[%s264 + $0xa4] sm:$0xf]
        %v7854 = vld [vmem:[%s264 + $0xa8] sm:$0xf]
        %v7855 = vld [vmem:[%s264 + $0xac] sm:$0xf]
        %v7856 = vld [vmem:[%s264 + $0xb0] sm:$0xf]
        %v7857 = vld [vmem:[%s264 + $0xb4] sm:$0xf]
        %v7858 = vld [vmem:[%s264 + $0xb8] sm:$0xf]
        %v7859 = vld [vmem:[%s264 + $0xbc] sm:$0xf]
        %v7868 = vunpack.c.l.b16 %v7852
        %v7869 = vunpack.c.l.b16 %v7853
        %v7870 = vunpack.c.l.b16 %v7854
        %v7871 = vunpack.c.l.b16 %v7855
        %v7872 = vunpack.c.l.b16 %v7856
        %v7873 = vunpack.c.l.b16 %v7857
        %v7874 = vunpack.c.l.b16 %v7858
        %v7875 = vunpack.c.l.b16 %v7859
        %v7876 = vpack.c.b16 %v7869, %v7868
        %v7877 = vpack.c.b16 %v7871, %v7870
        %v7878 = vpack.c.b16 %v7873, %v7872
        %v7879 = vpack.c.b16 %v7875, %v7874
        %v7885 = vsel %vm817, %v7788, 0
        %v7888 = vsel %vm817, %v7789, 0
        %v7891 = vsel %vm817, %v7790, 0
        %v7894 = vsel %vm817, %v7791, 0
        %v7897 = vsel %vm817, %v7792, 0
        %v7900 = vsel %vm817, %v7793, 0
        %v7903 = vsel %vm817, %v7794, 0
        %v7906 = vsel %vm817, %v7795, 0
        %v7909 = vsel %vm817, %v7796, 0
        %v7912 = vsel %vm817, %v7797, 0
        %v7915 = vsel %vm817, %v7798, 0
        %v7918 = vsel %vm817, %v7799, 0
        %v7921 = vsel %vm817, %v7800, 0
        %v7924 = vsel %vm817, %v7801, 0
        %v7927 = vsel %vm817, %v7802, 0
        %v7930 = vsel %vm817, %v7803, 0
        %v7933 = vsel %vm817, %v7804, 0
        %v7936 = vsel %vm817, %v7805, 0
        %v7939 = vsel %vm817, %v7806, 0
        %v7942 = vsel %vm817, %v7807, 0
        %v7945 = vsel %vm817, %v7808, 0
        %v7948 = vsel %vm817, %v7809, 0
        %v7951 = vsel %vm817, %v7810, 0
        %v7954 = vsel %vm817, %v7811, 0
        %v7957 = vsel %vm817, %v7812, 0
        %v7960 = vsel %vm817, %v7813, 0
        %v7963 = vsel %vm817, %v7814, 0
        %v7966 = vsel %vm817, %v7815, 0
        %v7969 = vsel %vm817, %v7816, 0
        %v7972 = vsel %vm817, %v7817, 0
        %v7975 = vsel %vm817, %v7818, 0
        %v7978 = vsel %vm817, %v7819, 0
        %v7981 = vsel %vm817, %v7820, 0
        %v7984 = vsel %vm817, %v7821, 0
        %v7987 = vsel %vm817, %v7822, 0
        %v7990 = vsel %vm817, %v7823, 0
        %v7993 = vsel %vm817, %v7824, 0
        %v7996 = vsel %vm817, %v7825, 0
        %v7999 = vsel %vm817, %v7826, 0
        %v8002 = vsel %vm817, %v7827, 0
        %v8005 = vsel %vm817, %v7828, 0
        %v8008 = vsel %vm817, %v7829, 0
        %v8011 = vsel %vm817, %v7830, 0
        %v8014 = vsel %vm817, %v7831, 0
        %v8017 = vsel %vm817, %v7832, 0
        %v8020 = vsel %vm817, %v7833, 0
        %v8023 = vsel %vm817, %v7834, 0
        %v8026 = vsel %vm817, %v7835, 0
        %v8029 = vsel %vm817, %v7836, 0
        %v8032 = vsel %vm817, %v7837, 0
        %v8035 = vsel %vm817, %v7838, 0
        %v8038 = vsel %vm817, %v7839, 0
        %v8041 = vsel %vm817, %v7840, 0
        %v8044 = vsel %vm817, %v7841, 0
        %v8047 = vsel %vm817, %v7842, 0
        %v8050 = vsel %vm817, %v7843, 0
        %v8053 = vsel %vm817, %v7844, 0
        %v8056 = vsel %vm817, %v7845, 0
        %v8059 = vsel %vm817, %v7846, 0
        %v8062 = vsel %vm817, %v7847, 0
        %v8065 = vsel %vm817, %v7848, 0
        %v8068 = vsel %vm817, %v7849, 0
        %v8071 = vsel %vm817, %v7850, 0
        %v8074 = vsel %vm817, %v7851, 0
        %8076 = vmatprep.subr.bf16.mxu0 0
        %8077 = vmatpush1.bf16.msra.mxu0 %v7876
        %8078 = vmatprep.subr.bf16.mxu0 0
        %8079 = vmatpush1.bf16.msra.mxu0 %v7877
        %8080 = vmatprep.subr.bf16.mxu0 0
        %8081 = vmatpush1.bf16.msra.mxu0 %v7878
        %8082 = vmatprep.subr.bf16.mxu0 0
        %8083 = vmatpush1.bf16.msra.mxu0 %v7879
        %8084 = vmatprep.subr.bf16.mxu0 0
        %8085 = vmatpush1.bf16.msra.mxu0 0
        %8086 = vmatprep.subr.bf16.mxu0 0
        %8087 = vmatpush1.bf16.msra.mxu0 0
        %8088 = vmatprep.subr.bf16.mxu0 0
        %8089 = vmatpush1.bf16.msra.mxu0 0
        %8090 = vmatprep.subr.bf16.mxu0 0
        %8091 = vmatpush1.bf16.msra.mxu0 0
        %8092 = vmatprep.subr.bf16.mxu0 0
        %8093 = vmatpush1.bf16.msra.mxu0 0
        %8094 = vmatprep.subr.bf16.mxu0 0
        %8095 = vmatpush1.bf16.msra.mxu0 0
        %8096 = vmatprep.subr.bf16.mxu0 0
        %8097 = vmatpush1.bf16.msra.mxu0 0
        %8098 = vmatprep.subr.bf16.mxu0 0
        %8099 = vmatpush1.bf16.msra.mxu0 0
        %8100 = vmatprep.subr.bf16.mxu0 0
        %8101 = vmatpush1.bf16.msra.mxu0 0
        %8102 = vmatprep.subr.bf16.mxu0 0
        %8103 = vmatpush1.bf16.msra.mxu0 0
        %8104 = vmatprep.subr.bf16.mxu0 0
        %8105 = vmatpush1.bf16.msra.mxu0 0
        %8106 = vmatprep.subr.bf16.mxu0 0
        %8107 = vmatpush1.bf16.msra.mxu0 0
        %8108 = vmatprep.mubr.bf16.mxu0 0
        %8109 = vmatmul.mubr.bf16.gmra.mrb[0].mxu0 %v7885
        %v8110 = vpop.f32.mrb[0].mxu0
        %v8111 = vadd.f32 0.0, %v8110
        %v8112 = vpop.f32.mrb[0].mxu0
        %v8113 = vpop.f32.mrb[0].mxu0
        %v8114 = vadd.f32 0.0, %v8113
        %v8115 = vpop.f32.mrb[0].mxu0
        %8116 = vmatprep.mubr.bf16.mxu0 0
        %8117 = vmatmul.mubr.bf16.gmra.mrb[0].mxu0 %v7888
        %v8118 = vpop.f32.mrb[0].mxu0
        %v8119 = vadd.f32 0.0, %v8118
        %v8120 = vpop.f32.mrb[0].mxu0
        %v8121 = vpop.f32.mrb[0].mxu0
        %v8122 = vadd.f32 0.0, %v8121
        %v8123 = vpop.f32.mrb[0].mxu0
        %8124 = vmatprep.mubr.bf16.mxu0 0
        %8125 = vmatmul.mubr.bf16.gmra.mrb[0].mxu0 %v7891
        %v8126 = vpop.f32.mrb[0].mxu0
        %v8127 = vadd.f32 0.0, %v8126
        %v8128 = vpop.f32.mrb[0].mxu0
        %v8129 = vpop.f32.mrb[0].mxu0
        %v8130 = vadd.f32 0.0, %v8129
        %v8131 = vpop.f32.mrb[0].mxu0
        %8132 = vmatprep.mubr.bf16.mxu0 0
        %8133 = vmatmul.mubr.bf16.gmra.mrb[0].mxu0 %v7894
        %v8134 = vpop.f32.mrb[0].mxu0
        %v8135 = vadd.f32 0.0, %v8134
        %v8136 = vpop.f32.mrb[0].mxu0
        %v8137 = vpop.f32.mrb[0].mxu0
        %v8138 = vadd.f32 0.0, %v8137
        %v8139 = vpop.f32.mrb[0].mxu0
        %8140 = vmatprep.mubr.bf16.mxu0 0
        %8141 = vmatmul.mubr.bf16.gmra.mrb[0].mxu0 %v7897
        %v8142 = vpop.f32.mrb[0].mxu0
        %v8143 = vadd.f32 0.0, %v8142
        %v8144 = vpop.f32.mrb[0].mxu0
        %v8145 = vpop.f32.mrb[0].mxu0
        %v8146 = vadd.f32 0.0, %v8145
        %v8147 = vpop.f32.mrb[0].mxu0
        %8148 = vmatprep.mubr.bf16.mxu0 0
        %8149 = vmatmul.mubr.bf16.gmra.mrb[0].mxu0 %v7900
        %v8150 = vpop.f32.mrb[0].mxu0
        %v8151 = vadd.f32 0.0, %v8150
        %v8152 = vpop.f32.mrb[0].mxu0
        %v8153 = vpop.f32.mrb[0].mxu0
        %v8154 = vadd.f32 0.0, %v8153
        %v8155 = vpop.f32.mrb[0].mxu0
        %8156 = vmatprep.mubr.bf16.mxu0 0
        %8157 = vmatmul.mubr.bf16.gmra.mrb[0].mxu0 %v7903
        %v8158 = vpop.f32.mrb[0].mxu0
        %v8159 = vadd.f32 0.0, %v8158
        %v8160 = vpop.f32.mrb[0].mxu0
        %v8161 = vpop.f32.mrb[0].mxu0
        %v8162 = vadd.f32 0.0, %v8161
        %v8163 = vpop.f32.mrb[0].mxu0
        %8164 = vmatprep.mubr.bf16.mxu0 0
        %8165 = vmatmul.mubr.bf16.gmra.mrb[0].mxu0 %v7906
        %v8166 = vpop.f32.mrb[0].mxu0
        %v8167 = vadd.f32 0.0, %v8166
        %v8168 = vpop.f32.mrb[0].mxu0
        %v8169 = vpop.f32.mrb[0].mxu0
        %v8170 = vadd.f32 0.0, %v8169
        %v8171 = vpop.f32.mrb[0].mxu0
        %8172 = vmatprep.mubr.bf16.mxu0 0
        %8173 = vmatmul.mubr.bf16.gmra.mrb[0].mxu0 %v7909
        %v8174 = vpop.f32.mrb[0].mxu0
        %v8175 = vadd.f32 0.0, %v8174
        %v8176 = vpop.f32.mrb[0].mxu0
        %v8177 = vpop.f32.mrb[0].mxu0
        %v8178 = vadd.f32 0.0, %v8177
        %v8179 = vpop.f32.mrb[0].mxu0
        %8180 = vmatprep.mubr.bf16.mxu0 0
        %8181 = vmatmul.mubr.bf16.gmra.mrb[0].mxu0 %v7912
        %v8182 = vpop.f32.mrb[0].mxu0
        %v8183 = vadd.f32 0.0, %v8182
        %v8184 = vpop.f32.mrb[0].mxu0
        %v8185 = vpop.f32.mrb[0].mxu0
        %v8186 = vadd.f32 0.0, %v8185
        %v8187 = vpop.f32.mrb[0].mxu0
        %8188 = vmatprep.mubr.bf16.mxu0 0
        %8189 = vmatmul.mubr.bf16.gmra.mrb[0].mxu0 %v7915
        %v8190 = vpop.f32.mrb[0].mxu0
        %v8191 = vadd.f32 0.0, %v8190
        %v8192 = vpop.f32.mrb[0].mxu0
        %v8193 = vpop.f32.mrb[0].mxu0
        %v8194 = vadd.f32 0.0, %v8193
        %v8195 = vpop.f32.mrb[0].mxu0
        %8196 = vmatprep.mubr.bf16.mxu0 0
        %8197 = vmatmul.mubr.bf16.gmra.mrb[0].mxu0 %v7918
        %v8198 = vpop.f32.mrb[0].mxu0
        %v8199 = vadd.f32 0.0, %v8198
        %v8200 = vpop.f32.mrb[0].mxu0
        %v8201 = vpop.f32.mrb[0].mxu0
        %v8202 = vadd.f32 0.0, %v8201
        %v8203 = vpop.f32.mrb[0].mxu0
        %8204 = vmatprep.mubr.bf16.mxu0 0
        %8205 = vmatmul.mubr.bf16.gmra.mrb[0].mxu0 %v7921
        %v8206 = vpop.f32.mrb[0].mxu0
        %v8207 = vadd.f32 0.0, %v8206
        %v8208 = vpop.f32.mrb[0].mxu0
        %v8209 = vpop.f32.mrb[0].mxu0
        %v8210 = vadd.f32 0.0, %v8209
        %v8211 = vpop.f32.mrb[0].mxu0
        %8212 = vmatprep.mubr.bf16.mxu0 0
        %8213 = vmatmul.mubr.bf16.gmra.mrb[0].mxu0 %v7924
        %v8214 = vpop.f32.mrb[0].mxu0
        %v8215 = vadd.f32 0.0, %v8214
        %v8216 = vpop.f32.mrb[0].mxu0
        %v8217 = vpop.f32.mrb[0].mxu0
        %v8218 = vadd.f32 0.0, %v8217
        %v8219 = vpop.f32.mrb[0].mxu0
        %8220 = vmatprep.mubr.bf16.mxu0 0
        %8221 = vmatmul.mubr.bf16.gmra.mrb[0].mxu0 %v7927
        %v8222 = vpop.f32.mrb[0].mxu0
        %v8223 = vadd.f32 0.0, %v8222
        %v8224 = vpop.f32.mrb[0].mxu0
        %v8225 = vpop.f32.mrb[0].mxu0
        %v8226 = vadd.f32 0.0, %v8225
        %v8227 = vpop.f32.mrb[0].mxu0
        %8228 = vmatprep.mubr.bf16.mxu0 0
        %8229 = vmatmul.mubr.bf16.gmra.mrb[0].mxu0 %v7930
        %v8230 = vpop.f32.mrb[0].mxu0
        %v8231 = vadd.f32 0.0, %v8230
        %v8232 = vpop.f32.mrb[0].mxu0
        %v8233 = vpop.f32.mrb[0].mxu0
        %v8234 = vadd.f32 0.0, %v8233
        %v8235 = vpop.f32.mrb[0].mxu0
        %8236 = vmatprep.mubr.bf16.mxu0 0
        %8237 = vmatmul.mubr.bf16.gmra.mrb[0].mxu0 %v7933
        %v8238 = vpop.f32.mrb[0].mxu0
        %v8239 = vadd.f32 0.0, %v8238
        %v8240 = vpop.f32.mrb[0].mxu0
        %v8241 = vpop.f32.mrb[0].mxu0
        %v8242 = vadd.f32 0.0, %v8241
        %v8243 = vpop.f32.mrb[0].mxu0
        %8244 = vmatprep.mubr.bf16.mxu0 0
        %8245 = vmatmul.mubr.bf16.gmra.mrb[0].mxu0 %v7936
        %v8246 = vpop.f32.mrb[0].mxu0
        %v8247 = vadd.f32 0.0, %v8246
        %v8248 = vpop.f32.mrb[0].mxu0
        %v8249 = vpop.f32.mrb[0].mxu0
        %v8250 = vadd.f32 0.0, %v8249
        %v8251 = vpop.f32.mrb[0].mxu0
        %8252 = vmatprep.mubr.bf16.mxu0 0
        %8253 = vmatmul.mubr.bf16.gmra.mrb[0].mxu0 %v7939
        %v8254 = vpop.f32.mrb[0].mxu0
        %v8255 = vadd.f32 0.0, %v8254
        %v8256 = vpop.f32.mrb[0].mxu0
        %v8257 = vpop.f32.mrb[0].mxu0
        %v8258 = vadd.f32 0.0, %v8257
        %v8259 = vpop.f32.mrb[0].mxu0
        %8260 = vmatprep.mubr.bf16.mxu0 0
        %8261 = vmatmul.mubr.bf16.gmra.mrb[0].mxu0 %v7942
        %v8262 = vpop.f32.mrb[0].mxu0
        %v8263 = vadd.f32 0.0, %v8262
        %v8264 = vpop.f32.mrb[0].mxu0
        %v8265 = vpop.f32.mrb[0].mxu0
        %v8266 = vadd.f32 0.0, %v8265
        %v8267 = vpop.f32.mrb[0].mxu0
        %8268 = vmatprep.mubr.bf16.mxu0 0
        %8269 = vmatmul.mubr.bf16.gmra.mrb[0].mxu0 %v7945
        %v8270 = vpop.f32.mrb[0].mxu0
        %v8271 = vadd.f32 0.0, %v8270
        %v8272 = vpop.f32.mrb[0].mxu0
        %v8273 = vpop.f32.mrb[0].mxu0
        %v8274 = vadd.f32 0.0, %v8273
        %v8275 = vpop.f32.mrb[0].mxu0
        %8276 = vmatprep.mubr.bf16.mxu0 0
        %8277 = vmatmul.mubr.bf16.gmra.mrb[0].mxu0 %v7948
        %v8278 = vpop.f32.mrb[0].mxu0
        %v8279 = vadd.f32 0.0, %v8278
        %v8280 = vpop.f32.mrb[0].mxu0
        %v8281 = vpop.f32.mrb[0].mxu0
        %v8282 = vadd.f32 0.0, %v8281
        %v8283 = vpop.f32.mrb[0].mxu0
        %8284 = vmatprep.mubr.bf16.mxu0 0
        %8285 = vmatmul.mubr.bf16.gmra.mrb[0].mxu0 %v7951
        %v8286 = vpop.f32.mrb[0].mxu0
        %v8287 = vadd.f32 0.0, %v8286
        %v8288 = vpop.f32.mrb[0].mxu0
        %v8289 = vpop.f32.mrb[0].mxu0
        %v8290 = vadd.f32 0.0, %v8289
        %v8291 = vpop.f32.mrb[0].mxu0
        %8292 = vmatprep.mubr.bf16.mxu0 0
        %8293 = vmatmul.mubr.bf16.gmra.mrb[0].mxu0 %v7954
        %v8294 = vpop.f32.mrb[0].mxu0
        %v8295 = vadd.f32 0.0, %v8294
        %v8296 = vpop.f32.mrb[0].mxu0
        %v8297 = vpop.f32.mrb[0].mxu0
        %v8298 = vadd.f32 0.0, %v8297
        %v8299 = vpop.f32.mrb[0].mxu0
        %8300 = vmatprep.mubr.bf16.mxu0 0
        %8301 = vmatmul.mubr.bf16.gmra.mrb[0].mxu0 %v7957
        %v8302 = vpop.f32.mrb[0].mxu0
        %v8303 = vadd.f32 0.0, %v8302
        %v8304 = vpop.f32.mrb[0].mxu0
        %v8305 = vpop.f32.mrb[0].mxu0
        %v8306 = vadd.f32 0.0, %v8305
        %v8307 = vpop.f32.mrb[0].mxu0
        %8308 = vmatprep.mubr.bf16.mxu0 0
        %8309 = vmatmul.mubr.bf16.gmra.mrb[0].mxu0 %v7960
        %v8310 = vpop.f32.mrb[0].mxu0
        %v8311 = vadd.f32 0.0, %v8310
        %v8312 = vpop.f32.mrb[0].mxu0
        %v8313 = vpop.f32.mrb[0].mxu0
        %v8314 = vadd.f32 0.0, %v8313
        %v8315 = vpop.f32.mrb[0].mxu0
        %8316 = vmatprep.mubr.bf16.mxu0 0
        %8317 = vmatmul.mubr.bf16.gmra.mrb[0].mxu0 %v7963
        %v8318 = vpop.f32.mrb[0].mxu0
        %v8319 = vadd.f32 0.0, %v8318
        %v8320 = vpop.f32.mrb[0].mxu0
        %v8321 = vpop.f32.mrb[0].mxu0
        %v8322 = vadd.f32 0.0, %v8321
        %v8323 = vpop.f32.mrb[0].mxu0
        %8324 = vmatprep.mubr.bf16.mxu0 0
        %8325 = vmatmul.mubr.bf16.gmra.mrb[0].mxu0 %v7966
        %v8326 = vpop.f32.mrb[0].mxu0
        %v8327 = vadd.f32 0.0, %v8326
        %v8328 = vpop.f32.mrb[0].mxu0
        %v8329 = vpop.f32.mrb[0].mxu0
        %v8330 = vadd.f32 0.0, %v8329
        %v8331 = vpop.f32.mrb[0].mxu0
        %8332 = vmatprep.mubr.bf16.mxu0 0
        %8333 = vmatmul.mubr.bf16.gmra.mrb[0].mxu0 %v7969
        %v8334 = vpop.f32.mrb[0].mxu0
        %v8335 = vadd.f32 0.0, %v8334
        %v8336 = vpop.f32.mrb[0].mxu0
        %v8337 = vpop.f32.mrb[0].mxu0
        %v8338 = vadd.f32 0.0, %v8337
        %v8339 = vpop.f32.mrb[0].mxu0
        %8340 = vmatprep.mubr.bf16.mxu0 0
        %8341 = vmatmul.mubr.bf16.gmra.mrb[0].mxu0 %v7972
        %v8342 = vpop.f32.mrb[0].mxu0
        %v8343 = vadd.f32 0.0, %v8342
        %v8344 = vpop.f32.mrb[0].mxu0
        %v8345 = vpop.f32.mrb[0].mxu0
        %v8346 = vadd.f32 0.0, %v8345
        %v8347 = vpop.f32.mrb[0].mxu0
        %8348 = vmatprep.mubr.bf16.mxu0 0
        %8349 = vmatmul.mubr.bf16.gmra.mrb[0].mxu0 %v7975
        %v8350 = vpop.f32.mrb[0].mxu0
        %v8351 = vadd.f32 0.0, %v8350
        %v8352 = vpop.f32.mrb[0].mxu0
        %v8353 = vpop.f32.mrb[0].mxu0
        %v8354 = vadd.f32 0.0, %v8353
        %v8355 = vpop.f32.mrb[0].mxu0
        %8356 = vmatprep.mubr.bf16.mxu0 0
        %8357 = vmatmul.mubr.bf16.gmra.mrb[0].mxu0 %v7978
        %v8358 = vpop.f32.mrb[0].mxu0
        %v8359 = vadd.f32 0.0, %v8358
        %v8360 = vpop.f32.mrb[0].mxu0
        %v8361 = vpop.f32.mrb[0].mxu0
        %v8362 = vadd.f32 0.0, %v8361
        %v8363 = vpop.f32.mrb[0].mxu0
        %8364 = vmatprep.mubr.bf16.mxu0 0
        %8365 = vmatmul.mubr.bf16.gmra.mrb[0].mxu0 %v7981
        %v8366 = vpop.f32.mrb[0].mxu0
        %v8367 = vadd.f32 0.0, %v8366
        %v8368 = vpop.f32.mrb[0].mxu0
        %v8369 = vpop.f32.mrb[0].mxu0
        %v8370 = vadd.f32 0.0, %v8369
        %v8371 = vpop.f32.mrb[0].mxu0
        %8372 = vmatprep.mubr.bf16.mxu0 0
        %8373 = vmatmul.mubr.bf16.gmra.mrb[0].mxu0 %v7984
        %v8374 = vpop.f32.mrb[0].mxu0
        %v8375 = vadd.f32 0.0, %v8374
        %v8376 = vpop.f32.mrb[0].mxu0
        %v8377 = vpop.f32.mrb[0].mxu0
        %v8378 = vadd.f32 0.0, %v8377
        %v8379 = vpop.f32.mrb[0].mxu0
        %8380 = vmatprep.mubr.bf16.mxu0 0
        %8381 = vmatmul.mubr.bf16.gmra.mrb[0].mxu0 %v7987
        %v8382 = vpop.f32.mrb[0].mxu0
        %v8383 = vadd.f32 0.0, %v8382
        %v8384 = vpop.f32.mrb[0].mxu0
        %v8385 = vpop.f32.mrb[0].mxu0
        %v8386 = vadd.f32 0.0, %v8385
        %v8387 = vpop.f32.mrb[0].mxu0
        %8388 = vmatprep.mubr.bf16.mxu0 0
        %8389 = vmatmul.mubr.bf16.gmra.mrb[0].mxu0 %v7990
        %v8390 = vpop.f32.mrb[0].mxu0
        %v8391 = vadd.f32 0.0, %v8390
        %v8392 = vpop.f32.mrb[0].mxu0
        %v8393 = vpop.f32.mrb[0].mxu0
        %v8394 = vadd.f32 0.0, %v8393
        %v8395 = vpop.f32.mrb[0].mxu0
        %8396 = vmatprep.mubr.bf16.mxu0 0
        %8397 = vmatmul.mubr.bf16.gmra.mrb[0].mxu0 %v7993
        %v8398 = vpop.f32.mrb[0].mxu0
        %v8399 = vadd.f32 0.0, %v8398
        %v8400 = vpop.f32.mrb[0].mxu0
        %v8401 = vpop.f32.mrb[0].mxu0
        %v8402 = vadd.f32 0.0, %v8401
        %v8403 = vpop.f32.mrb[0].mxu0
        %8404 = vmatprep.mubr.bf16.mxu0 0
        %8405 = vmatmul.mubr.bf16.gmra.mrb[0].mxu0 %v7996
        %v8406 = vpop.f32.mrb[0].mxu0
        %v8407 = vadd.f32 0.0, %v8406
        %v8408 = vpop.f32.mrb[0].mxu0
        %v8409 = vpop.f32.mrb[0].mxu0
        %v8410 = vadd.f32 0.0, %v8409
        %v8411 = vpop.f32.mrb[0].mxu0
        %8412 = vmatprep.mubr.bf16.mxu0 0
        %8413 = vmatmul.mubr.bf16.gmra.mrb[0].mxu0 %v7999
        %v8414 = vpop.f32.mrb[0].mxu0
        %v8415 = vadd.f32 0.0, %v8414
        %v8416 = vpop.f32.mrb[0].mxu0
        %v8417 = vpop.f32.mrb[0].mxu0
        %v8418 = vadd.f32 0.0, %v8417
        %v8419 = vpop.f32.mrb[0].mxu0
        %8420 = vmatprep.mubr.bf16.mxu0 0
        %8421 = vmatmul.mubr.bf16.gmra.mrb[0].mxu0 %v8002
        %v8422 = vpop.f32.mrb[0].mxu0
        %v8423 = vadd.f32 0.0, %v8422
        %v8424 = vpop.f32.mrb[0].mxu0
        %v8425 = vpop.f32.mrb[0].mxu0
        %v8426 = vadd.f32 0.0, %v8425
        %v8427 = vpop.f32.mrb[0].mxu0
        %8428 = vmatprep.mubr.bf16.mxu0 0
        %8429 = vmatmul.mubr.bf16.gmra.mrb[0].mxu0 %v8005
        %v8430 = vpop.f32.mrb[0].mxu0
        %v8431 = vadd.f32 0.0, %v8430
        %v8432 = vpop.f32.mrb[0].mxu0
        %v8433 = vpop.f32.mrb[0].mxu0
        %v8434 = vadd.f32 0.0, %v8433
        %v8435 = vpop.f32.mrb[0].mxu0
        %8436 = vmatprep.mubr.bf16.mxu0 0
        %8437 = vmatmul.mubr.bf16.gmra.mrb[0].mxu0 %v8008
        %v8438 = vpop.f32.mrb[0].mxu0
        %v8439 = vadd.f32 0.0, %v8438
        %v8440 = vpop.f32.mrb[0].mxu0
        %v8441 = vpop.f32.mrb[0].mxu0
        %v8442 = vadd.f32 0.0, %v8441
        %v8443 = vpop.f32.mrb[0].mxu0
        %8444 = vmatprep.mubr.bf16.mxu0 0
        %8445 = vmatmul.mubr.bf16.gmra.mrb[0].mxu0 %v8011
        %v8446 = vpop.f32.mrb[0].mxu0
        %v8447 = vadd.f32 0.0, %v8446
        %v8448 = vpop.f32.mrb[0].mxu0
        %v8449 = vpop.f32.mrb[0].mxu0
        %v8450 = vadd.f32 0.0, %v8449
        %v8451 = vpop.f32.mrb[0].mxu0
        %8452 = vmatprep.mubr.bf16.mxu0 0
        %8453 = vmatmul.mubr.bf16.gmra.mrb[0].mxu0 %v8014
        %v8454 = vpop.f32.mrb[0].mxu0
        %v8455 = vadd.f32 0.0, %v8454
        %v8456 = vpop.f32.mrb[0].mxu0
        %v8457 = vpop.f32.mrb[0].mxu0
        %v8458 = vadd.f32 0.0, %v8457
        %v8459 = vpop.f32.mrb[0].mxu0
        %8460 = vmatprep.mubr.bf16.mxu0 0
        %8461 = vmatmul.mubr.bf16.gmra.mrb[0].mxu0 %v8017
        %v8462 = vpop.f32.mrb[0].mxu0
        %v8463 = vadd.f32 0.0, %v8462
        %v8464 = vpop.f32.mrb[0].mxu0
        %v8465 = vpop.f32.mrb[0].mxu0
        %v8466 = vadd.f32 0.0, %v8465
        %v8467 = vpop.f32.mrb[0].mxu0
        %8468 = vmatprep.mubr.bf16.mxu0 0
        %8469 = vmatmul.mubr.bf16.gmra.mrb[0].mxu0 %v8020
        %v8470 = vpop.f32.mrb[0].mxu0
        %v8471 = vadd.f32 0.0, %v8470
        %v8472 = vpop.f32.mrb[0].mxu0
        %v8473 = vpop.f32.mrb[0].mxu0
        %v8474 = vadd.f32 0.0, %v8473
        %v8475 = vpop.f32.mrb[0].mxu0
        %8476 = vmatprep.mubr.bf16.mxu0 0
        %8477 = vmatmul.mubr.bf16.gmra.mrb[0].mxu0 %v8023
        %v8478 = vpop.f32.mrb[0].mxu0
        %v8479 = vadd.f32 0.0, %v8478
        %v8480 = vpop.f32.mrb[0].mxu0
        %v8481 = vpop.f32.mrb[0].mxu0
        %v8482 = vadd.f32 0.0, %v8481
        %v8483 = vpop.f32.mrb[0].mxu0
        %8484 = vmatprep.mubr.bf16.mxu0 0
        %8485 = vmatmul.mubr.bf16.gmra.mrb[0].mxu0 %v8026
        %v8486 = vpop.f32.mrb[0].mxu0
        %v8487 = vadd.f32 0.0, %v8486
        %v8488 = vpop.f32.mrb[0].mxu0
        %v8489 = vpop.f32.mrb[0].mxu0
        %v8490 = vadd.f32 0.0, %v8489
        %v8491 = vpop.f32.mrb[0].mxu0
        %8492 = vmatprep.mubr.bf16.mxu0 0
        %8493 = vmatmul.mubr.bf16.gmra.mrb[0].mxu0 %v8029
        %v8494 = vpop.f32.mrb[0].mxu0
        %v8495 = vadd.f32 0.0, %v8494
        %v8496 = vpop.f32.mrb[0].mxu0
        %v8497 = vpop.f32.mrb[0].mxu0
        %v8498 = vadd.f32 0.0, %v8497
        %v8499 = vpop.f32.mrb[0].mxu0
        %8500 = vmatprep.mubr.bf16.mxu0 0
        %8501 = vmatmul.mubr.bf16.gmra.mrb[0].mxu0 %v8032
        %v8502 = vpop.f32.mrb[0].mxu0
        %v8503 = vadd.f32 0.0, %v8502
        %v8504 = vpop.f32.mrb[0].mxu0
        %v8505 = vpop.f32.mrb[0].mxu0
        %v8506 = vadd.f32 0.0, %v8505
        %v8507 = vpop.f32.mrb[0].mxu0
        %8508 = vmatprep.mubr.bf16.mxu0 0
        %8509 = vmatmul.mubr.bf16.gmra.mrb[0].mxu0 %v8035
        %v8510 = vpop.f32.mrb[0].mxu0
        %v8511 = vadd.f32 0.0, %v8510
        %v8512 = vpop.f32.mrb[0].mxu0
        %v8513 = vpop.f32.mrb[0].mxu0
        %v8514 = vadd.f32 0.0, %v8513
        %v8515 = vpop.f32.mrb[0].mxu0
        %8516 = vmatprep.mubr.bf16.mxu0 0
        %8517 = vmatmul.mubr.bf16.gmra.mrb[0].mxu0 %v8038
        %v8518 = vpop.f32.mrb[0].mxu0
        %v8519 = vadd.f32 0.0, %v8518
        %v8520 = vpop.f32.mrb[0].mxu0
        %v8521 = vpop.f32.mrb[0].mxu0
        %v8522 = vadd.f32 0.0, %v8521
        %v8523 = vpop.f32.mrb[0].mxu0
        %8524 = vmatprep.mubr.bf16.mxu0 0
        %8525 = vmatmul.mubr.bf16.gmra.mrb[0].mxu0 %v8041
        %v8526 = vpop.f32.mrb[0].mxu0
        %v8527 = vadd.f32 0.0, %v8526
        %v8528 = vpop.f32.mrb[0].mxu0
        %v8529 = vpop.f32.mrb[0].mxu0
        %v8530 = vadd.f32 0.0, %v8529
        %v8531 = vpop.f32.mrb[0].mxu0
        %8532 = vmatprep.mubr.bf16.mxu0 0
        %8533 = vmatmul.mubr.bf16.gmra.mrb[0].mxu0 %v8044
        %v8534 = vpop.f32.mrb[0].mxu0
        %v8535 = vadd.f32 0.0, %v8534
        %v8536 = vpop.f32.mrb[0].mxu0
        %v8537 = vpop.f32.mrb[0].mxu0
        %v8538 = vadd.f32 0.0, %v8537
        %v8539 = vpop.f32.mrb[0].mxu0
        %8540 = vmatprep.mubr.bf16.mxu0 0
        %8541 = vmatmul.mubr.bf16.gmra.mrb[0].mxu0 %v8047
        %v8542 = vpop.f32.mrb[0].mxu0
        %v8543 = vadd.f32 0.0, %v8542
        %v8544 = vpop.f32.mrb[0].mxu0
        %v8545 = vpop.f32.mrb[0].mxu0
        %v8546 = vadd.f32 0.0, %v8545
        %v8547 = vpop.f32.mrb[0].mxu0
        %8548 = vmatprep.mubr.bf16.mxu0 0
        %8549 = vmatmul.mubr.bf16.gmra.mrb[0].mxu0 %v8050
        %v8550 = vpop.f32.mrb[0].mxu0
        %v8551 = vadd.f32 0.0, %v8550
        %v8552 = vpop.f32.mrb[0].mxu0
        %v8553 = vpop.f32.mrb[0].mxu0
        %v8554 = vadd.f32 0.0, %v8553
        %v8555 = vpop.f32.mrb[0].mxu0
        %8556 = vmatprep.mubr.bf16.mxu0 0
        %8557 = vmatmul.mubr.bf16.gmra.mrb[0].mxu0 %v8053
        %v8558 = vpop.f32.mrb[0].mxu0
        %v8559 = vadd.f32 0.0, %v8558
        %v8560 = vpop.f32.mrb[0].mxu0
        %v8561 = vpop.f32.mrb[0].mxu0
        %v8562 = vadd.f32 0.0, %v8561
        %v8563 = vpop.f32.mrb[0].mxu0
        %8564 = vmatprep.mubr.bf16.mxu0 0
        %8565 = vmatmul.mubr.bf16.gmra.mrb[0].mxu0 %v8056
        %v8566 = vpop.f32.mrb[0].mxu0
        %v8567 = vadd.f32 0.0, %v8566
        %v8568 = vpop.f32.mrb[0].mxu0
        %v8569 = vpop.f32.mrb[0].mxu0
        %v8570 = vadd.f32 0.0, %v8569
        %v8571 = vpop.f32.mrb[0].mxu0
        %8572 = vmatprep.mubr.bf16.mxu0 0
        %8573 = vmatmul.mubr.bf16.gmra.mrb[0].mxu0 %v8059
        %v8574 = vpop.f32.mrb[0].mxu0
        %v8575 = vadd.f32 0.0, %v8574
        %v8576 = vpop.f32.mrb[0].mxu0
        %v8577 = vpop.f32.mrb[0].mxu0
        %v8578 = vadd.f32 0.0, %v8577
        %v8579 = vpop.f32.mrb[0].mxu0
        %8580 = vmatprep.mubr.bf16.mxu0 0
        %8581 = vmatmul.mubr.bf16.gmra.mrb[0].mxu0 %v8062
        %v8582 = vpop.f32.mrb[0].mxu0
        %v8583 = vadd.f32 0.0, %v8582
        %v8584 = vpop.f32.mrb[0].mxu0
        %v8585 = vpop.f32.mrb[0].mxu0
        %v8586 = vadd.f32 0.0, %v8585
        %v8587 = vpop.f32.mrb[0].mxu0
        %8588 = vmatprep.mubr.bf16.mxu0 0
        %8589 = vmatmul.mubr.bf16.gmra.mrb[0].mxu0 %v8065
        %v8590 = vpop.f32.mrb[0].mxu0
        %v8591 = vadd.f32 0.0, %v8590
        %v8592 = vpop.f32.mrb[0].mxu0
        %v8593 = vpop.f32.mrb[0].mxu0
        %v8594 = vadd.f32 0.0, %v8593
        %v8595 = vpop.f32.mrb[0].mxu0
        %8596 = vmatprep.mubr.bf16.mxu0 0
        %8597 = vmatmul.mubr.bf16.gmra.mrb[0].mxu0 %v8068
        %v8598 = vpop.f32.mrb[0].mxu0
        %v8599 = vadd.f32 0.0, %v8598
        %v8600 = vpop.f32.mrb[0].mxu0
        %v8601 = vpop.f32.mrb[0].mxu0
        %v8602 = vadd.f32 0.0, %v8601
        %v8603 = vpop.f32.mrb[0].mxu0
        %8604 = vmatprep.mubr.bf16.mxu0 0
        %8605 = vmatmul.mubr.bf16.gmra.mrb[0].mxu0 %v8071
        %v8606 = vpop.f32.mrb[0].mxu0
        %v8607 = vadd.f32 0.0, %v8606
        %v8608 = vpop.f32.mrb[0].mxu0
        %v8609 = vpop.f32.mrb[0].mxu0
        %v8610 = vadd.f32 0.0, %v8609
        %v8611 = vpop.f32.mrb[0].mxu0
        %8612 = vmatprep.mubr.bf16.mxu0 0
        %8613 = vmatmul.mubr.bf16.gmra.mrb[0].mxu0 %v8074
        %v8614 = vpop.f32.mrb[0].mxu0
        %v8615 = vadd.f32 0.0, %v8614
        %v8616 = vpop.f32.mrb[0].mxu0
        %v8617 = vpop.f32.mrb[0].mxu0
        %v8618 = vadd.f32 0.0, %v8617
        %v8619 = vpop.f32.mrb[0].mxu0
        %8620 = vdwg.mxu0
        %v8621 = vadd.f32 %v7659, %v8111
        %v8622 = vadd.f32 %v7660, %v8114
        %v8623 = vadd.f32 %v7661, %v8119
        %v8624 = vadd.f32 %v7662, %v8122
        %v8625 = vadd.f32 %v7663, %v8127
        %v8626 = vadd.f32 %v7664, %v8130
        %v8627 = vadd.f32 %v7665, %v8135
        %v8628 = vadd.f32 %v7666, %v8138
        %v8629 = vadd.f32 %v7667, %v8143
        %v8630 = vadd.f32 %v7668, %v8146
        %v8631 = vadd.f32 %v7669, %v8151
        %v8632 = vadd.f32 %v7670, %v8154
        %v8633 = vadd.f32 %v7671, %v8159
        %v8634 = vadd.f32 %v7672, %v8162
        %v8635 = vadd.f32 %v7673, %v8167
        %v8636 = vadd.f32 %v7674, %v8170
        %v8637 = vadd.f32 %v7675, %v8175
        %v8638 = vadd.f32 %v7676, %v8178
        %v8639 = vadd.f32 %v7677, %v8183
        %v8640 = vadd.f32 %v7678, %v8186
        %v8641 = vadd.f32 %v7679, %v8191
        %v8642 = vadd.f32 %v7680, %v8194
        %v8643 = vadd.f32 %v7681, %v8199
        %v8644 = vadd.f32 %v7682, %v8202
        %v8645 = vadd.f32 %v7683, %v8207
        %v8646 = vadd.f32 %v7684, %v8210
        %v8647 = vadd.f32 %v7685, %v8215
        %v8648 = vadd.f32 %v7686, %v8218
        %v8649 = vadd.f32 %v7687, %v8223
        %v8650 = vadd.f32 %v7688, %v8226
        %v8651 = vadd.f32 %v7689, %v8231
        %v8652 = vadd.f32 %v7690, %v8234
        %v8653 = vadd.f32 %v7691, %v8239
        %v8654 = vadd.f32 %v7692, %v8242
        %v8655 = vadd.f32 %v7693, %v8247
        %v8656 = vadd.f32 %v7694, %v8250
        %v8657 = vadd.f32 %v7695, %v8255
        %v8658 = vadd.f32 %v7696, %v8258
        %v8659 = vadd.f32 %v7697, %v8263
        %v8660 = vadd.f32 %v7698, %v8266
        %v8661 = vadd.f32 %v7699, %v8271
        %v8662 = vadd.f32 %v7700, %v8274
        %v8663 = vadd.f32 %v7701, %v8279
        %v8664 = vadd.f32 %v7702, %v8282
        %v8665 = vadd.f32 %v7703, %v8287
        %v8666 = vadd.f32 %v7704, %v8290
        %v8667 = vadd.f32 %v7705, %v8295
        %v8668 = vadd.f32 %v7706, %v8298
        %v8669 = vadd.f32 %v7707, %v8303
        %v8670 = vadd.f32 %v7708, %v8306
        %v8671 = vadd.f32 %v7709, %v8311
        %v8672 = vadd.f32 %v7710, %v8314
        %v8673 = vadd.f32 %v7711, %v8319
        %v8674 = vadd.f32 %v7712, %v8322
        %v8675 = vadd.f32 %v7713, %v8327
        %v8676 = vadd.f32 %v7714, %v8330
        %v8677 = vadd.f32 %v7715, %v8335
        %v8678 = vadd.f32 %v7716, %v8338
        %v8679 = vadd.f32 %v7717, %v8343
        %v8680 = vadd.f32 %v7718, %v8346
        %v8681 = vadd.f32 %v7719, %v8351
        %v8682 = vadd.f32 %v7720, %v8354
        %v8683 = vadd.f32 %v7721, %v8359
        %v8684 = vadd.f32 %v7722, %v8362
        %v8685 = vadd.f32 %v7723, %v8367
        %v8686 = vadd.f32 %v7724, %v8370
        %v8687 = vadd.f32 %v7725, %v8375
        %v8688 = vadd.f32 %v7726, %v8378
        %v8689 = vadd.f32 %v7727, %v8383
        %v8690 = vadd.f32 %v7728, %v8386
        %v8691 = vadd.f32 %v7729, %v8391
        %v8692 = vadd.f32 %v7730, %v8394
        %v8693 = vadd.f32 %v7731, %v8399
        %v8694 = vadd.f32 %v7732, %v8402
        %v8695 = vadd.f32 %v7733, %v8407
        %v8696 = vadd.f32 %v7734, %v8410
        %v8697 = vadd.f32 %v7735, %v8415
        %v8698 = vadd.f32 %v7736, %v8418
        %v8699 = vadd.f32 %v7737, %v8423
        %v8700 = vadd.f32 %v7738, %v8426
        %v8701 = vadd.f32 %v7739, %v8431
        %v8702 = vadd.f32 %v7740, %v8434
        %v8703 = vadd.f32 %v7741, %v8439
        %v8704 = vadd.f32 %v7742, %v8442
        %v8705 = vadd.f32 %v7743, %v8447
        %v8706 = vadd.f32 %v7744, %v8450
        %v8707 = vadd.f32 %v7745, %v8455
        %v8708 = vadd.f32 %v7746, %v8458
        %v8709 = vadd.f32 %v7747, %v8463
        %v8710 = vadd.f32 %v7748, %v8466
        %v8711 = vadd.f32 %v7749, %v8471
        %v8712 = vadd.f32 %v7750, %v8474
        %v8713 = vadd.f32 %v7751, %v8479
        %v8714 = vadd.f32 %v7752, %v8482
        %v8715 = vadd.f32 %v7753, %v8487
        %v8716 = vadd.f32 %v7754, %v8490
        %v8717 = vadd.f32 %v7755, %v8495
        %v8718 = vadd.f32 %v7756, %v8498
        %v8719 = vadd.f32 %v7757, %v8503
        %v8720 = vadd.f32 %v7758, %v8506
        %v8721 = vadd.f32 %v7759, %v8511
        %v8722 = vadd.f32 %v7760, %v8514
        %v8723 = vadd.f32 %v7761, %v8519
        %v8724 = vadd.f32 %v7762, %v8522
        %v8725 = vadd.f32 %v7763, %v8527
        %v8726 = vadd.f32 %v7764, %v8530
        %v8727 = vadd.f32 %v7765, %v8535
        %v8728 = vadd.f32 %v7766, %v8538
        %v8729 = vadd.f32 %v7767, %v8543
        %v8730 = vadd.f32 %v7768, %v8546
        %v8731 = vadd.f32 %v7769, %v8551
        %v8732 = vadd.f32 %v7770, %v8554
        %v8733 = vadd.f32 %v7771, %v8559
        %v8734 = vadd.f32 %v7772, %v8562
        %v8735 = vadd.f32 %v7773, %v8567
        %v8736 = vadd.f32 %v7774, %v8570
        %v8737 = vadd.f32 %v7775, %v8575
        %v8738 = vadd.f32 %v7776, %v8578
        %v8739 = vadd.f32 %v7777, %v8583
        %v8740 = vadd.f32 %v7778, %v8586
        %v8741 = vadd.f32 %v7779, %v8591
        %v8742 = vadd.f32 %v7780, %v8594
        %v8743 = vadd.f32 %v7781, %v8599
        %v8744 = vadd.f32 %v7782, %v8602
        %v8745 = vadd.f32 %v7783, %v8607
        %v8746 = vadd.f32 %v7784, %v8610
        %v8747 = vadd.f32 %v7785, %v8615
        %v8748 = vadd.f32 %v7786, %v8618
        %s8749 = scalar_lea.vmem [#allocation2], 32
        %v8750 = vld [vmem:[%s8749] sm:$0xff]
        %v8751 = vld [vmem:[%s8749 + $0x8] sm:$0xff]
        %v8752 = vld [vmem:[%s8749 + $0x10] sm:$0xff]
        %v8753 = vld [vmem:[%s8749 + $0x18] sm:$0xff]
        %v8754 = vld [vmem:[%s8749 + $0x20] sm:$0xff]
        %v8755 = vld [vmem:[%s8749 + $0x28] sm:$0xff]
        %v8756 = vld [vmem:[%s8749 + $0x30] sm:$0xff]
        %v8757 = vld [vmem:[%s8749 + $0x38] sm:$0xff]
        %v8758 = vld [vmem:[%s8749 + $0x40] sm:$0xff]
        %v8759 = vld [vmem:[%s8749 + $0x48] sm:$0xff]
        %v8760 = vld [vmem:[%s8749 + $0x50] sm:$0xff]
        %v8761 = vld [vmem:[%s8749 + $0x58] sm:$0xff]
        %v8762 = vld [vmem:[%s8749 + $0x60] sm:$0xff]
        %v8763 = vld [vmem:[%s8749 + $0x68] sm:$0xff]
        %v8764 = vld [vmem:[%s8749 + $0x70] sm:$0xff]
        %v8765 = vld [vmem:[%s8749 + $0x78] sm:$0xff]
        %v8766 = vld [vmem:[%s8749 + $0x80] sm:$0xff]
        %v8767 = vld [vmem:[%s8749 + $0x88] sm:$0xff]
        %v8768 = vld [vmem:[%s8749 + $0x90] sm:$0xff]
        %v8769 = vld [vmem:[%s8749 + $0x98] sm:$0xff]
        %v8770 = vld [vmem:[%s8749 + $0xa0] sm:$0xff]
        %v8771 = vld [vmem:[%s8749 + $0xa8] sm:$0xff]
        %v8772 = vld [vmem:[%s8749 + $0xb0] sm:$0xff]
        %v8773 = vld [vmem:[%s8749 + $0xb8] sm:$0xff]
        %v8774 = vld [vmem:[%s8749 + $0xc0] sm:$0xff]
        %v8775 = vld [vmem:[%s8749 + $0xc8] sm:$0xff]
        %v8776 = vld [vmem:[%s8749 + $0xd0] sm:$0xff]
        %v8777 = vld [vmem:[%s8749 + $0xd8] sm:$0xff]
        %v8778 = vld [vmem:[%s8749 + $0xe0] sm:$0xff]
        %v8779 = vld [vmem:[%s8749 + $0xe8] sm:$0xff]
        %v8780 = vld [vmem:[%s8749 + $0xf0] sm:$0xff]
        %v8781 = vld [vmem:[%s8749 + $0xf8] sm:$0xff]
        %v8782 = vld [vmem:[%s8749 + $0x100] sm:$0xff]
        %v8783 = vld [vmem:[%s8749 + $0x108] sm:$0xff]
        %v8784 = vld [vmem:[%s8749 + $0x110] sm:$0xff]
        %v8785 = vld [vmem:[%s8749 + $0x118] sm:$0xff]
        %v8786 = vld [vmem:[%s8749 + $0x120] sm:$0xff]
        %v8787 = vld [vmem:[%s8749 + $0x128] sm:$0xff]
        %v8788 = vld [vmem:[%s8749 + $0x130] sm:$0xff]
        %v8789 = vld [vmem:[%s8749 + $0x138] sm:$0xff]
        %v8790 = vld [vmem:[%s8749 + $0x140] sm:$0xff]
        %v8791 = vld [vmem:[%s8749 + $0x148] sm:$0xff]
        %v8792 = vld [vmem:[%s8749 + $0x150] sm:$0xff]
        %v8793 = vld [vmem:[%s8749 + $0x158] sm:$0xff]
        %v8794 = vld [vmem:[%s8749 + $0x160] sm:$0xff]
        %v8795 = vld [vmem:[%s8749 + $0x168] sm:$0xff]
        %v8796 = vld [vmem:[%s8749 + $0x170] sm:$0xff]
        %v8797 = vld [vmem:[%s8749 + $0x178] sm:$0xff]
        %v8798 = vld [vmem:[%s8749 + $0x180] sm:$0xff]
        %v8799 = vld [vmem:[%s8749 + $0x188] sm:$0xff]
        %v8800 = vld [vmem:[%s8749 + $0x190] sm:$0xff]
        %v8801 = vld [vmem:[%s8749 + $0x198] sm:$0xff]
        %v8802 = vld [vmem:[%s8749 + $0x1a0] sm:$0xff]
        %v8803 = vld [vmem:[%s8749 + $0x1a8] sm:$0xff]
        %v8804 = vld [vmem:[%s8749 + $0x1b0] sm:$0xff]
        %v8805 = vld [vmem:[%s8749 + $0x1b8] sm:$0xff]
        %v8806 = vld [vmem:[%s8749 + $0x1c0] sm:$0xff]
        %v8807 = vld [vmem:[%s8749 + $0x1c8] sm:$0xff]
        %v8808 = vld [vmem:[%s8749 + $0x1d0] sm:$0xff]
        %v8809 = vld [vmem:[%s8749 + $0x1d8] sm:$0xff]
        %v8810 = vld [vmem:[%s8749 + $0x1e0] sm:$0xff]
        %v8811 = vld [vmem:[%s8749 + $0x1e8] sm:$0xff]
        %v8812 = vld [vmem:[%s8749 + $0x1f0] sm:$0xff]
        %v8813 = vld [vmem:[%s8749 + $0x1f8] sm:$0xff]
        %v8814 = vld [vmem:[%s264 + $0xc0] sm:$0xf]
        %v8815 = vld [vmem:[%s264 + $0xc4] sm:$0xf]
        %v8816 = vld [vmem:[%s264 + $0xc8] sm:$0xf]
        %v8817 = vld [vmem:[%s264 + $0xcc] sm:$0xf]
        %v8818 = vld [vmem:[%s264 + $0xd0] sm:$0xf]
        %v8819 = vld [vmem:[%s264 + $0xd4] sm:$0xf]
        %v8820 = vld [vmem:[%s264 + $0xd8] sm:$0xf]
        %v8821 = vld [vmem:[%s264 + $0xdc] sm:$0xf]
        %v8830 = vunpack.c.l.b16 %v8814
        %v8831 = vunpack.c.l.b16 %v8815
        %v8832 = vunpack.c.l.b16 %v8816
        %v8833 = vunpack.c.l.b16 %v8817
        %v8834 = vunpack.c.l.b16 %v8818
        %v8835 = vunpack.c.l.b16 %v8819
        %v8836 = vunpack.c.l.b16 %v8820
        %v8837 = vunpack.c.l.b16 %v8821
        %v8838 = vpack.c.b16 %v8831, %v8830
        %v8839 = vpack.c.b16 %v8833, %v8832
        %v8840 = vpack.c.b16 %v8835, %v8834
        %v8841 = vpack.c.b16 %v8837, %v8836
        %v8847 = vsel %vm817, %v8750, 0
        %v8850 = vsel %vm817, %v8751, 0
        %v8853 = vsel %vm817, %v8752, 0
        %v8856 = vsel %vm817, %v8753, 0
        %v8859 = vsel %vm817, %v8754, 0
        %v8862 = vsel %vm817, %v8755, 0
        %v8865 = vsel %vm817, %v8756, 0
        %v8868 = vsel %vm817, %v8757, 0
        %v8871 = vsel %vm817, %v8758, 0
        %v8874 = vsel %vm817, %v8759, 0
        %v8877 = vsel %vm817, %v8760, 0
        %v8880 = vsel %vm817, %v8761, 0
        %v8883 = vsel %vm817, %v8762, 0
        %v8886 = vsel %vm817, %v8763, 0
        %v8889 = vsel %vm817, %v8764, 0
        %v8892 = vsel %vm817, %v8765, 0
        %v8895 = vsel %vm817, %v8766, 0
        %v8898 = vsel %vm817, %v8767, 0
        %v8901 = vsel %vm817, %v8768, 0
        %v8904 = vsel %vm817, %v8769, 0
        %v8907 = vsel %vm817, %v8770, 0
        %v8910 = vsel %vm817, %v8771, 0
        %v8913 = vsel %vm817, %v8772, 0
        %v8916 = vsel %vm817, %v8773, 0
        %v8919 = vsel %vm817, %v8774, 0
        %v8922 = vsel %vm817, %v8775, 0
        %v8925 = vsel %vm817, %v8776, 0
        %v8928 = vsel %vm817, %v8777, 0
        %v8931 = vsel %vm817, %v8778, 0
        %v8934 = vsel %vm817, %v8779, 0
        %v8937 = vsel %vm817, %v8780, 0
        %v8940 = vsel %vm817, %v8781, 0
        %v8943 = vsel %vm817, %v8782, 0
        %v8946 = vsel %vm817, %v8783, 0
        %v8949 = vsel %vm817, %v8784, 0
        %v8952 = vsel %vm817, %v8785, 0
        %v8955 = vsel %vm817, %v8786, 0
        %v8958 = vsel %vm817, %v8787, 0
        %v8961 = vsel %vm817, %v8788, 0
        %v8964 = vsel %vm817, %v8789, 0
        %v8967 = vsel %vm817, %v8790, 0
        %v8970 = vsel %vm817, %v8791, 0
        %v8973 = vsel %vm817, %v8792, 0
        %v8976 = vsel %vm817, %v8793, 0
        %v8979 = vsel %vm817, %v8794, 0
        %v8982 = vsel %vm817, %v8795, 0
        %v8985 = vsel %vm817, %v8796, 0
        %v8988 = vsel %vm817, %v8797, 0
        %v8991 = vsel %vm817, %v8798, 0
        %v8994 = vsel %vm817, %v8799, 0
        %v8997 = vsel %vm817, %v8800, 0
        %v9000 = vsel %vm817, %v8801, 0
        %v9003 = vsel %vm817, %v8802, 0
        %v9006 = vsel %vm817, %v8803, 0
        %v9009 = vsel %vm817, %v8804, 0
        %v9012 = vsel %vm817, %v8805, 0
        %v9015 = vsel %vm817, %v8806, 0
        %v9018 = vsel %vm817, %v8807, 0
        %v9021 = vsel %vm817, %v8808, 0
        %v9024 = vsel %vm817, %v8809, 0
        %v9027 = vsel %vm817, %v8810, 0
        %v9030 = vsel %vm817, %v8811, 0
        %v9033 = vsel %vm817, %v8812, 0
        %v9036 = vsel %vm817, %v8813, 0
        %9038 = vmatprep.subr.bf16.mxu0 0
        %9039 = vmatpush1.bf16.msra.mxu0 %v8838
        %9040 = vmatprep.subr.bf16.mxu0 0
        %9041 = vmatpush1.bf16.msra.mxu0 %v8839
        %9042 = vmatprep.subr.bf16.mxu0 0
        %9043 = vmatpush1.bf16.msra.mxu0 %v8840
        %9044 = vmatprep.subr.bf16.mxu0 0
        %9045 = vmatpush1.bf16.msra.mxu0 %v8841
        %9046 = vmatprep.subr.bf16.mxu0 0
        %9047 = vmatpush1.bf16.msra.mxu0 0
        %9048 = vmatprep.subr.bf16.mxu0 0
        %9049 = vmatpush1.bf16.msra.mxu0 0
        %9050 = vmatprep.subr.bf16.mxu0 0
        %9051 = vmatpush1.bf16.msra.mxu0 0
        %9052 = vmatprep.subr.bf16.mxu0 0
        %9053 = vmatpush1.bf16.msra.mxu0 0
        %9054 = vmatprep.subr.bf16.mxu0 0
        %9055 = vmatpush1.bf16.msra.mxu0 0
        %9056 = vmatprep.subr.bf16.mxu0 0
        %9057 = vmatpush1.bf16.msra.mxu0 0
        %9058 = vmatprep.subr.bf16.mxu0 0
        %9059 = vmatpush1.bf16.msra.mxu0 0
        %9060 = vmatprep.subr.bf16.mxu0 0
        %9061 = vmatpush1.bf16.msra.mxu0 0
        %9062 = vmatprep.subr.bf16.mxu0 0
        %9063 = vmatpush1.bf16.msra.mxu0 0
        %9064 = vmatprep.subr.bf16.mxu0 0
        %9065 = vmatpush1.bf16.msra.mxu0 0
        %9066 = vmatprep.subr.bf16.mxu0 0
        %9067 = vmatpush1.bf16.msra.mxu0 0
        %9068 = vmatprep.subr.bf16.mxu0 0
        %9069 = vmatpush1.bf16.msra.mxu0 0
        %9070 = vmatprep.mubr.bf16.mxu0 0
        %9071 = vmatmul.mubr.bf16.gmra.mrb[0].mxu0 %v8847
        %v9072 = vpop.f32.mrb[0].mxu0
        %v9073 = vadd.f32 0.0, %v9072
        %v9074 = vpop.f32.mrb[0].mxu0
        %v9075 = vpop.f32.mrb[0].mxu0
        %v9076 = vadd.f32 0.0, %v9075
        %v9077 = vpop.f32.mrb[0].mxu0
        %9078 = vmatprep.mubr.bf16.mxu0 0
        %9079 = vmatmul.mubr.bf16.gmra.mrb[0].mxu0 %v8850
        %v9080 = vpop.f32.mrb[0].mxu0
        %v9081 = vadd.f32 0.0, %v9080
        %v9082 = vpop.f32.mrb[0].mxu0
        %v9083 = vpop.f32.mrb[0].mxu0
        %v9084 = vadd.f32 0.0, %v9083
        %v9085 = vpop.f32.mrb[0].mxu0
        %9086 = vmatprep.mubr.bf16.mxu0 0
        %9087 = vmatmul.mubr.bf16.gmra.mrb[0].mxu0 %v8853
        %v9088 = vpop.f32.mrb[0].mxu0
        %v9089 = vadd.f32 0.0, %v9088
        %v9090 = vpop.f32.mrb[0].mxu0
        %v9091 = vpop.f32.mrb[0].mxu0
        %v9092 = vadd.f32 0.0, %v9091
        %v9093 = vpop.f32.mrb[0].mxu0
        %9094 = vmatprep.mubr.bf16.mxu0 0
        %9095 = vmatmul.mubr.bf16.gmra.mrb[0].mxu0 %v8856
        %v9096 = vpop.f32.mrb[0].mxu0
        %v9097 = vadd.f32 0.0, %v9096
        %v9098 = vpop.f32.mrb[0].mxu0
        %v9099 = vpop.f32.mrb[0].mxu0
        %v9100 = vadd.f32 0.0, %v9099
        %v9101 = vpop.f32.mrb[0].mxu0
        %9102 = vmatprep.mubr.bf16.mxu0 0
        %9103 = vmatmul.mubr.bf16.gmra.mrb[0].mxu0 %v8859
        %v9104 = vpop.f32.mrb[0].mxu0
        %v9105 = vadd.f32 0.0, %v9104
        %v9106 = vpop.f32.mrb[0].mxu0
        %v9107 = vpop.f32.mrb[0].mxu0
        %v9108 = vadd.f32 0.0, %v9107
        %v9109 = vpop.f32.mrb[0].mxu0
        %9110 = vmatprep.mubr.bf16.mxu0 0
        %9111 = vmatmul.mubr.bf16.gmra.mrb[0].mxu0 %v8862
        %v9112 = vpop.f32.mrb[0].mxu0
        %v9113 = vadd.f32 0.0, %v9112
        %v9114 = vpop.f32.mrb[0].mxu0
        %v9115 = vpop.f32.mrb[0].mxu0
        %v9116 = vadd.f32 0.0, %v9115
        %v9117 = vpop.f32.mrb[0].mxu0
        %9118 = vmatprep.mubr.bf16.mxu0 0
        %9119 = vmatmul.mubr.bf16.gmra.mrb[0].mxu0 %v8865
        %v9120 = vpop.f32.mrb[0].mxu0
        %v9121 = vadd.f32 0.0, %v9120
        %v9122 = vpop.f32.mrb[0].mxu0
        %v9123 = vpop.f32.mrb[0].mxu0
        %v9124 = vadd.f32 0.0, %v9123
        %v9125 = vpop.f32.mrb[0].mxu0
        %9126 = vmatprep.mubr.bf16.mxu0 0
        %9127 = vmatmul.mubr.bf16.gmra.mrb[0].mxu0 %v8868
        %v9128 = vpop.f32.mrb[0].mxu0
        %v9129 = vadd.f32 0.0, %v9128
        %v9130 = vpop.f32.mrb[0].mxu0
        %v9131 = vpop.f32.mrb[0].mxu0
        %v9132 = vadd.f32 0.0, %v9131
        %v9133 = vpop.f32.mrb[0].mxu0
        %9134 = vmatprep.mubr.bf16.mxu0 0
        %9135 = vmatmul.mubr.bf16.gmra.mrb[0].mxu0 %v8871
        %v9136 = vpop.f32.mrb[0].mxu0
        %v9137 = vadd.f32 0.0, %v9136
        %v9138 = vpop.f32.mrb[0].mxu0
        %v9139 = vpop.f32.mrb[0].mxu0
        %v9140 = vadd.f32 0.0, %v9139
        %v9141 = vpop.f32.mrb[0].mxu0
        %9142 = vmatprep.mubr.bf16.mxu0 0
        %9143 = vmatmul.mubr.bf16.gmra.mrb[0].mxu0 %v8874
        %v9144 = vpop.f32.mrb[0].mxu0
        %v9145 = vadd.f32 0.0, %v9144
        %v9146 = vpop.f32.mrb[0].mxu0
        %v9147 = vpop.f32.mrb[0].mxu0
        %v9148 = vadd.f32 0.0, %v9147
        %v9149 = vpop.f32.mrb[0].mxu0
        %9150 = vmatprep.mubr.bf16.mxu0 0
        %9151 = vmatmul.mubr.bf16.gmra.mrb[0].mxu0 %v8877
        %v9152 = vpop.f32.mrb[0].mxu0
        %v9153 = vadd.f32 0.0, %v9152
        %v9154 = vpop.f32.mrb[0].mxu0
        %v9155 = vpop.f32.mrb[0].mxu0
        %v9156 = vadd.f32 0.0, %v9155
        %v9157 = vpop.f32.mrb[0].mxu0
        %9158 = vmatprep.mubr.bf16.mxu0 0
        %9159 = vmatmul.mubr.bf16.gmra.mrb[0].mxu0 %v8880
        %v9160 = vpop.f32.mrb[0].mxu0
        %v9161 = vadd.f32 0.0, %v9160
        %v9162 = vpop.f32.mrb[0].mxu0
        %v9163 = vpop.f32.mrb[0].mxu0
        %v9164 = vadd.f32 0.0, %v9163
        %v9165 = vpop.f32.mrb[0].mxu0
        %9166 = vmatprep.mubr.bf16.mxu0 0
        %9167 = vmatmul.mubr.bf16.gmra.mrb[0].mxu0 %v8883
        %v9168 = vpop.f32.mrb[0].mxu0
        %v9169 = vadd.f32 0.0, %v9168
        %v9170 = vpop.f32.mrb[0].mxu0
        %v9171 = vpop.f32.mrb[0].mxu0
        %v9172 = vadd.f32 0.0, %v9171
        %v9173 = vpop.f32.mrb[0].mxu0
        %9174 = vmatprep.mubr.bf16.mxu0 0
        %9175 = vmatmul.mubr.bf16.gmra.mrb[0].mxu0 %v8886
        %v9176 = vpop.f32.mrb[0].mxu0
        %v9177 = vadd.f32 0.0, %v9176
        %v9178 = vpop.f32.mrb[0].mxu0
        %v9179 = vpop.f32.mrb[0].mxu0
        %v9180 = vadd.f32 0.0, %v9179
        %v9181 = vpop.f32.mrb[0].mxu0
        %9182 = vmatprep.mubr.bf16.mxu0 0
        %9183 = vmatmul.mubr.bf16.gmra.mrb[0].mxu0 %v8889
        %v9184 = vpop.f32.mrb[0].mxu0
        %v9185 = vadd.f32 0.0, %v9184
        %v9186 = vpop.f32.mrb[0].mxu0
        %v9187 = vpop.f32.mrb[0].mxu0
        %v9188 = vadd.f32 0.0, %v9187
        %v9189 = vpop.f32.mrb[0].mxu0
        %9190 = vmatprep.mubr.bf16.mxu0 0
        %9191 = vmatmul.mubr.bf16.gmra.mrb[0].mxu0 %v8892
        %v9192 = vpop.f32.mrb[0].mxu0
        %v9193 = vadd.f32 0.0, %v9192
        %v9194 = vpop.f32.mrb[0].mxu0
        %v9195 = vpop.f32.mrb[0].mxu0
        %v9196 = vadd.f32 0.0, %v9195
        %v9197 = vpop.f32.mrb[0].mxu0
        %9198 = vmatprep.mubr.bf16.mxu0 0
        %9199 = vmatmul.mubr.bf16.gmra.mrb[0].mxu0 %v8895
        %v9200 = vpop.f32.mrb[0].mxu0
        %v9201 = vadd.f32 0.0, %v9200
        %v9202 = vpop.f32.mrb[0].mxu0
        %v9203 = vpop.f32.mrb[0].mxu0
        %v9204 = vadd.f32 0.0, %v9203
        %v9205 = vpop.f32.mrb[0].mxu0
        %9206 = vmatprep.mubr.bf16.mxu0 0
        %9207 = vmatmul.mubr.bf16.gmra.mrb[0].mxu0 %v8898
        %v9208 = vpop.f32.mrb[0].mxu0
        %v9209 = vadd.f32 0.0, %v9208
        %v9210 = vpop.f32.mrb[0].mxu0
        %v9211 = vpop.f32.mrb[0].mxu0
        %v9212 = vadd.f32 0.0, %v9211
        %v9213 = vpop.f32.mrb[0].mxu0
        %9214 = vmatprep.mubr.bf16.mxu0 0
        %9215 = vmatmul.mubr.bf16.gmra.mrb[0].mxu0 %v8901
        %v9216 = vpop.f32.mrb[0].mxu0
        %v9217 = vadd.f32 0.0, %v9216
        %v9218 = vpop.f32.mrb[0].mxu0
        %v9219 = vpop.f32.mrb[0].mxu0
        %v9220 = vadd.f32 0.0, %v9219
        %v9221 = vpop.f32.mrb[0].mxu0
        %9222 = vmatprep.mubr.bf16.mxu0 0
        %9223 = vmatmul.mubr.bf16.gmra.mrb[0].mxu0 %v8904
        %v9224 = vpop.f32.mrb[0].mxu0
        %v9225 = vadd.f32 0.0, %v9224
        %v9226 = vpop.f32.mrb[0].mxu0
        %v9227 = vpop.f32.mrb[0].mxu0
        %v9228 = vadd.f32 0.0, %v9227
        %v9229 = vpop.f32.mrb[0].mxu0
        %9230 = vmatprep.mubr.bf16.mxu0 0
        %9231 = vmatmul.mubr.bf16.gmra.mrb[0].mxu0 %v8907
        %v9232 = vpop.f32.mrb[0].mxu0
        %v9233 = vadd.f32 0.0, %v9232
        %v9234 = vpop.f32.mrb[0].mxu0
        %v9235 = vpop.f32.mrb[0].mxu0
        %v9236 = vadd.f32 0.0, %v9235
        %v9237 = vpop.f32.mrb[0].mxu0
        %9238 = vmatprep.mubr.bf16.mxu0 0
        %9239 = vmatmul.mubr.bf16.gmra.mrb[0].mxu0 %v8910
        %v9240 = vpop.f32.mrb[0].mxu0
        %v9241 = vadd.f32 0.0, %v9240
        %v9242 = vpop.f32.mrb[0].mxu0
        %v9243 = vpop.f32.mrb[0].mxu0
        %v9244 = vadd.f32 0.0, %v9243
        %v9245 = vpop.f32.mrb[0].mxu0
        %9246 = vmatprep.mubr.bf16.mxu0 0
        %9247 = vmatmul.mubr.bf16.gmra.mrb[0].mxu0 %v8913
        %v9248 = vpop.f32.mrb[0].mxu0
        %v9249 = vadd.f32 0.0, %v9248
        %v9250 = vpop.f32.mrb[0].mxu0
        %v9251 = vpop.f32.mrb[0].mxu0
        %v9252 = vadd.f32 0.0, %v9251
        %v9253 = vpop.f32.mrb[0].mxu0
        %9254 = vmatprep.mubr.bf16.mxu0 0
        %9255 = vmatmul.mubr.bf16.gmra.mrb[0].mxu0 %v8916
        %v9256 = vpop.f32.mrb[0].mxu0
        %v9257 = vadd.f32 0.0, %v9256
        %v9258 = vpop.f32.mrb[0].mxu0
        %v9259 = vpop.f32.mrb[0].mxu0
        %v9260 = vadd.f32 0.0, %v9259
        %v9261 = vpop.f32.mrb[0].mxu0
        %9262 = vmatprep.mubr.bf16.mxu0 0
        %9263 = vmatmul.mubr.bf16.gmra.mrb[0].mxu0 %v8919
        %v9264 = vpop.f32.mrb[0].mxu0
        %v9265 = vadd.f32 0.0, %v9264
        %v9266 = vpop.f32.mrb[0].mxu0
        %v9267 = vpop.f32.mrb[0].mxu0
        %v9268 = vadd.f32 0.0, %v9267
        %v9269 = vpop.f32.mrb[0].mxu0
        %9270 = vmatprep.mubr.bf16.mxu0 0
        %9271 = vmatmul.mubr.bf16.gmra.mrb[0].mxu0 %v8922
        %v9272 = vpop.f32.mrb[0].mxu0
        %v9273 = vadd.f32 0.0, %v9272
        %v9274 = vpop.f32.mrb[0].mxu0
        %v9275 = vpop.f32.mrb[0].mxu0
        %v9276 = vadd.f32 0.0, %v9275
        %v9277 = vpop.f32.mrb[0].mxu0
        %9278 = vmatprep.mubr.bf16.mxu0 0
        %9279 = vmatmul.mubr.bf16.gmra.mrb[0].mxu0 %v8925
        %v9280 = vpop.f32.mrb[0].mxu0
        %v9281 = vadd.f32 0.0, %v9280
        %v9282 = vpop.f32.mrb[0].mxu0
        %v9283 = vpop.f32.mrb[0].mxu0
        %v9284 = vadd.f32 0.0, %v9283
        %v9285 = vpop.f32.mrb[0].mxu0
        %9286 = vmatprep.mubr.bf16.mxu0 0
        %9287 = vmatmul.mubr.bf16.gmra.mrb[0].mxu0 %v8928
        %v9288 = vpop.f32.mrb[0].mxu0
        %v9289 = vadd.f32 0.0, %v9288
        %v9290 = vpop.f32.mrb[0].mxu0
        %v9291 = vpop.f32.mrb[0].mxu0
        %v9292 = vadd.f32 0.0, %v9291
        %v9293 = vpop.f32.mrb[0].mxu0
        %9294 = vmatprep.mubr.bf16.mxu0 0
        %9295 = vmatmul.mubr.bf16.gmra.mrb[0].mxu0 %v8931
        %v9296 = vpop.f32.mrb[0].mxu0
        %v9297 = vadd.f32 0.0, %v9296
        %v9298 = vpop.f32.mrb[0].mxu0
        %v9299 = vpop.f32.mrb[0].mxu0
        %v9300 = vadd.f32 0.0, %v9299
        %v9301 = vpop.f32.mrb[0].mxu0
        %9302 = vmatprep.mubr.bf16.mxu0 0
        %9303 = vmatmul.mubr.bf16.gmra.mrb[0].mxu0 %v8934
        %v9304 = vpop.f32.mrb[0].mxu0
        %v9305 = vadd.f32 0.0, %v9304
        %v9306 = vpop.f32.mrb[0].mxu0
        %v9307 = vpop.f32.mrb[0].mxu0
        %v9308 = vadd.f32 0.0, %v9307
        %v9309 = vpop.f32.mrb[0].mxu0
        %9310 = vmatprep.mubr.bf16.mxu0 0
        %9311 = vmatmul.mubr.bf16.gmra.mrb[0].mxu0 %v8937
        %v9312 = vpop.f32.mrb[0].mxu0
        %v9313 = vadd.f32 0.0, %v9312
        %v9314 = vpop.f32.mrb[0].mxu0
        %v9315 = vpop.f32.mrb[0].mxu0
        %v9316 = vadd.f32 0.0, %v9315
        %v9317 = vpop.f32.mrb[0].mxu0
        %9318 = vmatprep.mubr.bf16.mxu0 0
        %9319 = vmatmul.mubr.bf16.gmra.mrb[0].mxu0 %v8940
        %v9320 = vpop.f32.mrb[0].mxu0
        %v9321 = vadd.f32 0.0, %v9320
        %v9322 = vpop.f32.mrb[0].mxu0
        %v9323 = vpop.f32.mrb[0].mxu0
        %v9324 = vadd.f32 0.0, %v9323
        %v9325 = vpop.f32.mrb[0].mxu0
        %9326 = vmatprep.mubr.bf16.mxu0 0
        %9327 = vmatmul.mubr.bf16.gmra.mrb[0].mxu0 %v8943
        %v9328 = vpop.f32.mrb[0].mxu0
        %v9329 = vadd.f32 0.0, %v9328
        %v9330 = vpop.f32.mrb[0].mxu0
        %v9331 = vpop.f32.mrb[0].mxu0
        %v9332 = vadd.f32 0.0, %v9331
        %v9333 = vpop.f32.mrb[0].mxu0
        %9334 = vmatprep.mubr.bf16.mxu0 0
        %9335 = vmatmul.mubr.bf16.gmra.mrb[0].mxu0 %v8946
        %v9336 = vpop.f32.mrb[0].mxu0
        %v9337 = vadd.f32 0.0, %v9336
        %v9338 = vpop.f32.mrb[0].mxu0
        %v9339 = vpop.f32.mrb[0].mxu0
        %v9340 = vadd.f32 0.0, %v9339
        %v9341 = vpop.f32.mrb[0].mxu0
        %9342 = vmatprep.mubr.bf16.mxu0 0
        %9343 = vmatmul.mubr.bf16.gmra.mrb[0].mxu0 %v8949
        %v9344 = vpop.f32.mrb[0].mxu0
        %v9345 = vadd.f32 0.0, %v9344
        %v9346 = vpop.f32.mrb[0].mxu0
        %v9347 = vpop.f32.mrb[0].mxu0
        %v9348 = vadd.f32 0.0, %v9347
        %v9349 = vpop.f32.mrb[0].mxu0
        %9350 = vmatprep.mubr.bf16.mxu0 0
        %9351 = vmatmul.mubr.bf16.gmra.mrb[0].mxu0 %v8952
        %v9352 = vpop.f32.mrb[0].mxu0
        %v9353 = vadd.f32 0.0, %v9352
        %v9354 = vpop.f32.mrb[0].mxu0
        %v9355 = vpop.f32.mrb[0].mxu0
        %v9356 = vadd.f32 0.0, %v9355
        %v9357 = vpop.f32.mrb[0].mxu0
        %9358 = vmatprep.mubr.bf16.mxu0 0
        %9359 = vmatmul.mubr.bf16.gmra.mrb[0].mxu0 %v8955
        %v9360 = vpop.f32.mrb[0].mxu0
        %v9361 = vadd.f32 0.0, %v9360
        %v9362 = vpop.f32.mrb[0].mxu0
        %v9363 = vpop.f32.mrb[0].mxu0
        %v9364 = vadd.f32 0.0, %v9363
        %v9365 = vpop.f32.mrb[0].mxu0
        %9366 = vmatprep.mubr.bf16.mxu0 0
        %9367 = vmatmul.mubr.bf16.gmra.mrb[0].mxu0 %v8958
        %v9368 = vpop.f32.mrb[0].mxu0
        %v9369 = vadd.f32 0.0, %v9368
        %v9370 = vpop.f32.mrb[0].mxu0
        %v9371 = vpop.f32.mrb[0].mxu0
        %v9372 = vadd.f32 0.0, %v9371
        %v9373 = vpop.f32.mrb[0].mxu0
        %9374 = vmatprep.mubr.bf16.mxu0 0
        %9375 = vmatmul.mubr.bf16.gmra.mrb[0].mxu0 %v8961
        %v9376 = vpop.f32.mrb[0].mxu0
        %v9377 = vadd.f32 0.0, %v9376
        %v9378 = vpop.f32.mrb[0].mxu0
        %v9379 = vpop.f32.mrb[0].mxu0
        %v9380 = vadd.f32 0.0, %v9379
        %v9381 = vpop.f32.mrb[0].mxu0
        %9382 = vmatprep.mubr.bf16.mxu0 0
        %9383 = vmatmul.mubr.bf16.gmra.mrb[0].mxu0 %v8964
        %v9384 = vpop.f32.mrb[0].mxu0
        %v9385 = vadd.f32 0.0, %v9384
        %v9386 = vpop.f32.mrb[0].mxu0
        %v9387 = vpop.f32.mrb[0].mxu0
        %v9388 = vadd.f32 0.0, %v9387
        %v9389 = vpop.f32.mrb[0].mxu0
        %9390 = vmatprep.mubr.bf16.mxu0 0
        %9391 = vmatmul.mubr.bf16.gmra.mrb[0].mxu0 %v8967
        %v9392 = vpop.f32.mrb[0].mxu0
        %v9393 = vadd.f32 0.0, %v9392
        %v9394 = vpop.f32.mrb[0].mxu0
        %v9395 = vpop.f32.mrb[0].mxu0
        %v9396 = vadd.f32 0.0, %v9395
        %v9397 = vpop.f32.mrb[0].mxu0
        %9398 = vmatprep.mubr.bf16.mxu0 0
        %9399 = vmatmul.mubr.bf16.gmra.mrb[0].mxu0 %v8970
        %v9400 = vpop.f32.mrb[0].mxu0
        %v9401 = vadd.f32 0.0, %v9400
        %v9402 = vpop.f32.mrb[0].mxu0
        %v9403 = vpop.f32.mrb[0].mxu0
        %v9404 = vadd.f32 0.0, %v9403
        %v9405 = vpop.f32.mrb[0].mxu0
        %9406 = vmatprep.mubr.bf16.mxu0 0
        %9407 = vmatmul.mubr.bf16.gmra.mrb[0].mxu0 %v8973
        %v9408 = vpop.f32.mrb[0].mxu0
        %v9409 = vadd.f32 0.0, %v9408
        %v9410 = vpop.f32.mrb[0].mxu0
        %v9411 = vpop.f32.mrb[0].mxu0
        %v9412 = vadd.f32 0.0, %v9411
        %v9413 = vpop.f32.mrb[0].mxu0
        %9414 = vmatprep.mubr.bf16.mxu0 0
        %9415 = vmatmul.mubr.bf16.gmra.mrb[0].mxu0 %v8976
        %v9416 = vpop.f32.mrb[0].mxu0
        %v9417 = vadd.f32 0.0, %v9416
        %v9418 = vpop.f32.mrb[0].mxu0
        %v9419 = vpop.f32.mrb[0].mxu0
        %v9420 = vadd.f32 0.0, %v9419
        %v9421 = vpop.f32.mrb[0].mxu0
        %9422 = vmatprep.mubr.bf16.mxu0 0
        %9423 = vmatmul.mubr.bf16.gmra.mrb[0].mxu0 %v8979
        %v9424 = vpop.f32.mrb[0].mxu0
        %v9425 = vadd.f32 0.0, %v9424
        %v9426 = vpop.f32.mrb[0].mxu0
        %v9427 = vpop.f32.mrb[0].mxu0
        %v9428 = vadd.f32 0.0, %v9427
        %v9429 = vpop.f32.mrb[0].mxu0
        %9430 = vmatprep.mubr.bf16.mxu0 0
        %9431 = vmatmul.mubr.bf16.gmra.mrb[0].mxu0 %v8982
        %v9432 = vpop.f32.mrb[0].mxu0
        %v9433 = vadd.f32 0.0, %v9432
        %v9434 = vpop.f32.mrb[0].mxu0
        %v9435 = vpop.f32.mrb[0].mxu0
        %v9436 = vadd.f32 0.0, %v9435
        %v9437 = vpop.f32.mrb[0].mxu0
        %9438 = vmatprep.mubr.bf16.mxu0 0
        %9439 = vmatmul.mubr.bf16.gmra.mrb[0].mxu0 %v8985
        %v9440 = vpop.f32.mrb[0].mxu0
        %v9441 = vadd.f32 0.0, %v9440
        %v9442 = vpop.f32.mrb[0].mxu0
        %v9443 = vpop.f32.mrb[0].mxu0
        %v9444 = vadd.f32 0.0, %v9443
        %v9445 = vpop.f32.mrb[0].mxu0
        %9446 = vmatprep.mubr.bf16.mxu0 0
        %9447 = vmatmul.mubr.bf16.gmra.mrb[0].mxu0 %v8988
        %v9448 = vpop.f32.mrb[0].mxu0
        %v9449 = vadd.f32 0.0, %v9448
        %v9450 = vpop.f32.mrb[0].mxu0
        %v9451 = vpop.f32.mrb[0].mxu0
        %v9452 = vadd.f32 0.0, %v9451
        %v9453 = vpop.f32.mrb[0].mxu0
        %9454 = vmatprep.mubr.bf16.mxu0 0
        %9455 = vmatmul.mubr.bf16.gmra.mrb[0].mxu0 %v8991
        %v9456 = vpop.f32.mrb[0].mxu0
        %v9457 = vadd.f32 0.0, %v9456
        %v9458 = vpop.f32.mrb[0].mxu0
        %v9459 = vpop.f32.mrb[0].mxu0
        %v9460 = vadd.f32 0.0, %v9459
        %v9461 = vpop.f32.mrb[0].mxu0
        %9462 = vmatprep.mubr.bf16.mxu0 0
        %9463 = vmatmul.mubr.bf16.gmra.mrb[0].mxu0 %v8994
        %v9464 = vpop.f32.mrb[0].mxu0
        %v9465 = vadd.f32 0.0, %v9464
        %v9466 = vpop.f32.mrb[0].mxu0
        %v9467 = vpop.f32.mrb[0].mxu0
        %v9468 = vadd.f32 0.0, %v9467
        %v9469 = vpop.f32.mrb[0].mxu0
        %9470 = vmatprep.mubr.bf16.mxu0 0
        %9471 = vmatmul.mubr.bf16.gmra.mrb[0].mxu0 %v8997
        %v9472 = vpop.f32.mrb[0].mxu0
        %v9473 = vadd.f32 0.0, %v9472
        %v9474 = vpop.f32.mrb[0].mxu0
        %v9475 = vpop.f32.mrb[0].mxu0
        %v9476 = vadd.f32 0.0, %v9475
        %v9477 = vpop.f32.mrb[0].mxu0
        %9478 = vmatprep.mubr.bf16.mxu0 0
        %9479 = vmatmul.mubr.bf16.gmra.mrb[0].mxu0 %v9000
        %v9480 = vpop.f32.mrb[0].mxu0
        %v9481 = vadd.f32 0.0, %v9480
        %v9482 = vpop.f32.mrb[0].mxu0
        %v9483 = vpop.f32.mrb[0].mxu0
        %v9484 = vadd.f32 0.0, %v9483
        %v9485 = vpop.f32.mrb[0].mxu0
        %9486 = vmatprep.mubr.bf16.mxu0 0
        %9487 = vmatmul.mubr.bf16.gmra.mrb[0].mxu0 %v9003
        %v9488 = vpop.f32.mrb[0].mxu0
        %v9489 = vadd.f32 0.0, %v9488
        %v9490 = vpop.f32.mrb[0].mxu0
        %v9491 = vpop.f32.mrb[0].mxu0
        %v9492 = vadd.f32 0.0, %v9491
        %v9493 = vpop.f32.mrb[0].mxu0
        %9494 = vmatprep.mubr.bf16.mxu0 0
        %9495 = vmatmul.mubr.bf16.gmra.mrb[0].mxu0 %v9006
        %v9496 = vpop.f32.mrb[0].mxu0
        %v9497 = vadd.f32 0.0, %v9496
        %v9498 = vpop.f32.mrb[0].mxu0
        %v9499 = vpop.f32.mrb[0].mxu0
        %v9500 = vadd.f32 0.0, %v9499
        %v9501 = vpop.f32.mrb[0].mxu0
        %9502 = vmatprep.mubr.bf16.mxu0 0
        %9503 = vmatmul.mubr.bf16.gmra.mrb[0].mxu0 %v9009
        %v9504 = vpop.f32.mrb[0].mxu0
        %v9505 = vadd.f32 0.0, %v9504
        %v9506 = vpop.f32.mrb[0].mxu0
        %v9507 = vpop.f32.mrb[0].mxu0
        %v9508 = vadd.f32 0.0, %v9507
        %v9509 = vpop.f32.mrb[0].mxu0
        %9510 = vmatprep.mubr.bf16.mxu0 0
        %9511 = vmatmul.mubr.bf16.gmra.mrb[0].mxu0 %v9012
        %v9512 = vpop.f32.mrb[0].mxu0
        %v9513 = vadd.f32 0.0, %v9512
        %v9514 = vpop.f32.mrb[0].mxu0
        %v9515 = vpop.f32.mrb[0].mxu0
        %v9516 = vadd.f32 0.0, %v9515
        %v9517 = vpop.f32.mrb[0].mxu0
        %9518 = vmatprep.mubr.bf16.mxu0 0
        %9519 = vmatmul.mubr.bf16.gmra.mrb[0].mxu0 %v9015
        %v9520 = vpop.f32.mrb[0].mxu0
        %v9521 = vadd.f32 0.0, %v9520
        %v9522 = vpop.f32.mrb[0].mxu0
        %v9523 = vpop.f32.mrb[0].mxu0
        %v9524 = vadd.f32 0.0, %v9523
        %v9525 = vpop.f32.mrb[0].mxu0
        %9526 = vmatprep.mubr.bf16.mxu0 0
        %9527 = vmatmul.mubr.bf16.gmra.mrb[0].mxu0 %v9018
        %v9528 = vpop.f32.mrb[0].mxu0
        %v9529 = vadd.f32 0.0, %v9528
        %v9530 = vpop.f32.mrb[0].mxu0
        %v9531 = vpop.f32.mrb[0].mxu0
        %v9532 = vadd.f32 0.0, %v9531
        %v9533 = vpop.f32.mrb[0].mxu0
        %9534 = vmatprep.mubr.bf16.mxu0 0
        %9535 = vmatmul.mubr.bf16.gmra.mrb[0].mxu0 %v9021
        %v9536 = vpop.f32.mrb[0].mxu0
        %v9537 = vadd.f32 0.0, %v9536
        %v9538 = vpop.f32.mrb[0].mxu0
        %v9539 = vpop.f32.mrb[0].mxu0
        %v9540 = vadd.f32 0.0, %v9539
        %v9541 = vpop.f32.mrb[0].mxu0
        %9542 = vmatprep.mubr.bf16.mxu0 0
        %9543 = vmatmul.mubr.bf16.gmra.mrb[0].mxu0 %v9024
        %v9544 = vpop.f32.mrb[0].mxu0
        %v9545 = vadd.f32 0.0, %v9544
        %v9546 = vpop.f32.mrb[0].mxu0
        %v9547 = vpop.f32.mrb[0].mxu0
        %v9548 = vadd.f32 0.0, %v9547
        %v9549 = vpop.f32.mrb[0].mxu0
        %9550 = vmatprep.mubr.bf16.mxu0 0
        %9551 = vmatmul.mubr.bf16.gmra.mrb[0].mxu0 %v9027
        %v9552 = vpop.f32.mrb[0].mxu0
        %v9553 = vadd.f32 0.0, %v9552
        %v9554 = vpop.f32.mrb[0].mxu0
        %v9555 = vpop.f32.mrb[0].mxu0
        %v9556 = vadd.f32 0.0, %v9555
        %v9557 = vpop.f32.mrb[0].mxu0
        %9558 = vmatprep.mubr.bf16.mxu0 0
        %9559 = vmatmul.mubr.bf16.gmra.mrb[0].mxu0 %v9030
        %v9560 = vpop.f32.mrb[0].mxu0
        %v9561 = vadd.f32 0.0, %v9560
        %v9562 = vpop.f32.mrb[0].mxu0
        %v9563 = vpop.f32.mrb[0].mxu0
        %v9564 = vadd.f32 0.0, %v9563
        %v9565 = vpop.f32.mrb[0].mxu0
        %9566 = vmatprep.mubr.bf16.mxu0 0
        %9567 = vmatmul.mubr.bf16.gmra.mrb[0].mxu0 %v9033
        %v9568 = vpop.f32.mrb[0].mxu0
        %v9569 = vadd.f32 0.0, %v9568
        %v9570 = vpop.f32.mrb[0].mxu0
        %v9571 = vpop.f32.mrb[0].mxu0
        %v9572 = vadd.f32 0.0, %v9571
        %v9573 = vpop.f32.mrb[0].mxu0
        %9574 = vmatprep.mubr.bf16.mxu0 0
        %9575 = vmatmul.mubr.bf16.gmra.mrb[0].mxu0 %v9036
        %v9576 = vpop.f32.mrb[0].mxu0
        %v9577 = vadd.f32 0.0, %v9576
        %v9578 = vpop.f32.mrb[0].mxu0
        %v9579 = vpop.f32.mrb[0].mxu0
        %v9580 = vadd.f32 0.0, %v9579
        %v9581 = vpop.f32.mrb[0].mxu0
        %9582 = vdwg.mxu0
        %v9583 = vadd.f32 %v8621, %v9073
        %v9584 = vadd.f32 %v8622, %v9076
        %v9585 = vadd.f32 %v8623, %v9081
        %v9586 = vadd.f32 %v8624, %v9084
        %v9587 = vadd.f32 %v8625, %v9089
        %v9588 = vadd.f32 %v8626, %v9092
        %v9589 = vadd.f32 %v8627, %v9097
        %v9590 = vadd.f32 %v8628, %v9100
        %v9591 = vadd.f32 %v8629, %v9105
        %v9592 = vadd.f32 %v8630, %v9108
        %v9593 = vadd.f32 %v8631, %v9113
        %v9594 = vadd.f32 %v8632, %v9116
        %v9595 = vadd.f32 %v8633, %v9121
        %v9596 = vadd.f32 %v8634, %v9124
        %v9597 = vadd.f32 %v8635, %v9129
        %v9598 = vadd.f32 %v8636, %v9132
        %v9599 = vadd.f32 %v8637, %v9137
        %v9600 = vadd.f32 %v8638, %v9140
        %v9601 = vadd.f32 %v8639, %v9145
        %v9602 = vadd.f32 %v8640, %v9148
        %v9603 = vadd.f32 %v8641, %v9153
        %v9604 = vadd.f32 %v8642, %v9156
        %v9605 = vadd.f32 %v8643, %v9161
        %v9606 = vadd.f32 %v8644, %v9164
        %v9607 = vadd.f32 %v8645, %v9169
        %v9608 = vadd.f32 %v8646, %v9172
        %v9609 = vadd.f32 %v8647, %v9177
        %v9610 = vadd.f32 %v8648, %v9180
        %v9611 = vadd.f32 %v8649, %v9185
        %v9612 = vadd.f32 %v8650, %v9188
        %v9613 = vadd.f32 %v8651, %v9193
        %v9614 = vadd.f32 %v8652, %v9196
        %v9615 = vadd.f32 %v8653, %v9201
        %v9616 = vadd.f32 %v8654, %v9204
        %v9617 = vadd.f32 %v8655, %v9209
        %v9618 = vadd.f32 %v8656, %v9212
        %v9619 = vadd.f32 %v8657, %v9217
        %v9620 = vadd.f32 %v8658, %v9220
        %v9621 = vadd.f32 %v8659, %v9225
        %v9622 = vadd.f32 %v8660, %v9228
        %v9623 = vadd.f32 %v8661, %v9233
        %v9624 = vadd.f32 %v8662, %v9236
        %v9625 = vadd.f32 %v8663, %v9241
        %v9626 = vadd.f32 %v8664, %v9244
        %v9627 = vadd.f32 %v8665, %v9249
        %v9628 = vadd.f32 %v8666, %v9252
        %v9629 = vadd.f32 %v8667, %v9257
        %v9630 = vadd.f32 %v8668, %v9260
        %v9631 = vadd.f32 %v8669, %v9265
        %v9632 = vadd.f32 %v8670, %v9268
        %v9633 = vadd.f32 %v8671, %v9273
        %v9634 = vadd.f32 %v8672, %v9276
        %v9635 = vadd.f32 %v8673, %v9281
        %v9636 = vadd.f32 %v8674, %v9284
        %v9637 = vadd.f32 %v8675, %v9289
        %v9638 = vadd.f32 %v8676, %v9292
        %v9639 = vadd.f32 %v8677, %v9297
        %v9640 = vadd.f32 %v8678, %v9300
        %v9641 = vadd.f32 %v8679, %v9305
        %v9642 = vadd.f32 %v8680, %v9308
        %v9643 = vadd.f32 %v8681, %v9313
        %v9644 = vadd.f32 %v8682, %v9316
        %v9645 = vadd.f32 %v8683, %v9321
        %v9646 = vadd.f32 %v8684, %v9324
        %v9647 = vadd.f32 %v8685, %v9329
        %v9648 = vadd.f32 %v8686, %v9332
        %v9649 = vadd.f32 %v8687, %v9337
        %v9650 = vadd.f32 %v8688, %v9340
        %v9651 = vadd.f32 %v8689, %v9345
        %v9652 = vadd.f32 %v8690, %v9348
        %v9653 = vadd.f32 %v8691, %v9353
        %v9654 = vadd.f32 %v8692, %v9356
        %v9655 = vadd.f32 %v8693, %v9361
        %v9656 = vadd.f32 %v8694, %v9364
        %v9657 = vadd.f32 %v8695, %v9369
        %v9658 = vadd.f32 %v8696, %v9372
        %v9659 = vadd.f32 %v8697, %v9377
        %v9660 = vadd.f32 %v8698, %v9380
        %v9661 = vadd.f32 %v8699, %v9385
        %v9662 = vadd.f32 %v8700, %v9388
        %v9663 = vadd.f32 %v8701, %v9393
        %v9664 = vadd.f32 %v8702, %v9396
        %v9665 = vadd.f32 %v8703, %v9401
        %v9666 = vadd.f32 %v8704, %v9404
        %v9667 = vadd.f32 %v8705, %v9409
        %v9668 = vadd.f32 %v8706, %v9412
        %v9669 = vadd.f32 %v8707, %v9417
        %v9670 = vadd.f32 %v8708, %v9420
        %v9671 = vadd.f32 %v8709, %v9425
        %v9672 = vadd.f32 %v8710, %v9428
        %v9673 = vadd.f32 %v8711, %v9433
        %v9674 = vadd.f32 %v8712, %v9436
        %v9675 = vadd.f32 %v8713, %v9441
        %v9676 = vadd.f32 %v8714, %v9444
        %v9677 = vadd.f32 %v8715, %v9449
        %v9678 = vadd.f32 %v8716, %v9452
        %v9679 = vadd.f32 %v8717, %v9457
        %v9680 = vadd.f32 %v8718, %v9460
        %v9681 = vadd.f32 %v8719, %v9465
        %v9682 = vadd.f32 %v8720, %v9468
        %v9683 = vadd.f32 %v8721, %v9473
        %v9684 = vadd.f32 %v8722, %v9476
        %v9685 = vadd.f32 %v8723, %v9481
        %v9686 = vadd.f32 %v8724, %v9484
        %v9687 = vadd.f32 %v8725, %v9489
        %v9688 = vadd.f32 %v8726, %v9492
        %v9689 = vadd.f32 %v8727, %v9497
        %v9690 = vadd.f32 %v8728, %v9500
        %v9691 = vadd.f32 %v8729, %v9505
        %v9692 = vadd.f32 %v8730, %v9508
        %v9693 = vadd.f32 %v8731, %v9513
        %v9694 = vadd.f32 %v8732, %v9516
        %v9695 = vadd.f32 %v8733, %v9521
        %v9696 = vadd.f32 %v8734, %v9524
        %v9697 = vadd.f32 %v8735, %v9529
        %v9698 = vadd.f32 %v8736, %v9532
        %v9699 = vadd.f32 %v8737, %v9537
        %v9700 = vadd.f32 %v8738, %v9540
        %v9701 = vadd.f32 %v8739, %v9545
        %v9702 = vadd.f32 %v8740, %v9548
        %v9703 = vadd.f32 %v8741, %v9553
        %v9704 = vadd.f32 %v8742, %v9556
        %v9705 = vadd.f32 %v8743, %v9561
        %v9706 = vadd.f32 %v8744, %v9564
        %v9707 = vadd.f32 %v8745, %v9569
        %v9708 = vadd.f32 %v8746, %v9572
        %v9709 = vadd.f32 %v8747, %v9577
        %v9710 = vadd.f32 %v8748, %v9580
        %s9711 = scalar_lea.vmem [#allocation2], 576
        %v9712 = vld [vmem:[%s9711] sm:$0xff]
        %v9713 = vld [vmem:[%s9711 + $0x8] sm:$0xff]
        %v9714 = vld [vmem:[%s9711 + $0x10] sm:$0xff]
        %v9715 = vld [vmem:[%s9711 + $0x18] sm:$0xff]
        %v9716 = vld [vmem:[%s9711 + $0x20] sm:$0xff]
        %v9717 = vld [vmem:[%s9711 + $0x28] sm:$0xff]
        %v9718 = vld [vmem:[%s9711 + $0x30] sm:$0xff]
        %v9719 = vld [vmem:[%s9711 + $0x38] sm:$0xff]
        %v9720 = vld [vmem:[%s9711 + $0x40] sm:$0xff]
        %v9721 = vld [vmem:[%s9711 + $0x48] sm:$0xff]
        %v9722 = vld [vmem:[%s9711 + $0x50] sm:$0xff]
        %v9723 = vld [vmem:[%s9711 + $0x58] sm:$0xff]
        %v9724 = vld [vmem:[%s9711 + $0x60] sm:$0xff]
        %v9725 = vld [vmem:[%s9711 + $0x68] sm:$0xff]
        %v9726 = vld [vmem:[%s9711 + $0x70] sm:$0xff]
        %v9727 = vld [vmem:[%s9711 + $0x78] sm:$0xff]
        %v9728 = vld [vmem:[%s9711 + $0x80] sm:$0xff]
        %v9729 = vld [vmem:[%s9711 + $0x88] sm:$0xff]
        %v9730 = vld [vmem:[%s9711 + $0x90] sm:$0xff]
        %v9731 = vld [vmem:[%s9711 + $0x98] sm:$0xff]
        %v9732 = vld [vmem:[%s9711 + $0xa0] sm:$0xff]
        %v9733 = vld [vmem:[%s9711 + $0xa8] sm:$0xff]
        %v9734 = vld [vmem:[%s9711 + $0xb0] sm:$0xff]
        %v9735 = vld [vmem:[%s9711 + $0xb8] sm:$0xff]
        %v9736 = vld [vmem:[%s9711 + $0xc0] sm:$0xff]
        %v9737 = vld [vmem:[%s9711 + $0xc8] sm:$0xff]
        %v9738 = vld [vmem:[%s9711 + $0xd0] sm:$0xff]
        %v9739 = vld [vmem:[%s9711 + $0xd8] sm:$0xff]
        %v9740 = vld [vmem:[%s9711 + $0xe0] sm:$0xff]
        %v9741 = vld [vmem:[%s9711 + $0xe8] sm:$0xff]
        %v9742 = vld [vmem:[%s9711 + $0xf0] sm:$0xff]
        %v9743 = vld [vmem:[%s9711 + $0xf8] sm:$0xff]
        %v9744 = vld [vmem:[%s9711 + $0x100] sm:$0xff]
        %v9745 = vld [vmem:[%s9711 + $0x108] sm:$0xff]
        %v9746 = vld [vmem:[%s9711 + $0x110] sm:$0xff]
        %v9747 = vld [vmem:[%s9711 + $0x118] sm:$0xff]
        %v9748 = vld [vmem:[%s9711 + $0x120] sm:$0xff]
        %v9749 = vld [vmem:[%s9711 + $0x128] sm:$0xff]
        %v9750 = vld [vmem:[%s9711 + $0x130] sm:$0xff]
        %v9751 = vld [vmem:[%s9711 + $0x138] sm:$0xff]
        %v9752 = vld [vmem:[%s9711 + $0x140] sm:$0xff]
        %v9753 = vld [vmem:[%s9711 + $0x148] sm:$0xff]
        %v9754 = vld [vmem:[%s9711 + $0x150] sm:$0xff]
        %v9755 = vld [vmem:[%s9711 + $0x158] sm:$0xff]
        %v9756 = vld [vmem:[%s9711 + $0x160] sm:$0xff]
        %v9757 = vld [vmem:[%s9711 + $0x168] sm:$0xff]
        %v9758 = vld [vmem:[%s9711 + $0x170] sm:$0xff]
        %v9759 = vld [vmem:[%s9711 + $0x178] sm:$0xff]
        %v9760 = vld [vmem:[%s9711 + $0x180] sm:$0xff]
        %v9761 = vld [vmem:[%s9711 + $0x188] sm:$0xff]
        %v9762 = vld [vmem:[%s9711 + $0x190] sm:$0xff]
        %v9763 = vld [vmem:[%s9711 + $0x198] sm:$0xff]
        %v9764 = vld [vmem:[%s9711 + $0x1a0] sm:$0xff]
        %v9765 = vld [vmem:[%s9711 + $0x1a8] sm:$0xff]
        %v9766 = vld [vmem:[%s9711 + $0x1b0] sm:$0xff]
        %v9767 = vld [vmem:[%s9711 + $0x1b8] sm:$0xff]
        %v9768 = vld [vmem:[%s9711 + $0x1c0] sm:$0xff]
        %v9769 = vld [vmem:[%s9711 + $0x1c8] sm:$0xff]
        %v9770 = vld [vmem:[%s9711 + $0x1d0] sm:$0xff]
        %v9771 = vld [vmem:[%s9711 + $0x1d8] sm:$0xff]
        %v9772 = vld [vmem:[%s9711 + $0x1e0] sm:$0xff]
        %v9773 = vld [vmem:[%s9711 + $0x1e8] sm:$0xff]
        %v9774 = vld [vmem:[%s9711 + $0x1f0] sm:$0xff]
        %v9775 = vld [vmem:[%s9711 + $0x1f8] sm:$0xff]
        %v9776 = vld [vmem:[%s264 + $0xe0] sm:$0xf]
        %v9777 = vld [vmem:[%s264 + $0xe4] sm:$0xf]
        %v9778 = vld [vmem:[%s264 + $0xe8] sm:$0xf]
        %v9779 = vld [vmem:[%s264 + $0xec] sm:$0xf]
        %v9780 = vld [vmem:[%s264 + $0xf0] sm:$0xf]
        %v9781 = vld [vmem:[%s264 + $0xf4] sm:$0xf]
        %v9782 = vld [vmem:[%s264 + $0xf8] sm:$0xf]
        %v9783 = vld [vmem:[%s264 + $0xfc] sm:$0xf]
        %v9792 = vunpack.c.l.b16 %v9776
        %v9793 = vunpack.c.l.b16 %v9777
        %v9794 = vunpack.c.l.b16 %v9778
        %v9795 = vunpack.c.l.b16 %v9779
        %v9796 = vunpack.c.l.b16 %v9780
        %v9797 = vunpack.c.l.b16 %v9781
        %v9798 = vunpack.c.l.b16 %v9782
        %v9799 = vunpack.c.l.b16 %v9783
        %v9800 = vpack.c.b16 %v9793, %v9792
        %v9801 = vpack.c.b16 %v9795, %v9794
        %v9802 = vpack.c.b16 %v9797, %v9796
        %v9803 = vpack.c.b16 %v9799, %v9798
        %v9809 = vsel %vm817, %v9712, 0
        %v9812 = vsel %vm817, %v9713, 0
        %v9815 = vsel %vm817, %v9714, 0
        %v9818 = vsel %vm817, %v9715, 0
        %v9821 = vsel %vm817, %v9716, 0
        %v9824 = vsel %vm817, %v9717, 0
        %v9827 = vsel %vm817, %v9718, 0
        %v9830 = vsel %vm817, %v9719, 0
        %v9833 = vsel %vm817, %v9720, 0
        %v9836 = vsel %vm817, %v9721, 0
        %v9839 = vsel %vm817, %v9722, 0
        %v9842 = vsel %vm817, %v9723, 0
        %v9845 = vsel %vm817, %v9724, 0
        %v9848 = vsel %vm817, %v9725, 0
        %v9851 = vsel %vm817, %v9726, 0
        %v9854 = vsel %vm817, %v9727, 0
        %v9857 = vsel %vm817, %v9728, 0
        %v9860 = vsel %vm817, %v9729, 0
        %v9863 = vsel %vm817, %v9730, 0
        %v9866 = vsel %vm817, %v9731, 0
        %v9869 = vsel %vm817, %v9732, 0
        %v9872 = vsel %vm817, %v9733, 0
        %v9875 = vsel %vm817, %v9734, 0
        %v9878 = vsel %vm817, %v9735, 0
        %v9881 = vsel %vm817, %v9736, 0
        %v9884 = vsel %vm817, %v9737, 0
        %v9887 = vsel %vm817, %v9738, 0
        %v9890 = vsel %vm817, %v9739, 0
        %v9893 = vsel %vm817, %v9740, 0
        %v9896 = vsel %vm817, %v9741, 0
        %v9899 = vsel %vm817, %v9742, 0
        %v9902 = vsel %vm817, %v9743, 0
        %v9905 = vsel %vm817, %v9744, 0
        %v9908 = vsel %vm817, %v9745, 0
        %v9911 = vsel %vm817, %v9746, 0
        %v9914 = vsel %vm817, %v9747, 0
        %v9917 = vsel %vm817, %v9748, 0
        %v9920 = vsel %vm817, %v9749, 0
        %v9923 = vsel %vm817, %v9750, 0
        %v9926 = vsel %vm817, %v9751, 0
        %v9929 = vsel %vm817, %v9752, 0
        %v9932 = vsel %vm817, %v9753, 0
        %v9935 = vsel %vm817, %v9754, 0
        %v9938 = vsel %vm817, %v9755, 0
        %v9941 = vsel %vm817, %v9756, 0
        %v9944 = vsel %vm817, %v9757, 0
        %v9947 = vsel %vm817, %v9758, 0
        %v9950 = vsel %vm817, %v9759, 0
        %v9953 = vsel %vm817, %v9760, 0
        %v9956 = vsel %vm817, %v9761, 0
        %v9959 = vsel %vm817, %v9762, 0
        %v9962 = vsel %vm817, %v9763, 0
        %v9965 = vsel %vm817, %v9764, 0
        %v9968 = vsel %vm817, %v9765, 0
        %v9971 = vsel %vm817, %v9766, 0
        %v9974 = vsel %vm817, %v9767, 0
        %v9977 = vsel %vm817, %v9768, 0
        %v9980 = vsel %vm817, %v9769, 0
        %v9983 = vsel %vm817, %v9770, 0
        %v9986 = vsel %vm817, %v9771, 0
        %v9989 = vsel %vm817, %v9772, 0
        %v9992 = vsel %vm817, %v9773, 0
        %v9995 = vsel %vm817, %v9774, 0
        %v9998 = vsel %vm817, %v9775, 0
        %10000 = vmatprep.subr.bf16.mxu0 0
        %10001 = vmatpush1.bf16.msra.mxu0 %v9800
        %10002 = vmatprep.subr.bf16.mxu0 0
        %10003 = vmatpush1.bf16.msra.mxu0 %v9801
        %10004 = vmatprep.subr.bf16.mxu0 0
        %10005 = vmatpush1.bf16.msra.mxu0 %v9802
        %10006 = vmatprep.subr.bf16.mxu0 0
        %10007 = vmatpush1.bf16.msra.mxu0 %v9803
        %10008 = vmatprep.subr.bf16.mxu0 0
        %10009 = vmatpush1.bf16.msra.mxu0 0
        %10010 = vmatprep.subr.bf16.mxu0 0
        %10011 = vmatpush1.bf16.msra.mxu0 0
        %10012 = vmatprep.subr.bf16.mxu0 0
        %10013 = vmatpush1.bf16.msra.mxu0 0
        %10014 = vmatprep.subr.bf16.mxu0 0
        %10015 = vmatpush1.bf16.msra.mxu0 0
        %10016 = vmatprep.subr.bf16.mxu0 0
        %10017 = vmatpush1.bf16.msra.mxu0 0
        %10018 = vmatprep.subr.bf16.mxu0 0
        %10019 = vmatpush1.bf16.msra.mxu0 0
        %10020 = vmatprep.subr.bf16.mxu0 0
        %10021 = vmatpush1.bf16.msra.mxu0 0
        %10022 = vmatprep.subr.bf16.mxu0 0
        %10023 = vmatpush1.bf16.msra.mxu0 0
        %10024 = vmatprep.subr.bf16.mxu0 0
        %10025 = vmatpush1.bf16.msra.mxu0 0
        %10026 = vmatprep.subr.bf16.mxu0 0
        %10027 = vmatpush1.bf16.msra.mxu0 0
        %10028 = vmatprep.subr.bf16.mxu0 0
        %10029 = vmatpush1.bf16.msra.mxu0 0
        %10030 = vmatprep.subr.bf16.mxu0 0
        %10031 = vmatpush1.bf16.msra.mxu0 0
        %10032 = vmatprep.mubr.bf16.mxu0 0
        %10033 = vmatmul.mubr.bf16.gmra.mrb[0].mxu0 %v9809
        %v10034 = vpop.f32.mrb[0].mxu0
        %v10035 = vadd.f32 0.0, %v10034
        %v10036 = vpop.f32.mrb[0].mxu0
        %v10037 = vpop.f32.mrb[0].mxu0
        %v10038 = vadd.f32 0.0, %v10037
        %v10039 = vpop.f32.mrb[0].mxu0
        %10040 = vmatprep.mubr.bf16.mxu0 0
        %10041 = vmatmul.mubr.bf16.gmra.mrb[0].mxu0 %v9812
        %v10042 = vpop.f32.mrb[0].mxu0
        %v10043 = vadd.f32 0.0, %v10042
        %v10044 = vpop.f32.mrb[0].mxu0
        %v10045 = vpop.f32.mrb[0].mxu0
        %v10046 = vadd.f32 0.0, %v10045
        %v10047 = vpop.f32.mrb[0].mxu0
        %10048 = vmatprep.mubr.bf16.mxu0 0
        %10049 = vmatmul.mubr.bf16.gmra.mrb[0].mxu0 %v9815
        %v10050 = vpop.f32.mrb[0].mxu0
        %v10051 = vadd.f32 0.0, %v10050
        %v10052 = vpop.f32.mrb[0].mxu0
        %v10053 = vpop.f32.mrb[0].mxu0
        %v10054 = vadd.f32 0.0, %v10053
        %v10055 = vpop.f32.mrb[0].mxu0
        %10056 = vmatprep.mubr.bf16.mxu0 0
        %10057 = vmatmul.mubr.bf16.gmra.mrb[0].mxu0 %v9818
        %v10058 = vpop.f32.mrb[0].mxu0
        %v10059 = vadd.f32 0.0, %v10058
        %v10060 = vpop.f32.mrb[0].mxu0
        %v10061 = vpop.f32.mrb[0].mxu0
        %v10062 = vadd.f32 0.0, %v10061
        %v10063 = vpop.f32.mrb[0].mxu0
        %10064 = vmatprep.mubr.bf16.mxu0 0
        %10065 = vmatmul.mubr.bf16.gmra.mrb[0].mxu0 %v9821
        %v10066 = vpop.f32.mrb[0].mxu0
        %v10067 = vadd.f32 0.0, %v10066
        %v10068 = vpop.f32.mrb[0].mxu0
        %v10069 = vpop.f32.mrb[0].mxu0
        %v10070 = vadd.f32 0.0, %v10069
        %v10071 = vpop.f32.mrb[0].mxu0
        %10072 = vmatprep.mubr.bf16.mxu0 0
        %10073 = vmatmul.mubr.bf16.gmra.mrb[0].mxu0 %v9824
        %v10074 = vpop.f32.mrb[0].mxu0
        %v10075 = vadd.f32 0.0, %v10074
        %v10076 = vpop.f32.mrb[0].mxu0
        %v10077 = vpop.f32.mrb[0].mxu0
        %v10078 = vadd.f32 0.0, %v10077
        %v10079 = vpop.f32.mrb[0].mxu0
        %10080 = vmatprep.mubr.bf16.mxu0 0
        %10081 = vmatmul.mubr.bf16.gmra.mrb[0].mxu0 %v9827
        %v10082 = vpop.f32.mrb[0].mxu0
        %v10083 = vadd.f32 0.0, %v10082
        %v10084 = vpop.f32.mrb[0].mxu0
        %v10085 = vpop.f32.mrb[0].mxu0
        %v10086 = vadd.f32 0.0, %v10085
        %v10087 = vpop.f32.mrb[0].mxu0
        %10088 = vmatprep.mubr.bf16.mxu0 0
        %10089 = vmatmul.mubr.bf16.gmra.mrb[0].mxu0 %v9830
        %v10090 = vpop.f32.mrb[0].mxu0
        %v10091 = vadd.f32 0.0, %v10090
        %v10092 = vpop.f32.mrb[0].mxu0
        %v10093 = vpop.f32.mrb[0].mxu0
        %v10094 = vadd.f32 0.0, %v10093
        %v10095 = vpop.f32.mrb[0].mxu0
        %10096 = vmatprep.mubr.bf16.mxu0 0
        %10097 = vmatmul.mubr.bf16.gmra.mrb[0].mxu0 %v9833
        %v10098 = vpop.f32.mrb[0].mxu0
        %v10099 = vadd.f32 0.0, %v10098
        %v10100 = vpop.f32.mrb[0].mxu0
        %v10101 = vpop.f32.mrb[0].mxu0
        %v10102 = vadd.f32 0.0, %v10101
        %v10103 = vpop.f32.mrb[0].mxu0
        %10104 = vmatprep.mubr.bf16.mxu0 0
        %10105 = vmatmul.mubr.bf16.gmra.mrb[0].mxu0 %v9836
        %v10106 = vpop.f32.mrb[0].mxu0
        %v10107 = vadd.f32 0.0, %v10106
        %v10108 = vpop.f32.mrb[0].mxu0
        %v10109 = vpop.f32.mrb[0].mxu0
        %v10110 = vadd.f32 0.0, %v10109
        %v10111 = vpop.f32.mrb[0].mxu0
        %10112 = vmatprep.mubr.bf16.mxu0 0
        %10113 = vmatmul.mubr.bf16.gmra.mrb[0].mxu0 %v9839
        %v10114 = vpop.f32.mrb[0].mxu0
        %v10115 = vadd.f32 0.0, %v10114
        %v10116 = vpop.f32.mrb[0].mxu0
        %v10117 = vpop.f32.mrb[0].mxu0
        %v10118 = vadd.f32 0.0, %v10117
        %v10119 = vpop.f32.mrb[0].mxu0
        %10120 = vmatprep.mubr.bf16.mxu0 0
        %10121 = vmatmul.mubr.bf16.gmra.mrb[0].mxu0 %v9842
        %v10122 = vpop.f32.mrb[0].mxu0
        %v10123 = vadd.f32 0.0, %v10122
        %v10124 = vpop.f32.mrb[0].mxu0
        %v10125 = vpop.f32.mrb[0].mxu0
        %v10126 = vadd.f32 0.0, %v10125
        %v10127 = vpop.f32.mrb[0].mxu0
        %10128 = vmatprep.mubr.bf16.mxu0 0
        %10129 = vmatmul.mubr.bf16.gmra.mrb[0].mxu0 %v9845
        %v10130 = vpop.f32.mrb[0].mxu0
        %v10131 = vadd.f32 0.0, %v10130
        %v10132 = vpop.f32.mrb[0].mxu0
        %v10133 = vpop.f32.mrb[0].mxu0
        %v10134 = vadd.f32 0.0, %v10133
        %v10135 = vpop.f32.mrb[0].mxu0
        %10136 = vmatprep.mubr.bf16.mxu0 0
        %10137 = vmatmul.mubr.bf16.gmra.mrb[0].mxu0 %v9848
        %v10138 = vpop.f32.mrb[0].mxu0
        %v10139 = vadd.f32 0.0, %v10138
        %v10140 = vpop.f32.mrb[0].mxu0
        %v10141 = vpop.f32.mrb[0].mxu0
        %v10142 = vadd.f32 0.0, %v10141
        %v10143 = vpop.f32.mrb[0].mxu0
        %10144 = vmatprep.mubr.bf16.mxu0 0
        %10145 = vmatmul.mubr.bf16.gmra.mrb[0].mxu0 %v9851
        %v10146 = vpop.f32.mrb[0].mxu0
        %v10147 = vadd.f32 0.0, %v10146
        %v10148 = vpop.f32.mrb[0].mxu0
        %v10149 = vpop.f32.mrb[0].mxu0
        %v10150 = vadd.f32 0.0, %v10149
        %v10151 = vpop.f32.mrb[0].mxu0
        %10152 = vmatprep.mubr.bf16.mxu0 0
        %10153 = vmatmul.mubr.bf16.gmra.mrb[0].mxu0 %v9854
        %v10154 = vpop.f32.mrb[0].mxu0
        %v10155 = vadd.f32 0.0, %v10154
        %v10156 = vpop.f32.mrb[0].mxu0
        %v10157 = vpop.f32.mrb[0].mxu0
        %v10158 = vadd.f32 0.0, %v10157
        %v10159 = vpop.f32.mrb[0].mxu0
        %10160 = vmatprep.mubr.bf16.mxu0 0
        %10161 = vmatmul.mubr.bf16.gmra.mrb[0].mxu0 %v9857
        %v10162 = vpop.f32.mrb[0].mxu0
        %v10163 = vadd.f32 0.0, %v10162
        %v10164 = vpop.f32.mrb[0].mxu0
        %v10165 = vpop.f32.mrb[0].mxu0
        %v10166 = vadd.f32 0.0, %v10165
        %v10167 = vpop.f32.mrb[0].mxu0
        %10168 = vmatprep.mubr.bf16.mxu0 0
        %10169 = vmatmul.mubr.bf16.gmra.mrb[0].mxu0 %v9860
        %v10170 = vpop.f32.mrb[0].mxu0
        %v10171 = vadd.f32 0.0, %v10170
        %v10172 = vpop.f32.mrb[0].mxu0
        %v10173 = vpop.f32.mrb[0].mxu0
        %v10174 = vadd.f32 0.0, %v10173
        %v10175 = vpop.f32.mrb[0].mxu0
        %10176 = vmatprep.mubr.bf16.mxu0 0
        %10177 = vmatmul.mubr.bf16.gmra.mrb[0].mxu0 %v9863
        %v10178 = vpop.f32.mrb[0].mxu0
        %v10179 = vadd.f32 0.0, %v10178
        %v10180 = vpop.f32.mrb[0].mxu0
        %v10181 = vpop.f32.mrb[0].mxu0
        %v10182 = vadd.f32 0.0, %v10181
        %v10183 = vpop.f32.mrb[0].mxu0
        %10184 = vmatprep.mubr.bf16.mxu0 0
        %10185 = vmatmul.mubr.bf16.gmra.mrb[0].mxu0 %v9866
        %v10186 = vpop.f32.mrb[0].mxu0
        %v10187 = vadd.f32 0.0, %v10186
        %v10188 = vpop.f32.mrb[0].mxu0
        %v10189 = vpop.f32.mrb[0].mxu0
        %v10190 = vadd.f32 0.0, %v10189
        %v10191 = vpop.f32.mrb[0].mxu0
        %10192 = vmatprep.mubr.bf16.mxu0 0
        %10193 = vmatmul.mubr.bf16.gmra.mrb[0].mxu0 %v9869
        %v10194 = vpop.f32.mrb[0].mxu0
        %v10195 = vadd.f32 0.0, %v10194
        %v10196 = vpop.f32.mrb[0].mxu0
        %v10197 = vpop.f32.mrb[0].mxu0
        %v10198 = vadd.f32 0.0, %v10197
        %v10199 = vpop.f32.mrb[0].mxu0
        %10200 = vmatprep.mubr.bf16.mxu0 0
        %10201 = vmatmul.mubr.bf16.gmra.mrb[0].mxu0 %v9872
        %v10202 = vpop.f32.mrb[0].mxu0
        %v10203 = vadd.f32 0.0, %v10202
        %v10204 = vpop.f32.mrb[0].mxu0
        %v10205 = vpop.f32.mrb[0].mxu0
        %v10206 = vadd.f32 0.0, %v10205
        %v10207 = vpop.f32.mrb[0].mxu0
        %10208 = vmatprep.mubr.bf16.mxu0 0
        %10209 = vmatmul.mubr.bf16.gmra.mrb[0].mxu0 %v9875
        %v10210 = vpop.f32.mrb[0].mxu0
        %v10211 = vadd.f32 0.0, %v10210
        %v10212 = vpop.f32.mrb[0].mxu0
        %v10213 = vpop.f32.mrb[0].mxu0
        %v10214 = vadd.f32 0.0, %v10213
        %v10215 = vpop.f32.mrb[0].mxu0
        %10216 = vmatprep.mubr.bf16.mxu0 0
        %10217 = vmatmul.mubr.bf16.gmra.mrb[0].mxu0 %v9878
        %v10218 = vpop.f32.mrb[0].mxu0
        %v10219 = vadd.f32 0.0, %v10218
        %v10220 = vpop.f32.mrb[0].mxu0
        %v10221 = vpop.f32.mrb[0].mxu0
        %v10222 = vadd.f32 0.0, %v10221
        %v10223 = vpop.f32.mrb[0].mxu0
        %10224 = vmatprep.mubr.bf16.mxu0 0
        %10225 = vmatmul.mubr.bf16.gmra.mrb[0].mxu0 %v9881
        %v10226 = vpop.f32.mrb[0].mxu0
        %v10227 = vadd.f32 0.0, %v10226
        %v10228 = vpop.f32.mrb[0].mxu0
        %v10229 = vpop.f32.mrb[0].mxu0
        %v10230 = vadd.f32 0.0, %v10229
        %v10231 = vpop.f32.mrb[0].mxu0
        %10232 = vmatprep.mubr.bf16.mxu0 0
        %10233 = vmatmul.mubr.bf16.gmra.mrb[0].mxu0 %v9884
        %v10234 = vpop.f32.mrb[0].mxu0
        %v10235 = vadd.f32 0.0, %v10234
        %v10236 = vpop.f32.mrb[0].mxu0
        %v10237 = vpop.f32.mrb[0].mxu0
        %v10238 = vadd.f32 0.0, %v10237
        %v10239 = vpop.f32.mrb[0].mxu0
        %10240 = vmatprep.mubr.bf16.mxu0 0
        %10241 = vmatmul.mubr.bf16.gmra.mrb[0].mxu0 %v9887
        %v10242 = vpop.f32.mrb[0].mxu0
        %v10243 = vadd.f32 0.0, %v10242
        %v10244 = vpop.f32.mrb[0].mxu0
        %v10245 = vpop.f32.mrb[0].mxu0
        %v10246 = vadd.f32 0.0, %v10245
        %v10247 = vpop.f32.mrb[0].mxu0
        %10248 = vmatprep.mubr.bf16.mxu0 0
        %10249 = vmatmul.mubr.bf16.gmra.mrb[0].mxu0 %v9890
        %v10250 = vpop.f32.mrb[0].mxu0
        %v10251 = vadd.f32 0.0, %v10250
        %v10252 = vpop.f32.mrb[0].mxu0
        %v10253 = vpop.f32.mrb[0].mxu0
        %v10254 = vadd.f32 0.0, %v10253
        %v10255 = vpop.f32.mrb[0].mxu0
        %10256 = vmatprep.mubr.bf16.mxu0 0
        %10257 = vmatmul.mubr.bf16.gmra.mrb[0].mxu0 %v9893
        %v10258 = vpop.f32.mrb[0].mxu0
        %v10259 = vadd.f32 0.0, %v10258
        %v10260 = vpop.f32.mrb[0].mxu0
        %v10261 = vpop.f32.mrb[0].mxu0
        %v10262 = vadd.f32 0.0, %v10261
        %v10263 = vpop.f32.mrb[0].mxu0
        %10264 = vmatprep.mubr.bf16.mxu0 0
        %10265 = vmatmul.mubr.bf16.gmra.mrb[0].mxu0 %v9896
        %v10266 = vpop.f32.mrb[0].mxu0
        %v10267 = vadd.f32 0.0, %v10266
        %v10268 = vpop.f32.mrb[0].mxu0
        %v10269 = vpop.f32.mrb[0].mxu0
        %v10270 = vadd.f32 0.0, %v10269
        %v10271 = vpop.f32.mrb[0].mxu0
        %10272 = vmatprep.mubr.bf16.mxu0 0
        %10273 = vmatmul.mubr.bf16.gmra.mrb[0].mxu0 %v9899
        %v10274 = vpop.f32.mrb[0].mxu0
        %v10275 = vadd.f32 0.0, %v10274
        %v10276 = vpop.f32.mrb[0].mxu0
        %v10277 = vpop.f32.mrb[0].mxu0
        %v10278 = vadd.f32 0.0, %v10277
        %v10279 = vpop.f32.mrb[0].mxu0
        %10280 = vmatprep.mubr.bf16.mxu0 0
        %10281 = vmatmul.mubr.bf16.gmra.mrb[0].mxu0 %v9902
        %v10282 = vpop.f32.mrb[0].mxu0
        %v10283 = vadd.f32 0.0, %v10282
        %v10284 = vpop.f32.mrb[0].mxu0
        %v10285 = vpop.f32.mrb[0].mxu0
        %v10286 = vadd.f32 0.0, %v10285
        %v10287 = vpop.f32.mrb[0].mxu0
        %10288 = vmatprep.mubr.bf16.mxu0 0
        %10289 = vmatmul.mubr.bf16.gmra.mrb[0].mxu0 %v9905
        %v10290 = vpop.f32.mrb[0].mxu0
        %v10291 = vadd.f32 0.0, %v10290
        %v10292 = vpop.f32.mrb[0].mxu0
        %v10293 = vpop.f32.mrb[0].mxu0
        %v10294 = vadd.f32 0.0, %v10293
        %v10295 = vpop.f32.mrb[0].mxu0
        %10296 = vmatprep.mubr.bf16.mxu0 0
        %10297 = vmatmul.mubr.bf16.gmra.mrb[0].mxu0 %v9908
        %v10298 = vpop.f32.mrb[0].mxu0
        %v10299 = vadd.f32 0.0, %v10298
        %v10300 = vpop.f32.mrb[0].mxu0
        %v10301 = vpop.f32.mrb[0].mxu0
        %v10302 = vadd.f32 0.0, %v10301
        %v10303 = vpop.f32.mrb[0].mxu0
        %10304 = vmatprep.mubr.bf16.mxu0 0
        %10305 = vmatmul.mubr.bf16.gmra.mrb[0].mxu0 %v9911
        %v10306 = vpop.f32.mrb[0].mxu0
        %v10307 = vadd.f32 0.0, %v10306
        %v10308 = vpop.f32.mrb[0].mxu0
        %v10309 = vpop.f32.mrb[0].mxu0
        %v10310 = vadd.f32 0.0, %v10309
        %v10311 = vpop.f32.mrb[0].mxu0
        %10312 = vmatprep.mubr.bf16.mxu0 0
        %10313 = vmatmul.mubr.bf16.gmra.mrb[0].mxu0 %v9914
        %v10314 = vpop.f32.mrb[0].mxu0
        %v10315 = vadd.f32 0.0, %v10314
        %v10316 = vpop.f32.mrb[0].mxu0
        %v10317 = vpop.f32.mrb[0].mxu0
        %v10318 = vadd.f32 0.0, %v10317
        %v10319 = vpop.f32.mrb[0].mxu0
        %10320 = vmatprep.mubr.bf16.mxu0 0
        %10321 = vmatmul.mubr.bf16.gmra.mrb[0].mxu0 %v9917
        %v10322 = vpop.f32.mrb[0].mxu0
        %v10323 = vadd.f32 0.0, %v10322
        %v10324 = vpop.f32.mrb[0].mxu0
        %v10325 = vpop.f32.mrb[0].mxu0
        %v10326 = vadd.f32 0.0, %v10325
        %v10327 = vpop.f32.mrb[0].mxu0
        %10328 = vmatprep.mubr.bf16.mxu0 0
        %10329 = vmatmul.mubr.bf16.gmra.mrb[0].mxu0 %v9920
        %v10330 = vpop.f32.mrb[0].mxu0
        %v10331 = vadd.f32 0.0, %v10330
        %v10332 = vpop.f32.mrb[0].mxu0
        %v10333 = vpop.f32.mrb[0].mxu0
        %v10334 = vadd.f32 0.0, %v10333
        %v10335 = vpop.f32.mrb[0].mxu0
        %10336 = vmatprep.mubr.bf16.mxu0 0
        %10337 = vmatmul.mubr.bf16.gmra.mrb[0].mxu0 %v9923
        %v10338 = vpop.f32.mrb[0].mxu0
        %v10339 = vadd.f32 0.0, %v10338
        %v10340 = vpop.f32.mrb[0].mxu0
        %v10341 = vpop.f32.mrb[0].mxu0
        %v10342 = vadd.f32 0.0, %v10341
        %v10343 = vpop.f32.mrb[0].mxu0
        %10344 = vmatprep.mubr.bf16.mxu0 0
        %10345 = vmatmul.mubr.bf16.gmra.mrb[0].mxu0 %v9926
        %v10346 = vpop.f32.mrb[0].mxu0
        %v10347 = vadd.f32 0.0, %v10346
        %v10348 = vpop.f32.mrb[0].mxu0
        %v10349 = vpop.f32.mrb[0].mxu0
        %v10350 = vadd.f32 0.0, %v10349
        %v10351 = vpop.f32.mrb[0].mxu0
        %10352 = vmatprep.mubr.bf16.mxu0 0
        %10353 = vmatmul.mubr.bf16.gmra.mrb[0].mxu0 %v9929
        %v10354 = vpop.f32.mrb[0].mxu0
        %v10355 = vadd.f32 0.0, %v10354
        %v10356 = vpop.f32.mrb[0].mxu0
        %v10357 = vpop.f32.mrb[0].mxu0
        %v10358 = vadd.f32 0.0, %v10357
        %v10359 = vpop.f32.mrb[0].mxu0
        %10360 = vmatprep.mubr.bf16.mxu0 0
        %10361 = vmatmul.mubr.bf16.gmra.mrb[0].mxu0 %v9932
        %v10362 = vpop.f32.mrb[0].mxu0
        %v10363 = vadd.f32 0.0, %v10362
        %v10364 = vpop.f32.mrb[0].mxu0
        %v10365 = vpop.f32.mrb[0].mxu0
        %v10366 = vadd.f32 0.0, %v10365
        %v10367 = vpop.f32.mrb[0].mxu0
        %10368 = vmatprep.mubr.bf16.mxu0 0
        %10369 = vmatmul.mubr.bf16.gmra.mrb[0].mxu0 %v9935
        %v10370 = vpop.f32.mrb[0].mxu0
        %v10371 = vadd.f32 0.0, %v10370
        %v10372 = vpop.f32.mrb[0].mxu0
        %v10373 = vpop.f32.mrb[0].mxu0
        %v10374 = vadd.f32 0.0, %v10373
        %v10375 = vpop.f32.mrb[0].mxu0
        %10376 = vmatprep.mubr.bf16.mxu0 0
        %10377 = vmatmul.mubr.bf16.gmra.mrb[0].mxu0 %v9938
        %v10378 = vpop.f32.mrb[0].mxu0
        %v10379 = vadd.f32 0.0, %v10378
        %v10380 = vpop.f32.mrb[0].mxu0
        %v10381 = vpop.f32.mrb[0].mxu0
        %v10382 = vadd.f32 0.0, %v10381
        %v10383 = vpop.f32.mrb[0].mxu0
        %10384 = vmatprep.mubr.bf16.mxu0 0
        %10385 = vmatmul.mubr.bf16.gmra.mrb[0].mxu0 %v9941
        %v10386 = vpop.f32.mrb[0].mxu0
        %v10387 = vadd.f32 0.0, %v10386
        %v10388 = vpop.f32.mrb[0].mxu0
        %v10389 = vpop.f32.mrb[0].mxu0
        %v10390 = vadd.f32 0.0, %v10389
        %v10391 = vpop.f32.mrb[0].mxu0
        %10392 = vmatprep.mubr.bf16.mxu0 0
        %10393 = vmatmul.mubr.bf16.gmra.mrb[0].mxu0 %v9944
        %v10394 = vpop.f32.mrb[0].mxu0
        %v10395 = vadd.f32 0.0, %v10394
        %v10396 = vpop.f32.mrb[0].mxu0
        %v10397 = vpop.f32.mrb[0].mxu0
        %v10398 = vadd.f32 0.0, %v10397
        %v10399 = vpop.f32.mrb[0].mxu0
        %10400 = vmatprep.mubr.bf16.mxu0 0
        %10401 = vmatmul.mubr.bf16.gmra.mrb[0].mxu0 %v9947
        %v10402 = vpop.f32.mrb[0].mxu0
        %v10403 = vadd.f32 0.0, %v10402
        %v10404 = vpop.f32.mrb[0].mxu0
        %v10405 = vpop.f32.mrb[0].mxu0
        %v10406 = vadd.f32 0.0, %v10405
        %v10407 = vpop.f32.mrb[0].mxu0
        %10408 = vmatprep.mubr.bf16.mxu0 0
        %10409 = vmatmul.mubr.bf16.gmra.mrb[0].mxu0 %v9950
        %v10410 = vpop.f32.mrb[0].mxu0
        %v10411 = vadd.f32 0.0, %v10410
        %v10412 = vpop.f32.mrb[0].mxu0
        %v10413 = vpop.f32.mrb[0].mxu0
        %v10414 = vadd.f32 0.0, %v10413
        %v10415 = vpop.f32.mrb[0].mxu0
        %10416 = vmatprep.mubr.bf16.mxu0 0
        %10417 = vmatmul.mubr.bf16.gmra.mrb[0].mxu0 %v9953
        %v10418 = vpop.f32.mrb[0].mxu0
        %v10419 = vadd.f32 0.0, %v10418
        %v10420 = vpop.f32.mrb[0].mxu0
        %v10421 = vpop.f32.mrb[0].mxu0
        %v10422 = vadd.f32 0.0, %v10421
        %v10423 = vpop.f32.mrb[0].mxu0
        %10424 = vmatprep.mubr.bf16.mxu0 0
        %10425 = vmatmul.mubr.bf16.gmra.mrb[0].mxu0 %v9956
        %v10426 = vpop.f32.mrb[0].mxu0
        %v10427 = vadd.f32 0.0, %v10426
        %v10428 = vpop.f32.mrb[0].mxu0
        %v10429 = vpop.f32.mrb[0].mxu0
        %v10430 = vadd.f32 0.0, %v10429
        %v10431 = vpop.f32.mrb[0].mxu0
        %10432 = vmatprep.mubr.bf16.mxu0 0
        %10433 = vmatmul.mubr.bf16.gmra.mrb[0].mxu0 %v9959
        %v10434 = vpop.f32.mrb[0].mxu0
        %v10435 = vadd.f32 0.0, %v10434
        %v10436 = vpop.f32.mrb[0].mxu0
        %v10437 = vpop.f32.mrb[0].mxu0
        %v10438 = vadd.f32 0.0, %v10437
        %v10439 = vpop.f32.mrb[0].mxu0
        %10440 = vmatprep.mubr.bf16.mxu0 0
        %10441 = vmatmul.mubr.bf16.gmra.mrb[0].mxu0 %v9962
        %v10442 = vpop.f32.mrb[0].mxu0
        %v10443 = vadd.f32 0.0, %v10442
        %v10444 = vpop.f32.mrb[0].mxu0
        %v10445 = vpop.f32.mrb[0].mxu0
        %v10446 = vadd.f32 0.0, %v10445
        %v10447 = vpop.f32.mrb[0].mxu0
        %10448 = vmatprep.mubr.bf16.mxu0 0
        %10449 = vmatmul.mubr.bf16.gmra.mrb[0].mxu0 %v9965
        %v10450 = vpop.f32.mrb[0].mxu0
        %v10451 = vadd.f32 0.0, %v10450
        %v10452 = vpop.f32.mrb[0].mxu0
        %v10453 = vpop.f32.mrb[0].mxu0
        %v10454 = vadd.f32 0.0, %v10453
        %v10455 = vpop.f32.mrb[0].mxu0
        %10456 = vmatprep.mubr.bf16.mxu0 0
        %10457 = vmatmul.mubr.bf16.gmra.mrb[0].mxu0 %v9968
        %v10458 = vpop.f32.mrb[0].mxu0
        %v10459 = vadd.f32 0.0, %v10458
        %v10460 = vpop.f32.mrb[0].mxu0
        %v10461 = vpop.f32.mrb[0].mxu0
        %v10462 = vadd.f32 0.0, %v10461
        %v10463 = vpop.f32.mrb[0].mxu0
        %10464 = vmatprep.mubr.bf16.mxu0 0
        %10465 = vmatmul.mubr.bf16.gmra.mrb[0].mxu0 %v9971
        %v10466 = vpop.f32.mrb[0].mxu0
        %v10467 = vadd.f32 0.0, %v10466
        %v10468 = vpop.f32.mrb[0].mxu0
        %v10469 = vpop.f32.mrb[0].mxu0
        %v10470 = vadd.f32 0.0, %v10469
        %v10471 = vpop.f32.mrb[0].mxu0
        %10472 = vmatprep.mubr.bf16.mxu0 0
        %10473 = vmatmul.mubr.bf16.gmra.mrb[0].mxu0 %v9974
        %v10474 = vpop.f32.mrb[0].mxu0
        %v10475 = vadd.f32 0.0, %v10474
        %v10476 = vpop.f32.mrb[0].mxu0
        %v10477 = vpop.f32.mrb[0].mxu0
        %v10478 = vadd.f32 0.0, %v10477
        %v10479 = vpop.f32.mrb[0].mxu0
        %10480 = vmatprep.mubr.bf16.mxu0 0
        %10481 = vmatmul.mubr.bf16.gmra.mrb[0].mxu0 %v9977
        %v10482 = vpop.f32.mrb[0].mxu0
        %v10483 = vadd.f32 0.0, %v10482
        %v10484 = vpop.f32.mrb[0].mxu0
        %v10485 = vpop.f32.mrb[0].mxu0
        %v10486 = vadd.f32 0.0, %v10485
        %v10487 = vpop.f32.mrb[0].mxu0
        %10488 = vmatprep.mubr.bf16.mxu0 0
        %10489 = vmatmul.mubr.bf16.gmra.mrb[0].mxu0 %v9980
        %v10490 = vpop.f32.mrb[0].mxu0
        %v10491 = vadd.f32 0.0, %v10490
        %v10492 = vpop.f32.mrb[0].mxu0
        %v10493 = vpop.f32.mrb[0].mxu0
        %v10494 = vadd.f32 0.0, %v10493
        %v10495 = vpop.f32.mrb[0].mxu0
        %10496 = vmatprep.mubr.bf16.mxu0 0
        %10497 = vmatmul.mubr.bf16.gmra.mrb[0].mxu0 %v9983
        %v10498 = vpop.f32.mrb[0].mxu0
        %v10499 = vadd.f32 0.0, %v10498
        %v10500 = vpop.f32.mrb[0].mxu0
        %v10501 = vpop.f32.mrb[0].mxu0
        %v10502 = vadd.f32 0.0, %v10501
        %v10503 = vpop.f32.mrb[0].mxu0
        %10504 = vmatprep.mubr.bf16.mxu0 0
        %10505 = vmatmul.mubr.bf16.gmra.mrb[0].mxu0 %v9986
        %v10506 = vpop.f32.mrb[0].mxu0
        %v10507 = vadd.f32 0.0, %v10506
        %v10508 = vpop.f32.mrb[0].mxu0
        %v10509 = vpop.f32.mrb[0].mxu0
        %v10510 = vadd.f32 0.0, %v10509
        %v10511 = vpop.f32.mrb[0].mxu0
        %10512 = vmatprep.mubr.bf16.mxu0 0
        %10513 = vmatmul.mubr.bf16.gmra.mrb[0].mxu0 %v9989
        %v10514 = vpop.f32.mrb[0].mxu0
        %v10515 = vadd.f32 0.0, %v10514
        %v10516 = vpop.f32.mrb[0].mxu0
        %v10517 = vpop.f32.mrb[0].mxu0
        %v10518 = vadd.f32 0.0, %v10517
        %v10519 = vpop.f32.mrb[0].mxu0
        %10520 = vmatprep.mubr.bf16.mxu0 0
        %10521 = vmatmul.mubr.bf16.gmra.mrb[0].mxu0 %v9992
        %v10522 = vpop.f32.mrb[0].mxu0
        %v10523 = vadd.f32 0.0, %v10522
        %v10524 = vpop.f32.mrb[0].mxu0
        %v10525 = vpop.f32.mrb[0].mxu0
        %v10526 = vadd.f32 0.0, %v10525
        %v10527 = vpop.f32.mrb[0].mxu0
        %10528 = vmatprep.mubr.bf16.mxu0 0
        %10529 = vmatmul.mubr.bf16.gmra.mrb[0].mxu0 %v9995
        %v10530 = vpop.f32.mrb[0].mxu0
        %v10531 = vadd.f32 0.0, %v10530
        %v10532 = vpop.f32.mrb[0].mxu0
        %v10533 = vpop.f32.mrb[0].mxu0
        %v10534 = vadd.f32 0.0, %v10533
        %v10535 = vpop.f32.mrb[0].mxu0
        %10536 = vmatprep.mubr.bf16.mxu0 0
        %10537 = vmatmul.mubr.bf16.gmra.mrb[0].mxu0 %v9998
        %v10538 = vpop.f32.mrb[0].mxu0
        %v10539 = vadd.f32 0.0, %v10538
        %v10540 = vpop.f32.mrb[0].mxu0
        %v10541 = vpop.f32.mrb[0].mxu0
        %v10542 = vadd.f32 0.0, %v10541
        %v10543 = vpop.f32.mrb[0].mxu0
        %10544 = vdwg.mxu0
        %v10545 = vadd.f32 %v9583, %v10035
        %v10546 = vadd.f32 %v9584, %v10038
        %v10547 = vadd.f32 %v9585, %v10043
        %v10548 = vadd.f32 %v9586, %v10046
        %v10549 = vadd.f32 %v9587, %v10051
        %v10550 = vadd.f32 %v9588, %v10054
        %v10551 = vadd.f32 %v9589, %v10059
        %v10552 = vadd.f32 %v9590, %v10062
        %v10553 = vadd.f32 %v9591, %v10067
        %v10554 = vadd.f32 %v9592, %v10070
        %v10555 = vadd.f32 %v9593, %v10075
        %v10556 = vadd.f32 %v9594, %v10078
        %v10557 = vadd.f32 %v9595, %v10083
        %v10558 = vadd.f32 %v9596, %v10086
        %v10559 = vadd.f32 %v9597, %v10091
        %v10560 = vadd.f32 %v9598, %v10094
        %v10561 = vadd.f32 %v9599, %v10099
        %v10562 = vadd.f32 %v9600, %v10102
        %v10563 = vadd.f32 %v9601, %v10107
        %v10564 = vadd.f32 %v9602, %v10110
        %v10565 = vadd.f32 %v9603, %v10115
        %v10566 = vadd.f32 %v9604, %v10118
        %v10567 = vadd.f32 %v9605, %v10123
        %v10568 = vadd.f32 %v9606, %v10126
        %v10569 = vadd.f32 %v9607, %v10131
        %v10570 = vadd.f32 %v9608, %v10134
        %v10571 = vadd.f32 %v9609, %v10139
        %v10572 = vadd.f32 %v9610, %v10142
        %v10573 = vadd.f32 %v9611, %v10147
        %v10574 = vadd.f32 %v9612, %v10150
        %v10575 = vadd.f32 %v9613, %v10155
        %v10576 = vadd.f32 %v9614, %v10158
        %v10577 = vadd.f32 %v9615, %v10163
        %v10578 = vadd.f32 %v9616, %v10166
        %v10579 = vadd.f32 %v9617, %v10171
        %v10580 = vadd.f32 %v9618, %v10174
        %v10581 = vadd.f32 %v9619, %v10179
        %v10582 = vadd.f32 %v9620, %v10182
        %v10583 = vadd.f32 %v9621, %v10187
        %v10584 = vadd.f32 %v9622, %v10190
        %v10585 = vadd.f32 %v9623, %v10195
        %v10586 = vadd.f32 %v9624, %v10198
        %v10587 = vadd.f32 %v9625, %v10203
        %v10588 = vadd.f32 %v9626, %v10206
        %v10589 = vadd.f32 %v9627, %v10211
        %v10590 = vadd.f32 %v9628, %v10214
        %v10591 = vadd.f32 %v9629, %v10219
        %v10592 = vadd.f32 %v9630, %v10222
        %v10593 = vadd.f32 %v9631, %v10227
        %v10594 = vadd.f32 %v9632, %v10230
        %v10595 = vadd.f32 %v9633, %v10235
        %v10596 = vadd.f32 %v9634, %v10238
        %v10597 = vadd.f32 %v9635, %v10243
        %v10598 = vadd.f32 %v9636, %v10246
        %v10599 = vadd.f32 %v9637, %v10251
        %v10600 = vadd.f32 %v9638, %v10254
        %v10601 = vadd.f32 %v9639, %v10259
        %v10602 = vadd.f32 %v9640, %v10262
        %v10603 = vadd.f32 %v9641, %v10267
        %v10604 = vadd.f32 %v9642, %v10270
        %v10605 = vadd.f32 %v9643, %v10275
        %v10606 = vadd.f32 %v9644, %v10278
        %v10607 = vadd.f32 %v9645, %v10283
        %v10608 = vadd.f32 %v9646, %v10286
        %v10609 = vadd.f32 %v9647, %v10291
        %v10610 = vadd.f32 %v9648, %v10294
        %v10611 = vadd.f32 %v9649, %v10299
        %v10612 = vadd.f32 %v9650, %v10302
        %v10613 = vadd.f32 %v9651, %v10307
        %v10614 = vadd.f32 %v9652, %v10310
        %v10615 = vadd.f32 %v9653, %v10315
        %v10616 = vadd.f32 %v9654, %v10318
        %v10617 = vadd.f32 %v9655, %v10323
        %v10618 = vadd.f32 %v9656, %v10326
        %v10619 = vadd.f32 %v9657, %v10331
        %v10620 = vadd.f32 %v9658, %v10334
        %v10621 = vadd.f32 %v9659, %v10339
        %v10622 = vadd.f32 %v9660, %v10342
        %v10623 = vadd.f32 %v9661, %v10347
        %v10624 = vadd.f32 %v9662, %v10350
        %v10625 = vadd.f32 %v9663, %v10355
        %v10626 = vadd.f32 %v9664, %v10358
        %v10627 = vadd.f32 %v9665, %v10363
        %v10628 = vadd.f32 %v9666, %v10366
        %v10629 = vadd.f32 %v9667, %v10371
        %v10630 = vadd.f32 %v9668, %v10374
        %v10631 = vadd.f32 %v9669, %v10379
        %v10632 = vadd.f32 %v9670, %v10382
        %v10633 = vadd.f32 %v9671, %v10387
        %v10634 = vadd.f32 %v9672, %v10390
        %v10635 = vadd.f32 %v9673, %v10395
        %v10636 = vadd.f32 %v9674, %v10398
        %v10637 = vadd.f32 %v9675, %v10403
        %v10638 = vadd.f32 %v9676, %v10406
        %v10639 = vadd.f32 %v9677, %v10411
        %v10640 = vadd.f32 %v9678, %v10414
        %v10641 = vadd.f32 %v9679, %v10419
        %v10642 = vadd.f32 %v9680, %v10422
        %v10643 = vadd.f32 %v9681, %v10427
        %v10644 = vadd.f32 %v9682, %v10430
        %v10645 = vadd.f32 %v9683, %v10435
        %v10646 = vadd.f32 %v9684, %v10438
        %v10647 = vadd.f32 %v9685, %v10443
        %v10648 = vadd.f32 %v9686, %v10446
        %v10649 = vadd.f32 %v9687, %v10451
        %v10650 = vadd.f32 %v9688, %v10454
        %v10651 = vadd.f32 %v9689, %v10459
        %v10652 = vadd.f32 %v9690, %v10462
        %v10653 = vadd.f32 %v9691, %v10467
        %v10654 = vadd.f32 %v9692, %v10470
        %v10655 = vadd.f32 %v9693, %v10475
        %v10656 = vadd.f32 %v9694, %v10478
        %v10657 = vadd.f32 %v9695, %v10483
        %v10658 = vadd.f32 %v9696, %v10486
        %v10659 = vadd.f32 %v9697, %v10491
        %v10660 = vadd.f32 %v9698, %v10494
        %v10661 = vadd.f32 %v9699, %v10499
        %v10662 = vadd.f32 %v9700, %v10502
        %v10663 = vadd.f32 %v9701, %v10507
        %v10664 = vadd.f32 %v9702, %v10510
        %v10665 = vadd.f32 %v9703, %v10515
        %v10666 = vadd.f32 %v9704, %v10518
        %v10667 = vadd.f32 %v9705, %v10523
        %v10668 = vadd.f32 %v9706, %v10526
        %v10669 = vadd.f32 %v9707, %v10531
        %v10670 = vadd.f32 %v9708, %v10534
        %v10671 = vadd.f32 %v9709, %v10539
        %v10672 = vadd.f32 %v9710, %v10542
        %s10673 = scalar_lea.vmem [#allocation2], 1120
        %v10674 = vld [vmem:[%s10673] sm:$0xff]
        %v10675 = vld [vmem:[%s10673 + $0x8] sm:$0xff]
        %v10676 = vld [vmem:[%s10673 + $0x10] sm:$0xff]
        %v10677 = vld [vmem:[%s10673 + $0x18] sm:$0xff]
        %v10678 = vld [vmem:[%s10673 + $0x20] sm:$0xff]
        %v10679 = vld [vmem:[%s10673 + $0x28] sm:$0xff]
        %v10680 = vld [vmem:[%s10673 + $0x30] sm:$0xff]
        %v10681 = vld [vmem:[%s10673 + $0x38] sm:$0xff]
        %v10682 = vld [vmem:[%s10673 + $0x40] sm:$0xff]
        %v10683 = vld [vmem:[%s10673 + $0x48] sm:$0xff]
        %v10684 = vld [vmem:[%s10673 + $0x50] sm:$0xff]
        %v10685 = vld [vmem:[%s10673 + $0x58] sm:$0xff]
        %v10686 = vld [vmem:[%s10673 + $0x60] sm:$0xff]
        %v10687 = vld [vmem:[%s10673 + $0x68] sm:$0xff]
        %v10688 = vld [vmem:[%s10673 + $0x70] sm:$0xff]
        %v10689 = vld [vmem:[%s10673 + $0x78] sm:$0xff]
        %v10690 = vld [vmem:[%s10673 + $0x80] sm:$0xff]
        %v10691 = vld [vmem:[%s10673 + $0x88] sm:$0xff]
        %v10692 = vld [vmem:[%s10673 + $0x90] sm:$0xff]
        %v10693 = vld [vmem:[%s10673 + $0x98] sm:$0xff]
        %v10694 = vld [vmem:[%s10673 + $0xa0] sm:$0xff]
        %v10695 = vld [vmem:[%s10673 + $0xa8] sm:$0xff]
        %v10696 = vld [vmem:[%s10673 + $0xb0] sm:$0xff]
        %v10697 = vld [vmem:[%s10673 + $0xb8] sm:$0xff]
        %v10698 = vld [vmem:[%s10673 + $0xc0] sm:$0xff]
        %v10699 = vld [vmem:[%s10673 + $0xc8] sm:$0xff]
        %v10700 = vld [vmem:[%s10673 + $0xd0] sm:$0xff]
        %v10701 = vld [vmem:[%s10673 + $0xd8] sm:$0xff]
        %v10702 = vld [vmem:[%s10673 + $0xe0] sm:$0xff]
        %v10703 = vld [vmem:[%s10673 + $0xe8] sm:$0xff]
        %v10704 = vld [vmem:[%s10673 + $0xf0] sm:$0xff]
        %v10705 = vld [vmem:[%s10673 + $0xf8] sm:$0xff]
        %v10706 = vld [vmem:[%s10673 + $0x100] sm:$0xff]
        %v10707 = vld [vmem:[%s10673 + $0x108] sm:$0xff]
        %v10708 = vld [vmem:[%s10673 + $0x110] sm:$0xff]
        %v10709 = vld [vmem:[%s10673 + $0x118] sm:$0xff]
        %v10710 = vld [vmem:[%s10673 + $0x120] sm:$0xff]
        %v10711 = vld [vmem:[%s10673 + $0x128] sm:$0xff]
        %v10712 = vld [vmem:[%s10673 + $0x130] sm:$0xff]
        %v10713 = vld [vmem:[%s10673 + $0x138] sm:$0xff]
        %v10714 = vld [vmem:[%s10673 + $0x140] sm:$0xff]
        %v10715 = vld [vmem:[%s10673 + $0x148] sm:$0xff]
        %v10716 = vld [vmem:[%s10673 + $0x150] sm:$0xff]
        %v10717 = vld [vmem:[%s10673 + $0x158] sm:$0xff]
        %v10718 = vld [vmem:[%s10673 + $0x160] sm:$0xff]
        %v10719 = vld [vmem:[%s10673 + $0x168] sm:$0xff]
        %v10720 = vld [vmem:[%s10673 + $0x170] sm:$0xff]
        %v10721 = vld [vmem:[%s10673 + $0x178] sm:$0xff]
        %v10722 = vld [vmem:[%s10673 + $0x180] sm:$0xff]
        %v10723 = vld [vmem:[%s10673 + $0x188] sm:$0xff]
        %v10724 = vld [vmem:[%s10673 + $0x190] sm:$0xff]
        %v10725 = vld [vmem:[%s10673 + $0x198] sm:$0xff]
        %v10726 = vld [vmem:[%s10673 + $0x1a0] sm:$0xff]
        %v10727 = vld [vmem:[%s10673 + $0x1a8] sm:$0xff]
        %v10728 = vld [vmem:[%s10673 + $0x1b0] sm:$0xff]
        %v10729 = vld [vmem:[%s10673 + $0x1b8] sm:$0xff]
        %v10730 = vld [vmem:[%s10673 + $0x1c0] sm:$0xff]
        %v10731 = vld [vmem:[%s10673 + $0x1c8] sm:$0xff]
        %v10732 = vld [vmem:[%s10673 + $0x1d0] sm:$0xff]
        %v10733 = vld [vmem:[%s10673 + $0x1d8] sm:$0xff]
        %v10734 = vld [vmem:[%s10673 + $0x1e0] sm:$0xff]
        %v10735 = vld [vmem:[%s10673 + $0x1e8] sm:$0xff]
        %v10736 = vld [vmem:[%s10673 + $0x1f0] sm:$0xff]
        %v10737 = vld [vmem:[%s10673 + $0x1f8] sm:$0xff]
        %v10738 = vld [vmem:[%s264 + $0x100] sm:$0xf]
        %v10739 = vld [vmem:[%s264 + $0x104] sm:$0xf]
        %v10740 = vld [vmem:[%s264 + $0x108] sm:$0xf]
        %v10741 = vld [vmem:[%s264 + $0x10c] sm:$0xf]
        %v10742 = vld [vmem:[%s264 + $0x110] sm:$0xf]
        %v10743 = vld [vmem:[%s264 + $0x114] sm:$0xf]
        %v10744 = vld [vmem:[%s264 + $0x118] sm:$0xf]
        %v10745 = vld [vmem:[%s264 + $0x11c] sm:$0xf]
        %v10754 = vunpack.c.l.b16 %v10738
        %v10755 = vunpack.c.l.b16 %v10739
        %v10756 = vunpack.c.l.b16 %v10740
        %v10757 = vunpack.c.l.b16 %v10741
        %v10758 = vunpack.c.l.b16 %v10742
        %v10759 = vunpack.c.l.b16 %v10743
        %v10760 = vunpack.c.l.b16 %v10744
        %v10761 = vunpack.c.l.b16 %v10745
        %v10762 = vpack.c.b16 %v10755, %v10754
        %v10763 = vpack.c.b16 %v10757, %v10756
        %v10764 = vpack.c.b16 %v10759, %v10758
        %v10765 = vpack.c.b16 %v10761, %v10760
        %v10771 = vsel %vm817, %v10674, 0
        %v10774 = vsel %vm817, %v10675, 0
        %v10777 = vsel %vm817, %v10676, 0
        %v10780 = vsel %vm817, %v10677, 0
        %v10783 = vsel %vm817, %v10678, 0
        %v10786 = vsel %vm817, %v10679, 0
        %v10789 = vsel %vm817, %v10680, 0
        %v10792 = vsel %vm817, %v10681, 0
        %v10795 = vsel %vm817, %v10682, 0
        %v10798 = vsel %vm817, %v10683, 0
        %v10801 = vsel %vm817, %v10684, 0
        %v10804 = vsel %vm817, %v10685, 0
        %v10807 = vsel %vm817, %v10686, 0
        %v10810 = vsel %vm817, %v10687, 0
        %v10813 = vsel %vm817, %v10688, 0
        %v10816 = vsel %vm817, %v10689, 0
        %v10819 = vsel %vm817, %v10690, 0
        %v10822 = vsel %vm817, %v10691, 0
        %v10825 = vsel %vm817, %v10692, 0
        %v10828 = vsel %vm817, %v10693, 0
        %v10831 = vsel %vm817, %v10694, 0
        %v10834 = vsel %vm817, %v10695, 0
        %v10837 = vsel %vm817, %v10696, 0
        %v10840 = vsel %vm817, %v10697, 0
        %v10843 = vsel %vm817, %v10698, 0
        %v10846 = vsel %vm817, %v10699, 0
        %v10849 = vsel %vm817, %v10700, 0
        %v10852 = vsel %vm817, %v10701, 0
        %v10855 = vsel %vm817, %v10702, 0
        %v10858 = vsel %vm817, %v10703, 0
        %v10861 = vsel %vm817, %v10704, 0
        %v10864 = vsel %vm817, %v10705, 0
        %v10867 = vsel %vm817, %v10706, 0
        %v10870 = vsel %vm817, %v10707, 0
        %v10873 = vsel %vm817, %v10708, 0
        %v10876 = vsel %vm817, %v10709, 0
        %v10879 = vsel %vm817, %v10710, 0
        %v10882 = vsel %vm817, %v10711, 0
        %v10885 = vsel %vm817, %v10712, 0
        %v10888 = vsel %vm817, %v10713, 0
        %v10891 = vsel %vm817, %v10714, 0
        %v10894 = vsel %vm817, %v10715, 0
        %v10897 = vsel %vm817, %v10716, 0
        %v10900 = vsel %vm817, %v10717, 0
        %v10903 = vsel %vm817, %v10718, 0
        %v10906 = vsel %vm817, %v10719, 0
        %v10909 = vsel %vm817, %v10720, 0
        %v10912 = vsel %vm817, %v10721, 0
        %v10915 = vsel %vm817, %v10722, 0
        %v10918 = vsel %vm817, %v10723, 0
        %v10921 = vsel %vm817, %v10724, 0
        %v10924 = vsel %vm817, %v10725, 0
        %v10927 = vsel %vm817, %v10726, 0
        %v10930 = vsel %vm817, %v10727, 0
        %v10933 = vsel %vm817, %v10728, 0
        %v10936 = vsel %vm817, %v10729, 0
        %v10939 = vsel %vm817, %v10730, 0
        %v10942 = vsel %vm817, %v10731, 0
        %v10945 = vsel %vm817, %v10732, 0
        %v10948 = vsel %vm817, %v10733, 0
        %v10951 = vsel %vm817, %v10734, 0
        %v10954 = vsel %vm817, %v10735, 0
        %v10957 = vsel %vm817, %v10736, 0
        %v10960 = vsel %vm817, %v10737, 0
        %10962 = vmatprep.subr.bf16.mxu0 0
        %10963 = vmatpush1.bf16.msra.mxu0 %v10762
        %10964 = vmatprep.subr.bf16.mxu0 0
        %10965 = vmatpush1.bf16.msra.mxu0 %v10763
        %10966 = vmatprep.subr.bf16.mxu0 0
        %10967 = vmatpush1.bf16.msra.mxu0 %v10764
        %10968 = vmatprep.subr.bf16.mxu0 0
        %10969 = vmatpush1.bf16.msra.mxu0 %v10765
        %10970 = vmatprep.subr.bf16.mxu0 0
        %10971 = vmatpush1.bf16.msra.mxu0 0
        %10972 = vmatprep.subr.bf16.mxu0 0
        %10973 = vmatpush1.bf16.msra.mxu0 0
        %10974 = vmatprep.subr.bf16.mxu0 0
        %10975 = vmatpush1.bf16.msra.mxu0 0
        %10976 = vmatprep.subr.bf16.mxu0 0
        %10977 = vmatpush1.bf16.msra.mxu0 0
        %10978 = vmatprep.subr.bf16.mxu0 0
        %10979 = vmatpush1.bf16.msra.mxu0 0
        %10980 = vmatprep.subr.bf16.mxu0 0
        %10981 = vmatpush1.bf16.msra.mxu0 0
        %10982 = vmatprep.subr.bf16.mxu0 0
        %10983 = vmatpush1.bf16.msra.mxu0 0
        %10984 = vmatprep.subr.bf16.mxu0 0
        %10985 = vmatpush1.bf16.msra.mxu0 0
        %10986 = vmatprep.subr.bf16.mxu0 0
        %10987 = vmatpush1.bf16.msra.mxu0 0
        %10988 = vmatprep.subr.bf16.mxu0 0
        %10989 = vmatpush1.bf16.msra.mxu0 0
        %10990 = vmatprep.subr.bf16.mxu0 0
        %10991 = vmatpush1.bf16.msra.mxu0 0
        %10992 = vmatprep.subr.bf16.mxu0 0
        %10993 = vmatpush1.bf16.msra.mxu0 0
        %10994 = vmatprep.mubr.bf16.mxu0 0
        %10995 = vmatmul.mubr.bf16.gmra.mrb[0].mxu0 %v10771
        %v10996 = vpop.f32.mrb[0].mxu0
        %v10997 = vadd.f32 0.0, %v10996
        %v10998 = vpop.f32.mrb[0].mxu0
        %v10999 = vpop.f32.mrb[0].mxu0
        %v11000 = vadd.f32 0.0, %v10999
        %v11001 = vpop.f32.mrb[0].mxu0
        %11002 = vmatprep.mubr.bf16.mxu0 0
        %11003 = vmatmul.mubr.bf16.gmra.mrb[0].mxu0 %v10774
        %v11004 = vpop.f32.mrb[0].mxu0
        %v11005 = vadd.f32 0.0, %v11004
        %v11006 = vpop.f32.mrb[0].mxu0
        %v11007 = vpop.f32.mrb[0].mxu0
        %v11008 = vadd.f32 0.0, %v11007
        %v11009 = vpop.f32.mrb[0].mxu0
        %11010 = vmatprep.mubr.bf16.mxu0 0
        %11011 = vmatmul.mubr.bf16.gmra.mrb[0].mxu0 %v10777
        %v11012 = vpop.f32.mrb[0].mxu0
        %v11013 = vadd.f32 0.0, %v11012
        %v11014 = vpop.f32.mrb[0].mxu0
        %v11015 = vpop.f32.mrb[0].mxu0
        %v11016 = vadd.f32 0.0, %v11015
        %v11017 = vpop.f32.mrb[0].mxu0
        %11018 = vmatprep.mubr.bf16.mxu0 0
        %11019 = vmatmul.mubr.bf16.gmra.mrb[0].mxu0 %v10780
        %v11020 = vpop.f32.mrb[0].mxu0
        %v11021 = vadd.f32 0.0, %v11020
        %v11022 = vpop.f32.mrb[0].mxu0
        %v11023 = vpop.f32.mrb[0].mxu0
        %v11024 = vadd.f32 0.0, %v11023
        %v11025 = vpop.f32.mrb[0].mxu0
        %11026 = vmatprep.mubr.bf16.mxu0 0
        %11027 = vmatmul.mubr.bf16.gmra.mrb[0].mxu0 %v10783
        %v11028 = vpop.f32.mrb[0].mxu0
        %v11029 = vadd.f32 0.0, %v11028
        %v11030 = vpop.f32.mrb[0].mxu0
        %v11031 = vpop.f32.mrb[0].mxu0
        %v11032 = vadd.f32 0.0, %v11031
        %v11033 = vpop.f32.mrb[0].mxu0
        %11034 = vmatprep.mubr.bf16.mxu0 0
        %11035 = vmatmul.mubr.bf16.gmra.mrb[0].mxu0 %v10786
        %v11036 = vpop.f32.mrb[0].mxu0
        %v11037 = vadd.f32 0.0, %v11036
        %v11038 = vpop.f32.mrb[0].mxu0
        %v11039 = vpop.f32.mrb[0].mxu0
        %v11040 = vadd.f32 0.0, %v11039
        %v11041 = vpop.f32.mrb[0].mxu0
        %11042 = vmatprep.mubr.bf16.mxu0 0
        %11043 = vmatmul.mubr.bf16.gmra.mrb[0].mxu0 %v10789
        %v11044 = vpop.f32.mrb[0].mxu0
        %v11045 = vadd.f32 0.0, %v11044
        %v11046 = vpop.f32.mrb[0].mxu0
        %v11047 = vpop.f32.mrb[0].mxu0
        %v11048 = vadd.f32 0.0, %v11047
        %v11049 = vpop.f32.mrb[0].mxu0
        %11050 = vmatprep.mubr.bf16.mxu0 0
        %11051 = vmatmul.mubr.bf16.gmra.mrb[0].mxu0 %v10792
        %v11052 = vpop.f32.mrb[0].mxu0
        %v11053 = vadd.f32 0.0, %v11052
        %v11054 = vpop.f32.mrb[0].mxu0
        %v11055 = vpop.f32.mrb[0].mxu0
        %v11056 = vadd.f32 0.0, %v11055
        %v11057 = vpop.f32.mrb[0].mxu0
        %11058 = vmatprep.mubr.bf16.mxu0 0
        %11059 = vmatmul.mubr.bf16.gmra.mrb[0].mxu0 %v10795
        %v11060 = vpop.f32.mrb[0].mxu0
        %v11061 = vadd.f32 0.0, %v11060
        %v11062 = vpop.f32.mrb[0].mxu0
        %v11063 = vpop.f32.mrb[0].mxu0
        %v11064 = vadd.f32 0.0, %v11063
        %v11065 = vpop.f32.mrb[0].mxu0
        %11066 = vmatprep.mubr.bf16.mxu0 0
        %11067 = vmatmul.mubr.bf16.gmra.mrb[0].mxu0 %v10798
        %v11068 = vpop.f32.mrb[0].mxu0
        %v11069 = vadd.f32 0.0, %v11068
        %v11070 = vpop.f32.mrb[0].mxu0
        %v11071 = vpop.f32.mrb[0].mxu0
        %v11072 = vadd.f32 0.0, %v11071
        %v11073 = vpop.f32.mrb[0].mxu0
        %11074 = vmatprep.mubr.bf16.mxu0 0
        %11075 = vmatmul.mubr.bf16.gmra.mrb[0].mxu0 %v10801
        %v11076 = vpop.f32.mrb[0].mxu0
        %v11077 = vadd.f32 0.0, %v11076
        %v11078 = vpop.f32.mrb[0].mxu0
        %v11079 = vpop.f32.mrb[0].mxu0
        %v11080 = vadd.f32 0.0, %v11079
        %v11081 = vpop.f32.mrb[0].mxu0
        %11082 = vmatprep.mubr.bf16.mxu0 0
        %11083 = vmatmul.mubr.bf16.gmra.mrb[0].mxu0 %v10804
        %v11084 = vpop.f32.mrb[0].mxu0
        %v11085 = vadd.f32 0.0, %v11084
        %v11086 = vpop.f32.mrb[0].mxu0
        %v11087 = vpop.f32.mrb[0].mxu0
        %v11088 = vadd.f32 0.0, %v11087
        %v11089 = vpop.f32.mrb[0].mxu0
        %11090 = vmatprep.mubr.bf16.mxu0 0
        %11091 = vmatmul.mubr.bf16.gmra.mrb[0].mxu0 %v10807
        %v11092 = vpop.f32.mrb[0].mxu0
        %v11093 = vadd.f32 0.0, %v11092
        %v11094 = vpop.f32.mrb[0].mxu0
        %v11095 = vpop.f32.mrb[0].mxu0
        %v11096 = vadd.f32 0.0, %v11095
        %v11097 = vpop.f32.mrb[0].mxu0
        %11098 = vmatprep.mubr.bf16.mxu0 0
        %11099 = vmatmul.mubr.bf16.gmra.mrb[0].mxu0 %v10810
        %v11100 = vpop.f32.mrb[0].mxu0
        %v11101 = vadd.f32 0.0, %v11100
        %v11102 = vpop.f32.mrb[0].mxu0
        %v11103 = vpop.f32.mrb[0].mxu0
        %v11104 = vadd.f32 0.0, %v11103
        %v11105 = vpop.f32.mrb[0].mxu0
        %11106 = vmatprep.mubr.bf16.mxu0 0
        %11107 = vmatmul.mubr.bf16.gmra.mrb[0].mxu0 %v10813
        %v11108 = vpop.f32.mrb[0].mxu0
        %v11109 = vadd.f32 0.0, %v11108
        %v11110 = vpop.f32.mrb[0].mxu0
        %v11111 = vpop.f32.mrb[0].mxu0
        %v11112 = vadd.f32 0.0, %v11111
        %v11113 = vpop.f32.mrb[0].mxu0
        %11114 = vmatprep.mubr.bf16.mxu0 0
        %11115 = vmatmul.mubr.bf16.gmra.mrb[0].mxu0 %v10816
        %v11116 = vpop.f32.mrb[0].mxu0
        %v11117 = vadd.f32 0.0, %v11116
        %v11118 = vpop.f32.mrb[0].mxu0
        %v11119 = vpop.f32.mrb[0].mxu0
        %v11120 = vadd.f32 0.0, %v11119
        %v11121 = vpop.f32.mrb[0].mxu0
        %11122 = vmatprep.mubr.bf16.mxu0 0
        %11123 = vmatmul.mubr.bf16.gmra.mrb[0].mxu0 %v10819
        %v11124 = vpop.f32.mrb[0].mxu0
        %v11125 = vadd.f32 0.0, %v11124
        %v11126 = vpop.f32.mrb[0].mxu0
        %v11127 = vpop.f32.mrb[0].mxu0
        %v11128 = vadd.f32 0.0, %v11127
        %v11129 = vpop.f32.mrb[0].mxu0
        %11130 = vmatprep.mubr.bf16.mxu0 0
        %11131 = vmatmul.mubr.bf16.gmra.mrb[0].mxu0 %v10822
        %v11132 = vpop.f32.mrb[0].mxu0
        %v11133 = vadd.f32 0.0, %v11132
        %v11134 = vpop.f32.mrb[0].mxu0
        %v11135 = vpop.f32.mrb[0].mxu0
        %v11136 = vadd.f32 0.0, %v11135
        %v11137 = vpop.f32.mrb[0].mxu0
        %11138 = vmatprep.mubr.bf16.mxu0 0
        %11139 = vmatmul.mubr.bf16.gmra.mrb[0].mxu0 %v10825
        %v11140 = vpop.f32.mrb[0].mxu0
        %v11141 = vadd.f32 0.0, %v11140
        %v11142 = vpop.f32.mrb[0].mxu0
        %v11143 = vpop.f32.mrb[0].mxu0
        %v11144 = vadd.f32 0.0, %v11143
        %v11145 = vpop.f32.mrb[0].mxu0
        %11146 = vmatprep.mubr.bf16.mxu0 0
        %11147 = vmatmul.mubr.bf16.gmra.mrb[0].mxu0 %v10828
        %v11148 = vpop.f32.mrb[0].mxu0
        %v11149 = vadd.f32 0.0, %v11148
        %v11150 = vpop.f32.mrb[0].mxu0
        %v11151 = vpop.f32.mrb[0].mxu0
        %v11152 = vadd.f32 0.0, %v11151
        %v11153 = vpop.f32.mrb[0].mxu0
        %11154 = vmatprep.mubr.bf16.mxu0 0
        %11155 = vmatmul.mubr.bf16.gmra.mrb[0].mxu0 %v10831
        %v11156 = vpop.f32.mrb[0].mxu0
        %v11157 = vadd.f32 0.0, %v11156
        %v11158 = vpop.f32.mrb[0].mxu0
        %v11159 = vpop.f32.mrb[0].mxu0
        %v11160 = vadd.f32 0.0, %v11159
        %v11161 = vpop.f32.mrb[0].mxu0
        %11162 = vmatprep.mubr.bf16.mxu0 0
        %11163 = vmatmul.mubr.bf16.gmra.mrb[0].mxu0 %v10834
        %v11164 = vpop.f32.mrb[0].mxu0
        %v11165 = vadd.f32 0.0, %v11164
        %v11166 = vpop.f32.mrb[0].mxu0
        %v11167 = vpop.f32.mrb[0].mxu0
        %v11168 = vadd.f32 0.0, %v11167
        %v11169 = vpop.f32.mrb[0].mxu0
        %11170 = vmatprep.mubr.bf16.mxu0 0
        %11171 = vmatmul.mubr.bf16.gmra.mrb[0].mxu0 %v10837
        %v11172 = vpop.f32.mrb[0].mxu0
        %v11173 = vadd.f32 0.0, %v11172
        %v11174 = vpop.f32.mrb[0].mxu0
        %v11175 = vpop.f32.mrb[0].mxu0
        %v11176 = vadd.f32 0.0, %v11175
        %v11177 = vpop.f32.mrb[0].mxu0
        %11178 = vmatprep.mubr.bf16.mxu0 0
        %11179 = vmatmul.mubr.bf16.gmra.mrb[0].mxu0 %v10840
        %v11180 = vpop.f32.mrb[0].mxu0
        %v11181 = vadd.f32 0.0, %v11180
        %v11182 = vpop.f32.mrb[0].mxu0
        %v11183 = vpop.f32.mrb[0].mxu0
        %v11184 = vadd.f32 0.0, %v11183
        %v11185 = vpop.f32.mrb[0].mxu0
        %11186 = vmatprep.mubr.bf16.mxu0 0
        %11187 = vmatmul.mubr.bf16.gmra.mrb[0].mxu0 %v10843
        %v11188 = vpop.f32.mrb[0].mxu0
        %v11189 = vadd.f32 0.0, %v11188
        %v11190 = vpop.f32.mrb[0].mxu0
        %v11191 = vpop.f32.mrb[0].mxu0
        %v11192 = vadd.f32 0.0, %v11191
        %v11193 = vpop.f32.mrb[0].mxu0
        %11194 = vmatprep.mubr.bf16.mxu0 0
        %11195 = vmatmul.mubr.bf16.gmra.mrb[0].mxu0 %v10846
        %v11196 = vpop.f32.mrb[0].mxu0
        %v11197 = vadd.f32 0.0, %v11196
        %v11198 = vpop.f32.mrb[0].mxu0
        %v11199 = vpop.f32.mrb[0].mxu0
        %v11200 = vadd.f32 0.0, %v11199
        %v11201 = vpop.f32.mrb[0].mxu0
        %11202 = vmatprep.mubr.bf16.mxu0 0
        %11203 = vmatmul.mubr.bf16.gmra.mrb[0].mxu0 %v10849
        %v11204 = vpop.f32.mrb[0].mxu0
        %v11205 = vadd.f32 0.0, %v11204
        %v11206 = vpop.f32.mrb[0].mxu0
        %v11207 = vpop.f32.mrb[0].mxu0
        %v11208 = vadd.f32 0.0, %v11207
        %v11209 = vpop.f32.mrb[0].mxu0
        %11210 = vmatprep.mubr.bf16.mxu0 0
        %11211 = vmatmul.mubr.bf16.gmra.mrb[0].mxu0 %v10852
        %v11212 = vpop.f32.mrb[0].mxu0
        %v11213 = vadd.f32 0.0, %v11212
        %v11214 = vpop.f32.mrb[0].mxu0
        %v11215 = vpop.f32.mrb[0].mxu0
        %v11216 = vadd.f32 0.0, %v11215
        %v11217 = vpop.f32.mrb[0].mxu0
        %11218 = vmatprep.mubr.bf16.mxu0 0
        %11219 = vmatmul.mubr.bf16.gmra.mrb[0].mxu0 %v10855
        %v11220 = vpop.f32.mrb[0].mxu0
        %v11221 = vadd.f32 0.0, %v11220
        %v11222 = vpop.f32.mrb[0].mxu0
        %v11223 = vpop.f32.mrb[0].mxu0
        %v11224 = vadd.f32 0.0, %v11223
        %v11225 = vpop.f32.mrb[0].mxu0
        %11226 = vmatprep.mubr.bf16.mxu0 0
        %11227 = vmatmul.mubr.bf16.gmra.mrb[0].mxu0 %v10858
        %v11228 = vpop.f32.mrb[0].mxu0
        %v11229 = vadd.f32 0.0, %v11228
        %v11230 = vpop.f32.mrb[0].mxu0
        %v11231 = vpop.f32.mrb[0].mxu0
        %v11232 = vadd.f32 0.0, %v11231
        %v11233 = vpop.f32.mrb[0].mxu0
        %11234 = vmatprep.mubr.bf16.mxu0 0
        %11235 = vmatmul.mubr.bf16.gmra.mrb[0].mxu0 %v10861
        %v11236 = vpop.f32.mrb[0].mxu0
        %v11237 = vadd.f32 0.0, %v11236
        %v11238 = vpop.f32.mrb[0].mxu0
        %v11239 = vpop.f32.mrb[0].mxu0
        %v11240 = vadd.f32 0.0, %v11239
        %v11241 = vpop.f32.mrb[0].mxu0
        %11242 = vmatprep.mubr.bf16.mxu0 0
        %11243 = vmatmul.mubr.bf16.gmra.mrb[0].mxu0 %v10864
        %v11244 = vpop.f32.mrb[0].mxu0
        %v11245 = vadd.f32 0.0, %v11244
        %v11246 = vpop.f32.mrb[0].mxu0
        %v11247 = vpop.f32.mrb[0].mxu0
        %v11248 = vadd.f32 0.0, %v11247
        %v11249 = vpop.f32.mrb[0].mxu0
        %11250 = vmatprep.mubr.bf16.mxu0 0
        %11251 = vmatmul.mubr.bf16.gmra.mrb[0].mxu0 %v10867
        %v11252 = vpop.f32.mrb[0].mxu0
        %v11253 = vadd.f32 0.0, %v11252
        %v11254 = vpop.f32.mrb[0].mxu0
        %v11255 = vpop.f32.mrb[0].mxu0
        %v11256 = vadd.f32 0.0, %v11255
        %v11257 = vpop.f32.mrb[0].mxu0
        %11258 = vmatprep.mubr.bf16.mxu0 0
        %11259 = vmatmul.mubr.bf16.gmra.mrb[0].mxu0 %v10870
        %v11260 = vpop.f32.mrb[0].mxu0
        %v11261 = vadd.f32 0.0, %v11260
        %v11262 = vpop.f32.mrb[0].mxu0
        %v11263 = vpop.f32.mrb[0].mxu0
        %v11264 = vadd.f32 0.0, %v11263
        %v11265 = vpop.f32.mrb[0].mxu0
        %11266 = vmatprep.mubr.bf16.mxu0 0
        %11267 = vmatmul.mubr.bf16.gmra.mrb[0].mxu0 %v10873
        %v11268 = vpop.f32.mrb[0].mxu0
        %v11269 = vadd.f32 0.0, %v11268
        %v11270 = vpop.f32.mrb[0].mxu0
        %v11271 = vpop.f32.mrb[0].mxu0
        %v11272 = vadd.f32 0.0, %v11271
        %v11273 = vpop.f32.mrb[0].mxu0
        %11274 = vmatprep.mubr.bf16.mxu0 0
        %11275 = vmatmul.mubr.bf16.gmra.mrb[0].mxu0 %v10876
        %v11276 = vpop.f32.mrb[0].mxu0
        %v11277 = vadd.f32 0.0, %v11276
        %v11278 = vpop.f32.mrb[0].mxu0
        %v11279 = vpop.f32.mrb[0].mxu0
        %v11280 = vadd.f32 0.0, %v11279
        %v11281 = vpop.f32.mrb[0].mxu0
        %11282 = vmatprep.mubr.bf16.mxu0 0
        %11283 = vmatmul.mubr.bf16.gmra.mrb[0].mxu0 %v10879
        %v11284 = vpop.f32.mrb[0].mxu0
        %v11285 = vadd.f32 0.0, %v11284
        %v11286 = vpop.f32.mrb[0].mxu0
        %v11287 = vpop.f32.mrb[0].mxu0
        %v11288 = vadd.f32 0.0, %v11287
        %v11289 = vpop.f32.mrb[0].mxu0
        %11290 = vmatprep.mubr.bf16.mxu0 0
        %11291 = vmatmul.mubr.bf16.gmra.mrb[0].mxu0 %v10882
        %v11292 = vpop.f32.mrb[0].mxu0
        %v11293 = vadd.f32 0.0, %v11292
        %v11294 = vpop.f32.mrb[0].mxu0
        %v11295 = vpop.f32.mrb[0].mxu0
        %v11296 = vadd.f32 0.0, %v11295
        %v11297 = vpop.f32.mrb[0].mxu0
        %11298 = vmatprep.mubr.bf16.mxu0 0
        %11299 = vmatmul.mubr.bf16.gmra.mrb[0].mxu0 %v10885
        %v11300 = vpop.f32.mrb[0].mxu0
        %v11301 = vadd.f32 0.0, %v11300
        %v11302 = vpop.f32.mrb[0].mxu0
        %v11303 = vpop.f32.mrb[0].mxu0
        %v11304 = vadd.f32 0.0, %v11303
        %v11305 = vpop.f32.mrb[0].mxu0
        %11306 = vmatprep.mubr.bf16.mxu0 0
        %11307 = vmatmul.mubr.bf16.gmra.mrb[0].mxu0 %v10888
        %v11308 = vpop.f32.mrb[0].mxu0
        %v11309 = vadd.f32 0.0, %v11308
        %v11310 = vpop.f32.mrb[0].mxu0
        %v11311 = vpop.f32.mrb[0].mxu0
        %v11312 = vadd.f32 0.0, %v11311
        %v11313 = vpop.f32.mrb[0].mxu0
        %11314 = vmatprep.mubr.bf16.mxu0 0
        %11315 = vmatmul.mubr.bf16.gmra.mrb[0].mxu0 %v10891
        %v11316 = vpop.f32.mrb[0].mxu0
        %v11317 = vadd.f32 0.0, %v11316
        %v11318 = vpop.f32.mrb[0].mxu0
        %v11319 = vpop.f32.mrb[0].mxu0
        %v11320 = vadd.f32 0.0, %v11319
        %v11321 = vpop.f32.mrb[0].mxu0
        %11322 = vmatprep.mubr.bf16.mxu0 0
        %11323 = vmatmul.mubr.bf16.gmra.mrb[0].mxu0 %v10894
        %v11324 = vpop.f32.mrb[0].mxu0
        %v11325 = vadd.f32 0.0, %v11324
        %v11326 = vpop.f32.mrb[0].mxu0
        %v11327 = vpop.f32.mrb[0].mxu0
        %v11328 = vadd.f32 0.0, %v11327
        %v11329 = vpop.f32.mrb[0].mxu0
        %11330 = vmatprep.mubr.bf16.mxu0 0
        %11331 = vmatmul.mubr.bf16.gmra.mrb[0].mxu0 %v10897
        %v11332 = vpop.f32.mrb[0].mxu0
        %v11333 = vadd.f32 0.0, %v11332
        %v11334 = vpop.f32.mrb[0].mxu0
        %v11335 = vpop.f32.mrb[0].mxu0
        %v11336 = vadd.f32 0.0, %v11335
        %v11337 = vpop.f32.mrb[0].mxu0
        %11338 = vmatprep.mubr.bf16.mxu0 0
        %11339 = vmatmul.mubr.bf16.gmra.mrb[0].mxu0 %v10900
        %v11340 = vpop.f32.mrb[0].mxu0
        %v11341 = vadd.f32 0.0, %v11340
        %v11342 = vpop.f32.mrb[0].mxu0
        %v11343 = vpop.f32.mrb[0].mxu0
        %v11344 = vadd.f32 0.0, %v11343
        %v11345 = vpop.f32.mrb[0].mxu0
        %11346 = vmatprep.mubr.bf16.mxu0 0
        %11347 = vmatmul.mubr.bf16.gmra.mrb[0].mxu0 %v10903
        %v11348 = vpop.f32.mrb[0].mxu0
        %v11349 = vadd.f32 0.0, %v11348
        %v11350 = vpop.f32.mrb[0].mxu0
        %v11351 = vpop.f32.mrb[0].mxu0
        %v11352 = vadd.f32 0.0, %v11351
        %v11353 = vpop.f32.mrb[0].mxu0
        %11354 = vmatprep.mubr.bf16.mxu0 0
        %11355 = vmatmul.mubr.bf16.gmra.mrb[0].mxu0 %v10906
        %v11356 = vpop.f32.mrb[0].mxu0
        %v11357 = vadd.f32 0.0, %v11356
        %v11358 = vpop.f32.mrb[0].mxu0
        %v11359 = vpop.f32.mrb[0].mxu0
        %v11360 = vadd.f32 0.0, %v11359
        %v11361 = vpop.f32.mrb[0].mxu0
        %11362 = vmatprep.mubr.bf16.mxu0 0
        %11363 = vmatmul.mubr.bf16.gmra.mrb[0].mxu0 %v10909
        %v11364 = vpop.f32.mrb[0].mxu0
        %v11365 = vadd.f32 0.0, %v11364
        %v11366 = vpop.f32.mrb[0].mxu0
        %v11367 = vpop.f32.mrb[0].mxu0
        %v11368 = vadd.f32 0.0, %v11367
        %v11369 = vpop.f32.mrb[0].mxu0
        %11370 = vmatprep.mubr.bf16.mxu0 0
        %11371 = vmatmul.mubr.bf16.gmra.mrb[0].mxu0 %v10912
        %v11372 = vpop.f32.mrb[0].mxu0
        %v11373 = vadd.f32 0.0, %v11372
        %v11374 = vpop.f32.mrb[0].mxu0
        %v11375 = vpop.f32.mrb[0].mxu0
        %v11376 = vadd.f32 0.0, %v11375
        %v11377 = vpop.f32.mrb[0].mxu0
        %11378 = vmatprep.mubr.bf16.mxu0 0
        %11379 = vmatmul.mubr.bf16.gmra.mrb[0].mxu0 %v10915
        %v11380 = vpop.f32.mrb[0].mxu0
        %v11381 = vadd.f32 0.0, %v11380
        %v11382 = vpop.f32.mrb[0].mxu0
        %v11383 = vpop.f32.mrb[0].mxu0
        %v11384 = vadd.f32 0.0, %v11383
        %v11385 = vpop.f32.mrb[0].mxu0
        %11386 = vmatprep.mubr.bf16.mxu0 0
        %11387 = vmatmul.mubr.bf16.gmra.mrb[0].mxu0 %v10918
        %v11388 = vpop.f32.mrb[0].mxu0
        %v11389 = vadd.f32 0.0, %v11388
        %v11390 = vpop.f32.mrb[0].mxu0
        %v11391 = vpop.f32.mrb[0].mxu0
        %v11392 = vadd.f32 0.0, %v11391
        %v11393 = vpop.f32.mrb[0].mxu0
        %11394 = vmatprep.mubr.bf16.mxu0 0
        %11395 = vmatmul.mubr.bf16.gmra.mrb[0].mxu0 %v10921
        %v11396 = vpop.f32.mrb[0].mxu0
        %v11397 = vadd.f32 0.0, %v11396
        %v11398 = vpop.f32.mrb[0].mxu0
        %v11399 = vpop.f32.mrb[0].mxu0
        %v11400 = vadd.f32 0.0, %v11399
        %v11401 = vpop.f32.mrb[0].mxu0
        %11402 = vmatprep.mubr.bf16.mxu0 0
        %11403 = vmatmul.mubr.bf16.gmra.mrb[0].mxu0 %v10924
        %v11404 = vpop.f32.mrb[0].mxu0
        %v11405 = vadd.f32 0.0, %v11404
        %v11406 = vpop.f32.mrb[0].mxu0
        %v11407 = vpop.f32.mrb[0].mxu0
        %v11408 = vadd.f32 0.0, %v11407
        %v11409 = vpop.f32.mrb[0].mxu0
        %11410 = vmatprep.mubr.bf16.mxu0 0
        %11411 = vmatmul.mubr.bf16.gmra.mrb[0].mxu0 %v10927
        %v11412 = vpop.f32.mrb[0].mxu0
        %v11413 = vadd.f32 0.0, %v11412
        %v11414 = vpop.f32.mrb[0].mxu0
        %v11415 = vpop.f32.mrb[0].mxu0
        %v11416 = vadd.f32 0.0, %v11415
        %v11417 = vpop.f32.mrb[0].mxu0
        %11418 = vmatprep.mubr.bf16.mxu0 0
        %11419 = vmatmul.mubr.bf16.gmra.mrb[0].mxu0 %v10930
        %v11420 = vpop.f32.mrb[0].mxu0
        %v11421 = vadd.f32 0.0, %v11420
        %v11422 = vpop.f32.mrb[0].mxu0
        %v11423 = vpop.f32.mrb[0].mxu0
        %v11424 = vadd.f32 0.0, %v11423
        %v11425 = vpop.f32.mrb[0].mxu0
        %11426 = vmatprep.mubr.bf16.mxu0 0
        %11427 = vmatmul.mubr.bf16.gmra.mrb[0].mxu0 %v10933
        %v11428 = vpop.f32.mrb[0].mxu0
        %v11429 = vadd.f32 0.0, %v11428
        %v11430 = vpop.f32.mrb[0].mxu0
        %v11431 = vpop.f32.mrb[0].mxu0
        %v11432 = vadd.f32 0.0, %v11431
        %v11433 = vpop.f32.mrb[0].mxu0
        %11434 = vmatprep.mubr.bf16.mxu0 0
        %11435 = vmatmul.mubr.bf16.gmra.mrb[0].mxu0 %v10936
        %v11436 = vpop.f32.mrb[0].mxu0
        %v11437 = vadd.f32 0.0, %v11436
        %v11438 = vpop.f32.mrb[0].mxu0
        %v11439 = vpop.f32.mrb[0].mxu0
        %v11440 = vadd.f32 0.0, %v11439
        %v11441 = vpop.f32.mrb[0].mxu0
        %11442 = vmatprep.mubr.bf16.mxu0 0
        %11443 = vmatmul.mubr.bf16.gmra.mrb[0].mxu0 %v10939
        %v11444 = vpop.f32.mrb[0].mxu0
        %v11445 = vadd.f32 0.0, %v11444
        %v11446 = vpop.f32.mrb[0].mxu0
        %v11447 = vpop.f32.mrb[0].mxu0
        %v11448 = vadd.f32 0.0, %v11447
        %v11449 = vpop.f32.mrb[0].mxu0
        %11450 = vmatprep.mubr.bf16.mxu0 0
        %11451 = vmatmul.mubr.bf16.gmra.mrb[0].mxu0 %v10942
        %v11452 = vpop.f32.mrb[0].mxu0
        %v11453 = vadd.f32 0.0, %v11452
        %v11454 = vpop.f32.mrb[0].mxu0
        %v11455 = vpop.f32.mrb[0].mxu0
        %v11456 = vadd.f32 0.0, %v11455
        %v11457 = vpop.f32.mrb[0].mxu0
        %11458 = vmatprep.mubr.bf16.mxu0 0
        %11459 = vmatmul.mubr.bf16.gmra.mrb[0].mxu0 %v10945
        %v11460 = vpop.f32.mrb[0].mxu0
        %v11461 = vadd.f32 0.0, %v11460
        %v11462 = vpop.f32.mrb[0].mxu0
        %v11463 = vpop.f32.mrb[0].mxu0
        %v11464 = vadd.f32 0.0, %v11463
        %v11465 = vpop.f32.mrb[0].mxu0
        %11466 = vmatprep.mubr.bf16.mxu0 0
        %11467 = vmatmul.mubr.bf16.gmra.mrb[0].mxu0 %v10948
        %v11468 = vpop.f32.mrb[0].mxu0
        %v11469 = vadd.f32 0.0, %v11468
        %v11470 = vpop.f32.mrb[0].mxu0
        %v11471 = vpop.f32.mrb[0].mxu0
        %v11472 = vadd.f32 0.0, %v11471
        %v11473 = vpop.f32.mrb[0].mxu0
        %11474 = vmatprep.mubr.bf16.mxu0 0
        %11475 = vmatmul.mubr.bf16.gmra.mrb[0].mxu0 %v10951
        %v11476 = vpop.f32.mrb[0].mxu0
        %v11477 = vadd.f32 0.0, %v11476
        %v11478 = vpop.f32.mrb[0].mxu0
        %v11479 = vpop.f32.mrb[0].mxu0
        %v11480 = vadd.f32 0.0, %v11479
        %v11481 = vpop.f32.mrb[0].mxu0
        %11482 = vmatprep.mubr.bf16.mxu0 0
        %11483 = vmatmul.mubr.bf16.gmra.mrb[0].mxu0 %v10954
        %v11484 = vpop.f32.mrb[0].mxu0
        %v11485 = vadd.f32 0.0, %v11484
        %v11486 = vpop.f32.mrb[0].mxu0
        %v11487 = vpop.f32.mrb[0].mxu0
        %v11488 = vadd.f32 0.0, %v11487
        %v11489 = vpop.f32.mrb[0].mxu0
        %11490 = vmatprep.mubr.bf16.mxu0 0
        %11491 = vmatmul.mubr.bf16.gmra.mrb[0].mxu0 %v10957
        %v11492 = vpop.f32.mrb[0].mxu0
        %v11493 = vadd.f32 0.0, %v11492
        %v11494 = vpop.f32.mrb[0].mxu0
        %v11495 = vpop.f32.mrb[0].mxu0
        %v11496 = vadd.f32 0.0, %v11495
        %v11497 = vpop.f32.mrb[0].mxu0
        %11498 = vmatprep.mubr.bf16.mxu0 0
        %11499 = vmatmul.mubr.bf16.gmra.mrb[0].mxu0 %v10960
        %v11500 = vpop.f32.mrb[0].mxu0
        %v11501 = vadd.f32 0.0, %v11500
        %v11502 = vpop.f32.mrb[0].mxu0
        %v11503 = vpop.f32.mrb[0].mxu0
        %v11504 = vadd.f32 0.0, %v11503
        %v11505 = vpop.f32.mrb[0].mxu0
        %11506 = vdwg.mxu0
        %v11507 = vadd.f32 %v10545, %v10997
        %v11508 = vadd.f32 %v10546, %v11000
        %v11509 = vadd.f32 %v10547, %v11005
        %v11510 = vadd.f32 %v10548, %v11008
        %v11511 = vadd.f32 %v10549, %v11013
        %v11512 = vadd.f32 %v10550, %v11016
        %v11513 = vadd.f32 %v10551, %v11021
        %v11514 = vadd.f32 %v10552, %v11024
        %v11515 = vadd.f32 %v10553, %v11029
        %v11516 = vadd.f32 %v10554, %v11032
        %v11517 = vadd.f32 %v10555, %v11037
        %v11518 = vadd.f32 %v10556, %v11040
        %v11519 = vadd.f32 %v10557, %v11045
        %v11520 = vadd.f32 %v10558, %v11048
        %v11521 = vadd.f32 %v10559, %v11053
        %v11522 = vadd.f32 %v10560, %v11056
        %v11523 = vadd.f32 %v10561, %v11061
        %v11524 = vadd.f32 %v10562, %v11064
        %v11525 = vadd.f32 %v10563, %v11069
        %v11526 = vadd.f32 %v10564, %v11072
        %v11527 = vadd.f32 %v10565, %v11077
        %v11528 = vadd.f32 %v10566, %v11080
        %v11529 = vadd.f32 %v10567, %v11085
        %v11530 = vadd.f32 %v10568, %v11088
        %v11531 = vadd.f32 %v10569, %v11093
        %v11532 = vadd.f32 %v10570, %v11096
        %v11533 = vadd.f32 %v10571, %v11101
        %v11534 = vadd.f32 %v10572, %v11104
        %v11535 = vadd.f32 %v10573, %v11109
        %v11536 = vadd.f32 %v10574, %v11112
        %v11537 = vadd.f32 %v10575, %v11117
        %v11538 = vadd.f32 %v10576, %v11120
        %v11539 = vadd.f32 %v10577, %v11125
        %v11540 = vadd.f32 %v10578, %v11128
        %v11541 = vadd.f32 %v10579, %v11133
        %v11542 = vadd.f32 %v10580, %v11136
        %v11543 = vadd.f32 %v10581, %v11141
        %v11544 = vadd.f32 %v10582, %v11144
        %v11545 = vadd.f32 %v10583, %v11149
        %v11546 = vadd.f32 %v10584, %v11152
        %v11547 = vadd.f32 %v10585, %v11157
        %v11548 = vadd.f32 %v10586, %v11160
        %v11549 = vadd.f32 %v10587, %v11165
        %v11550 = vadd.f32 %v10588, %v11168
        %v11551 = vadd.f32 %v10589, %v11173
        %v11552 = vadd.f32 %v10590, %v11176
        %v11553 = vadd.f32 %v10591, %v11181
        %v11554 = vadd.f32 %v10592, %v11184
        %v11555 = vadd.f32 %v10593, %v11189
        %v11556 = vadd.f32 %v10594, %v11192
        %v11557 = vadd.f32 %v10595, %v11197
        %v11558 = vadd.f32 %v10596, %v11200
        %v11559 = vadd.f32 %v10597, %v11205
        %v11560 = vadd.f32 %v10598, %v11208
        %v11561 = vadd.f32 %v10599, %v11213
        %v11562 = vadd.f32 %v10600, %v11216
        %v11563 = vadd.f32 %v10601, %v11221
        %v11564 = vadd.f32 %v10602, %v11224
        %v11565 = vadd.f32 %v10603, %v11229
        %v11566 = vadd.f32 %v10604, %v11232
        %v11567 = vadd.f32 %v10605, %v11237
        %v11568 = vadd.f32 %v10606, %v11240
        %v11569 = vadd.f32 %v10607, %v11245
        %v11570 = vadd.f32 %v10608, %v11248
        %v11571 = vadd.f32 %v10609, %v11253
        %v11572 = vadd.f32 %v10610, %v11256
        %v11573 = vadd.f32 %v10611, %v11261
        %v11574 = vadd.f32 %v10612, %v11264
        %v11575 = vadd.f32 %v10613, %v11269
        %v11576 = vadd.f32 %v10614, %v11272
        %v11577 = vadd.f32 %v10615, %v11277
        %v11578 = vadd.f32 %v10616, %v11280
        %v11579 = vadd.f32 %v10617, %v11285
        %v11580 = vadd.f32 %v10618, %v11288
        %v11581 = vadd.f32 %v10619, %v11293
        %v11582 = vadd.f32 %v10620, %v11296
        %v11583 = vadd.f32 %v10621, %v11301
        %v11584 = vadd.f32 %v10622, %v11304
        %v11585 = vadd.f32 %v10623, %v11309
        %v11586 = vadd.f32 %v10624, %v11312
        %v11587 = vadd.f32 %v10625, %v11317
        %v11588 = vadd.f32 %v10626, %v11320
        %v11589 = vadd.f32 %v10627, %v11325
        %v11590 = vadd.f32 %v10628, %v11328
        %v11591 = vadd.f32 %v10629, %v11333
        %v11592 = vadd.f32 %v10630, %v11336
        %v11593 = vadd.f32 %v10631, %v11341
        %v11594 = vadd.f32 %v10632, %v11344
        %v11595 = vadd.f32 %v10633, %v11349
        %v11596 = vadd.f32 %v10634, %v11352
        %v11597 = vadd.f32 %v10635, %v11357
        %v11598 = vadd.f32 %v10636, %v11360
        %v11599 = vadd.f32 %v10637, %v11365
        %v11600 = vadd.f32 %v10638, %v11368
        %v11601 = vadd.f32 %v10639, %v11373
        %v11602 = vadd.f32 %v10640, %v11376
        %v11603 = vadd.f32 %v10641, %v11381
        %v11604 = vadd.f32 %v10642, %v11384
        %v11605 = vadd.f32 %v10643, %v11389
        %v11606 = vadd.f32 %v10644, %v11392
        %v11607 = vadd.f32 %v10645, %v11397
        %v11608 = vadd.f32 %v10646, %v11400
        %v11609 = vadd.f32 %v10647, %v11405
        %v11610 = vadd.f32 %v10648, %v11408
        %v11611 = vadd.f32 %v10649, %v11413
        %v11612 = vadd.f32 %v10650, %v11416
        %v11613 = vadd.f32 %v10651, %v11421
        %v11614 = vadd.f32 %v10652, %v11424
        %v11615 = vadd.f32 %v10653, %v11429
        %v11616 = vadd.f32 %v10654, %v11432
        %v11617 = vadd.f32 %v10655, %v11437
        %v11618 = vadd.f32 %v10656, %v11440
        %v11619 = vadd.f32 %v10657, %v11445
        %v11620 = vadd.f32 %v10658, %v11448
        %v11621 = vadd.f32 %v10659, %v11453
        %v11622 = vadd.f32 %v10660, %v11456
        %v11623 = vadd.f32 %v10661, %v11461
        %v11624 = vadd.f32 %v10662, %v11464
        %v11625 = vadd.f32 %v10663, %v11469
        %v11626 = vadd.f32 %v10664, %v11472
        %v11627 = vadd.f32 %v10665, %v11477
        %v11628 = vadd.f32 %v10666, %v11480
        %v11629 = vadd.f32 %v10667, %v11485
        %v11630 = vadd.f32 %v10668, %v11488
        %v11631 = vadd.f32 %v10669, %v11493
        %v11632 = vadd.f32 %v10670, %v11496
        %v11633 = vadd.f32 %v10671, %v11501
        %v11634 = vadd.f32 %v10672, %v11504
        %v11635 = vld [vmem:[%s267] sm:$0x1]
        %v11637 = vlaneseq
        %v11638 = vshrl.u32 %v11637, 7
        %v11639 = vsub.s32 0, %v11638
        %v11640 = vrot.slane %v11635, %v11639
        %v11642 = vmul.f32 %v11507, %v11640
        %v11643 = vmul.f32 %v11508, %v11640
        %v11644 = vmul.f32 %v11509, %v11640
        %v11645 = vmul.f32 %v11510, %v11640
        %v11646 = vmul.f32 %v11511, %v11640
        %v11647 = vmul.f32 %v11512, %v11640
        %v11648 = vmul.f32 %v11513, %v11640
        %v11649 = vmul.f32 %v11514, %v11640
        %v11650 = vmul.f32 %v11515, %v11640
        %v11651 = vmul.f32 %v11516, %v11640
        %v11652 = vmul.f32 %v11517, %v11640
        %v11653 = vmul.f32 %v11518, %v11640
        %v11654 = vmul.f32 %v11519, %v11640
        %v11655 = vmul.f32 %v11520, %v11640
        %v11656 = vmul.f32 %v11521, %v11640
        %v11657 = vmul.f32 %v11522, %v11640
        %v11658 = vmul.f32 %v11523, %v11640
        %v11659 = vmul.f32 %v11524, %v11640
        %v11660 = vmul.f32 %v11525, %v11640
        %v11661 = vmul.f32 %v11526, %v11640
        %v11662 = vmul.f32 %v11527, %v11640
        %v11663 = vmul.f32 %v11528, %v11640
        %v11664 = vmul.f32 %v11529, %v11640
        %v11665 = vmul.f32 %v11530, %v11640
        %v11666 = vmul.f32 %v11531, %v11640
        %v11667 = vmul.f32 %v11532, %v11640
        %v11668 = vmul.f32 %v11533, %v11640
        %v11669 = vmul.f32 %v11534, %v11640
        %v11670 = vmul.f32 %v11535, %v11640
        %v11671 = vmul.f32 %v11536, %v11640
        %v11672 = vmul.f32 %v11537, %v11640
        %v11673 = vmul.f32 %v11538, %v11640
        %v11674 = vmul.f32 %v11539, %v11640
        %v11675 = vmul.f32 %v11540, %v11640
        %v11676 = vmul.f32 %v11541, %v11640
        %v11677 = vmul.f32 %v11542, %v11640
        %v11678 = vmul.f32 %v11543, %v11640
        %v11679 = vmul.f32 %v11544, %v11640
        %v11680 = vmul.f32 %v11545, %v11640
        %v11681 = vmul.f32 %v11546, %v11640
        %v11682 = vmul.f32 %v11547, %v11640
        %v11683 = vmul.f32 %v11548, %v11640
        %v11684 = vmul.f32 %v11549, %v11640
        %v11685 = vmul.f32 %v11550, %v11640
        %v11686 = vmul.f32 %v11551, %v11640
        %v11687 = vmul.f32 %v11552, %v11640
        %v11688 = vmul.f32 %v11553, %v11640
        %v11689 = vmul.f32 %v11554, %v11640
        %v11690 = vmul.f32 %v11555, %v11640
        %v11691 = vmul.f32 %v11556, %v11640
        %v11692 = vmul.f32 %v11557, %v11640
        %v11693 = vmul.f32 %v11558, %v11640
        %v11694 = vmul.f32 %v11559, %v11640
        %v11695 = vmul.f32 %v11560, %v11640
        %v11696 = vmul.f32 %v11561, %v11640
        %v11697 = vmul.f32 %v11562, %v11640
        %v11698 = vmul.f32 %v11563, %v11640
        %v11699 = vmul.f32 %v11564, %v11640
        %v11700 = vmul.f32 %v11565, %v11640
        %v11701 = vmul.f32 %v11566, %v11640
        %v11702 = vmul.f32 %v11567, %v11640
        %v11703 = vmul.f32 %v11568, %v11640
        %v11704 = vmul.f32 %v11569, %v11640
        %v11705 = vmul.f32 %v11570, %v11640
        %v11706 = vmul.f32 %v11571, %v11640
        %v11707 = vmul.f32 %v11572, %v11640
        %v11708 = vmul.f32 %v11573, %v11640
        %v11709 = vmul.f32 %v11574, %v11640
        %v11710 = vmul.f32 %v11575, %v11640
        %v11711 = vmul.f32 %v11576, %v11640
        %v11712 = vmul.f32 %v11577, %v11640
        %v11713 = vmul.f32 %v11578, %v11640
        %v11714 = vmul.f32 %v11579, %v11640
        %v11715 = vmul.f32 %v11580, %v11640
        %v11716 = vmul.f32 %v11581, %v11640
        %v11717 = vmul.f32 %v11582, %v11640
        %v11718 = vmul.f32 %v11583, %v11640
        %v11719 = vmul.f32 %v11584, %v11640
        %v11720 = vmul.f32 %v11585, %v11640
        %v11721 = vmul.f32 %v11586, %v11640
        %v11722 = vmul.f32 %v11587, %v11640
        %v11723 = vmul.f32 %v11588, %v11640
        %v11724 = vmul.f32 %v11589, %v11640
        %v11725 = vmul.f32 %v11590, %v11640
        %v11726 = vmul.f32 %v11591, %v11640
        %v11727 = vmul.f32 %v11592, %v11640
        %v11728 = vmul.f32 %v11593, %v11640
        %v11729 = vmul.f32 %v11594, %v11640
        %v11730 = vmul.f32 %v11595, %v11640
        %v11731 = vmul.f32 %v11596, %v11640
        %v11732 = vmul.f32 %v11597, %v11640
        %v11733 = vmul.f32 %v11598, %v11640
        %v11734 = vmul.f32 %v11599, %v11640
        %v11735 = vmul.f32 %v11600, %v11640
        %v11736 = vmul.f32 %v11601, %v11640
        %v11737 = vmul.f32 %v11602, %v11640
        %v11738 = vmul.f32 %v11603, %v11640
        %v11739 = vmul.f32 %v11604, %v11640
        %v11740 = vmul.f32 %v11605, %v11640
        %v11741 = vmul.f32 %v11606, %v11640
        %v11742 = vmul.f32 %v11607, %v11640
        %v11743 = vmul.f32 %v11608, %v11640
        %v11744 = vmul.f32 %v11609, %v11640
        %v11745 = vmul.f32 %v11610, %v11640
        %v11746 = vmul.f32 %v11611, %v11640
        %v11747 = vmul.f32 %v11612, %v11640
        %v11748 = vmul.f32 %v11613, %v11640
        %v11749 = vmul.f32 %v11614, %v11640
        %v11750 = vmul.f32 %v11615, %v11640
        %v11751 = vmul.f32 %v11616, %v11640
        %v11752 = vmul.f32 %v11617, %v11640
        %v11753 = vmul.f32 %v11618, %v11640
        %v11754 = vmul.f32 %v11619, %v11640
        %v11755 = vmul.f32 %v11620, %v11640
        %v11756 = vmul.f32 %v11621, %v11640
        %v11757 = vmul.f32 %v11622, %v11640
        %v11758 = vmul.f32 %v11623, %v11640
        %v11759 = vmul.f32 %v11624, %v11640
        %v11760 = vmul.f32 %v11625, %v11640
        %v11761 = vmul.f32 %v11626, %v11640
        %v11762 = vmul.f32 %v11627, %v11640
        %v11763 = vmul.f32 %v11628, %v11640
        %v11764 = vmul.f32 %v11629, %v11640
        %v11765 = vmul.f32 %v11630, %v11640
        %v11766 = vmul.f32 %v11631, %v11640
        %v11767 = vmul.f32 %v11632, %v11640
        %v11768 = vmul.f32 %v11633, %v11640
        %v11769 = vmul.f32 %v11634, %v11640
        %v11770 = vld [vmem:[%s270] sm:$0x1]
        %v11772 = vlaneseq
        %v11773 = vshrl.u32 %v11772, 7
        %v11774 = vsub.s32 0, %v11773
        %v11775 = vrot.slane %v11770, %v11774
        %v11777 = vadd.f32 %v11642, %v11775
        %v11778 = vadd.f32 %v11643, %v11775
        %v11779 = vadd.f32 %v11644, %v11775
        %v11780 = vadd.f32 %v11645, %v11775
        %v11781 = vadd.f32 %v11646, %v11775
        %v11782 = vadd.f32 %v11647, %v11775
        %v11783 = vadd.f32 %v11648, %v11775
        %v11784 = vadd.f32 %v11649, %v11775
        %v11785 = vadd.f32 %v11650, %v11775
        %v11786 = vadd.f32 %v11651, %v11775
        %v11787 = vadd.f32 %v11652, %v11775
        %v11788 = vadd.f32 %v11653, %v11775
        %v11789 = vadd.f32 %v11654, %v11775
        %v11790 = vadd.f32 %v11655, %v11775
        %v11791 = vadd.f32 %v11656, %v11775
        %v11792 = vadd.f32 %v11657, %v11775
        %v11793 = vadd.f32 %v11658, %v11775
        %v11794 = vadd.f32 %v11659, %v11775
        %v11795 = vadd.f32 %v11660, %v11775
        %v11796 = vadd.f32 %v11661, %v11775
        %v11797 = vadd.f32 %v11662, %v11775
        %v11798 = vadd.f32 %v11663, %v11775
        %v11799 = vadd.f32 %v11664, %v11775
        %v11800 = vadd.f32 %v11665, %v11775
        %v11801 = vadd.f32 %v11666, %v11775
        %v11802 = vadd.f32 %v11667, %v11775
        %v11803 = vadd.f32 %v11668, %v11775
        %v11804 = vadd.f32 %v11669, %v11775
        %v11805 = vadd.f32 %v11670, %v11775
        %v11806 = vadd.f32 %v11671, %v11775
        %v11807 = vadd.f32 %v11672, %v11775
        %v11808 = vadd.f32 %v11673, %v11775
        %v11809 = vadd.f32 %v11674, %v11775
        %v11810 = vadd.f32 %v11675, %v11775
        %v11811 = vadd.f32 %v11676, %v11775
        %v11812 = vadd.f32 %v11677, %v11775
        %v11813 = vadd.f32 %v11678, %v11775
        %v11814 = vadd.f32 %v11679, %v11775
        %v11815 = vadd.f32 %v11680, %v11775
        %v11816 = vadd.f32 %v11681, %v11775
        %v11817 = vadd.f32 %v11682, %v11775
        %v11818 = vadd.f32 %v11683, %v11775
        %v11819 = vadd.f32 %v11684, %v11775
        %v11820 = vadd.f32 %v11685, %v11775
        %v11821 = vadd.f32 %v11686, %v11775
        %v11822 = vadd.f32 %v11687, %v11775
        %v11823 = vadd.f32 %v11688, %v11775
        %v11824 = vadd.f32 %v11689, %v11775
        %v11825 = vadd.f32 %v11690, %v11775
        %v11826 = vadd.f32 %v11691, %v11775
        %v11827 = vadd.f32 %v11692, %v11775
        %v11828 = vadd.f32 %v11693, %v11775
        %v11829 = vadd.f32 %v11694, %v11775
        %v11830 = vadd.f32 %v11695, %v11775
        %v11831 = vadd.f32 %v11696, %v11775
        %v11832 = vadd.f32 %v11697, %v11775
        %v11833 = vadd.f32 %v11698, %v11775
        %v11834 = vadd.f32 %v11699, %v11775
        %v11835 = vadd.f32 %v11700, %v11775
        %v11836 = vadd.f32 %v11701, %v11775
        %v11837 = vadd.f32 %v11702, %v11775
        %v11838 = vadd.f32 %v11703, %v11775
        %v11839 = vadd.f32 %v11704, %v11775
        %v11840 = vadd.f32 %v11705, %v11775
        %v11841 = vadd.f32 %v11706, %v11775
        %v11842 = vadd.f32 %v11707, %v11775
        %v11843 = vadd.f32 %v11708, %v11775
        %v11844 = vadd.f32 %v11709, %v11775
        %v11845 = vadd.f32 %v11710, %v11775
        %v11846 = vadd.f32 %v11711, %v11775
        %v11847 = vadd.f32 %v11712, %v11775
        %v11848 = vadd.f32 %v11713, %v11775
        %v11849 = vadd.f32 %v11714, %v11775
        %v11850 = vadd.f32 %v11715, %v11775
        %v11851 = vadd.f32 %v11716, %v11775
        %v11852 = vadd.f32 %v11717, %v11775
        %v11853 = vadd.f32 %v11718, %v11775
        %v11854 = vadd.f32 %v11719, %v11775
        %v11855 = vadd.f32 %v11720, %v11775
        %v11856 = vadd.f32 %v11721, %v11775
        %v11857 = vadd.f32 %v11722, %v11775
        %v11858 = vadd.f32 %v11723, %v11775
        %v11859 = vadd.f32 %v11724, %v11775
        %v11860 = vadd.f32 %v11725, %v11775
        %v11861 = vadd.f32 %v11726, %v11775
        %v11862 = vadd.f32 %v11727, %v11775
        %v11863 = vadd.f32 %v11728, %v11775
        %v11864 = vadd.f32 %v11729, %v11775
        %v11865 = vadd.f32 %v11730, %v11775
        %v11866 = vadd.f32 %v11731, %v11775
        %v11867 = vadd.f32 %v11732, %v11775
        %v11868 = vadd.f32 %v11733, %v11775
        %v11869 = vadd.f32 %v11734, %v11775
        %v11870 = vadd.f32 %v11735, %v11775
        %v11871 = vadd.f32 %v11736, %v11775
        %v11872 = vadd.f32 %v11737, %v11775
        %v11873 = vadd.f32 %v11738, %v11775
        %v11874 = vadd.f32 %v11739, %v11775
        %v11875 = vadd.f32 %v11740, %v11775
        %v11876 = vadd.f32 %v11741, %v11775
        %v11877 = vadd.f32 %v11742, %v11775
        %v11878 = vadd.f32 %v11743, %v11775
        %v11879 = vadd.f32 %v11744, %v11775
        %v11880 = vadd.f32 %v11745, %v11775
        %v11881 = vadd.f32 %v11746, %v11775
        %v11882 = vadd.f32 %v11747, %v11775
        %v11883 = vadd.f32 %v11748, %v11775
        %v11884 = vadd.f32 %v11749, %v11775
        %v11885 = vadd.f32 %v11750, %v11775
        %v11886 = vadd.f32 %v11751, %v11775
        %v11887 = vadd.f32 %v11752, %v11775
        %v11888 = vadd.f32 %v11753, %v11775
        %v11889 = vadd.f32 %v11754, %v11775
        %v11890 = vadd.f32 %v11755, %v11775
        %v11891 = vadd.f32 %v11756, %v11775
        %v11892 = vadd.f32 %v11757, %v11775
        %v11893 = vadd.f32 %v11758, %v11775
        %v11894 = vadd.f32 %v11759, %v11775
        %v11895 = vadd.f32 %v11760, %v11775
        %v11896 = vadd.f32 %v11761, %v11775
        %v11897 = vadd.f32 %v11762, %v11775
        %v11898 = vadd.f32 %v11763, %v11775
        %v11899 = vadd.f32 %v11764, %v11775
        %v11900 = vadd.f32 %v11765, %v11775
        %v11901 = vadd.f32 %v11766, %v11775
        %v11902 = vadd.f32 %v11767, %v11775
        %v11903 = vadd.f32 %v11768, %v11775
        %v11904 = vadd.f32 %v11769, %v11775
        %11905 = vst [vmem:[%s253] sm:$0xff] %v11777
        %11906 = vst [vmem:[%s253 + $0x8] sm:$0xff] %v11778
        %11907 = vst [vmem:[%s253 + $0x10] sm:$0xff] %v11779
        %11908 = vst [vmem:[%s253 + $0x18] sm:$0xff] %v11780
        %11909 = vst [vmem:[%s253 + $0x20] sm:$0xff] %v11781
        %11910 = vst [vmem:[%s253 + $0x28] sm:$0xff] %v11782
        %11911 = vst [vmem:[%s253 + $0x30] sm:$0xff] %v11783
        %11912 = vst [vmem:[%s253 + $0x38] sm:$0xff] %v11784
        %11913 = vst [vmem:[%s253 + $0x40] sm:$0xff] %v11785
        %11914 = vst [vmem:[%s253 + $0x48] sm:$0xff] %v11786
        %11915 = vst [vmem:[%s253 + $0x50] sm:$0xff] %v11787
        %11916 = vst [vmem:[%s253 + $0x58] sm:$0xff] %v11788
        %11917 = vst [vmem:[%s253 + $0x60] sm:$0xff] %v11789
        %11918 = vst [vmem:[%s253 + $0x68] sm:$0xff] %v11790
        %11919 = vst [vmem:[%s253 + $0x70] sm:$0xff] %v11791
        %11920 = vst [vmem:[%s253 + $0x78] sm:$0xff] %v11792
        %11921 = vst [vmem:[%s253 + $0x80] sm:$0xff] %v11793
        %11922 = vst [vmem:[%s253 + $0x88] sm:$0xff] %v11794
        %11923 = vst [vmem:[%s253 + $0x90] sm:$0xff] %v11795
        %11924 = vst [vmem:[%s253 + $0x98] sm:$0xff] %v11796
        %11925 = vst [vmem:[%s253 + $0xa0] sm:$0xff] %v11797
        %11926 = vst [vmem:[%s253 + $0xa8] sm:$0xff] %v11798
        %11927 = vst [vmem:[%s253 + $0xb0] sm:$0xff] %v11799
        %11928 = vst [vmem:[%s253 + $0xb8] sm:$0xff] %v11800
        %11929 = vst [vmem:[%s253 + $0xc0] sm:$0xff] %v11801
        %11930 = vst [vmem:[%s253 + $0xc8] sm:$0xff] %v11802
        %11931 = vst [vmem:[%s253 + $0xd0] sm:$0xff] %v11803
        %11932 = vst [vmem:[%s253 + $0xd8] sm:$0xff] %v11804
        %11933 = vst [vmem:[%s253 + $0xe0] sm:$0xff] %v11805
        %11934 = vst [vmem:[%s253 + $0xe8] sm:$0xff] %v11806
        %11935 = vst [vmem:[%s253 + $0xf0] sm:$0xff] %v11807
        %11936 = vst [vmem:[%s253 + $0xf8] sm:$0xff] %v11808
        %11937 = vst [vmem:[%s253 + $0x100] sm:$0xff] %v11809
        %11938 = vst [vmem:[%s253 + $0x108] sm:$0xff] %v11810
        %11939 = vst [vmem:[%s253 + $0x110] sm:$0xff] %v11811
        %11940 = vst [vmem:[%s253 + $0x118] sm:$0xff] %v11812
        %11941 = vst [vmem:[%s253 + $0x120] sm:$0xff] %v11813
        %11942 = vst [vmem:[%s253 + $0x128] sm:$0xff] %v11814
        %11943 = vst [vmem:[%s253 + $0x130] sm:$0xff] %v11815
        %11944 = vst [vmem:[%s253 + $0x138] sm:$0xff] %v11816
        %11945 = vst [vmem:[%s253 + $0x140] sm:$0xff] %v11817
        %11946 = vst [vmem:[%s253 + $0x148] sm:$0xff] %v11818
        %11947 = vst [vmem:[%s253 + $0x150] sm:$0xff] %v11819
        %11948 = vst [vmem:[%s253 + $0x158] sm:$0xff] %v11820
        %11949 = vst [vmem:[%s253 + $0x160] sm:$0xff] %v11821
        %11950 = vst [vmem:[%s253 + $0x168] sm:$0xff] %v11822
        %11951 = vst [vmem:[%s253 + $0x170] sm:$0xff] %v11823
        %11952 = vst [vmem:[%s253 + $0x178] sm:$0xff] %v11824
        %11953 = vst [vmem:[%s253 + $0x180] sm:$0xff] %v11825
        %11954 = vst [vmem:[%s253 + $0x188] sm:$0xff] %v11826
        %11955 = vst [vmem:[%s253 + $0x190] sm:$0xff] %v11827
        %11956 = vst [vmem:[%s253 + $0x198] sm:$0xff] %v11828
        %11957 = vst [vmem:[%s253 + $0x1a0] sm:$0xff] %v11829
        %11958 = vst [vmem:[%s253 + $0x1a8] sm:$0xff] %v11830
        %11959 = vst [vmem:[%s253 + $0x1b0] sm:$0xff] %v11831
        %11960 = vst [vmem:[%s253 + $0x1b8] sm:$0xff] %v11832
        %11961 = vst [vmem:[%s253 + $0x1c0] sm:$0xff] %v11833
        %11962 = vst [vmem:[%s253 + $0x1c8] sm:$0xff] %v11834
        %11963 = vst [vmem:[%s253 + $0x1d0] sm:$0xff] %v11835
        %11964 = vst [vmem:[%s253 + $0x1d8] sm:$0xff] %v11836
        %11965 = vst [vmem:[%s253 + $0x1e0] sm:$0xff] %v11837
        %11966 = vst [vmem:[%s253 + $0x1e8] sm:$0xff] %v11838
        %11967 = vst [vmem:[%s253 + $0x1f0] sm:$0xff] %v11839
        %11968 = vst [vmem:[%s253 + $0x1f8] sm:$0xff] %v11840
        %11969 = vst [vmem:[%s253 + $0x200] sm:$0xff] %v11841
        %11970 = vst [vmem:[%s253 + $0x208] sm:$0xff] %v11842
        %11971 = vst [vmem:[%s253 + $0x210] sm:$0xff] %v11843
        %11972 = vst [vmem:[%s253 + $0x218] sm:$0xff] %v11844
        %11973 = vst [vmem:[%s253 + $0x220] sm:$0xff] %v11845
        %11974 = vst [vmem:[%s253 + $0x228] sm:$0xff] %v11846
        %11975 = vst [vmem:[%s253 + $0x230] sm:$0xff] %v11847
        %11976 = vst [vmem:[%s253 + $0x238] sm:$0xff] %v11848
        %11977 = vst [vmem:[%s253 + $0x240] sm:$0xff] %v11849
        %11978 = vst [vmem:[%s253 + $0x248] sm:$0xff] %v11850
        %11979 = vst [vmem:[%s253 + $0x250] sm:$0xff] %v11851
        %11980 = vst [vmem:[%s253 + $0x258] sm:$0xff] %v11852
        %11981 = vst [vmem:[%s253 + $0x260] sm:$0xff] %v11853
        %11982 = vst [vmem:[%s253 + $0x268] sm:$0xff] %v11854
        %11983 = vst [vmem:[%s253 + $0x270] sm:$0xff] %v11855
        %11984 = vst [vmem:[%s253 + $0x278] sm:$0xff] %v11856
        %11985 = vst [vmem:[%s253 + $0x280] sm:$0xff] %v11857
        %11986 = vst [vmem:[%s253 + $0x288] sm:$0xff] %v11858
        %11987 = vst [vmem:[%s253 + $0x290] sm:$0xff] %v11859
        %11988 = vst [vmem:[%s253 + $0x298] sm:$0xff] %v11860
        %11989 = vst [vmem:[%s253 + $0x2a0] sm:$0xff] %v11861
        %11990 = vst [vmem:[%s253 + $0x2a8] sm:$0xff] %v11862
        %11991 = vst [vmem:[%s253 + $0x2b0] sm:$0xff] %v11863
        %11992 = vst [vmem:[%s253 + $0x2b8] sm:$0xff] %v11864
        %11993 = vst [vmem:[%s253 + $0x2c0] sm:$0xff] %v11865
        %11994 = vst [vmem:[%s253 + $0x2c8] sm:$0xff] %v11866
        %11995 = vst [vmem:[%s253 + $0x2d0] sm:$0xff] %v11867
        %11996 = vst [vmem:[%s253 + $0x2d8] sm:$0xff] %v11868
        %11997 = vst [vmem:[%s253 + $0x2e0] sm:$0xff] %v11869
        %11998 = vst [vmem:[%s253 + $0x2e8] sm:$0xff] %v11870
        %11999 = vst [vmem:[%s253 + $0x2f0] sm:$0xff] %v11871
        %12000 = vst [vmem:[%s253 + $0x2f8] sm:$0xff] %v11872
        %12001 = vst [vmem:[%s253 + $0x300] sm:$0xff] %v11873
        %12002 = vst [vmem:[%s253 + $0x308] sm:$0xff] %v11874
        %12003 = vst [vmem:[%s253 + $0x310] sm:$0xff] %v11875
        %12004 = vst [vmem:[%s253 + $0x318] sm:$0xff] %v11876
        %12005 = vst [vmem:[%s253 + $0x320] sm:$0xff] %v11877
        %12006 = vst [vmem:[%s253 + $0x328] sm:$0xff] %v11878
        %12007 = vst [vmem:[%s253 + $0x330] sm:$0xff] %v11879
        %12008 = vst [vmem:[%s253 + $0x338] sm:$0xff] %v11880
        %12009 = vst [vmem:[%s253 + $0x340] sm:$0xff] %v11881
        %12010 = vst [vmem:[%s253 + $0x348] sm:$0xff] %v11882
        %12011 = vst [vmem:[%s253 + $0x350] sm:$0xff] %v11883
        %12012 = vst [vmem:[%s253 + $0x358] sm:$0xff] %v11884
        %12013 = vst [vmem:[%s253 + $0x360] sm:$0xff] %v11885
        %12014 = vst [vmem:[%s253 + $0x368] sm:$0xff] %v11886
        %12015 = vst [vmem:[%s253 + $0x370] sm:$0xff] %v11887
        %12016 = vst [vmem:[%s253 + $0x378] sm:$0xff] %v11888
        %12017 = vst [vmem:[%s253 + $0x380] sm:$0xff] %v11889
        %12018 = vst [vmem:[%s253 + $0x388] sm:$0xff] %v11890
        %12019 = vst [vmem:[%s253 + $0x390] sm:$0xff] %v11891
        %12020 = vst [vmem:[%s253 + $0x398] sm:$0xff] %v11892
        %12021 = vst [vmem:[%s253 + $0x3a0] sm:$0xff] %v11893
        %12022 = vst [vmem:[%s253 + $0x3a8] sm:$0xff] %v11894
        %12023 = vst [vmem:[%s253 + $0x3b0] sm:$0xff] %v11895
        %12024 = vst [vmem:[%s253 + $0x3b8] sm:$0xff] %v11896
        %12025 = vst [vmem:[%s253 + $0x3c0] sm:$0xff] %v11897
        %12026 = vst [vmem:[%s253 + $0x3c8] sm:$0xff] %v11898
        %12027 = vst [vmem:[%s253 + $0x3d0] sm:$0xff] %v11899
        %12028 = vst [vmem:[%s253 + $0x3d8] sm:$0xff] %v11900
        %12029 = vst [vmem:[%s253 + $0x3e0] sm:$0xff] %v11901
        %12030 = vst [vmem:[%s253 + $0x3e8] sm:$0xff] %v11902
        %12031 = vst [vmem:[%s253 + $0x3f0] sm:$0xff] %v11903
        %12032 = vst [vmem:[%s253 + $0x3f8] sm:$0xff] %v11904
        %s12033 = sand.u32 %s155, 1
        %s12034 = scalar_lea.sflag [#allocation4], %s12033
        %s12035 = sand.u32 %s155, 1
        %s12036 = smul.addr %s12035, 1024
        %s12037 = scalar_lea.vmem [#allocation3], %s12036
        // Predicated region
        $region37: #{tpu_custom_call.1} parent=35 // pred_check
          %p12038 = pneg %p165
        $region38: #{tpu_custom_call.1} parent=35 // pred_check_branch
          %12040 = sbr.rel (%p12038) target = $region40
        $region39: #{tpu_custom_call.1} parent=35 // pred_region
          %s12041 = smul.u32 128, %s24
          %s12043 = ssub.s32 16384, 16384
          %12044 = vsyncadd %s12034, %s12043
          %s12045 = sadd.s32 %s25, %s12041
          %s12046 = smul.addr %s23, 128
          %s12047 = sadd.s32 %s12045, %s12046
          %s12048 = smul.addr %s12047, 128
          %s12049 = scalar_lea.hbm %s4, %s12048
          %s12050 = sshll.u32 %s12037, 4
          %s12051 = int_to_ptr.vmem [resolvable:$true] %s12050
          %12056 = dma.vmem_to_hbm [thread:$0]  %s12051, 16384, %s12049, %s12034, 128, 128, 8
        $region40: #{tpu_custom_call.1} parent=35 // pred_fallthru
          _
      $region36: #{tpu_custom_call.1} parent=5 // pred_fallthru
        _
      %p12057 = scmp.le.s32.totalorder 2, %s13
      // Predicated region
      $region41: #{tpu_custom_call.1} parent=5 // pred_check
        %p12058 = pneg %p12057
      $region42: #{tpu_custom_call.1} parent=5 // pred_check_branch
        %12060 = sbr.rel (%p12058) target = $region44
      $region43: #{tpu_custom_call.1} parent=5 // pred_region
        %s12061 = ssub.s32 %s13, 2
        // Predicated region
        $region45: #{tpu_custom_call.1} parent=43 // pred_check
          %p12062 = pneg %p171
        $region46: #{tpu_custom_call.1} parent=43 // pred_check_branch
          %12064 = sbr.rel (%p12062) target = $region48
        $region47: #{tpu_custom_call.1} parent=43 // pred_region
          %s12065 = sand.u32 %s156, 1
          %s12066 = scalar_lea.sflag [#allocation4], %s12065
          %s12067 = sand.u32 %s156, 1
          %s12068 = smul.addr %s12067, 1024
          %s12069 = scalar_lea.vmem [#allocation3], %s12068
          %12070 = dma.done %s12066, 16384
        $region48: #{tpu_custom_call.1} parent=43 // pred_fallthru
          _
      $region44: #{tpu_custom_call.1} parent=5 // pred_fallthru
        _
    $region6: #{tpu_custom_call.1} parent=1 // loop_footer
      %s17 = sadd.s32 1, %s13
    $region7: #{tpu_custom_call.1} parent=1 // loop_footer_branch
      %12 = sbr.rel target = $region3
    $region8: #{tpu_custom_call.1} parent=1 // loop_exit
      _
    %12071 = vsyncpa [#allocation4], 1
    %s12072 = scalar_lea.sflag [#allocation4], 1
    %12073 = vsyncpa %s12072, 1

</llo_original>
